<compile_context>
chip_gen: v7x
topology: tpu7x:2x2x1
jax: 0.10.0
libtpu: 0.0.40
codegen_flags: <defaults>
</compile_context>

<pallas_src>
import math
import functools

import jax
import jax.numpy as jnp
from jax import lax
from jax.experimental import pallas as pl
from jax.experimental.pallas import tpu as pltpu


def _round_up(x, m):
    return (x + m - 1) // m * m


def _apply_activation(y, activation):
    a = activation.lower()
    if a == "relu":
        return jnp.maximum(y, 0.0)
    if a == "sigmoid":
        return jax.nn.sigmoid(y)
    if a == "tanh":
        return jnp.tanh(y)
    return y  # any other string -> identity (matches the PyTorch module)


# ----------------------------------------------------------------------------
# Fused kernel for one group of consecutive layers.
#   refs = (x_ref, *const_operands, o_ref)
#
#   mode == "fold":     x_ref is the raw (TB, 4 + num_other) input tile.
#                       First layer = sum_c onehot(idx_c) @ folded_c
#                                     + other @ w_other + b_first   (all f32).
#                       const operands: 4 folded tables, [w_other], b_first.
#   mode == "features": x_ref is a pre-concatenated (TB, num_inputs) tile;
#                       const operands start with w_first (f32), b_first.
#   mode == "act":      x_ref is a (TB, 1024) bf16 activation tile from the
#                       previous group; no first-layer operands.
#
#   Then n_rest (w_bf16, b_f32) pairs follow.  The last layer of the final
#   group is the output head (no activation, f32 store); all other layers are
#   hidden (activation in f32, then cast to bf16 for the next MXU pass).
# ----------------------------------------------------------------------------
def _mlp_group_kernel(*refs, mode, cat_sizes, num_other, n_rest,
                      last_is_output, activation):
    x_ref = refs[0]
    o_ref = refs[-1]
    ops = refs[1:-1]
    p = 0

    if mode == "act":
        t = x_ref[...]                                     # bf16 activations
    else:
        if mode == "fold":
            x = x_ref[...].astype(jnp.float32)             # (TB, 4 + num_other)
            tb = x.shape[0]
            y = None
            for ci, n_cat in enumerate(cat_sizes):
                ftab = ops[p][...]                          # (n_cat, OUT0) f32
                p += 1
                idx = x[:, ci:ci + 1].astype(jnp.int32)     # (TB, 1)
                iota = lax.broadcasted_iota(jnp.int32, (tb, n_cat), 1)
                onehot = jnp.where(idx == iota, 1.0, 0.0).astype(jnp.float32)
                part = jnp.dot(onehot, ftab,
                               preferred_element_type=jnp.float32)
                y = part if y is None else y + part
            if num_other > 0:
                w_other = ops[p][...]                       # (num_other, OUT0)
                p += 1
                other = x[:, len(cat_sizes):len(cat_sizes) + num_other]
                y = y + jnp.dot(other, w_other,
                                preferred_element_type=jnp.float32)
            b_first = ops[p][...]
            p += 1
            y = y + b_first
        else:  # "features": large-vocab fallback (gather done in the wrapper)
            x = x_ref[...].astype(jnp.float32)
            w_first = ops[p][...]
            p += 1
            b_first = ops[p][...]
            p += 1
            y = jnp.dot(x, w_first, preferred_element_type=jnp.float32) + b_first

        if last_is_output and n_rest == 0:
            t = y                                           # head: no activation
        else:
            t = _apply_activation(y, activation).astype(jnp.bfloat16)

    for li in range(n_rest):
        w = ops[p + 2 * li][...]                            # bf16 (K, N)
        b = ops[p + 2 * li + 1][...]                        # f32  (1, N)
        y = jnp.dot(t, w, preferred_element_type=jnp.float32) + b
        if last_is_output and li == n_rest - 1:
            t = y                                           # head: no activation
        else:
            t = _apply_activation(y, activation).astype(jnp.bfloat16)

    o_ref[...] = t.astype(o_ref.dtype)


# ----------------------------------------------------------------------------
# Module wrapper.
# ----------------------------------------------------------------------------
class NetworkPallas:
    HIDDEN = 1024            # fixed in the reference module
    OUT_PAD = 128            # lane-dense padding of the 1-wide output head
    FOLD_MAX_VOCAB = 1024    # fuse embedding lookups when vocabularies are small
    FOLD_MAX_BYTES = 8 << 20

    def __init__(self, num_careers, num_aircrafts, num_origin_airports,
                 num_dest_airports, num_other_columns, num_hidden_layers,
                 activation_function, key):
        self.cat_sizes = (num_careers, num_aircrafts, num_origin_airports,
                          num_dest_airports)
        self.embed_dims = tuple(math.ceil(n ** 0.25) for n in self.cat_sizes)
        (self.careers_vector_len, self.aircrafts_vector_len,
         self.origin_airport_vector_len, self.dest_airport_vector_len) = self.embed_dims
        self.num_other_columns = num_other_columns
        self.num_hidden_layers = num_hidden_layers
        self.activation_function = activation_function

        self.num_inputs = sum(self.embed_dims) + num_other_columns
        # Output width of the FIRST linear layer (hidden, or the padded head).
        self.out0 = self.HIDDEN if num_hidden_layers > 0 else self.OUT_PAD

        # ---------------- parameters -------------------------------------
        n_keys = 4 + 2 * (num_hidden_layers + 1)
        keys = jax.random.split(key, n_keys)
        ki = iter(range(n_keys))

        # nn.Embedding default init: N(0, 1)
        self.embed_tables = [
            jax.random.normal(keys[next(ki)], (n, d), jnp.float32)
            for n, d in zip(self.cat_sizes, self.embed_dims)
        ]

        # nn.Linear default init: U(-1/sqrt(fan_in), 1/sqrt(fan_in))
        def linear(kw, kb, fan_in, fan_out):
            bound = 1.0 / math.sqrt(fan_in)
            w = jax.random.uniform(kw, (fan_in, fan_out), jnp.float32,
                                   minval=-bound, maxval=bound)
            b = jax.random.uniform(kb, (fan_out,), jnp.float32,
                                   minval=-bound, maxval=bound)
            return w, b

        # First linear layer (kept in f32 for precision on raw features).
        out0_logical = self.HIDDEN if num_hidden_layers > 0 else 1
        w0, b0 = linear(keys[next(ki)], keys[next(ki)], self.num_inputs, out0_logical)
        if num_hidden_layers == 0:
            w0p = jnp.zeros((self.num_inputs, self.OUT_PAD), jnp.float32)
            w0 = w0p.at[:, :1].set(w0)
            b0p = jnp.zeros((self.OUT_PAD,), jnp.float32)
            b0 = b0p.at[:1].set(b0)
        self._w_first = w0.astype(jnp.float32)                 # (num_inputs, out0)
        self._b_first = b0.reshape(1, -1).astype(jnp.float32)  # (1, out0)

        # Fold the (tiny) embedding tables into the first layer (exact algebra):
        #   E_c[idx] @ W0_c == onehot(idx) @ (E_c @ W0_c)
        self._fold = (max(self.cat_sizes) <= self.FOLD_MAX_VOCAB and
                      sum(self.cat_sizes) * self.out0 * 4 <= self.FOLD_MAX_BYTES)
        self._folded_tables = []
        self._w_first_other = None
        if self._fold:
            off = 0
            for tbl, d in zip(self.embed_tables, self.embed_dims):
                self._folded_tables.append(
                    (tbl @ self._w_first[off:off + d]).astype(jnp.float32))
                off += d
            if num_other_columns > 0:
                self._w_first_other = self._w_first[off:off + num_other_columns]

        # Remaining layers: hidden layers 2..L (bf16) and the padded output head.
        self._rest = []  # list of (w_bf16 (K,N), b_f32 (1,N))
        for _ in range(1, num_hidden_layers):
            w, b = linear(keys[next(ki)], keys[next(ki)], self.HIDDEN, self.HIDDEN)
            self._rest.append((w.astype(jnp.bfloat16),
                               b.reshape(1, -1).astype(jnp.float32)))
        if num_hidden_layers > 0:
            w, b = linear(keys[next(ki)], keys[next(ki)], self.HIDDEN, 1)
            wp = jnp.zeros((self.HIDDEN, self.OUT_PAD), jnp.float32)
            wp = wp.at[:, :1].set(w).astype(jnp.bfloat16)
            bp = jnp.zeros((1, self.OUT_PAD), jnp.float32).at[0, :1].set(b)
            self._rest.append((wp, bp))

        # ---------------- hardware info ----------------------------------
        cap = 0
        try:
            info = pltpu.get_tpu_info()
            cap = int(getattr(info, "vmem_capacity_bytes", 0))
        except Exception:
            cap = 0
        if cap <= 0:
            cap = 64 << 20  # conservative fallback (v7x-sized)
        self._vmem_capacity = cap
        # v7x-like: small VMEM (64 MiB) and 2 TensorCores per chip.
        self._small_vmem = cap <= (80 << 20)

        self._single_buffer_ok = None  # probed lazily (pl.Buffered(1) support)

    # ------------------------------------------------------------------
    def _choose_tb(self, B):
        b8 = _round_up(max(B, 1), 8)
        if b8 <= 256:
            return b8
        cap = 512 if self._small_vmem else 1024
        best = None
        for tb in (128, 256, 512, 1024):
            if tb > cap:
                continue
            ntiles = -(-b8 // tb)
            if self._small_vmem and ntiles < 2:
                continue                     # keep both v7x TensorCores busy
            waste = ntiles * tb - B
            score = (waste, -tb)             # minimise padding, prefer larger tile
            if best is None or score < best[0]:
                best = (score, tb)
        return best[1] if best is not None else min(cap, b8)

    # ------------------------------------------------------------------
    def _first_group_weight_bytes(self):
        if self._fold:
            nb = sum(int(a.size) * 4 for a in self._folded_tables)
            if self._w_first_other is not None:
                nb += int(self._w_first_other.size) * 4
        else:
            nb = int(self._w_first.size) * 4
        nb += int(self._b_first.size) * 4
        return nb

    def _rest_bytes(self, i):
        w, b = self._rest[i]
        return int(w.size) * w.dtype.itemsize + int(b.size) * 4

    def _plan_groups(self, TB):
        """Split layers into VMEM-resident groups (weight streaming fallback
        for very deep nets on small-VMEM parts; one group in typical configs)."""
        act_io = 7 * TB * self.HIDDEN * 4          # I/O double-buffers + live f32/bf16
        budget = max(self._vmem_capacity - (8 << 20) - act_io, 8 << 20)
        factor = 2                                  # conservative (double-buffered)
        groups = [[]]                               # group 0 owns the first layer
        cur = self._first_group_weight_bytes() * factor
        for i in range(len(self._rest)):
            nb = self._rest_bytes(i) * factor
            if cur + nb > budget and (len(groups) == 1 or groups[-1]):
                groups.append([])
                cur = 0
            groups[-1].append(i)
            cur += nb
        return groups

    # ------------------------------------------------------------------
    def _call_group(self, x, rest_idx, TB, Bp, is_first_group, is_last_group):
        n_rest = len(rest_idx)
        mode = ("fold" if self._fold else "features") if is_first_group else "act"

        const_args = []
        if is_first_group:
            if self._fold:
                const_args.extend(self._folded_tables)
                if self._w_first_other is not None:
                    const_args.append(self._w_first_other)
            else:
                const_args.append(self._w_first)
            const_args.append(self._b_first)
        for i in rest_idx:
            w, b = self._rest[i]
            const_args.extend([w, b])

        in_width = x.shape[1]
        out_width = self.OUT_PAD if is_last_group else self.HIDDEN
        out_dtype = jnp.float32 if is_last_group else jnp.bfloat16
        out_isize = 4 if out_dtype == jnp.float32 else 2

        kernel = functools.partial(
            _mlp_group_kernel, mode=mode, cat_sizes=self.cat_sizes,
            num_other=self.num_other_columns, n_rest=n_rest,
            last_is_output=is_last_group, activation=self.activation_function)

        # VMEM budget: resident weights (x2 if double-buffered), streamed I/O
        # tiles, live intermediates, compiler margin -- capped at physical VMEM.
        weight_bytes = sum(int(a.size) * a.dtype.itemsize for a in const_args)
        io_bytes = 2 * (TB * in_width * x.dtype.itemsize + TB * out_width * out_isize)
        act_bytes = 3 * TB * self.HIDDEN * 4
        needed = 2 * weight_bytes + io_bytes + act_bytes + (8 << 20)
        cap = max(self._vmem_capacity - (8 << 20), 16 << 20)
        vmem_limit = int(min(max(needed, 32 << 20), cap))

        # Advisory cost estimate (helps XLA schedule surrounding ops).
        flops = 0
        if is_first_group:
            flops += 2 * Bp * self.num_inputs * self.out0
        for i in rest_idx:
            w, _ = self._rest[i]
            flops += 2 * Bp * w.shape[0] * w.shape[1]
        trans = 0
        if self.activation_function.lower() in ("sigmoid", "tanh"):
            n_act = (1 if (is_first_group and not (is_last_group and n_rest == 0)) else 0)
            n_act += max(n_rest - (1 if is_last_group else 0), 0)
            trans = Bp * self.HIDDEN * n_act
        bytes_accessed = (int(x.size) * x.dtype.itemsize
                          + Bp * out_width * out_isize + weight_bytes)
        cost = pl.CostEstimate(flops=int(flops), transcendentals=int(trans),
                               bytes_accessed=int(bytes_accessed))

        def build(single_buffer):
            cspecs = []
            for a in const_args:
                if single_buffer:
                    cspecs.append(pl.BlockSpec(a.shape, lambda i: (0, 0),
                                               pipeline_mode=pl.Buffered(1)))
                else:
                    cspecs.append(pl.BlockSpec(a.shape, lambda i: (0, 0)))
            return pl.pallas_call(
                kernel,
                out_shape=jax.ShapeDtypeStruct((Bp, out_width), out_dtype),
                grid=(Bp // TB,),
                in_specs=[pl.BlockSpec((TB, in_width), lambda i: (i, 0))] + cspecs,
                out_specs=pl.BlockSpec((TB, out_width), lambda i: (i, 0)),
                compiler_params=pltpu.CompilerParams(
                    dimension_semantics=("parallel",),
                    vmem_limit_bytes=vmem_limit),
                cost_estimate=cost,
            )

        # Prefer single-buffered resident weights (constant block index never
        # changes), falling back if this Pallas build rejects Buffered(1).
        if self._single_buffer_ok is not False:
            try:
                out = build(True)(x, *const_args)
                self._single_buffer_ok = True
                return out
            except Exception:
                self._single_buffer_ok = False
        return build(False)(x, *const_args)

    # ------------------------------------------------------------------
    def __call__(self, t_input):
        # t_input: (B, 4 + num_other_columns); first 4 columns are categorical
        # indices stored as floats (the PyTorch forward does .long()).
        B = t_input.shape[0]
        TB = self._choose_tb(B)
        Bp = _round_up(B, TB)

        if self._fold:
            x = t_input.astype(jnp.float32)     # raw input, fused lookups in-kernel
        else:
            # TODO(synk): large-vocab path keeps the gather/concat outside the
            # kernel (still no width-128 pad materialization).
            idx = t_input[:, :4].astype(jnp.int32)
            parts = [jnp.take(tbl, idx[:, c], axis=0)
                     for c, tbl in enumerate(self.embed_tables)]
            parts.append(t_input[:, 4:].astype(jnp.float32))
            x = jnp.concatenate(parts, axis=1)

        if Bp != B:
            x = jnp.pad(x, ((0, Bp - B), (0, 0)))   # batch-dim pad only (tiny)

        groups = self._plan_groups(TB)
        for gi, rest_idx in enumerate(groups):
            x = self._call_group(x, rest_idx, TB, Bp,
                                 is_first_group=(gi == 0),
                                 is_last_group=(gi == len(groups) - 1))
        return x[:B, :1]


# ----------------------------------------------------------------------------
# Pure-JAX reference of the same math (for a correctness check).
# ----------------------------------------------------------------------------
def _reference_forward(net, t_input):
    idx = t_input[:, :4].astype(jnp.int32)
    parts = [jnp.take(tbl, idx[:, c], axis=0)
             for c, tbl in enumerate(net.embed_tables)]
    parts.append(t_input[:, 4:].astype(jnp.float32))
    t = jnp.concatenate(parts, axis=1)
    y = t @ net._w_first + net._b_first
    if net.num_hidden_layers == 0:
        return y[:, :1]
    y = _apply_activation(y, net.activation_function).astype(jnp.bfloat16)
    for li, (w, b) in enumerate(net._rest):
        z = jnp.dot(y, w, preferred_element_type=jnp.float32) + b
        if li == len(net._rest) - 1:
            y = z
        else:
            y = _apply_activation(z, net.activation_function).astype(jnp.bfloat16)
    return y[:, :1]


if __name__ == "__main__":
    key = jax.random.PRNGKey(0)
    k_params, k_idx, k_other = jax.random.split(key, 3)

    num_careers = 10
    num_aircrafts = 7
    num_origin_airports = 12
    num_dest_airports = 12
    num_other_columns = 6
    num_hidden_layers = 2
    activation_function = "relu"
    batch = 8

    net = NetworkPallas(num_careers, num_aircrafts, num_origin_airports,
                        num_dest_airports, num_other_columns,
                        num_hidden_layers, activation_function, k_params)

    # Build input: 4 categorical index columns (as floats) + other float cols.
    maxes = jnp.array([num_careers, num_aircrafts, num_origin_airports,
                       num_dest_airports], dtype=jnp.int32)
    idx_cols = jax.random.randint(k_idx, (batch, 4), 0, maxes).astype(jnp.float32)
    other_cols = jax.random.normal(k_other, (batch, num_other_columns), jnp.float32)
    t_input = jnp.concatenate([idx_cols, other_cols], axis=1)   # (8, 10)

    out = jax.block_until_ready(net(t_input))
    assert out.shape == (batch, 1)

    ref = jax.block_until_ready(_reference_forward(net, t_input))
    max_err = float(jnp.max(jnp.abs(out - ref)))
    assert max_err < 5e-2, f"mismatch vs reference: {max_err}"
    print("KERNEL_OK")
</pallas_src>

<mosaic_0001>
module attributes {stable_mosaic.version = 11 : i64} {
  func.func @_mlp_group_kernel(%arg0: i32, %arg1: memref<8x10xf32, #tpu.memory_space<vmem>>, %arg2: memref<10x1024xf32, #tpu.memory_space<vmem>>, %arg3: memref<7x1024xf32, #tpu.memory_space<vmem>>, %arg4: memref<12x1024xf32, #tpu.memory_space<vmem>>, %arg5: memref<12x1024xf32, #tpu.memory_space<vmem>>, %arg6: memref<6x1024xf32, #tpu.memory_space<vmem>>, %arg7: memref<1x1024xf32, #tpu.memory_space<vmem>>, %arg8: memref<1024x1024xbf16, #tpu.memory_space<vmem>>, %arg9: memref<1x1024xf32, #tpu.memory_space<vmem>>, %arg10: memref<1024x128xbf16, #tpu.memory_space<vmem>>, %arg11: memref<1x128xf32, #tpu.memory_space<vmem>>, %arg12: memref<8x128xf32, #tpu.memory_space<vmem>>) attributes {dimension_semantics = [#tpu.dimension_semantics<parallel>], iteration_bounds = array<i64: 1>, scalar_prefetch = 0 : i64, scratch_operands = 0 : i64, tpu.core_type = #tpu.core_type<tc>, window_params = [{transform_indices = @transform_0, window_bounds = array<i64: 8, 10>}, {pipeline_mode = #tpu.pipeline_mode<synchronous>, transform_indices = @transform_1, window_bounds = array<i64: 10, 1024>}, {pipeline_mode = #tpu.pipeline_mode<synchronous>, transform_indices = @transform_2, window_bounds = array<i64: 7, 1024>}, {pipeline_mode = #tpu.pipeline_mode<synchronous>, transform_indices = @transform_3, window_bounds = array<i64: 12, 1024>}, {pipeline_mode = #tpu.pipeline_mode<synchronous>, transform_indices = @transform_4, window_bounds = array<i64: 12, 1024>}, {pipeline_mode = #tpu.pipeline_mode<synchronous>, transform_indices = @transform_5, window_bounds = array<i64: 6, 1024>}, {pipeline_mode = #tpu.pipeline_mode<synchronous>, transform_indices = @transform_6, window_bounds = array<i64: 1, 1024>}, {pipeline_mode = #tpu.pipeline_mode<synchronous>, transform_indices = @transform_7, window_bounds = array<i64: 1024, 1024>}, {pipeline_mode = #tpu.pipeline_mode<synchronous>, transform_indices = @transform_8, window_bounds = array<i64: 1, 1024>}, {pipeline_mode = #tpu.pipeline_mode<synchronous>, transform_indices = @transform_9, window_bounds = array<i64: 1024, 128>}, {pipeline_mode = #tpu.pipeline_mode<synchronous>, transform_indices = @transform_10, window_bounds = array<i64: 1, 128>}, {transform_indices = @transform_11, window_bounds = array<i64: 8, 128>}]} {
    %c0 = arith.constant 0 : index
    %c0_0 = arith.constant 0 : index
    %0 = vector.load %arg1[%c0, %c0_0] : memref<8x10xf32, #tpu.memory_space<vmem>>, vector<8x10xf32>
    %c0_1 = arith.constant 0 : index
    %c0_2 = arith.constant 0 : index
    %1 = vector.load %arg2[%c0_1, %c0_2] : memref<10x1024xf32, #tpu.memory_space<vmem>>, vector<10x1024xf32>
    %2 = vector.extract_strided_slice %0 {offsets = [0, 0], sizes = [8, 1], strides = [1, 1]} : vector<8x10xf32> to vector<8x1xf32>
    %3 = arith.fptosi %2 : vector<8x1xf32> to vector<8x1xi32>
    %4 = tpu.iota {dimensions = array<i32: 1>} : vector<8x10xi32>
    %5 = vector.broadcast %3 : vector<8x1xi32> to vector<8x10xi32>
    %6 = arith.cmpi eq, %5, %4 : vector<8x10xi32>
    %cst = arith.constant 1.000000e+00 : f32
    %cst_3 = arith.constant 0.000000e+00 : f32
    %7 = vector.broadcast %cst : f32 to vector<8x10xf32>
    %8 = vector.broadcast %cst_3 : f32 to vector<8x10xf32>
    %9 = arith.select %6, %7, %8 : vector<8x10xi1>, vector<8x10xf32>
    %cst_4 = arith.constant dense<0.000000e+00> : vector<8x1024xf32>
    %10 = tpu.matmul %9, %1, %cst_4 {dimension_numbers = #tpu.dot_dimension_numbers<[1], [0], [0], [1], [0, 0, 1, 1], [], []>} : vector<8x10xf32>, vector<10x1024xf32>, vector<8x1024xf32> -> vector<8x1024xf32>
    %c0_5 = arith.constant 0 : index
    %c0_6 = arith.constant 0 : index
    %11 = vector.load %arg3[%c0_5, %c0_6] : memref<7x1024xf32, #tpu.memory_space<vmem>>, vector<7x1024xf32>
    %12 = vector.extract_strided_slice %0 {offsets = [0, 1], sizes = [8, 1], strides = [1, 1]} : vector<8x10xf32> to vector<8x1xf32>
    %13 = arith.fptosi %12 : vector<8x1xf32> to vector<8x1xi32>
    %14 = tpu.iota {dimensions = array<i32: 1>} : vector<8x7xi32>
    %15 = vector.broadcast %13 : vector<8x1xi32> to vector<8x7xi32>
    %16 = arith.cmpi eq, %15, %14 : vector<8x7xi32>
    %cst_7 = arith.constant 1.000000e+00 : f32
    %cst_8 = arith.constant 0.000000e+00 : f32
    %17 = vector.broadcast %cst_7 : f32 to vector<8x7xf32>
    %18 = vector.broadcast %cst_8 : f32 to vector<8x7xf32>
    %19 = arith.select %16, %17, %18 : vector<8x7xi1>, vector<8x7xf32>
    %cst_9 = arith.constant dense<0.000000e+00> : vector<8x1024xf32>
    %20 = tpu.matmul %19, %11, %cst_9 {dimension_numbers = #tpu.dot_dimension_numbers<[1], [0], [0], [1], [0, 0, 1, 1], [], []>} : vector<8x7xf32>, vector<7x1024xf32>, vector<8x1024xf32> -> vector<8x1024xf32>
    %21 = arith.addf %10, %20 : vector<8x1024xf32>
    %c0_10 = arith.constant 0 : index
    %c0_11 = arith.constant 0 : index
    %22 = vector.load %arg4[%c0_10, %c0_11] : memref<12x1024xf32, #tpu.memory_space<vmem>>, vector<12x1024xf32>
    %23 = vector.extract_strided_slice %0 {offsets = [0, 2], sizes = [8, 1], strides = [1, 1]} : vector<8x10xf32> to vector<8x1xf32>
    %24 = arith.fptosi %23 : vector<8x1xf32> to vector<8x1xi32>
    %25 = tpu.iota {dimensions = array<i32: 1>} : vector<8x12xi32>
    %26 = vector.broadcast %24 : vector<8x1xi32> to vector<8x12xi32>
    %27 = arith.cmpi eq, %26, %25 : vector<8x12xi32>
    %cst_12 = arith.constant 1.000000e+00 : f32
    %cst_13 = arith.constant 0.000000e+00 : f32
    %28 = vector.broadcast %cst_12 : f32 to vector<8x12xf32>
    %29 = vector.broadcast %cst_13 : f32 to vector<8x12xf32>
    %30 = arith.select %27, %28, %29 : vector<8x12xi1>, vector<8x12xf32>
    %cst_14 = arith.constant dense<0.000000e+00> : vector<8x1024xf32>
    %31 = tpu.matmul %30, %22, %cst_14 {dimension_numbers = #tpu.dot_dimension_numbers<[1], [0], [0], [1], [0, 0, 1, 1], [], []>} : vector<8x12xf32>, vector<12x1024xf32>, vector<8x1024xf32> -> vector<8x1024xf32>
    %32 = arith.addf %21, %31 : vector<8x1024xf32>
    %c0_15 = arith.constant 0 : index
    %c0_16 = arith.constant 0 : index
    %33 = vector.load %arg5[%c0_15, %c0_16] : memref<12x1024xf32, #tpu.memory_space<vmem>>, vector<12x1024xf32>
    %34 = vector.extract_strided_slice %0 {offsets = [0, 3], sizes = [8, 1], strides = [1, 1]} : vector<8x10xf32> to vector<8x1xf32>
    %35 = arith.fptosi %34 : vector<8x1xf32> to vector<8x1xi32>
    %36 = tpu.iota {dimensions = array<i32: 1>} : vector<8x12xi32>
    %37 = vector.broadcast %35 : vector<8x1xi32> to vector<8x12xi32>
    %38 = arith.cmpi eq, %37, %36 : vector<8x12xi32>
    %cst_17 = arith.constant 1.000000e+00 : f32
    %cst_18 = arith.constant 0.000000e+00 : f32
    %39 = vector.broadcast %cst_17 : f32 to vector<8x12xf32>
    %40 = vector.broadcast %cst_18 : f32 to vector<8x12xf32>
    %41 = arith.select %38, %39, %40 : vector<8x12xi1>, vector<8x12xf32>
    %cst_19 = arith.constant dense<0.000000e+00> : vector<8x1024xf32>
    %42 = tpu.matmul %41, %33, %cst_19 {dimension_numbers = #tpu.dot_dimension_numbers<[1], [0], [0], [1], [0, 0, 1, 1], [], []>} : vector<8x12xf32>, vector<12x1024xf32>, vector<8x1024xf32> -> vector<8x1024xf32>
    %43 = arith.addf %32, %42 : vector<8x1024xf32>
    %c0_20 = arith.constant 0 : index
    %c0_21 = arith.constant 0 : index
    %44 = vector.load %arg6[%c0_20, %c0_21] : memref<6x1024xf32, #tpu.memory_space<vmem>>, vector<6x1024xf32>
    %45 = vector.extract_strided_slice %0 {offsets = [0, 4], sizes = [8, 6], strides = [1, 1]} : vector<8x10xf32> to vector<8x6xf32>
    %cst_22 = arith.constant dense<0.000000e+00> : vector<8x1024xf32>
    %46 = tpu.matmul %45, %44, %cst_22 {dimension_numbers = #tpu.dot_dimension_numbers<[1], [0], [0], [1], [0, 0, 1, 1], [], []>} : vector<8x6xf32>, vector<6x1024xf32>, vector<8x1024xf32> -> vector<8x1024xf32>
    %47 = arith.addf %43, %46 : vector<8x1024xf32>
    %c0_23 = arith.constant 0 : index
    %c0_24 = arith.constant 0 : index
    %48 = vector.load %arg7[%c0_23, %c0_24] : memref<1x1024xf32, #tpu.memory_space<vmem>>, vector<1x1024xf32>
    %49 = vector.broadcast %48 : vector<1x1024xf32> to vector<8x1024xf32>
    %50 = arith.addf %47, %49 : vector<8x1024xf32>
    %cst_25 = arith.constant 0.000000e+00 : f32
    %51 = vector.broadcast %cst_25 : f32 to vector<8x1024xf32>
    %52 = arith.maximumf %50, %51 : vector<8x1024xf32>
    %53 = arith.truncf %52 : vector<8x1024xf32> to vector<8x1024xbf16>
    %c0_26 = arith.constant 0 : index
    %c0_27 = arith.constant 0 : index
    %54 = vector.load %arg8[%c0_26, %c0_27] : memref<1024x1024xbf16, #tpu.memory_space<vmem>>, vector<1024x1024xbf16>
    %c0_28 = arith.constant 0 : index
    %c0_29 = arith.constant 0 : index
    %55 = vector.load %arg9[%c0_28, %c0_29] : memref<1x1024xf32, #tpu.memory_space<vmem>>, vector<1x1024xf32>
    %cst_30 = arith.constant dense<0.000000e+00> : vector<8x1024xf32>
    %56 = tpu.matmul %53, %54, %cst_30 {dimension_numbers = #tpu.dot_dimension_numbers<[1], [0], [0], [1], [0, 0, 1, 1], [], []>} : vector<8x1024xbf16>, vector<1024x1024xbf16>, vector<8x1024xf32> -> vector<8x1024xf32>
    %57 = vector.broadcast %55 : vector<1x1024xf32> to vector<8x1024xf32>
    %58 = arith.addf %56, %57 : vector<8x1024xf32>
    %cst_31 = arith.constant 0.000000e+00 : f32
    %59 = vector.broadcast %cst_31 : f32 to vector<8x1024xf32>
    %60 = arith.maximumf %58, %59 : vector<8x1024xf32>
    %61 = arith.truncf %60 : vector<8x1024xf32> to vector<8x1024xbf16>
    %c0_32 = arith.constant 0 : index
    %c0_33 = arith.constant 0 : index
    %62 = vector.load %arg10[%c0_32, %c0_33] : memref<1024x128xbf16, #tpu.memory_space<vmem>>, vector<1024x128xbf16>
    %c0_34 = arith.constant 0 : index
    %c0_35 = arith.constant 0 : index
    %63 = vector.load %arg11[%c0_34, %c0_35] : memref<1x128xf32, #tpu.memory_space<vmem>>, vector<1x128xf32>
    %cst_36 = arith.constant dense<0.000000e+00> : vector<8x128xf32>
    %64 = tpu.matmul %61, %62, %cst_36 {dimension_numbers = #tpu.dot_dimension_numbers<[1], [0], [0], [1], [0, 0, 1, 1], [], []>} : vector<8x1024xbf16>, vector<1024x128xbf16>, vector<8x128xf32> -> vector<8x128xf32>
    %65 = vector.broadcast %63 : vector<1x128xf32> to vector<8x128xf32>
    %66 = arith.addf %64, %65 : vector<8x128xf32>
    %c0_37 = arith.constant 0 : index
    %c0_38 = arith.constant 0 : index
    %67 = vector.load %arg12[%c0_37, %c0_38] : memref<8x128xf32, #tpu.memory_space<vmem>>, vector<8x128xf32>
    tpu.vector_store %arg12[%c0_37, %c0_38], %66 {strides = array<i32>} : memref<8x128xf32, #tpu.memory_space<vmem>>, vector<8x128xf32>,
    return
  }
  func.func @transform_0(%arg0: i32) -> (i32, i32) {
    %c0_i32 = arith.constant 0 : i32
    %c0_i32_0 = arith.constant 0 : i32
    return %arg0, %c0_i32 : i32, i32
  }
  func.func @transform_1(%arg0: i32) -> (i32, i32) {
    %c0_i32 = arith.constant 0 : i32
    %c0_i32_0 = arith.constant 0 : i32
    %c0_i32_1 = arith.constant 0 : i32
    return %c0_i32, %c0_i32_0 : i32, i32
  }
  func.func @transform_2(%arg0: i32) -> (i32, i32) {
    %c0_i32 = arith.constant 0 : i32
    %c0_i32_0 = arith.constant 0 : i32
    %c0_i32_1 = arith.constant 0 : i32
    return %c0_i32, %c0_i32_0 : i32, i32
  }
  func.func @transform_3(%arg0: i32) -> (i32, i32) {
    %c0_i32 = arith.constant 0 : i32
    %c0_i32_0 = arith.constant 0 : i32
    %c0_i32_1 = arith.constant 0 : i32
    return %c0_i32, %c0_i32_0 : i32, i32
  }
  func.func @transform_4(%arg0: i32) -> (i32, i32) {
    %c0_i32 = arith.constant 0 : i32
    %c0_i32_0 = arith.constant 0 : i32
    %c0_i32_1 = arith.constant 0 : i32
    return %c0_i32, %c0_i32_0 : i32, i32
  }
  func.func @transform_5(%arg0: i32) -> (i32, i32) {
    %c0_i32 = arith.constant 0 : i32
    %c0_i32_0 = arith.constant 0 : i32
    %c0_i32_1 = arith.constant 0 : i32
    return %c0_i32, %c0_i32_0 : i32, i32
  }
  func.func @transform_6(%arg0: i32) -> (i32, i32) {
    %c0_i32 = arith.constant 0 : i32
    %c0_i32_0 = arith.constant 0 : i32
    %c0_i32_1 = arith.constant 0 : i32
    return %c0_i32, %c0_i32_0 : i32, i32
  }
  func.func @transform_7(%arg0: i32) -> (i32, i32) {
    %c0_i32 = arith.constant 0 : i32
    %c0_i32_0 = arith.constant 0 : i32
    %c0_i32_1 = arith.constant 0 : i32
    return %c0_i32, %c0_i32_0 : i32, i32
  }
  func.func @transform_8(%arg0: i32) -> (i32, i32) {
    %c0_i32 = arith.constant 0 : i32
    %c0_i32_0 = arith.constant 0 : i32
    %c0_i32_1 = arith.constant 0 : i32
    return %c0_i32, %c0_i32_0 : i32, i32
  }
  func.func @transform_9(%arg0: i32) -> (i32, i32) {
    %c0_i32 = arith.constant 0 : i32
    %c0_i32_0 = arith.constant 0 : i32
    %c0_i32_1 = arith.constant 0 : i32
    return %c0_i32, %c0_i32_0 : i32, i32
  }
  func.func @transform_10(%arg0: i32) -> (i32, i32) {
    %c0_i32 = arith.constant 0 : i32
    %c0_i32_0 = arith.constant 0 : i32
    %c0_i32_1 = arith.constant 0 : i32
    return %c0_i32, %c0_i32_0 : i32, i32
  }
  func.func @transform_11(%arg0: i32) -> (i32, i32) {
    %c0_i32 = arith.constant 0 : i32
    %c0_i32_0 = arith.constant 0 : i32
    return %arg0, %c0_i32 : i32, i32
  }
}

module attributes {stable_mosaic.version = 11 : i64} {
  func.func @_mlp_group_kernel(%arg0: i32, %arg1: memref<8x10xf32, #tpu.memory_space<vmem>>, %arg2: memref<10x1024xf32, #tpu.memory_space<vmem>>, %arg3: memref<7x1024xf32, #tpu.memory_space<vmem>>, %arg4: memref<12x1024xf32, #tpu.memory_space<vmem>>, %arg5: memref<12x1024xf32, #tpu.memory_space<vmem>>, %arg6: memref<6x1024xf32, #tpu.memory_space<vmem>>, %arg7: memref<1x1024xf32, #tpu.memory_space<vmem>>, %arg8: memref<1024x1024xbf16, #tpu.memory_space<vmem>>, %arg9: memref<1x1024xf32, #tpu.memory_space<vmem>>, %arg10: memref<1024x128xbf16, #tpu.memory_space<vmem>>, %arg11: memref<1x128xf32, #tpu.memory_space<vmem>>, %arg12: memref<8x128xf32, #tpu.memory_space<vmem>>) attributes {dimension_semantics = [#tpu.dimension_semantics<parallel>], iteration_bounds = array<i64: 1>, scalar_prefetch = 0 : i64, scratch_operands = 0 : i64, tpu.core_type = #tpu.core_type<tc>, window_params = [{transform_indices = @transform_0, window_bounds = array<i64: 8, 10>}, {pipeline_mode = #tpu.pipeline_mode<synchronous>, transform_indices = @transform_1, window_bounds = array<i64: 10, 1024>}, {pipeline_mode = #tpu.pipeline_mode<synchronous>, transform_indices = @transform_2, window_bounds = array<i64: 7, 1024>}, {pipeline_mode = #tpu.pipeline_mode<synchronous>, transform_indices = @transform_3, window_bounds = array<i64: 12, 1024>}, {pipeline_mode = #tpu.pipeline_mode<synchronous>, transform_indices = @transform_4, window_bounds = array<i64: 12, 1024>}, {pipeline_mode = #tpu.pipeline_mode<synchronous>, transform_indices = @transform_5, window_bounds = array<i64: 6, 1024>}, {pipeline_mode = #tpu.pipeline_mode<synchronous>, transform_indices = @transform_6, window_bounds = array<i64: 1, 1024>}, {pipeline_mode = #tpu.pipeline_mode<synchronous>, transform_indices = @transform_7, window_bounds = array<i64: 1024, 1024>}, {pipeline_mode = #tpu.pipeline_mode<synchronous>, transform_indices = @transform_8, window_bounds = array<i64: 1, 1024>}, {pipeline_mode = #tpu.pipeline_mode<synchronous>, transform_indices = @transform_9, window_bounds = array<i64: 1024, 128>}, {pipeline_mode = #tpu.pipeline_mode<synchronous>, transform_indices = @transform_10, window_bounds = array<i64: 1, 128>}, {transform_indices = @transform_11, window_bounds = array<i64: 8, 128>}]} {
    %c0 = arith.constant 0 : index
    %c0_0 = arith.constant 0 : index
    %0 = vector.load %arg1[%c0, %c0_0] : memref<8x10xf32, #tpu.memory_space<vmem>>, vector<8x10xf32>
    %c0_1 = arith.constant 0 : index
    %c0_2 = arith.constant 0 : index
    %1 = vector.load %arg2[%c0_1, %c0_2] : memref<10x1024xf32, #tpu.memory_space<vmem>>, vector<10x1024xf32>
    %2 = vector.extract_strided_slice %0 {offsets = [0, 0], sizes = [8, 1], strides = [1, 1]} : vector<8x10xf32> to vector<8x1xf32>
    %3 = arith.fptosi %2 : vector<8x1xf32> to vector<8x1xi32>
    %4 = tpu.iota {dimensions = array<i32: 1>} : vector<8x10xi32>
    %5 = vector.broadcast %3 : vector<8x1xi32> to vector<8x10xi32>
    %6 = arith.cmpi eq, %5, %4 : vector<8x10xi32>
    %cst = arith.constant 1.000000e+00 : f32
    %cst_3 = arith.constant 0.000000e+00 : f32
    %7 = vector.broadcast %cst : f32 to vector<8x10xf32>
    %8 = vector.broadcast %cst_3 : f32 to vector<8x10xf32>
    %9 = arith.select %6, %7, %8 : vector<8x10xi1>, vector<8x10xf32>
    %cst_4 = arith.constant dense<0.000000e+00> : vector<8x1024xf32>
    %10 = tpu.matmul %9, %1, %cst_4 {dimension_numbers = #tpu.dot_dimension_numbers<[1], [0], [0], [1], [0, 0, 1, 1], [], []>} : vector<8x10xf32>, vector<10x1024xf32>, vector<8x1024xf32> -> vector<8x1024xf32>
    %c0_5 = arith.constant 0 : index
    %c0_6 = arith.constant 0 : index
    %11 = vector.load %arg3[%c0_5, %c0_6] : memref<7x1024xf32, #tpu.memory_space<vmem>>, vector<7x1024xf32>
    %12 = vector.extract_strided_slice %0 {offsets = [0, 1], sizes = [8, 1], strides = [1, 1]} : vector<8x10xf32> to vector<8x1xf32>
    %13 = arith.fptosi %12 : vector<8x1xf32> to vector<8x1xi32>
    %14 = tpu.iota {dimensions = array<i32: 1>} : vector<8x7xi32>
    %15 = vector.broadcast %13 : vector<8x1xi32> to vector<8x7xi32>
    %16 = arith.cmpi eq, %15, %14 : vector<8x7xi32>
    %cst_7 = arith.constant 1.000000e+00 : f32
    %cst_8 = arith.constant 0.000000e+00 : f32
    %17 = vector.broadcast %cst_7 : f32 to vector<8x7xf32>
    %18 = vector.broadcast %cst_8 : f32 to vector<8x7xf32>
    %19 = arith.select %16, %17, %18 : vector<8x7xi1>, vector<8x7xf32>
    %cst_9 = arith.constant dense<0.000000e+00> : vector<8x1024xf32>
    %20 = tpu.matmul %19, %11, %cst_9 {dimension_numbers = #tpu.dot_dimension_numbers<[1], [0], [0], [1], [0, 0, 1, 1], [], []>} : vector<8x7xf32>, vector<7x1024xf32>, vector<8x1024xf32> -> vector<8x1024xf32>
    %21 = arith.addf %10, %20 : vector<8x1024xf32>
    %c0_10 = arith.constant 0 : index
    %c0_11 = arith.constant 0 : index
    %22 = vector.load %arg4[%c0_10, %c0_11] : memref<12x1024xf32, #tpu.memory_space<vmem>>, vector<12x1024xf32>
    %23 = vector.extract_strided_slice %0 {offsets = [0, 2], sizes = [8, 1], strides = [1, 1]} : vector<8x10xf32> to vector<8x1xf32>
    %24 = arith.fptosi %23 : vector<8x1xf32> to vector<8x1xi32>
    %25 = tpu.iota {dimensions = array<i32: 1>} : vector<8x12xi32>
    %26 = vector.broadcast %24 : vector<8x1xi32> to vector<8x12xi32>
    %27 = arith.cmpi eq, %26, %25 : vector<8x12xi32>
    %cst_12 = arith.constant 1.000000e+00 : f32
    %cst_13 = arith.constant 0.000000e+00 : f32
    %28 = vector.broadcast %cst_12 : f32 to vector<8x12xf32>
    %29 = vector.broadcast %cst_13 : f32 to vector<8x12xf32>
    %30 = arith.select %27, %28, %29 : vector<8x12xi1>, vector<8x12xf32>
    %cst_14 = arith.constant dense<0.000000e+00> : vector<8x1024xf32>
    %31 = tpu.matmul %30, %22, %cst_14 {dimension_numbers = #tpu.dot_dimension_numbers<[1], [0], [0], [1], [0, 0, 1, 1], [], []>} : vector<8x12xf32>, vector<12x1024xf32>, vector<8x1024xf32> -> vector<8x1024xf32>
    %32 = arith.addf %21, %31 : vector<8x1024xf32>
    %c0_15 = arith.constant 0 : index
    %c0_16 = arith.constant 0 : index
    %33 = vector.load %arg5[%c0_15, %c0_16] : memref<12x1024xf32, #tpu.memory_space<vmem>>, vector<12x1024xf32>
    %34 = vector.extract_strided_slice %0 {offsets = [0, 3], sizes = [8, 1], strides = [1, 1]} : vector<8x10xf32> to vector<8x1xf32>
    %35 = arith.fptosi %34 : vector<8x1xf32> to vector<8x1xi32>
    %36 = tpu.iota {dimensions = array<i32: 1>} : vector<8x12xi32>
    %37 = vector.broadcast %35 : vector<8x1xi32> to vector<8x12xi32>
    %38 = arith.cmpi eq, %37, %36 : vector<8x12xi32>
    %cst_17 = arith.constant 1.000000e+00 : f32
    %cst_18 = arith.constant 0.000000e+00 : f32
    %39 = vector.broadcast %cst_17 : f32 to vector<8x12xf32>
    %40 = vector.broadcast %cst_18 : f32 to vector<8x12xf32>
    %41 = arith.select %38, %39, %40 : vector<8x12xi1>, vector<8x12xf32>
    %cst_19 = arith.constant dense<0.000000e+00> : vector<8x1024xf32>
    %42 = tpu.matmul %41, %33, %cst_19 {dimension_numbers = #tpu.dot_dimension_numbers<[1], [0], [0], [1], [0, 0, 1, 1], [], []>} : vector<8x12xf32>, vector<12x1024xf32>, vector<8x1024xf32> -> vector<8x1024xf32>
    %43 = arith.addf %32, %42 : vector<8x1024xf32>
    %c0_20 = arith.constant 0 : index
    %c0_21 = arith.constant 0 : index
    %44 = vector.load %arg6[%c0_20, %c0_21] : memref<6x1024xf32, #tpu.memory_space<vmem>>, vector<6x1024xf32>
    %45 = vector.extract_strided_slice %0 {offsets = [0, 4], sizes = [8, 6], strides = [1, 1]} : vector<8x10xf32> to vector<8x6xf32>
    %cst_22 = arith.constant dense<0.000000e+00> : vector<8x1024xf32>
    %46 = tpu.matmul %45, %44, %cst_22 {dimension_numbers = #tpu.dot_dimension_numbers<[1], [0], [0], [1], [0, 0, 1, 1], [], []>} : vector<8x6xf32>, vector<6x1024xf32>, vector<8x1024xf32> -> vector<8x1024xf32>
    %47 = arith.addf %43, %46 : vector<8x1024xf32>
    %c0_23 = arith.constant 0 : index
    %c0_24 = arith.constant 0 : index
    %48 = vector.load %arg7[%c0_23, %c0_24] : memref<1x1024xf32, #tpu.memory_space<vmem>>, vector<1x1024xf32>
    %49 = vector.broadcast %48 : vector<1x1024xf32> to vector<8x1024xf32>
    %50 = arith.addf %47, %49 : vector<8x1024xf32>
    %cst_25 = arith.constant 0.000000e+00 : f32
    %51 = vector.broadcast %cst_25 : f32 to vector<8x1024xf32>
    %52 = arith.maximumf %50, %51 : vector<8x1024xf32>
    %53 = arith.truncf %52 : vector<8x1024xf32> to vector<8x1024xbf16>
    %c0_26 = arith.constant 0 : index
    %c0_27 = arith.constant 0 : index
    %54 = vector.load %arg8[%c0_26, %c0_27] : memref<1024x1024xbf16, #tpu.memory_space<vmem>>, vector<1024x1024xbf16>
    %c0_28 = arith.constant 0 : index
    %c0_29 = arith.constant 0 : index
    %55 = vector.load %arg9[%c0_28, %c0_29] : memref<1x1024xf32, #tpu.memory_space<vmem>>, vector<1x1024xf32>
    %cst_30 = arith.constant dense<0.000000e+00> : vector<8x1024xf32>
    %56 = tpu.matmul %53, %54, %cst_30 {dimension_numbers = #tpu.dot_dimension_numbers<[1], [0], [0], [1], [0, 0, 1, 1], [], []>} : vector<8x1024xbf16>, vector<1024x1024xbf16>, vector<8x1024xf32> -> vector<8x1024xf32>
    %57 = vector.broadcast %55 : vector<1x1024xf32> to vector<8x1024xf32>
    %58 = arith.addf %56, %57 : vector<8x1024xf32>
    %cst_31 = arith.constant 0.000000e+00 : f32
    %59 = vector.broadcast %cst_31 : f32 to vector<8x1024xf32>
    %60 = arith.maximumf %58, %59 : vector<8x1024xf32>
    %61 = arith.truncf %60 : vector<8x1024xf32> to vector<8x1024xbf16>
    %c0_32 = arith.constant 0 : index
    %c0_33 = arith.constant 0 : index
    %62 = vector.load %arg10[%c0_32, %c0_33] : memref<1024x128xbf16, #tpu.memory_space<vmem>>, vector<1024x128xbf16>
    %c0_34 = arith.constant 0 : index
    %c0_35 = arith.constant 0 : index
    %63 = vector.load %arg11[%c0_34, %c0_35] : memref<1x128xf32, #tpu.memory_space<vmem>>, vector<1x128xf32>
    %cst_36 = arith.constant dense<0.000000e+00> : vector<8x128xf32>
    %64 = tpu.matmul %61, %62, %cst_36 {dimension_numbers = #tpu.dot_dimension_numbers<[1], [0], [0], [1], [0, 0, 1, 1], [], []>} : vector<8x1024xbf16>, vector<1024x128xbf16>, vector<8x128xf32> -> vector<8x128xf32>
    %65 = vector.broadcast %63 : vector<1x128xf32> to vector<8x128xf32>
    %66 = arith.addf %64, %65 : vector<8x128xf32>
    %c0_37 = arith.constant 0 : index
    %c0_38 = arith.constant 0 : index
    %67 = vector.load %arg12[%c0_37, %c0_38] : memref<8x128xf32, #tpu.memory_space<vmem>>, vector<8x128xf32>
    tpu.vector_store %arg12[%c0_37, %c0_38], %66 {strides = array<i32>} : memref<8x128xf32, #tpu.memory_space<vmem>>, vector<8x128xf32>,
    return
  }
  func.func @transform_0(%arg0: i32) -> (i32, i32) {
    %c0_i32 = arith.constant 0 : i32
    %c0_i32_0 = arith.constant 0 : i32
    return %arg0, %c0_i32 : i32, i32
  }
  func.func @transform_1(%arg0: i32) -> (i32, i32) {
    %c0_i32 = arith.constant 0 : i32
    %c0_i32_0 = arith.constant 0 : i32
    %c0_i32_1 = arith.constant 0 : i32
    return %c0_i32, %c0_i32_0 : i32, i32
  }
  func.func @transform_2(%arg0: i32) -> (i32, i32) {
    %c0_i32 = arith.constant 0 : i32
    %c0_i32_0 = arith.constant 0 : i32
    %c0_i32_1 = arith.constant 0 : i32
    return %c0_i32, %c0_i32_0 : i32, i32
  }
  func.func @transform_3(%arg0: i32) -> (i32, i32) {
    %c0_i32 = arith.constant 0 : i32
    %c0_i32_0 = arith.constant 0 : i32
    %c0_i32_1 = arith.constant 0 : i32
    return %c0_i32, %c0_i32_0 : i32, i32
  }
  func.func @transform_4(%arg0: i32) -> (i32, i32) {
    %c0_i32 = arith.constant 0 : i32
    %c0_i32_0 = arith.constant 0 : i32
    %c0_i32_1 = arith.constant 0 : i32
    return %c0_i32, %c0_i32_0 : i32, i32
  }
  func.func @transform_5(%arg0: i32) -> (i32, i32) {
    %c0_i32 = arith.constant 0 : i32
    %c0_i32_0 = arith.constant 0 : i32
    %c0_i32_1 = arith.constant 0 : i32
    return %c0_i32, %c0_i32_0 : i32, i32
  }
  func.func @transform_6(%arg0: i32) -> (i32, i32) {
    %c0_i32 = arith.constant 0 : i32
    %c0_i32_0 = arith.constant 0 : i32
    %c0_i32_1 = arith.constant 0 : i32
    return %c0_i32, %c0_i32_0 : i32, i32
  }
  func.func @transform_7(%arg0: i32) -> (i32, i32) {
    %c0_i32 = arith.constant 0 : i32
    %c0_i32_0 = arith.constant 0 : i32
    %c0_i32_1 = arith.constant 0 : i32
    return %c0_i32, %c0_i32_0 : i32, i32
  }
  func.func @transform_8(%arg0: i32) -> (i32, i32) {
    %c0_i32 = arith.constant 0 : i32
    %c0_i32_0 = arith.constant 0 : i32
    %c0_i32_1 = arith.constant 0 : i32
    return %c0_i32, %c0_i32_0 : i32, i32
  }
  func.func @transform_9(%arg0: i32) -> (i32, i32) {
    %c0_i32 = arith.constant 0 : i32
    %c0_i32_0 = arith.constant 0 : i32
    %c0_i32_1 = arith.constant 0 : i32
    return %c0_i32, %c0_i32_0 : i32, i32
  }
  func.func @transform_10(%arg0: i32) -> (i32, i32) {
    %c0_i32 = arith.constant 0 : i32
    %c0_i32_0 = arith.constant 0 : i32
    %c0_i32_1 = arith.constant 0 : i32
    return %c0_i32, %c0_i32_0 : i32, i32
  }
  func.func @transform_11(%arg0: i32) -> (i32, i32) {
    %c0_i32 = arith.constant 0 : i32
    %c0_i32_0 = arith.constant 0 : i32
    return %arg0, %c0_i32 : i32, i32
  }
}

</mosaic_0001>

<llo_original>
// kernel: tpu_custom_call.1
$region0: #{tpu_custom_call.1}
  #allocation0 [shape = 'u32[]', space=smem, size = 0x4, offset = 0x4, fixed_abs, tag = 'smem constant byte address 0x4 - core index']
  #allocation1 [shape = 'u32[144,128]{1,0:T(1,128)}', space=vmem, size = 0x12000, scoped, tag = 'internal scratch']
  %s0 = inlined_call_operand.hbm [shape: f32[8,10], index: 0, kind: input, shape index: {}]
  %s1 = inlined_call_operand.hbm [shape: f32[10,1024], index: 1, kind: input, shape index: {}]
  %s2 = inlined_call_operand.hbm [shape: f32[7,1024], index: 2, kind: input, shape index: {}]
  %s3 = inlined_call_operand.hbm [shape: f32[12,1024], index: 3, kind: input, shape index: {}]
  %s4 = inlined_call_operand.hbm [shape: f32[12,1024], index: 4, kind: input, shape index: {}]
  %s5 = inlined_call_operand.hbm [shape: f32[6,1024], index: 5, kind: input, shape index: {}]
  %s6 = inlined_call_operand.hbm [shape: f32[1,1024], index: 6, kind: input, shape index: {}]
  %s7 = inlined_call_operand.hbm [shape: bf16[1024,1024], index: 7, kind: input, shape index: {}]
  %s8 = inlined_call_operand.hbm [shape: f32[1,1024], index: 8, kind: input, shape index: {}]
  %s9 = inlined_call_operand.hbm [shape: bf16[1024,128], index: 9, kind: input, shape index: {}]
  %s10 = inlined_call_operand.hbm [shape: f32[1,128], index: 10, kind: input, shape index: {}]
  %s11 = inlined_call_operand.hbm [shape: f32[8,128], index: 11, kind: output, shape index: {}]
  %s12 = sld [smem:[#allocation0]]
  $region98: #{tpu_custom_call.1} parent=0
    _
  %s14 = ssub.s32 1, %s12
  %s15 = scalar_select 0, %s14, %s12
  $region1: #{tpu_custom_call.1} parent=0
    #allocation2 [shape = 'u8[4096]{0}', space=vmem, size = 0x1000, scoped, tag = 'input window, operand 0, single buffered']
    #allocation3 [shape = 's32[1]{0}', space=sflag, size = 0x4, scoped, tag = 'scoped memory for tpu_custom_call.1']
    #allocation4 [shape = 's32[1]{0}', space=sflag, size = 0x4, scoped, tag = 'scoped memory for tpu_custom_call.1']
    #allocation5 [shape = 'u8[65536]{0}', space=vmem, size = 0x10000, scoped, tag = 'input window, operand 1, single buffered']
    #allocation6 [shape = 's32[1]{0}', space=sflag, size = 0x4, scoped, tag = 'scoped memory for tpu_custom_call.1']
    #allocation7 [shape = 'u8[32768]{0}', space=vmem, size = 0x8000, scoped, tag = 'input window, operand 2, single buffered']
    #allocation8 [shape = 'u8[65536]{0}', space=vmem, size = 0x10000, scoped, tag = 'input window, operand 3, single buffered']
    #allocation9 [shape = 's32[1]{0}', space=sflag, size = 0x4, scoped, tag = 'scoped memory for tpu_custom_call.1']
    #allocation10 [shape = 'u8[65536]{0}', space=vmem, size = 0x10000, scoped, tag = 'input window, operand 4, single buffered']
    #allocation11 [shape = 'u8[32768]{0}', space=vmem, size = 0x8000, scoped, tag = 'input window, operand 5, single buffered']
    #allocation12 [shape = 's32[1]{0}', space=sflag, size = 0x4, scoped, tag = 'scoped memory for tpu_custom_call.1']
    #allocation13 [shape = 'u8[4096]{0}', space=vmem, size = 0x1000, scoped, tag = 'input window, operand 6, single buffered']
    #allocation14 [shape = 'u8[2097152]{0}', space=vmem, size = 0x200000, scoped, tag = 'input window, operand 7, single buffered']
    #allocation15 [shape = 's32[1]{0}', space=sflag, size = 0x4, scoped, tag = 'scoped memory for tpu_custom_call.1']
    #allocation16 [shape = 'u8[4096]{0}', space=vmem, size = 0x1000, scoped, tag = 'input window, operand 8, single buffered']
    #allocation17 [shape = 'u8[262144]{0}', space=vmem, size = 0x40000, scoped, tag = 'input window, operand 9, single buffered']
    #allocation18 [shape = 's32[1]{0}', space=sflag, size = 0x4, scoped, tag = 'scoped memory for tpu_custom_call.1']
    #allocation19 [shape = 'u8[512]{0}', space=vmem, size = 0x400, scoped, tag = 'input window, operand 10, single buffered']
    #allocation20 [shape = 'u8[4096]{0}', space=vmem, size = 0x1000, scoped, tag = 'output window, operand 0, single buffered']
    %16 = vsyncpa [#allocation3], 0
    %17 = vsyncpa [#allocation6], 0
    %18 = vsyncpa [#allocation9], 0
    %19 = vsyncpa [#allocation12], 0
    %20 = vsyncpa [#allocation15], 0
    %21 = vsyncpa [#allocation18], 0
    %22 = vsyncpa [#allocation4], 0
    // Predicated region
    $region2: #{tpu_custom_call.1} parent=1 // pred_check
      _
    $region3: #{tpu_custom_call.1} parent=1 // pred_check_branch
      %24 = sbr.rel (0) target = $region5
    $region4: #{tpu_custom_call.1} parent=1 // pred_region
      %s26 = ssub.s32 128, 128
      %27 = vsyncadd [#allocation3], %s26
      %s29 = sshll.u32 [#allocation2], 4
      %s30 = int_to_ptr.vmem [resolvable:$true] %s29
      %32 = dma.hbm_to_vmem [thread:$0]  %s0, 128, %s30, [#allocation3]
    $region5: #{tpu_custom_call.1} parent=1 // pred_fallthru
      _
    // Predicated region
    $region6: #{tpu_custom_call.1} parent=1 // pred_check
      _
    $region7: #{tpu_custom_call.1} parent=1 // pred_check_branch
      %34 = sbr.rel (0) target = $region9
    $region8: #{tpu_custom_call.1} parent=1 // pred_region
      %s36 = ssub.s32 2048, 2048
      %37 = vsyncadd [#allocation6], %s36
      %s38 = sshll.u32 [#allocation5], 4
      %s39 = int_to_ptr.vmem [resolvable:$true] %s38
      %44 = dma.hbm_to_vmem [thread:$0]  %s1, 2048, %s39, [#allocation6], 1024, 1024, 64
    $region9: #{tpu_custom_call.1} parent=1 // pred_fallthru
      _
    // Predicated region
    $region10: #{tpu_custom_call.1} parent=1 // pred_check
      _
    $region11: #{tpu_custom_call.1} parent=1 // pred_check_branch
      %46 = sbr.rel (0) target = $region13
    $region12: #{tpu_custom_call.1} parent=1 // pred_region
      %s48 = ssub.s32 1024, 1024
      %49 = vsyncadd [#allocation6], %s48
      %s51 = sshll.u32 [#allocation7], 4
      %s52 = int_to_ptr.vmem [resolvable:$true] %s51
      %54 = dma.hbm_to_vmem [thread:$0]  %s2, 1024, %s52, [#allocation6]
    $region13: #{tpu_custom_call.1} parent=1 // pred_fallthru
      _
    // Predicated region
    $region14: #{tpu_custom_call.1} parent=1 // pred_check
      _
    $region15: #{tpu_custom_call.1} parent=1 // pred_check_branch
      %56 = sbr.rel (0) target = $region17
    $region16: #{tpu_custom_call.1} parent=1 // pred_region
      %s58 = ssub.s32 2048, 2048
      %59 = vsyncadd [#allocation9], %s58
      %s60 = sshll.u32 [#allocation8], 4
      %s61 = int_to_ptr.vmem [resolvable:$true] %s60
      %66 = dma.hbm_to_vmem [thread:$0]  %s3, 2048, %s61, [#allocation9], 1024, 1024, 64
    $region17: #{tpu_custom_call.1} parent=1 // pred_fallthru
      _
    // Predicated region
    $region18: #{tpu_custom_call.1} parent=1 // pred_check
      _
    $region19: #{tpu_custom_call.1} parent=1 // pred_check_branch
      %68 = sbr.rel (0) target = $region21
    $region20: #{tpu_custom_call.1} parent=1 // pred_region
      %s70 = ssub.s32 2048, 2048
      %71 = vsyncadd [#allocation9], %s70
      %s72 = sshll.u32 [#allocation10], 4
      %s73 = int_to_ptr.vmem [resolvable:$true] %s72
      %78 = dma.hbm_to_vmem [thread:$0]  %s4, 2048, %s73, [#allocation9], 1024, 1024, 64
    $region21: #{tpu_custom_call.1} parent=1 // pred_fallthru
      _
    // Predicated region
    $region22: #{tpu_custom_call.1} parent=1 // pred_check
      _
    $region23: #{tpu_custom_call.1} parent=1 // pred_check_branch
      %80 = sbr.rel (0) target = $region25
    $region24: #{tpu_custom_call.1} parent=1 // pred_region
      %s82 = ssub.s32 1024, 1024
      %83 = vsyncadd [#allocation12], %s82
      %s85 = sshll.u32 [#allocation11], 4
      %s86 = int_to_ptr.vmem [resolvable:$true] %s85
      %88 = dma.hbm_to_vmem [thread:$0]  %s5, 1024, %s86, [#allocation12]
    $region25: #{tpu_custom_call.1} parent=1 // pred_fallthru
      _
    // Predicated region
    $region26: #{tpu_custom_call.1} parent=1 // pred_check
      _
    $region27: #{tpu_custom_call.1} parent=1 // pred_check_branch
      %90 = sbr.rel (0) target = $region29
    $region28: #{tpu_custom_call.1} parent=1 // pred_region
      %s92 = ssub.s32 128, 128
      %93 = vsyncadd [#allocation12], %s92
      %s95 = sshll.u32 [#allocation13], 4
      %s96 = int_to_ptr.vmem [resolvable:$true] %s95
      %98 = dma.hbm_to_vmem [thread:$0]  %s6, 128, %s96, [#allocation12]
    $region29: #{tpu_custom_call.1} parent=1 // pred_fallthru
      _
    // Predicated region
    $region30: #{tpu_custom_call.1} parent=1 // pred_check
      _
    $region31: #{tpu_custom_call.1} parent=1 // pred_check_branch
      %100 = sbr.rel (0) target = $region33
    $region32: #{tpu_custom_call.1} parent=1 // pred_region
      %s102 = ssub.s32 65536, 65536
      %103 = vsyncadd [#allocation15], %s102
      %s104 = sshll.u32 [#allocation14], 4
      %s105 = int_to_ptr.vmem [resolvable:$true] %s104
      %110 = dma.hbm_to_vmem [thread:$0]  %s7, 65536, %s105, [#allocation15], 512, 512, 32
    $region33: #{tpu_custom_call.1} parent=1 // pred_fallthru
      _
    // Predicated region
    $region34: #{tpu_custom_call.1} parent=1 // pred_check
      _
    $region35: #{tpu_custom_call.1} parent=1 // pred_check_branch
      %112 = sbr.rel (0) target = $region37
    $region36: #{tpu_custom_call.1} parent=1 // pred_region
      %s114 = ssub.s32 128, 128
      %115 = vsyncadd [#allocation15], %s114
      %s117 = sshll.u32 [#allocation16], 4
      %s118 = int_to_ptr.vmem [resolvable:$true] %s117
      %120 = dma.hbm_to_vmem [thread:$0]  %s8, 128, %s118, [#allocation15]
    $region37: #{tpu_custom_call.1} parent=1 // pred_fallthru
      _
    // Predicated region
    $region38: #{tpu_custom_call.1} parent=1 // pred_check
      _
    $region39: #{tpu_custom_call.1} parent=1 // pred_check_branch
      %122 = sbr.rel (0) target = $region41
    $region40: #{tpu_custom_call.1} parent=1 // pred_region
      %s124 = ssub.s32 8192, 8192
      %125 = vsyncadd [#allocation18], %s124
      %s126 = sshll.u32 [#allocation17], 4
      %s127 = int_to_ptr.vmem [resolvable:$true] %s126
      %132 = dma.hbm_to_vmem [thread:$0]  %s9, 8192, %s127, [#allocation18], 64, 64, 4
    $region41: #{tpu_custom_call.1} parent=1 // pred_fallthru
      _
    // Predicated region
    $region42: #{tpu_custom_call.1} parent=1 // pred_check
      _
    $region43: #{tpu_custom_call.1} parent=1 // pred_check_branch
      %134 = sbr.rel (0) target = $region45
    $region44: #{tpu_custom_call.1} parent=1 // pred_region
      %s136 = ssub.s32 16, 16
      %137 = vsyncadd [#allocation18], %s136
      %s139 = sshll.u32 [#allocation19], 4
      %s140 = int_to_ptr.vmem [resolvable:$true] %s139
      %142 = dma.hbm_to_vmem [thread:$0]  %s10, 16, %s140, [#allocation18]
    $region45: #{tpu_custom_call.1} parent=1 // pred_fallthru
      _
    // Predicated region
    $region46: #{tpu_custom_call.1} parent=1 // pred_check
      _
    $region47: #{tpu_custom_call.1} parent=1 // pred_check_branch
      %144 = sbr.rel (0) target = $region49
    $region48: #{tpu_custom_call.1} parent=1 // pred_region
      %145 = dma.done [#allocation3], 128
    $region49: #{tpu_custom_call.1} parent=1 // pred_fallthru
      _
    // Predicated region
    $region50: #{tpu_custom_call.1} parent=1 // pred_check
      _
    $region51: #{tpu_custom_call.1} parent=1 // pred_check_branch
      %147 = sbr.rel (0) target = $region53
    $region52: #{tpu_custom_call.1} parent=1 // pred_region
      %148 = dma.done [#allocation6], 2048
    $region53: #{tpu_custom_call.1} parent=1 // pred_fallthru
      _
    // Predicated region
    $region54: #{tpu_custom_call.1} parent=1 // pred_check
      _
    $region55: #{tpu_custom_call.1} parent=1 // pred_check_branch
      %150 = sbr.rel (0) target = $region57
    $region56: #{tpu_custom_call.1} parent=1 // pred_region
      %151 = dma.done [#allocation6], 1024
    $region57: #{tpu_custom_call.1} parent=1 // pred_fallthru
      _
    // Predicated region
    $region58: #{tpu_custom_call.1} parent=1 // pred_check
      _
    $region59: #{tpu_custom_call.1} parent=1 // pred_check_branch
      %153 = sbr.rel (0) target = $region61
    $region60: #{tpu_custom_call.1} parent=1 // pred_region
      %154 = dma.done [#allocation9], 2048
    $region61: #{tpu_custom_call.1} parent=1 // pred_fallthru
      _
    // Predicated region
    $region62: #{tpu_custom_call.1} parent=1 // pred_check
      _
    $region63: #{tpu_custom_call.1} parent=1 // pred_check_branch
      %156 = sbr.rel (0) target = $region65
    $region64: #{tpu_custom_call.1} parent=1 // pred_region
      %157 = dma.done [#allocation9], 2048
    $region65: #{tpu_custom_call.1} parent=1 // pred_fallthru
      _
    // Predicated region
    $region66: #{tpu_custom_call.1} parent=1 // pred_check
      _
    $region67: #{tpu_custom_call.1} parent=1 // pred_check_branch
      %159 = sbr.rel (0) target = $region69
    $region68: #{tpu_custom_call.1} parent=1 // pred_region
      %160 = dma.done [#allocation12], 1024
    $region69: #{tpu_custom_call.1} parent=1 // pred_fallthru
      _
    // Predicated region
    $region70: #{tpu_custom_call.1} parent=1 // pred_check
      _
    $region71: #{tpu_custom_call.1} parent=1 // pred_check_branch
      %162 = sbr.rel (0) target = $region73
    $region72: #{tpu_custom_call.1} parent=1 // pred_region
      %163 = dma.done [#allocation12], 128
    $region73: #{tpu_custom_call.1} parent=1 // pred_fallthru
      _
    // Predicated region
    $region74: #{tpu_custom_call.1} parent=1 // pred_check
      _
    $region75: #{tpu_custom_call.1} parent=1 // pred_check_branch
      %165 = sbr.rel (0) target = $region77
    $region76: #{tpu_custom_call.1} parent=1 // pred_region
      %166 = dma.done [#allocation15], 65536
    $region77: #{tpu_custom_call.1} parent=1 // pred_fallthru
      _
    // Predicated region
    $region78: #{tpu_custom_call.1} parent=1 // pred_check
      _
    $region79: #{tpu_custom_call.1} parent=1 // pred_check_branch
      %168 = sbr.rel (0) target = $region81
    $region80: #{tpu_custom_call.1} parent=1 // pred_region
      %169 = dma.done [#allocation15], 128
    $region81: #{tpu_custom_call.1} parent=1 // pred_fallthru
      _
    // Predicated region
    $region82: #{tpu_custom_call.1} parent=1 // pred_check
      _
    $region83: #{tpu_custom_call.1} parent=1 // pred_check_branch
      %171 = sbr.rel (0) target = $region85
    $region84: #{tpu_custom_call.1} parent=1 // pred_region
      %172 = dma.done [#allocation18], 8192
    $region85: #{tpu_custom_call.1} parent=1 // pred_fallthru
      _
    // Predicated region
    $region86: #{tpu_custom_call.1} parent=1 // pred_check
      _
    $region87: #{tpu_custom_call.1} parent=1 // pred_check_branch
      %174 = sbr.rel (0) target = $region89
    $region88: #{tpu_custom_call.1} parent=1 // pred_region
      %175 = dma.done [#allocation18], 16
    $region89: #{tpu_custom_call.1} parent=1 // pred_fallthru
      _
    %v177 = vld [vmem:[#allocation2] sm:$0xff]
    %v178 = vld [vmem:[#allocation5] sm:$0xff]
    %v179 = vld [vmem:[#allocation5 + $0x8] sm:$0xff]
    %v180 = vld [vmem:[#allocation5 + $0x10] sm:$0xff]
    %v181 = vld [vmem:[#allocation5 + $0x18] sm:$0xff]
    %v182 = vld [vmem:[#allocation5 + $0x20] sm:$0xff]
    %v183 = vld [vmem:[#allocation5 + $0x28] sm:$0xff]
    %v184 = vld [vmem:[#allocation5 + $0x30] sm:$0xff]
    %v185 = vld [vmem:[#allocation5 + $0x38] sm:$0xff]
    %v186 = vld [vmem:[#allocation5 + $0x40] sm:$0x3]
    %v187 = vld [vmem:[#allocation5 + $0x48] sm:$0x3]
    %v188 = vld [vmem:[#allocation5 + $0x50] sm:$0x3]
    %v189 = vld [vmem:[#allocation5 + $0x58] sm:$0x3]
    %v190 = vld [vmem:[#allocation5 + $0x60] sm:$0x3]
    %v191 = vld [vmem:[#allocation5 + $0x68] sm:$0x3]
    %v192 = vld [vmem:[#allocation5 + $0x70] sm:$0x3]
    %v193 = vld [vmem:[#allocation5 + $0x78] sm:$0x3]
    %v194 = vcvt.f32.s32.to.zero.pseudo %v177
    %v195 = vlaneseq
    %v196 = vand.u32 %v195, 127
    %197 = vset.pattern.permute.xlu0 0
    %198 = vperm.xlu0 %197, %v194
    %v199 = vpop.permute.xlu0 %198
    %vm200 = vcmp.eq.s32.totalorder %v199, %v196
    %v201 = vsel %vm200, 1.0, 0.0
    %v202 = vld [vmem:[#allocation7] sm:$0x7f]
    %v203 = vld [vmem:[#allocation7 + $0x8] sm:$0x7f]
    %v204 = vld [vmem:[#allocation7 + $0x10] sm:$0x7f]
    %v205 = vld [vmem:[#allocation7 + $0x18] sm:$0x7f]
    %v206 = vld [vmem:[#allocation7 + $0x20] sm:$0x7f]
    %v207 = vld [vmem:[#allocation7 + $0x28] sm:$0x7f]
    %v208 = vld [vmem:[#allocation7 + $0x30] sm:$0x7f]
    %v209 = vld [vmem:[#allocation7 + $0x38] sm:$0x7f]
    %210 = vset.pattern.permute.xlu0 1
    %211 = vperm.xlu0 %210, %v194
    %v212 = vpop.permute.xlu0 %211
    %vm213 = vcmp.eq.s32.totalorder %v212, %v196
    %v214 = vsel %vm213, 1.0, 0.0
    %vm215 = vcmask 56320
    %v217 = vsel %vm215, %v214, 0
    %vm219 = vcmask 1046528
    %v221 = vsel %vm219, %v202, 0
    %v224 = vsel %vm219, %v203, 0
    %v227 = vsel %vm219, %v204, 0
    %v230 = vsel %vm219, %v205, 0
    %v233 = vsel %vm219, %v206, 0
    %v236 = vsel %vm219, %v207, 0
    %v239 = vsel %vm219, %v208, 0
    %v242 = vsel %vm219, %v209, 0
    %244 = vmatprep.subr.mxu0 %v224
    %245 = vmatpush1.msra.mxu0 %v221
    %246 = vmatprep.subr.mxu0 0.0
    %247 = vmatpush1.msra.mxu0 0.0
    %248 = vmatprep.subr.mxu0 0.0
    %249 = vmatpush1.msra.mxu0 0.0
    %250 = vmatprep.subr.mxu0 0.0
    %251 = vmatpush1.msra.mxu0 0.0
    %252 = vmatprep.subr.mxu0 0.0
    %253 = vmatpush1.msra.mxu0 0.0
    %254 = vmatprep.subr.mxu0 0.0
    %255 = vmatpush1.msra.mxu0 0.0
    %256 = vmatprep.subr.mxu0 0.0
    %257 = vmatpush1.msra.mxu0 0.0
    %258 = vmatprep.subr.mxu0 0.0
    %259 = vmatpush1.msra.mxu0 0.0
    %260 = vmatprep.subr.mxu0 0.0
    %261 = vmatpush1.msra.mxu0 0.0
    %262 = vmatprep.subr.mxu0 0.0
    %263 = vmatpush1.msra.mxu0 0.0
    %264 = vmatprep.subr.mxu0 0.0
    %265 = vmatpush1.msra.mxu0 0.0
    %266 = vmatprep.subr.mxu0 0.0
    %267 = vmatpush1.msra.mxu0 0.0
    %268 = vmatprep.subr.mxu0 0.0
    %269 = vmatpush1.msra.mxu0 0.0
    %270 = vmatprep.subr.mxu0 0.0
    %271 = vmatpush1.msra.mxu0 0.0
    %272 = vmatprep.subr.mxu0 0.0
    %273 = vmatpush1.msra.mxu0 0.0
    %274 = vmatprep.subr.mxu0 0.0
    %275 = vmatpush1.msra.mxu0 0.0
    %276 = vmatprep.subr.mxu0 0.0
    %277 = vmatpush1.msra.mxu0 0.0
    %278 = vmatprep.subr.mxu0 0.0
    %279 = vmatpush1.msra.mxu0 0.0
    %280 = vmatprep.subr.mxu0 0.0
    %281 = vmatpush1.msra.mxu0 0.0
    %282 = vmatprep.subr.mxu0 0.0
    %283 = vmatpush1.msra.mxu0 0.0
    %284 = vmatprep.subr.mxu0 0.0
    %285 = vmatpush1.msra.mxu0 0.0
    %286 = vmatprep.subr.mxu0 0.0
    %287 = vmatpush1.msra.mxu0 0.0
    %288 = vmatprep.subr.mxu0 0.0
    %289 = vmatpush1.msra.mxu0 0.0
    %290 = vmatprep.subr.mxu0 0.0
    %291 = vmatpush1.msra.mxu0 0.0
    %292 = vmatprep.subr.mxu0 0.0
    %293 = vmatpush1.msra.mxu0 0.0
    %294 = vmatprep.subr.mxu0 0.0
    %295 = vmatpush1.msra.mxu0 0.0
    %296 = vmatprep.subr.mxu0 0.0
    %297 = vmatpush1.msra.mxu0 0.0
    %298 = vmatprep.subr.mxu0 0.0
    %299 = vmatpush1.msra.mxu0 0.0
    %300 = vmatprep.subr.mxu0 0.0
    %301 = vmatpush1.msra.mxu0 0.0
    %302 = vmatprep.subr.mxu0 0.0
    %303 = vmatpush1.msra.mxu0 0.0
    %304 = vmatprep.subr.mxu0 0.0
    %305 = vmatpush1.msra.mxu0 0.0
    %306 = vmatprep.subr.mxu0 0.0
    %307 = vmatpush1.msra.mxu0 0.0
    %308 = vmatprep.mubr.f32.mxu0 0.0
    %309 = vmatmul.mubr.f32.gmra.mrb[0].mxu0 %v217
    %v310 = vpop.f32.mrb[0].mxu0
    %v311 = vadd.f32 0.0, %v310
    %v312 = vpop.f32.mrb[0].mxu0
    %v313 = vadd.f32 0.0, %v312
    %314 = vdwg.mxu0
    %315 = vmatprep.subr.mxu0 %v230
    %316 = vmatpush1.msra.mxu0 %v227
    %317 = vmatprep.subr.mxu0 0.0
    %318 = vmatpush1.msra.mxu0 0.0
    %319 = vmatprep.subr.mxu0 0.0
    %320 = vmatpush1.msra.mxu0 0.0
    %321 = vmatprep.subr.mxu0 0.0
    %322 = vmatpush1.msra.mxu0 0.0
    %323 = vmatprep.subr.mxu0 0.0
    %324 = vmatpush1.msra.mxu0 0.0
    %325 = vmatprep.subr.mxu0 0.0
    %326 = vmatpush1.msra.mxu0 0.0
    %327 = vmatprep.subr.mxu0 0.0
    %328 = vmatpush1.msra.mxu0 0.0
    %329 = vmatprep.subr.mxu0 0.0
    %330 = vmatpush1.msra.mxu0 0.0
    %331 = vmatprep.subr.mxu0 0.0
    %332 = vmatpush1.msra.mxu0 0.0
    %333 = vmatprep.subr.mxu0 0.0
    %334 = vmatpush1.msra.mxu0 0.0
    %335 = vmatprep.subr.mxu0 0.0
    %336 = vmatpush1.msra.mxu0 0.0
    %337 = vmatprep.subr.mxu0 0.0
    %338 = vmatpush1.msra.mxu0 0.0
    %339 = vmatprep.subr.mxu0 0.0
    %340 = vmatpush1.msra.mxu0 0.0
    %341 = vmatprep.subr.mxu0 0.0
    %342 = vmatpush1.msra.mxu0 0.0
    %343 = vmatprep.subr.mxu0 0.0
    %344 = vmatpush1.msra.mxu0 0.0
    %345 = vmatprep.subr.mxu0 0.0
    %346 = vmatpush1.msra.mxu0 0.0
    %347 = vmatprep.subr.mxu0 0.0
    %348 = vmatpush1.msra.mxu0 0.0
    %349 = vmatprep.subr.mxu0 0.0
    %350 = vmatpush1.msra.mxu0 0.0
    %351 = vmatprep.subr.mxu0 0.0
    %352 = vmatpush1.msra.mxu0 0.0
    %353 = vmatprep.subr.mxu0 0.0
    %354 = vmatpush1.msra.mxu0 0.0
    %355 = vmatprep.subr.mxu0 0.0
    %356 = vmatpush1.msra.mxu0 0.0
    %357 = vmatprep.subr.mxu0 0.0
    %358 = vmatpush1.msra.mxu0 0.0
    %359 = vmatprep.subr.mxu0 0.0
    %360 = vmatpush1.msra.mxu0 0.0
    %361 = vmatprep.subr.mxu0 0.0
    %362 = vmatpush1.msra.mxu0 0.0
    %363 = vmatprep.subr.mxu0 0.0
    %364 = vmatpush1.msra.mxu0 0.0
    %365 = vmatprep.subr.mxu0 0.0
    %366 = vmatpush1.msra.mxu0 0.0
    %367 = vmatprep.subr.mxu0 0.0
    %368 = vmatpush1.msra.mxu0 0.0
    %369 = vmatprep.subr.mxu0 0.0
    %370 = vmatpush1.msra.mxu0 0.0
    %371 = vmatprep.subr.mxu0 0.0
    %372 = vmatpush1.msra.mxu0 0.0
    %373 = vmatprep.subr.mxu0 0.0
    %374 = vmatpush1.msra.mxu0 0.0
    %375 = vmatprep.subr.mxu0 0.0
    %376 = vmatpush1.msra.mxu0 0.0
    %377 = vmatprep.subr.mxu0 0.0
    %378 = vmatpush1.msra.mxu0 0.0
    %379 = vmatprep.mubr.f32.mxu0 0.0
    %380 = vmatmul.mubr.f32.gmra.mrb[0].mxu0 %v217
    %v381 = vpop.f32.mrb[0].mxu0
    %v382 = vadd.f32 0.0, %v381
    %v383 = vpop.f32.mrb[0].mxu0
    %v384 = vadd.f32 0.0, %v383
    %385 = vdwg.mxu0
    %386 = vmatprep.subr.mxu0 %v236
    %387 = vmatpush1.msra.mxu0 %v233
    %388 = vmatprep.subr.mxu0 0.0
    %389 = vmatpush1.msra.mxu0 0.0
    %390 = vmatprep.subr.mxu0 0.0
    %391 = vmatpush1.msra.mxu0 0.0
    %392 = vmatprep.subr.mxu0 0.0
    %393 = vmatpush1.msra.mxu0 0.0
    %394 = vmatprep.subr.mxu0 0.0
    %395 = vmatpush1.msra.mxu0 0.0
    %396 = vmatprep.subr.mxu0 0.0
    %397 = vmatpush1.msra.mxu0 0.0
    %398 = vmatprep.subr.mxu0 0.0
    %399 = vmatpush1.msra.mxu0 0.0
    %400 = vmatprep.subr.mxu0 0.0
    %401 = vmatpush1.msra.mxu0 0.0
    %402 = vmatprep.subr.mxu0 0.0
    %403 = vmatpush1.msra.mxu0 0.0
    %404 = vmatprep.subr.mxu0 0.0
    %405 = vmatpush1.msra.mxu0 0.0
    %406 = vmatprep.subr.mxu0 0.0
    %407 = vmatpush1.msra.mxu0 0.0
    %408 = vmatprep.subr.mxu0 0.0
    %409 = vmatpush1.msra.mxu0 0.0
    %410 = vmatprep.subr.mxu0 0.0
    %411 = vmatpush1.msra.mxu0 0.0
    %412 = vmatprep.subr.mxu0 0.0
    %413 = vmatpush1.msra.mxu0 0.0
    %414 = vmatprep.subr.mxu0 0.0
    %415 = vmatpush1.msra.mxu0 0.0
    %416 = vmatprep.subr.mxu0 0.0
    %417 = vmatpush1.msra.mxu0 0.0
    %418 = vmatprep.subr.mxu0 0.0
    %419 = vmatpush1.msra.mxu0 0.0
    %420 = vmatprep.subr.mxu0 0.0
    %421 = vmatpush1.msra.mxu0 0.0
    %422 = vmatprep.subr.mxu0 0.0
    %423 = vmatpush1.msra.mxu0 0.0
    %424 = vmatprep.subr.mxu0 0.0
    %425 = vmatpush1.msra.mxu0 0.0
    %426 = vmatprep.subr.mxu0 0.0
    %427 = vmatpush1.msra.mxu0 0.0
    %428 = vmatprep.subr.mxu0 0.0
    %429 = vmatpush1.msra.mxu0 0.0
    %430 = vmatprep.subr.mxu0 0.0
    %431 = vmatpush1.msra.mxu0 0.0
    %432 = vmatprep.subr.mxu0 0.0
    %433 = vmatpush1.msra.mxu0 0.0
    %434 = vmatprep.subr.mxu0 0.0
    %435 = vmatpush1.msra.mxu0 0.0
    %436 = vmatprep.subr.mxu0 0.0
    %437 = vmatpush1.msra.mxu0 0.0
    %438 = vmatprep.subr.mxu0 0.0
    %439 = vmatpush1.msra.mxu0 0.0
    %440 = vmatprep.subr.mxu0 0.0
    %441 = vmatpush1.msra.mxu0 0.0
    %442 = vmatprep.subr.mxu0 0.0
    %443 = vmatpush1.msra.mxu0 0.0
    %444 = vmatprep.subr.mxu0 0.0
    %445 = vmatpush1.msra.mxu0 0.0
    %446 = vmatprep.subr.mxu0 0.0
    %447 = vmatpush1.msra.mxu0 0.0
    %448 = vmatprep.subr.mxu0 0.0
    %449 = vmatpush1.msra.mxu0 0.0
    %450 = vmatprep.mubr.f32.mxu0 0.0
    %451 = vmatmul.mubr.f32.gmra.mrb[0].mxu0 %v217
    %v452 = vpop.f32.mrb[0].mxu0
    %v453 = vadd.f32 0.0, %v452
    %v454 = vpop.f32.mrb[0].mxu0
    %v455 = vadd.f32 0.0, %v454
    %456 = vdwg.mxu0
    %457 = vmatprep.subr.mxu0 %v242
    %458 = vmatpush1.msra.mxu0 %v239
    %459 = vmatprep.subr.mxu0 0.0
    %460 = vmatpush1.msra.mxu0 0.0
    %461 = vmatprep.subr.mxu0 0.0
    %462 = vmatpush1.msra.mxu0 0.0
    %463 = vmatprep.subr.mxu0 0.0
    %464 = vmatpush1.msra.mxu0 0.0
    %465 = vmatprep.subr.mxu0 0.0
    %466 = vmatpush1.msra.mxu0 0.0
    %467 = vmatprep.subr.mxu0 0.0
    %468 = vmatpush1.msra.mxu0 0.0
    %469 = vmatprep.subr.mxu0 0.0
    %470 = vmatpush1.msra.mxu0 0.0
    %471 = vmatprep.subr.mxu0 0.0
    %472 = vmatpush1.msra.mxu0 0.0
    %473 = vmatprep.subr.mxu0 0.0
    %474 = vmatpush1.msra.mxu0 0.0
    %475 = vmatprep.subr.mxu0 0.0
    %476 = vmatpush1.msra.mxu0 0.0
    %477 = vmatprep.subr.mxu0 0.0
    %478 = vmatpush1.msra.mxu0 0.0
    %479 = vmatprep.subr.mxu0 0.0
    %480 = vmatpush1.msra.mxu0 0.0
    %481 = vmatprep.subr.mxu0 0.0
    %482 = vmatpush1.msra.mxu0 0.0
    %483 = vmatprep.subr.mxu0 0.0
    %484 = vmatpush1.msra.mxu0 0.0
    %485 = vmatprep.subr.mxu0 0.0
    %486 = vmatpush1.msra.mxu0 0.0
    %487 = vmatprep.subr.mxu0 0.0
    %488 = vmatpush1.msra.mxu0 0.0
    %489 = vmatprep.subr.mxu0 0.0
    %490 = vmatpush1.msra.mxu0 0.0
    %491 = vmatprep.subr.mxu0 0.0
    %492 = vmatpush1.msra.mxu0 0.0
    %493 = vmatprep.subr.mxu0 0.0
    %494 = vmatpush1.msra.mxu0 0.0
    %495 = vmatprep.subr.mxu0 0.0
    %496 = vmatpush1.msra.mxu0 0.0
    %497 = vmatprep.subr.mxu0 0.0
    %498 = vmatpush1.msra.mxu0 0.0
    %499 = vmatprep.subr.mxu0 0.0
    %500 = vmatpush1.msra.mxu0 0.0
    %501 = vmatprep.subr.mxu0 0.0
    %502 = vmatpush1.msra.mxu0 0.0
    %503 = vmatprep.subr.mxu0 0.0
    %504 = vmatpush1.msra.mxu0 0.0
    %505 = vmatprep.subr.mxu0 0.0
    %506 = vmatpush1.msra.mxu0 0.0
    %507 = vmatprep.subr.mxu0 0.0
    %508 = vmatpush1.msra.mxu0 0.0
    %509 = vmatprep.subr.mxu0 0.0
    %510 = vmatpush1.msra.mxu0 0.0
    %511 = vmatprep.subr.mxu0 0.0
    %512 = vmatpush1.msra.mxu0 0.0
    %513 = vmatprep.subr.mxu0 0.0
    %514 = vmatpush1.msra.mxu0 0.0
    %515 = vmatprep.subr.mxu0 0.0
    %516 = vmatpush1.msra.mxu0 0.0
    %517 = vmatprep.subr.mxu0 0.0
    %518 = vmatpush1.msra.mxu0 0.0
    %519 = vmatprep.subr.mxu0 0.0
    %520 = vmatpush1.msra.mxu0 0.0
    %521 = vmatprep.mubr.f32.mxu0 0.0
    %522 = vmatmul.mubr.f32.gmra.mrb[0].mxu0 %v217
    %v523 = vpop.f32.mrb[0].mxu0
    %v524 = vadd.f32 0.0, %v523
    %v525 = vpop.f32.mrb[0].mxu0
    %v526 = vadd.f32 0.0, %v525
    %527 = vdwg.mxu0
    %vm528 = vcmask 80896
    %v530 = vsel %vm528, %v201, 0
    %vm532 = vcmask 1041408
    %v534 = vsel %vm532, %v186, 0
    %v537 = vsel %vm532, %v187, 0
    %v540 = vsel %vm532, %v188, 0
    %v543 = vsel %vm532, %v189, 0
    %v546 = vsel %vm532, %v190, 0
    %v549 = vsel %vm532, %v191, 0
    %v552 = vsel %vm532, %v192, 0
    %v555 = vsel %vm532, %v193, 0
    %557 = vmatprep.subr.mxu0 %v179
    %558 = vmatpush1.msra.mxu0 %v178
    %559 = vmatprep.subr.mxu0 %v537
    %560 = vmatpush1.msra.mxu0 %v534
    %561 = vmatprep.subr.mxu0 0.0
    %562 = vmatpush1.msra.mxu0 0.0
    %563 = vmatprep.subr.mxu0 0.0
    %564 = vmatpush1.msra.mxu0 0.0
    %565 = vmatprep.subr.mxu0 0.0
    %566 = vmatpush1.msra.mxu0 0.0
    %567 = vmatprep.subr.mxu0 0.0
    %568 = vmatpush1.msra.mxu0 0.0
    %569 = vmatprep.subr.mxu0 0.0
    %570 = vmatpush1.msra.mxu0 0.0
    %571 = vmatprep.subr.mxu0 0.0
    %572 = vmatpush1.msra.mxu0 0.0
    %573 = vmatprep.subr.mxu0 0.0
    %574 = vmatpush1.msra.mxu0 0.0
    %575 = vmatprep.subr.mxu0 0.0
    %576 = vmatpush1.msra.mxu0 0.0
    %577 = vmatprep.subr.mxu0 0.0
    %578 = vmatpush1.msra.mxu0 0.0
    %579 = vmatprep.subr.mxu0 0.0
    %580 = vmatpush1.msra.mxu0 0.0
    %581 = vmatprep.subr.mxu0 0.0
    %582 = vmatpush1.msra.mxu0 0.0
    %583 = vmatprep.subr.mxu0 0.0
    %584 = vmatpush1.msra.mxu0 0.0
    %585 = vmatprep.subr.mxu0 0.0
    %586 = vmatpush1.msra.mxu0 0.0
    %587 = vmatprep.subr.mxu0 0.0
    %588 = vmatpush1.msra.mxu0 0.0
    %589 = vmatprep.subr.mxu0 0.0
    %590 = vmatpush1.msra.mxu0 0.0
    %591 = vmatprep.subr.mxu0 0.0
    %592 = vmatpush1.msra.mxu0 0.0
    %593 = vmatprep.subr.mxu0 0.0
    %594 = vmatpush1.msra.mxu0 0.0
    %595 = vmatprep.subr.mxu0 0.0
    %596 = vmatpush1.msra.mxu0 0.0
    %597 = vmatprep.subr.mxu0 0.0
    %598 = vmatpush1.msra.mxu0 0.0
    %599 = vmatprep.subr.mxu0 0.0
    %600 = vmatpush1.msra.mxu0 0.0
    %601 = vmatprep.subr.mxu0 0.0
    %602 = vmatpush1.msra.mxu0 0.0
    %603 = vmatprep.subr.mxu0 0.0
    %604 = vmatpush1.msra.mxu0 0.0
    %605 = vmatprep.subr.mxu0 0.0
    %606 = vmatpush1.msra.mxu0 0.0
    %607 = vmatprep.subr.mxu0 0.0
    %608 = vmatpush1.msra.mxu0 0.0
    %609 = vmatprep.subr.mxu0 0.0
    %610 = vmatpush1.msra.mxu0 0.0
    %611 = vmatprep.subr.mxu0 0.0
    %612 = vmatpush1.msra.mxu0 0.0
    %613 = vmatprep.subr.mxu0 0.0
    %614 = vmatpush1.msra.mxu0 0.0
    %615 = vmatprep.subr.mxu0 0.0
    %616 = vmatpush1.msra.mxu0 0.0
    %617 = vmatprep.subr.mxu0 0.0
    %618 = vmatpush1.msra.mxu0 0.0
    %619 = vmatprep.subr.mxu0 0.0
    %620 = vmatpush1.msra.mxu0 0.0
    %621 = vmatprep.mubr.f32.mxu0 0.0
    %622 = vmatmul.mubr.f32.gmra.mrb[0].mxu0 %v530
    %v623 = vpop.f32.mrb[0].mxu0
    %v624 = vadd.f32 %v311, %v623
    %v625 = vpop.f32.mrb[0].mxu0
    %v626 = vadd.f32 %v313, %v625
    %627 = vdwg.mxu0
    %628 = vmatprep.subr.mxu0 %v181
    %629 = vmatpush1.msra.mxu0 %v180
    %630 = vmatprep.subr.mxu0 %v543
    %631 = vmatpush1.msra.mxu0 %v540
    %632 = vmatprep.subr.mxu0 0.0
    %633 = vmatpush1.msra.mxu0 0.0
    %634 = vmatprep.subr.mxu0 0.0
    %635 = vmatpush1.msra.mxu0 0.0
    %636 = vmatprep.subr.mxu0 0.0
    %637 = vmatpush1.msra.mxu0 0.0
    %638 = vmatprep.subr.mxu0 0.0
    %639 = vmatpush1.msra.mxu0 0.0
    %640 = vmatprep.subr.mxu0 0.0
    %641 = vmatpush1.msra.mxu0 0.0
    %642 = vmatprep.subr.mxu0 0.0
    %643 = vmatpush1.msra.mxu0 0.0
    %644 = vmatprep.subr.mxu0 0.0
    %645 = vmatpush1.msra.mxu0 0.0
    %646 = vmatprep.subr.mxu0 0.0
    %647 = vmatpush1.msra.mxu0 0.0
    %648 = vmatprep.subr.mxu0 0.0
    %649 = vmatpush1.msra.mxu0 0.0
    %650 = vmatprep.subr.mxu0 0.0
    %651 = vmatpush1.msra.mxu0 0.0
    %652 = vmatprep.subr.mxu0 0.0
    %653 = vmatpush1.msra.mxu0 0.0
    %654 = vmatprep.subr.mxu0 0.0
    %655 = vmatpush1.msra.mxu0 0.0
    %656 = vmatprep.subr.mxu0 0.0
    %657 = vmatpush1.msra.mxu0 0.0
    %658 = vmatprep.subr.mxu0 0.0
    %659 = vmatpush1.msra.mxu0 0.0
    %660 = vmatprep.subr.mxu0 0.0
    %661 = vmatpush1.msra.mxu0 0.0
    %662 = vmatprep.subr.mxu0 0.0
    %663 = vmatpush1.msra.mxu0 0.0
    %664 = vmatprep.subr.mxu0 0.0
    %665 = vmatpush1.msra.mxu0 0.0
    %666 = vmatprep.subr.mxu0 0.0
    %667 = vmatpush1.msra.mxu0 0.0
    %668 = vmatprep.subr.mxu0 0.0
    %669 = vmatpush1.msra.mxu0 0.0
    %670 = vmatprep.subr.mxu0 0.0
    %671 = vmatpush1.msra.mxu0 0.0
    %672 = vmatprep.subr.mxu0 0.0
    %673 = vmatpush1.msra.mxu0 0.0
    %674 = vmatprep.subr.mxu0 0.0
    %675 = vmatpush1.msra.mxu0 0.0
    %676 = vmatprep.subr.mxu0 0.0
    %677 = vmatpush1.msra.mxu0 0.0
    %678 = vmatprep.subr.mxu0 0.0
    %679 = vmatpush1.msra.mxu0 0.0
    %680 = vmatprep.subr.mxu0 0.0
    %681 = vmatpush1.msra.mxu0 0.0
    %682 = vmatprep.subr.mxu0 0.0
    %683 = vmatpush1.msra.mxu0 0.0
    %684 = vmatprep.subr.mxu0 0.0
    %685 = vmatpush1.msra.mxu0 0.0
    %686 = vmatprep.subr.mxu0 0.0
    %687 = vmatpush1.msra.mxu0 0.0
    %688 = vmatprep.subr.mxu0 0.0
    %689 = vmatpush1.msra.mxu0 0.0
    %690 = vmatprep.subr.mxu0 0.0
    %691 = vmatpush1.msra.mxu0 0.0
    %692 = vmatprep.mubr.f32.mxu0 0.0
    %693 = vmatmul.mubr.f32.gmra.mrb[0].mxu0 %v530
    %v694 = vpop.f32.mrb[0].mxu0
    %v695 = vadd.f32 %v382, %v694
    %v696 = vpop.f32.mrb[0].mxu0
    %v697 = vadd.f32 %v384, %v696
    %698 = vdwg.mxu0
    %699 = vmatprep.subr.mxu0 %v183
    %700 = vmatpush1.msra.mxu0 %v182
    %701 = vmatprep.subr.mxu0 %v549
    %702 = vmatpush1.msra.mxu0 %v546
    %703 = vmatprep.subr.mxu0 0.0
    %704 = vmatpush1.msra.mxu0 0.0
    %705 = vmatprep.subr.mxu0 0.0
    %706 = vmatpush1.msra.mxu0 0.0
    %707 = vmatprep.subr.mxu0 0.0
    %708 = vmatpush1.msra.mxu0 0.0
    %709 = vmatprep.subr.mxu0 0.0
    %710 = vmatpush1.msra.mxu0 0.0
    %711 = vmatprep.subr.mxu0 0.0
    %712 = vmatpush1.msra.mxu0 0.0
    %713 = vmatprep.subr.mxu0 0.0
    %714 = vmatpush1.msra.mxu0 0.0
    %715 = vmatprep.subr.mxu0 0.0
    %716 = vmatpush1.msra.mxu0 0.0
    %717 = vmatprep.subr.mxu0 0.0
    %718 = vmatpush1.msra.mxu0 0.0
    %719 = vmatprep.subr.mxu0 0.0
    %720 = vmatpush1.msra.mxu0 0.0
    %721 = vmatprep.subr.mxu0 0.0
    %722 = vmatpush1.msra.mxu0 0.0
    %723 = vmatprep.subr.mxu0 0.0
    %724 = vmatpush1.msra.mxu0 0.0
    %725 = vmatprep.subr.mxu0 0.0
    %726 = vmatpush1.msra.mxu0 0.0
    %727 = vmatprep.subr.mxu0 0.0
    %728 = vmatpush1.msra.mxu0 0.0
    %729 = vmatprep.subr.mxu0 0.0
    %730 = vmatpush1.msra.mxu0 0.0
    %731 = vmatprep.subr.mxu0 0.0
    %732 = vmatpush1.msra.mxu0 0.0
    %733 = vmatprep.subr.mxu0 0.0
    %734 = vmatpush1.msra.mxu0 0.0
    %735 = vmatprep.subr.mxu0 0.0
    %736 = vmatpush1.msra.mxu0 0.0
    %737 = vmatprep.subr.mxu0 0.0
    %738 = vmatpush1.msra.mxu0 0.0
    %739 = vmatprep.subr.mxu0 0.0
    %740 = vmatpush1.msra.mxu0 0.0
    %741 = vmatprep.subr.mxu0 0.0
    %742 = vmatpush1.msra.mxu0 0.0
    %743 = vmatprep.subr.mxu0 0.0
    %744 = vmatpush1.msra.mxu0 0.0
    %745 = vmatprep.subr.mxu0 0.0
    %746 = vmatpush1.msra.mxu0 0.0
    %747 = vmatprep.subr.mxu0 0.0
    %748 = vmatpush1.msra.mxu0 0.0
    %749 = vmatprep.subr.mxu0 0.0
    %750 = vmatpush1.msra.mxu0 0.0
    %751 = vmatprep.subr.mxu0 0.0
    %752 = vmatpush1.msra.mxu0 0.0
    %753 = vmatprep.subr.mxu0 0.0
    %754 = vmatpush1.msra.mxu0 0.0
    %755 = vmatprep.subr.mxu0 0.0
    %756 = vmatpush1.msra.mxu0 0.0
    %757 = vmatprep.subr.mxu0 0.0
    %758 = vmatpush1.msra.mxu0 0.0
    %759 = vmatprep.subr.mxu0 0.0
    %760 = vmatpush1.msra.mxu0 0.0
    %761 = vmatprep.subr.mxu0 0.0
    %762 = vmatpush1.msra.mxu0 0.0
    %763 = vmatprep.mubr.f32.mxu0 0.0
    %764 = vmatmul.mubr.f32.gmra.mrb[0].mxu0 %v530
    %v765 = vpop.f32.mrb[0].mxu0
    %v766 = vadd.f32 %v453, %v765
    %v767 = vpop.f32.mrb[0].mxu0
    %v768 = vadd.f32 %v455, %v767
    %769 = vdwg.mxu0
    %770 = vmatprep.subr.mxu0 %v185
    %771 = vmatpush1.msra.mxu0 %v184
    %772 = vmatprep.subr.mxu0 %v555
    %773 = vmatpush1.msra.mxu0 %v552
    %774 = vmatprep.subr.mxu0 0.0
    %775 = vmatpush1.msra.mxu0 0.0
    %776 = vmatprep.subr.mxu0 0.0
    %777 = vmatpush1.msra.mxu0 0.0
    %778 = vmatprep.subr.mxu0 0.0
    %779 = vmatpush1.msra.mxu0 0.0
    %780 = vmatprep.subr.mxu0 0.0
    %781 = vmatpush1.msra.mxu0 0.0
    %782 = vmatprep.subr.mxu0 0.0
    %783 = vmatpush1.msra.mxu0 0.0
    %784 = vmatprep.subr.mxu0 0.0
    %785 = vmatpush1.msra.mxu0 0.0
    %786 = vmatprep.subr.mxu0 0.0
    %787 = vmatpush1.msra.mxu0 0.0
    %788 = vmatprep.subr.mxu0 0.0
    %789 = vmatpush1.msra.mxu0 0.0
    %790 = vmatprep.subr.mxu0 0.0
    %791 = vmatpush1.msra.mxu0 0.0
    %792 = vmatprep.subr.mxu0 0.0
    %793 = vmatpush1.msra.mxu0 0.0
    %794 = vmatprep.subr.mxu0 0.0
    %795 = vmatpush1.msra.mxu0 0.0
    %796 = vmatprep.subr.mxu0 0.0
    %797 = vmatpush1.msra.mxu0 0.0
    %798 = vmatprep.subr.mxu0 0.0
    %799 = vmatpush1.msra.mxu0 0.0
    %800 = vmatprep.subr.mxu0 0.0
    %801 = vmatpush1.msra.mxu0 0.0
    %802 = vmatprep.subr.mxu0 0.0
    %803 = vmatpush1.msra.mxu0 0.0
    %804 = vmatprep.subr.mxu0 0.0
    %805 = vmatpush1.msra.mxu0 0.0
    %806 = vmatprep.subr.mxu0 0.0
    %807 = vmatpush1.msra.mxu0 0.0
    %808 = vmatprep.subr.mxu0 0.0
    %809 = vmatpush1.msra.mxu0 0.0
    %810 = vmatprep.subr.mxu0 0.0
    %811 = vmatpush1.msra.mxu0 0.0
    %812 = vmatprep.subr.mxu0 0.0
    %813 = vmatpush1.msra.mxu0 0.0
    %814 = vmatprep.subr.mxu0 0.0
    %815 = vmatpush1.msra.mxu0 0.0
    %816 = vmatprep.subr.mxu0 0.0
    %817 = vmatpush1.msra.mxu0 0.0
    %818 = vmatprep.subr.mxu0 0.0
    %819 = vmatpush1.msra.mxu0 0.0
    %820 = vmatprep.subr.mxu0 0.0
    %821 = vmatpush1.msra.mxu0 0.0
    %822 = vmatprep.subr.mxu0 0.0
    %823 = vmatpush1.msra.mxu0 0.0
    %824 = vmatprep.subr.mxu0 0.0
    %825 = vmatpush1.msra.mxu0 0.0
    %826 = vmatprep.subr.mxu0 0.0
    %827 = vmatpush1.msra.mxu0 0.0
    %828 = vmatprep.subr.mxu0 0.0
    %829 = vmatpush1.msra.mxu0 0.0
    %830 = vmatprep.subr.mxu0 0.0
    %831 = vmatpush1.msra.mxu0 0.0
    %832 = vmatprep.subr.mxu0 0.0
    %833 = vmatpush1.msra.mxu0 0.0
    %834 = vmatprep.mubr.f32.mxu0 0.0
    %835 = vmatmul.mubr.f32.gmra.mrb[0].mxu0 %v530
    %v836 = vpop.f32.mrb[0].mxu0
    %v837 = vadd.f32 %v524, %v836
    %v838 = vpop.f32.mrb[0].mxu0
    %v839 = vadd.f32 %v526, %v838
    %840 = vdwg.mxu0
    %v841 = vld [vmem:[#allocation8] sm:$0xff]
    %v842 = vld [vmem:[#allocation8 + $0x8] sm:$0xff]
    %v843 = vld [vmem:[#allocation8 + $0x10] sm:$0xff]
    %v844 = vld [vmem:[#allocation8 + $0x18] sm:$0xff]
    %v845 = vld [vmem:[#allocation8 + $0x20] sm:$0xff]
    %v846 = vld [vmem:[#allocation8 + $0x28] sm:$0xff]
    %v847 = vld [vmem:[#allocation8 + $0x30] sm:$0xff]
    %v848 = vld [vmem:[#allocation8 + $0x38] sm:$0xff]
    %v849 = vld [vmem:[#allocation8 + $0x40] sm:$0xf]
    %v850 = vld [vmem:[#allocation8 + $0x48] sm:$0xf]
    %v851 = vld [vmem:[#allocation8 + $0x50] sm:$0xf]
    %v852 = vld [vmem:[#allocation8 + $0x58] sm:$0xf]
    %v853 = vld [vmem:[#allocation8 + $0x60] sm:$0xf]
    %v854 = vld [vmem:[#allocation8 + $0x68] sm:$0xf]
    %v855 = vld [vmem:[#allocation8 + $0x70] sm:$0xf]
    %v856 = vld [vmem:[#allocation8 + $0x78] sm:$0xf]
    %857 = vset.pattern.permute.xlu0 2
    %858 = vperm.xlu0 %857, %v194
    %v859 = vpop.permute.xlu0 %858
    %vm860 = vcmp.eq.s32.totalorder %v859, %v196
    %v861 = vsel %vm860, 1.0, 0.0
    %vm862 = vcmask 97280
    %v864 = vsel %vm862, %v861, 0
    %vm866 = vcmask 1043456
    %v868 = vsel %vm866, %v849, 0
    %v871 = vsel %vm866, %v850, 0
    %v874 = vsel %vm866, %v851, 0
    %v877 = vsel %vm866, %v852, 0
    %v880 = vsel %vm866, %v853, 0
    %v883 = vsel %vm866, %v854, 0
    %v886 = vsel %vm866, %v855, 0
    %v889 = vsel %vm866, %v856, 0
    %891 = vmatprep.subr.mxu0 %v842
    %892 = vmatpush1.msra.mxu0 %v841
    %893 = vmatprep.subr.mxu0 %v871
    %894 = vmatpush1.msra.mxu0 %v868
    %895 = vmatprep.subr.mxu0 0.0
    %896 = vmatpush1.msra.mxu0 0.0
    %897 = vmatprep.subr.mxu0 0.0
    %898 = vmatpush1.msra.mxu0 0.0
    %899 = vmatprep.subr.mxu0 0.0
    %900 = vmatpush1.msra.mxu0 0.0
    %901 = vmatprep.subr.mxu0 0.0
    %902 = vmatpush1.msra.mxu0 0.0
    %903 = vmatprep.subr.mxu0 0.0
    %904 = vmatpush1.msra.mxu0 0.0
    %905 = vmatprep.subr.mxu0 0.0
    %906 = vmatpush1.msra.mxu0 0.0
    %907 = vmatprep.subr.mxu0 0.0
    %908 = vmatpush1.msra.mxu0 0.0
    %909 = vmatprep.subr.mxu0 0.0
    %910 = vmatpush1.msra.mxu0 0.0
    %911 = vmatprep.subr.mxu0 0.0
    %912 = vmatpush1.msra.mxu0 0.0
    %913 = vmatprep.subr.mxu0 0.0
    %914 = vmatpush1.msra.mxu0 0.0
    %915 = vmatprep.subr.mxu0 0.0
    %916 = vmatpush1.msra.mxu0 0.0
    %917 = vmatprep.subr.mxu0 0.0
    %918 = vmatpush1.msra.mxu0 0.0
    %919 = vmatprep.subr.mxu0 0.0
    %920 = vmatpush1.msra.mxu0 0.0
    %921 = vmatprep.subr.mxu0 0.0
    %922 = vmatpush1.msra.mxu0 0.0
    %923 = vmatprep.subr.mxu0 0.0
    %924 = vmatpush1.msra.mxu0 0.0
    %925 = vmatprep.subr.mxu0 0.0
    %926 = vmatpush1.msra.mxu0 0.0
    %927 = vmatprep.subr.mxu0 0.0
    %928 = vmatpush1.msra.mxu0 0.0
    %929 = vmatprep.subr.mxu0 0.0
    %930 = vmatpush1.msra.mxu0 0.0
    %931 = vmatprep.subr.mxu0 0.0
    %932 = vmatpush1.msra.mxu0 0.0
    %933 = vmatprep.subr.mxu0 0.0
    %934 = vmatpush1.msra.mxu0 0.0
    %935 = vmatprep.subr.mxu0 0.0
    %936 = vmatpush1.msra.mxu0 0.0
    %937 = vmatprep.subr.mxu0 0.0
    %938 = vmatpush1.msra.mxu0 0.0
    %939 = vmatprep.subr.mxu0 0.0
    %940 = vmatpush1.msra.mxu0 0.0
    %941 = vmatprep.subr.mxu0 0.0
    %942 = vmatpush1.msra.mxu0 0.0
    %943 = vmatprep.subr.mxu0 0.0
    %944 = vmatpush1.msra.mxu0 0.0
    %945 = vmatprep.subr.mxu0 0.0
    %946 = vmatpush1.msra.mxu0 0.0
    %947 = vmatprep.subr.mxu0 0.0
    %948 = vmatpush1.msra.mxu0 0.0
    %949 = vmatprep.subr.mxu0 0.0
    %950 = vmatpush1.msra.mxu0 0.0
    %951 = vmatprep.subr.mxu0 0.0
    %952 = vmatpush1.msra.mxu0 0.0
    %953 = vmatprep.subr.mxu0 0.0
    %954 = vmatpush1.msra.mxu0 0.0
    %955 = vmatprep.mubr.f32.mxu0 0.0
    %956 = vmatmul.mubr.f32.gmra.mrb[0].mxu0 %v864
    %v957 = vpop.f32.mrb[0].mxu0
    %v958 = vadd.f32 0.0, %v957
    %v959 = vpop.f32.mrb[0].mxu0
    %v960 = vadd.f32 0.0, %v959
    %961 = vdwg.mxu0
    %962 = vmatprep.subr.mxu0 %v844
    %963 = vmatpush1.msra.mxu0 %v843
    %964 = vmatprep.subr.mxu0 %v877
    %965 = vmatpush1.msra.mxu0 %v874
    %966 = vmatprep.subr.mxu0 0.0
    %967 = vmatpush1.msra.mxu0 0.0
    %968 = vmatprep.subr.mxu0 0.0
    %969 = vmatpush1.msra.mxu0 0.0
    %970 = vmatprep.subr.mxu0 0.0
    %971 = vmatpush1.msra.mxu0 0.0
    %972 = vmatprep.subr.mxu0 0.0
    %973 = vmatpush1.msra.mxu0 0.0
    %974 = vmatprep.subr.mxu0 0.0
    %975 = vmatpush1.msra.mxu0 0.0
    %976 = vmatprep.subr.mxu0 0.0
    %977 = vmatpush1.msra.mxu0 0.0
    %978 = vmatprep.subr.mxu0 0.0
    %979 = vmatpush1.msra.mxu0 0.0
    %980 = vmatprep.subr.mxu0 0.0
    %981 = vmatpush1.msra.mxu0 0.0
    %982 = vmatprep.subr.mxu0 0.0
    %983 = vmatpush1.msra.mxu0 0.0
    %984 = vmatprep.subr.mxu0 0.0
    %985 = vmatpush1.msra.mxu0 0.0
    %986 = vmatprep.subr.mxu0 0.0
    %987 = vmatpush1.msra.mxu0 0.0
    %988 = vmatprep.subr.mxu0 0.0
    %989 = vmatpush1.msra.mxu0 0.0
    %990 = vmatprep.subr.mxu0 0.0
    %991 = vmatpush1.msra.mxu0 0.0
    %992 = vmatprep.subr.mxu0 0.0
    %993 = vmatpush1.msra.mxu0 0.0
    %994 = vmatprep.subr.mxu0 0.0
    %995 = vmatpush1.msra.mxu0 0.0
    %996 = vmatprep.subr.mxu0 0.0
    %997 = vmatpush1.msra.mxu0 0.0
    %998 = vmatprep.subr.mxu0 0.0
    %999 = vmatpush1.msra.mxu0 0.0
    %1000 = vmatprep.subr.mxu0 0.0
    %1001 = vmatpush1.msra.mxu0 0.0
    %1002 = vmatprep.subr.mxu0 0.0
    %1003 = vmatpush1.msra.mxu0 0.0
    %1004 = vmatprep.subr.mxu0 0.0
    %1005 = vmatpush1.msra.mxu0 0.0
    %1006 = vmatprep.subr.mxu0 0.0
    %1007 = vmatpush1.msra.mxu0 0.0
    %1008 = vmatprep.subr.mxu0 0.0
    %1009 = vmatpush1.msra.mxu0 0.0
    %1010 = vmatprep.subr.mxu0 0.0
    %1011 = vmatpush1.msra.mxu0 0.0
    %1012 = vmatprep.subr.mxu0 0.0
    %1013 = vmatpush1.msra.mxu0 0.0
    %1014 = vmatprep.subr.mxu0 0.0
    %1015 = vmatpush1.msra.mxu0 0.0
    %1016 = vmatprep.subr.mxu0 0.0
    %1017 = vmatpush1.msra.mxu0 0.0
    %1018 = vmatprep.subr.mxu0 0.0
    %1019 = vmatpush1.msra.mxu0 0.0
    %1020 = vmatprep.subr.mxu0 0.0
    %1021 = vmatpush1.msra.mxu0 0.0
    %1022 = vmatprep.subr.mxu0 0.0
    %1023 = vmatpush1.msra.mxu0 0.0
    %1024 = vmatprep.subr.mxu0 0.0
    %1025 = vmatpush1.msra.mxu0 0.0
    %1026 = vmatprep.mubr.f32.mxu0 0.0
    %1027 = vmatmul.mubr.f32.gmra.mrb[0].mxu0 %v864
    %v1028 = vpop.f32.mrb[0].mxu0
    %v1029 = vadd.f32 0.0, %v1028
    %v1030 = vpop.f32.mrb[0].mxu0
    %v1031 = vadd.f32 0.0, %v1030
    %1032 = vdwg.mxu0
    %1033 = vmatprep.subr.mxu0 %v846
    %1034 = vmatpush1.msra.mxu0 %v845
    %1035 = vmatprep.subr.mxu0 %v883
    %1036 = vmatpush1.msra.mxu0 %v880
    %1037 = vmatprep.subr.mxu0 0.0
    %1038 = vmatpush1.msra.mxu0 0.0
    %1039 = vmatprep.subr.mxu0 0.0
    %1040 = vmatpush1.msra.mxu0 0.0
    %1041 = vmatprep.subr.mxu0 0.0
    %1042 = vmatpush1.msra.mxu0 0.0
    %1043 = vmatprep.subr.mxu0 0.0
    %1044 = vmatpush1.msra.mxu0 0.0
    %1045 = vmatprep.subr.mxu0 0.0
    %1046 = vmatpush1.msra.mxu0 0.0
    %1047 = vmatprep.subr.mxu0 0.0
    %1048 = vmatpush1.msra.mxu0 0.0
    %1049 = vmatprep.subr.mxu0 0.0
    %1050 = vmatpush1.msra.mxu0 0.0
    %1051 = vmatprep.subr.mxu0 0.0
    %1052 = vmatpush1.msra.mxu0 0.0
    %1053 = vmatprep.subr.mxu0 0.0
    %1054 = vmatpush1.msra.mxu0 0.0
    %1055 = vmatprep.subr.mxu0 0.0
    %1056 = vmatpush1.msra.mxu0 0.0
    %1057 = vmatprep.subr.mxu0 0.0
    %1058 = vmatpush1.msra.mxu0 0.0
    %1059 = vmatprep.subr.mxu0 0.0
    %1060 = vmatpush1.msra.mxu0 0.0
    %1061 = vmatprep.subr.mxu0 0.0
    %1062 = vmatpush1.msra.mxu0 0.0
    %1063 = vmatprep.subr.mxu0 0.0
    %1064 = vmatpush1.msra.mxu0 0.0
    %1065 = vmatprep.subr.mxu0 0.0
    %1066 = vmatpush1.msra.mxu0 0.0
    %1067 = vmatprep.subr.mxu0 0.0
    %1068 = vmatpush1.msra.mxu0 0.0
    %1069 = vmatprep.subr.mxu0 0.0
    %1070 = vmatpush1.msra.mxu0 0.0
    %1071 = vmatprep.subr.mxu0 0.0
    %1072 = vmatpush1.msra.mxu0 0.0
    %1073 = vmatprep.subr.mxu0 0.0
    %1074 = vmatpush1.msra.mxu0 0.0
    %1075 = vmatprep.subr.mxu0 0.0
    %1076 = vmatpush1.msra.mxu0 0.0
    %1077 = vmatprep.subr.mxu0 0.0
    %1078 = vmatpush1.msra.mxu0 0.0
    %1079 = vmatprep.subr.mxu0 0.0
    %1080 = vmatpush1.msra.mxu0 0.0
    %1081 = vmatprep.subr.mxu0 0.0
    %1082 = vmatpush1.msra.mxu0 0.0
    %1083 = vmatprep.subr.mxu0 0.0
    %1084 = vmatpush1.msra.mxu0 0.0
    %1085 = vmatprep.subr.mxu0 0.0
    %1086 = vmatpush1.msra.mxu0 0.0
    %1087 = vmatprep.subr.mxu0 0.0
    %1088 = vmatpush1.msra.mxu0 0.0
    %1089 = vmatprep.subr.mxu0 0.0
    %1090 = vmatpush1.msra.mxu0 0.0
    %1091 = vmatprep.subr.mxu0 0.0
    %1092 = vmatpush1.msra.mxu0 0.0
    %1093 = vmatprep.subr.mxu0 0.0
    %1094 = vmatpush1.msra.mxu0 0.0
    %1095 = vmatprep.subr.mxu0 0.0
    %1096 = vmatpush1.msra.mxu0 0.0
    %1097 = vmatprep.mubr.f32.mxu0 0.0
    %1098 = vmatmul.mubr.f32.gmra.mrb[0].mxu0 %v864
    %v1099 = vpop.f32.mrb[0].mxu0
    %v1100 = vadd.f32 0.0, %v1099
    %v1101 = vpop.f32.mrb[0].mxu0
    %v1102 = vadd.f32 0.0, %v1101
    %1103 = vdwg.mxu0
    %1104 = vmatprep.subr.mxu0 %v848
    %1105 = vmatpush1.msra.mxu0 %v847
    %1106 = vmatprep.subr.mxu0 %v889
    %1107 = vmatpush1.msra.mxu0 %v886
    %1108 = vmatprep.subr.mxu0 0.0
    %1109 = vmatpush1.msra.mxu0 0.0
    %1110 = vmatprep.subr.mxu0 0.0
    %1111 = vmatpush1.msra.mxu0 0.0
    %1112 = vmatprep.subr.mxu0 0.0
    %1113 = vmatpush1.msra.mxu0 0.0
    %1114 = vmatprep.subr.mxu0 0.0
    %1115 = vmatpush1.msra.mxu0 0.0
    %1116 = vmatprep.subr.mxu0 0.0
    %1117 = vmatpush1.msra.mxu0 0.0
    %1118 = vmatprep.subr.mxu0 0.0
    %1119 = vmatpush1.msra.mxu0 0.0
    %1120 = vmatprep.subr.mxu0 0.0
    %1121 = vmatpush1.msra.mxu0 0.0
    %1122 = vmatprep.subr.mxu0 0.0
    %1123 = vmatpush1.msra.mxu0 0.0
    %1124 = vmatprep.subr.mxu0 0.0
    %1125 = vmatpush1.msra.mxu0 0.0
    %1126 = vmatprep.subr.mxu0 0.0
    %1127 = vmatpush1.msra.mxu0 0.0
    %1128 = vmatprep.subr.mxu0 0.0
    %1129 = vmatpush1.msra.mxu0 0.0
    %1130 = vmatprep.subr.mxu0 0.0
    %1131 = vmatpush1.msra.mxu0 0.0
    %1132 = vmatprep.subr.mxu0 0.0
    %1133 = vmatpush1.msra.mxu0 0.0
    %1134 = vmatprep.subr.mxu0 0.0
    %1135 = vmatpush1.msra.mxu0 0.0
    %1136 = vmatprep.subr.mxu0 0.0
    %1137 = vmatpush1.msra.mxu0 0.0
    %1138 = vmatprep.subr.mxu0 0.0
    %1139 = vmatpush1.msra.mxu0 0.0
    %1140 = vmatprep.subr.mxu0 0.0
    %1141 = vmatpush1.msra.mxu0 0.0
    %1142 = vmatprep.subr.mxu0 0.0
    %1143 = vmatpush1.msra.mxu0 0.0
    %1144 = vmatprep.subr.mxu0 0.0
    %1145 = vmatpush1.msra.mxu0 0.0
    %1146 = vmatprep.subr.mxu0 0.0
    %1147 = vmatpush1.msra.mxu0 0.0
    %1148 = vmatprep.subr.mxu0 0.0
    %1149 = vmatpush1.msra.mxu0 0.0
    %1150 = vmatprep.subr.mxu0 0.0
    %1151 = vmatpush1.msra.mxu0 0.0
    %1152 = vmatprep.subr.mxu0 0.0
    %1153 = vmatpush1.msra.mxu0 0.0
    %1154 = vmatprep.subr.mxu0 0.0
    %1155 = vmatpush1.msra.mxu0 0.0
    %1156 = vmatprep.subr.mxu0 0.0
    %1157 = vmatpush1.msra.mxu0 0.0
    %1158 = vmatprep.subr.mxu0 0.0
    %1159 = vmatpush1.msra.mxu0 0.0
    %1160 = vmatprep.subr.mxu0 0.0
    %1161 = vmatpush1.msra.mxu0 0.0
    %1162 = vmatprep.subr.mxu0 0.0
    %1163 = vmatpush1.msra.mxu0 0.0
    %1164 = vmatprep.subr.mxu0 0.0
    %1165 = vmatpush1.msra.mxu0 0.0
    %1166 = vmatprep.subr.mxu0 0.0
    %1167 = vmatpush1.msra.mxu0 0.0
    %1168 = vmatprep.mubr.f32.mxu0 0.0
    %1169 = vmatmul.mubr.f32.gmra.mrb[0].mxu0 %v864
    %v1170 = vpop.f32.mrb[0].mxu0
    %v1171 = vadd.f32 0.0, %v1170
    %v1172 = vpop.f32.mrb[0].mxu0
    %v1173 = vadd.f32 0.0, %v1172
    %1174 = vdwg.mxu0
    %v1175 = vadd.f32 %v624, %v958
    %v1176 = vadd.f32 %v626, %v960
    %v1177 = vadd.f32 %v695, %v1029
    %v1178 = vadd.f32 %v697, %v1031
    %v1179 = vadd.f32 %v766, %v1100
    %v1180 = vadd.f32 %v768, %v1102
    %v1181 = vadd.f32 %v837, %v1171
    %v1182 = vadd.f32 %v839, %v1173
    %v1183 = vld [vmem:[#allocation10] sm:$0xff]
    %v1184 = vld [vmem:[#allocation10 + $0x8] sm:$0xff]
    %v1185 = vld [vmem:[#allocation10 + $0x10] sm:$0xff]
    %v1186 = vld [vmem:[#allocation10 + $0x18] sm:$0xff]
    %v1187 = vld [vmem:[#allocation10 + $0x20] sm:$0xff]
    %v1188 = vld [vmem:[#allocation10 + $0x28] sm:$0xff]
    %v1189 = vld [vmem:[#allocation10 + $0x30] sm:$0xff]
    %v1190 = vld [vmem:[#allocation10 + $0x38] sm:$0xff]
    %v1191 = vld [vmem:[#allocation10 + $0x40] sm:$0xf]
    %v1192 = vld [vmem:[#allocation10 + $0x48] sm:$0xf]
    %v1193 = vld [vmem:[#allocation10 + $0x50] sm:$0xf]
    %v1194 = vld [vmem:[#allocation10 + $0x58] sm:$0xf]
    %v1195 = vld [vmem:[#allocation10 + $0x60] sm:$0xf]
    %v1196 = vld [vmem:[#allocation10 + $0x68] sm:$0xf]
    %v1197 = vld [vmem:[#allocation10 + $0x70] sm:$0xf]
    %v1198 = vld [vmem:[#allocation10 + $0x78] sm:$0xf]
    %1199 = vset.pattern.permute.xlu0 3
    %1200 = vperm.xlu0 %1199, %v194
    %v1201 = vpop.permute.xlu0 %1200
    %vm1202 = vcmp.eq.s32.totalorder %v1201, %v196
    %v1203 = vsel %vm1202, 1.0, 0.0
    %v1205 = vsel %vm862, %v1203, 0
    %v1208 = vsel %vm866, %v1191, 0
    %v1211 = vsel %vm866, %v1192, 0
    %v1214 = vsel %vm866, %v1193, 0
    %v1217 = vsel %vm866, %v1194, 0
    %v1220 = vsel %vm866, %v1195, 0
    %v1223 = vsel %vm866, %v1196, 0
    %v1226 = vsel %vm866, %v1197, 0
    %v1229 = vsel %vm866, %v1198, 0
    %1231 = vmatprep.subr.mxu0 %v1184
    %1232 = vmatpush1.msra.mxu0 %v1183
    %1233 = vmatprep.subr.mxu0 %v1211
    %1234 = vmatpush1.msra.mxu0 %v1208
    %1235 = vmatprep.subr.mxu0 0.0
    %1236 = vmatpush1.msra.mxu0 0.0
    %1237 = vmatprep.subr.mxu0 0.0
    %1238 = vmatpush1.msra.mxu0 0.0
    %1239 = vmatprep.subr.mxu0 0.0
    %1240 = vmatpush1.msra.mxu0 0.0
    %1241 = vmatprep.subr.mxu0 0.0
    %1242 = vmatpush1.msra.mxu0 0.0
    %1243 = vmatprep.subr.mxu0 0.0
    %1244 = vmatpush1.msra.mxu0 0.0
    %1245 = vmatprep.subr.mxu0 0.0
    %1246 = vmatpush1.msra.mxu0 0.0
    %1247 = vmatprep.subr.mxu0 0.0
    %1248 = vmatpush1.msra.mxu0 0.0
    %1249 = vmatprep.subr.mxu0 0.0
    %1250 = vmatpush1.msra.mxu0 0.0
    %1251 = vmatprep.subr.mxu0 0.0
    %1252 = vmatpush1.msra.mxu0 0.0
    %1253 = vmatprep.subr.mxu0 0.0
    %1254 = vmatpush1.msra.mxu0 0.0
    %1255 = vmatprep.subr.mxu0 0.0
    %1256 = vmatpush1.msra.mxu0 0.0
    %1257 = vmatprep.subr.mxu0 0.0
    %1258 = vmatpush1.msra.mxu0 0.0
    %1259 = vmatprep.subr.mxu0 0.0
    %1260 = vmatpush1.msra.mxu0 0.0
    %1261 = vmatprep.subr.mxu0 0.0
    %1262 = vmatpush1.msra.mxu0 0.0
    %1263 = vmatprep.subr.mxu0 0.0
    %1264 = vmatpush1.msra.mxu0 0.0
    %1265 = vmatprep.subr.mxu0 0.0
    %1266 = vmatpush1.msra.mxu0 0.0
    %1267 = vmatprep.subr.mxu0 0.0
    %1268 = vmatpush1.msra.mxu0 0.0
    %1269 = vmatprep.subr.mxu0 0.0
    %1270 = vmatpush1.msra.mxu0 0.0
    %1271 = vmatprep.subr.mxu0 0.0
    %1272 = vmatpush1.msra.mxu0 0.0
    %1273 = vmatprep.subr.mxu0 0.0
    %1274 = vmatpush1.msra.mxu0 0.0
    %1275 = vmatprep.subr.mxu0 0.0
    %1276 = vmatpush1.msra.mxu0 0.0
    %1277 = vmatprep.subr.mxu0 0.0
    %1278 = vmatpush1.msra.mxu0 0.0
    %1279 = vmatprep.subr.mxu0 0.0
    %1280 = vmatpush1.msra.mxu0 0.0
    %1281 = vmatprep.subr.mxu0 0.0
    %1282 = vmatpush1.msra.mxu0 0.0
    %1283 = vmatprep.subr.mxu0 0.0
    %1284 = vmatpush1.msra.mxu0 0.0
    %1285 = vmatprep.subr.mxu0 0.0
    %1286 = vmatpush1.msra.mxu0 0.0
    %1287 = vmatprep.subr.mxu0 0.0
    %1288 = vmatpush1.msra.mxu0 0.0
    %1289 = vmatprep.subr.mxu0 0.0
    %1290 = vmatpush1.msra.mxu0 0.0
    %1291 = vmatprep.subr.mxu0 0.0
    %1292 = vmatpush1.msra.mxu0 0.0
    %1293 = vmatprep.subr.mxu0 0.0
    %1294 = vmatpush1.msra.mxu0 0.0
    %1295 = vmatprep.mubr.f32.mxu0 0.0
    %1296 = vmatmul.mubr.f32.gmra.mrb[0].mxu0 %v1205
    %v1297 = vpop.f32.mrb[0].mxu0
    %v1298 = vadd.f32 0.0, %v1297
    %v1299 = vpop.f32.mrb[0].mxu0
    %v1300 = vadd.f32 0.0, %v1299
    %1301 = vdwg.mxu0
    %1302 = vmatprep.subr.mxu0 %v1186
    %1303 = vmatpush1.msra.mxu0 %v1185
    %1304 = vmatprep.subr.mxu0 %v1217
    %1305 = vmatpush1.msra.mxu0 %v1214
    %1306 = vmatprep.subr.mxu0 0.0
    %1307 = vmatpush1.msra.mxu0 0.0
    %1308 = vmatprep.subr.mxu0 0.0
    %1309 = vmatpush1.msra.mxu0 0.0
    %1310 = vmatprep.subr.mxu0 0.0
    %1311 = vmatpush1.msra.mxu0 0.0
    %1312 = vmatprep.subr.mxu0 0.0
    %1313 = vmatpush1.msra.mxu0 0.0
    %1314 = vmatprep.subr.mxu0 0.0
    %1315 = vmatpush1.msra.mxu0 0.0
    %1316 = vmatprep.subr.mxu0 0.0
    %1317 = vmatpush1.msra.mxu0 0.0
    %1318 = vmatprep.subr.mxu0 0.0
    %1319 = vmatpush1.msra.mxu0 0.0
    %1320 = vmatprep.subr.mxu0 0.0
    %1321 = vmatpush1.msra.mxu0 0.0
    %1322 = vmatprep.subr.mxu0 0.0
    %1323 = vmatpush1.msra.mxu0 0.0
    %1324 = vmatprep.subr.mxu0 0.0
    %1325 = vmatpush1.msra.mxu0 0.0
    %1326 = vmatprep.subr.mxu0 0.0
    %1327 = vmatpush1.msra.mxu0 0.0
    %1328 = vmatprep.subr.mxu0 0.0
    %1329 = vmatpush1.msra.mxu0 0.0
    %1330 = vmatprep.subr.mxu0 0.0
    %1331 = vmatpush1.msra.mxu0 0.0
    %1332 = vmatprep.subr.mxu0 0.0
    %1333 = vmatpush1.msra.mxu0 0.0
    %1334 = vmatprep.subr.mxu0 0.0
    %1335 = vmatpush1.msra.mxu0 0.0
    %1336 = vmatprep.subr.mxu0 0.0
    %1337 = vmatpush1.msra.mxu0 0.0
    %1338 = vmatprep.subr.mxu0 0.0
    %1339 = vmatpush1.msra.mxu0 0.0
    %1340 = vmatprep.subr.mxu0 0.0
    %1341 = vmatpush1.msra.mxu0 0.0
    %1342 = vmatprep.subr.mxu0 0.0
    %1343 = vmatpush1.msra.mxu0 0.0
    %1344 = vmatprep.subr.mxu0 0.0
    %1345 = vmatpush1.msra.mxu0 0.0
    %1346 = vmatprep.subr.mxu0 0.0
    %1347 = vmatpush1.msra.mxu0 0.0
    %1348 = vmatprep.subr.mxu0 0.0
    %1349 = vmatpush1.msra.mxu0 0.0
    %1350 = vmatprep.subr.mxu0 0.0
    %1351 = vmatpush1.msra.mxu0 0.0
    %1352 = vmatprep.subr.mxu0 0.0
    %1353 = vmatpush1.msra.mxu0 0.0
    %1354 = vmatprep.subr.mxu0 0.0
    %1355 = vmatpush1.msra.mxu0 0.0
    %1356 = vmatprep.subr.mxu0 0.0
    %1357 = vmatpush1.msra.mxu0 0.0
    %1358 = vmatprep.subr.mxu0 0.0
    %1359 = vmatpush1.msra.mxu0 0.0
    %1360 = vmatprep.subr.mxu0 0.0
    %1361 = vmatpush1.msra.mxu0 0.0
    %1362 = vmatprep.subr.mxu0 0.0
    %1363 = vmatpush1.msra.mxu0 0.0
    %1364 = vmatprep.subr.mxu0 0.0
    %1365 = vmatpush1.msra.mxu0 0.0
    %1366 = vmatprep.mubr.f32.mxu0 0.0
    %1367 = vmatmul.mubr.f32.gmra.mrb[0].mxu0 %v1205
    %v1368 = vpop.f32.mrb[0].mxu0
    %v1369 = vadd.f32 0.0, %v1368
    %v1370 = vpop.f32.mrb[0].mxu0
    %v1371 = vadd.f32 0.0, %v1370
    %1372 = vdwg.mxu0
    %1373 = vmatprep.subr.mxu0 %v1188
    %1374 = vmatpush1.msra.mxu0 %v1187
    %1375 = vmatprep.subr.mxu0 %v1223
    %1376 = vmatpush1.msra.mxu0 %v1220
    %1377 = vmatprep.subr.mxu0 0.0
    %1378 = vmatpush1.msra.mxu0 0.0
    %1379 = vmatprep.subr.mxu0 0.0
    %1380 = vmatpush1.msra.mxu0 0.0
    %1381 = vmatprep.subr.mxu0 0.0
    %1382 = vmatpush1.msra.mxu0 0.0
    %1383 = vmatprep.subr.mxu0 0.0
    %1384 = vmatpush1.msra.mxu0 0.0
    %1385 = vmatprep.subr.mxu0 0.0
    %1386 = vmatpush1.msra.mxu0 0.0
    %1387 = vmatprep.subr.mxu0 0.0
    %1388 = vmatpush1.msra.mxu0 0.0
    %1389 = vmatprep.subr.mxu0 0.0
    %1390 = vmatpush1.msra.mxu0 0.0
    %1391 = vmatprep.subr.mxu0 0.0
    %1392 = vmatpush1.msra.mxu0 0.0
    %1393 = vmatprep.subr.mxu0 0.0
    %1394 = vmatpush1.msra.mxu0 0.0
    %1395 = vmatprep.subr.mxu0 0.0
    %1396 = vmatpush1.msra.mxu0 0.0
    %1397 = vmatprep.subr.mxu0 0.0
    %1398 = vmatpush1.msra.mxu0 0.0
    %1399 = vmatprep.subr.mxu0 0.0
    %1400 = vmatpush1.msra.mxu0 0.0
    %1401 = vmatprep.subr.mxu0 0.0
    %1402 = vmatpush1.msra.mxu0 0.0
    %1403 = vmatprep.subr.mxu0 0.0
    %1404 = vmatpush1.msra.mxu0 0.0
    %1405 = vmatprep.subr.mxu0 0.0
    %1406 = vmatpush1.msra.mxu0 0.0
    %1407 = vmatprep.subr.mxu0 0.0
    %1408 = vmatpush1.msra.mxu0 0.0
    %1409 = vmatprep.subr.mxu0 0.0
    %1410 = vmatpush1.msra.mxu0 0.0
    %1411 = vmatprep.subr.mxu0 0.0
    %1412 = vmatpush1.msra.mxu0 0.0
    %1413 = vmatprep.subr.mxu0 0.0
    %1414 = vmatpush1.msra.mxu0 0.0
    %1415 = vmatprep.subr.mxu0 0.0
    %1416 = vmatpush1.msra.mxu0 0.0
    %1417 = vmatprep.subr.mxu0 0.0
    %1418 = vmatpush1.msra.mxu0 0.0
    %1419 = vmatprep.subr.mxu0 0.0
    %1420 = vmatpush1.msra.mxu0 0.0
    %1421 = vmatprep.subr.mxu0 0.0
    %1422 = vmatpush1.msra.mxu0 0.0
    %1423 = vmatprep.subr.mxu0 0.0
    %1424 = vmatpush1.msra.mxu0 0.0
    %1425 = vmatprep.subr.mxu0 0.0
    %1426 = vmatpush1.msra.mxu0 0.0
    %1427 = vmatprep.subr.mxu0 0.0
    %1428 = vmatpush1.msra.mxu0 0.0
    %1429 = vmatprep.subr.mxu0 0.0
    %1430 = vmatpush1.msra.mxu0 0.0
    %1431 = vmatprep.subr.mxu0 0.0
    %1432 = vmatpush1.msra.mxu0 0.0
    %1433 = vmatprep.subr.mxu0 0.0
    %1434 = vmatpush1.msra.mxu0 0.0
    %1435 = vmatprep.subr.mxu0 0.0
    %1436 = vmatpush1.msra.mxu0 0.0
    %1437 = vmatprep.mubr.f32.mxu0 0.0
    %1438 = vmatmul.mubr.f32.gmra.mrb[0].mxu0 %v1205
    %v1439 = vpop.f32.mrb[0].mxu0
    %v1440 = vadd.f32 0.0, %v1439
    %v1441 = vpop.f32.mrb[0].mxu0
    %v1442 = vadd.f32 0.0, %v1441
    %1443 = vdwg.mxu0
    %1444 = vmatprep.subr.mxu0 %v1190
    %1445 = vmatpush1.msra.mxu0 %v1189
    %1446 = vmatprep.subr.mxu0 %v1229
    %1447 = vmatpush1.msra.mxu0 %v1226
    %1448 = vmatprep.subr.mxu0 0.0
    %1449 = vmatpush1.msra.mxu0 0.0
    %1450 = vmatprep.subr.mxu0 0.0
    %1451 = vmatpush1.msra.mxu0 0.0
    %1452 = vmatprep.subr.mxu0 0.0
    %1453 = vmatpush1.msra.mxu0 0.0
    %1454 = vmatprep.subr.mxu0 0.0
    %1455 = vmatpush1.msra.mxu0 0.0
    %1456 = vmatprep.subr.mxu0 0.0
    %1457 = vmatpush1.msra.mxu0 0.0
    %1458 = vmatprep.subr.mxu0 0.0
    %1459 = vmatpush1.msra.mxu0 0.0
    %1460 = vmatprep.subr.mxu0 0.0
    %1461 = vmatpush1.msra.mxu0 0.0
    %1462 = vmatprep.subr.mxu0 0.0
    %1463 = vmatpush1.msra.mxu0 0.0
    %1464 = vmatprep.subr.mxu0 0.0
    %1465 = vmatpush1.msra.mxu0 0.0
    %1466 = vmatprep.subr.mxu0 0.0
    %1467 = vmatpush1.msra.mxu0 0.0
    %1468 = vmatprep.subr.mxu0 0.0
    %1469 = vmatpush1.msra.mxu0 0.0
    %1470 = vmatprep.subr.mxu0 0.0
    %1471 = vmatpush1.msra.mxu0 0.0
    %1472 = vmatprep.subr.mxu0 0.0
    %1473 = vmatpush1.msra.mxu0 0.0
    %1474 = vmatprep.subr.mxu0 0.0
    %1475 = vmatpush1.msra.mxu0 0.0
    %1476 = vmatprep.subr.mxu0 0.0
    %1477 = vmatpush1.msra.mxu0 0.0
    %1478 = vmatprep.subr.mxu0 0.0
    %1479 = vmatpush1.msra.mxu0 0.0
    %1480 = vmatprep.subr.mxu0 0.0
    %1481 = vmatpush1.msra.mxu0 0.0
    %1482 = vmatprep.subr.mxu0 0.0
    %1483 = vmatpush1.msra.mxu0 0.0
    %1484 = vmatprep.subr.mxu0 0.0
    %1485 = vmatpush1.msra.mxu0 0.0
    %1486 = vmatprep.subr.mxu0 0.0
    %1487 = vmatpush1.msra.mxu0 0.0
    %1488 = vmatprep.subr.mxu0 0.0
    %1489 = vmatpush1.msra.mxu0 0.0
    %1490 = vmatprep.subr.mxu0 0.0
    %1491 = vmatpush1.msra.mxu0 0.0
    %1492 = vmatprep.subr.mxu0 0.0
    %1493 = vmatpush1.msra.mxu0 0.0
    %1494 = vmatprep.subr.mxu0 0.0
    %1495 = vmatpush1.msra.mxu0 0.0
    %1496 = vmatprep.subr.mxu0 0.0
    %1497 = vmatpush1.msra.mxu0 0.0
    %1498 = vmatprep.subr.mxu0 0.0
    %1499 = vmatpush1.msra.mxu0 0.0
    %1500 = vmatprep.subr.mxu0 0.0
    %1501 = vmatpush1.msra.mxu0 0.0
    %1502 = vmatprep.subr.mxu0 0.0
    %1503 = vmatpush1.msra.mxu0 0.0
    %1504 = vmatprep.subr.mxu0 0.0
    %1505 = vmatpush1.msra.mxu0 0.0
    %1506 = vmatprep.subr.mxu0 0.0
    %1507 = vmatpush1.msra.mxu0 0.0
    %1508 = vmatprep.mubr.f32.mxu0 0.0
    %1509 = vmatmul.mubr.f32.gmra.mrb[0].mxu0 %v1205
    %v1510 = vpop.f32.mrb[0].mxu0
    %v1511 = vadd.f32 0.0, %v1510
    %v1512 = vpop.f32.mrb[0].mxu0
    %v1513 = vadd.f32 0.0, %v1512
    %1514 = vdwg.mxu0
    %v1515 = vadd.f32 %v1175, %v1298
    %v1516 = vadd.f32 %v1176, %v1300
    %v1517 = vadd.f32 %v1177, %v1369
    %v1518 = vadd.f32 %v1178, %v1371
    %v1519 = vadd.f32 %v1179, %v1440
    %v1520 = vadd.f32 %v1180, %v1442
    %v1521 = vadd.f32 %v1181, %v1511
    %v1522 = vadd.f32 %v1182, %v1513
    %v1523 = vld [vmem:[#allocation11] sm:$0x3f]
    %v1524 = vld [vmem:[#allocation11 + $0x8] sm:$0x3f]
    %v1525 = vld [vmem:[#allocation11 + $0x10] sm:$0x3f]
    %v1526 = vld [vmem:[#allocation11 + $0x18] sm:$0x3f]
    %v1527 = vld [vmem:[#allocation11 + $0x20] sm:$0x3f]
    %v1528 = vld [vmem:[#allocation11 + $0x28] sm:$0x3f]
    %v1529 = vld [vmem:[#allocation11 + $0x30] sm:$0x3f]
    %v1530 = vld [vmem:[#allocation11 + $0x38] sm:$0x3f]
    %1532 = vrot.lane.b32.xlu0 %v177, 124
    %v1533 = vpop.permute.xlu0 %1532
    %vm1534 = vcmask 48128
    %v1535 = vsel %vm1534, %v1533, 0
    %vm1537 = vcmask 1045504
    %v1539 = vsel %vm1537, %v1523, 0
    %v1542 = vsel %vm1537, %v1524, 0
    %v1545 = vsel %vm1537, %v1525, 0
    %v1548 = vsel %vm1537, %v1526, 0
    %v1551 = vsel %vm1537, %v1527, 0
    %v1554 = vsel %vm1537, %v1528, 0
    %v1557 = vsel %vm1537, %v1529, 0
    %v1560 = vsel %vm1537, %v1530, 0
    %1562 = vmatprep.subr.mxu0 %v1542
    %1563 = vmatpush1.msra.mxu0 %v1539
    %1564 = vmatprep.subr.mxu0 0.0
    %1565 = vmatpush1.msra.mxu0 0.0
    %1566 = vmatprep.subr.mxu0 0.0
    %1567 = vmatpush1.msra.mxu0 0.0
    %1568 = vmatprep.subr.mxu0 0.0
    %1569 = vmatpush1.msra.mxu0 0.0
    %1570 = vmatprep.subr.mxu0 0.0
    %1571 = vmatpush1.msra.mxu0 0.0
    %1572 = vmatprep.subr.mxu0 0.0
    %1573 = vmatpush1.msra.mxu0 0.0
    %1574 = vmatprep.subr.mxu0 0.0
    %1575 = vmatpush1.msra.mxu0 0.0
    %1576 = vmatprep.subr.mxu0 0.0
    %1577 = vmatpush1.msra.mxu0 0.0
    %1578 = vmatprep.subr.mxu0 0.0
    %1579 = vmatpush1.msra.mxu0 0.0
    %1580 = vmatprep.subr.mxu0 0.0
    %1581 = vmatpush1.msra.mxu0 0.0
    %1582 = vmatprep.subr.mxu0 0.0
    %1583 = vmatpush1.msra.mxu0 0.0
    %1584 = vmatprep.subr.mxu0 0.0
    %1585 = vmatpush1.msra.mxu0 0.0
    %1586 = vmatprep.subr.mxu0 0.0
    %1587 = vmatpush1.msra.mxu0 0.0
    %1588 = vmatprep.subr.mxu0 0.0
    %1589 = vmatpush1.msra.mxu0 0.0
    %1590 = vmatprep.subr.mxu0 0.0
    %1591 = vmatpush1.msra.mxu0 0.0
    %1592 = vmatprep.subr.mxu0 0.0
    %1593 = vmatpush1.msra.mxu0 0.0
    %1594 = vmatprep.subr.mxu0 0.0
    %1595 = vmatpush1.msra.mxu0 0.0
    %1596 = vmatprep.subr.mxu0 0.0
    %1597 = vmatpush1.msra.mxu0 0.0
    %1598 = vmatprep.subr.mxu0 0.0
    %1599 = vmatpush1.msra.mxu0 0.0
    %1600 = vmatprep.subr.mxu0 0.0
    %1601 = vmatpush1.msra.mxu0 0.0
    %1602 = vmatprep.subr.mxu0 0.0
    %1603 = vmatpush1.msra.mxu0 0.0
    %1604 = vmatprep.subr.mxu0 0.0
    %1605 = vmatpush1.msra.mxu0 0.0
    %1606 = vmatprep.subr.mxu0 0.0
    %1607 = vmatpush1.msra.mxu0 0.0
    %1608 = vmatprep.subr.mxu0 0.0
    %1609 = vmatpush1.msra.mxu0 0.0
    %1610 = vmatprep.subr.mxu0 0.0
    %1611 = vmatpush1.msra.mxu0 0.0
    %1612 = vmatprep.subr.mxu0 0.0
    %1613 = vmatpush1.msra.mxu0 0.0
    %1614 = vmatprep.subr.mxu0 0.0
    %1615 = vmatpush1.msra.mxu0 0.0
    %1616 = vmatprep.subr.mxu0 0.0
    %1617 = vmatpush1.msra.mxu0 0.0
    %1618 = vmatprep.subr.mxu0 0.0
    %1619 = vmatpush1.msra.mxu0 0.0
    %1620 = vmatprep.subr.mxu0 0.0
    %1621 = vmatpush1.msra.mxu0 0.0
    %1622 = vmatprep.subr.mxu0 0.0
    %1623 = vmatpush1.msra.mxu0 0.0
    %1624 = vmatprep.subr.mxu0 0.0
    %1625 = vmatpush1.msra.mxu0 0.0
    %1626 = vmatprep.mubr.f32.mxu0 0.0
    %1627 = vmatmul.mubr.f32.gmra.mrb[0].mxu0 %v1535
    %v1628 = vpop.f32.mrb[0].mxu0
    %v1629 = vadd.f32 0.0, %v1628
    %v1630 = vpop.f32.mrb[0].mxu0
    %v1631 = vadd.f32 0.0, %v1630
    %1632 = vdwg.mxu0
    %1633 = vmatprep.subr.mxu0 %v1548
    %1634 = vmatpush1.msra.mxu0 %v1545
    %1635 = vmatprep.subr.mxu0 0.0
    %1636 = vmatpush1.msra.mxu0 0.0
    %1637 = vmatprep.subr.mxu0 0.0
    %1638 = vmatpush1.msra.mxu0 0.0
    %1639 = vmatprep.subr.mxu0 0.0
    %1640 = vmatpush1.msra.mxu0 0.0
    %1641 = vmatprep.subr.mxu0 0.0
    %1642 = vmatpush1.msra.mxu0 0.0
    %1643 = vmatprep.subr.mxu0 0.0
    %1644 = vmatpush1.msra.mxu0 0.0
    %1645 = vmatprep.subr.mxu0 0.0
    %1646 = vmatpush1.msra.mxu0 0.0
    %1647 = vmatprep.subr.mxu0 0.0
    %1648 = vmatpush1.msra.mxu0 0.0
    %1649 = vmatprep.subr.mxu0 0.0
    %1650 = vmatpush1.msra.mxu0 0.0
    %1651 = vmatprep.subr.mxu0 0.0
    %1652 = vmatpush1.msra.mxu0 0.0
    %1653 = vmatprep.subr.mxu0 0.0
    %1654 = vmatpush1.msra.mxu0 0.0
    %1655 = vmatprep.subr.mxu0 0.0
    %1656 = vmatpush1.msra.mxu0 0.0
    %1657 = vmatprep.subr.mxu0 0.0
    %1658 = vmatpush1.msra.mxu0 0.0
    %1659 = vmatprep.subr.mxu0 0.0
    %1660 = vmatpush1.msra.mxu0 0.0
    %1661 = vmatprep.subr.mxu0 0.0
    %1662 = vmatpush1.msra.mxu0 0.0
    %1663 = vmatprep.subr.mxu0 0.0
    %1664 = vmatpush1.msra.mxu0 0.0
    %1665 = vmatprep.subr.mxu0 0.0
    %1666 = vmatpush1.msra.mxu0 0.0
    %1667 = vmatprep.subr.mxu0 0.0
    %1668 = vmatpush1.msra.mxu0 0.0
    %1669 = vmatprep.subr.mxu0 0.0
    %1670 = vmatpush1.msra.mxu0 0.0
    %1671 = vmatprep.subr.mxu0 0.0
    %1672 = vmatpush1.msra.mxu0 0.0
    %1673 = vmatprep.subr.mxu0 0.0
    %1674 = vmatpush1.msra.mxu0 0.0
    %1675 = vmatprep.subr.mxu0 0.0
    %1676 = vmatpush1.msra.mxu0 0.0
    %1677 = vmatprep.subr.mxu0 0.0
    %1678 = vmatpush1.msra.mxu0 0.0
    %1679 = vmatprep.subr.mxu0 0.0
    %1680 = vmatpush1.msra.mxu0 0.0
    %1681 = vmatprep.subr.mxu0 0.0
    %1682 = vmatpush1.msra.mxu0 0.0
    %1683 = vmatprep.subr.mxu0 0.0
    %1684 = vmatpush1.msra.mxu0 0.0
    %1685 = vmatprep.subr.mxu0 0.0
    %1686 = vmatpush1.msra.mxu0 0.0
    %1687 = vmatprep.subr.mxu0 0.0
    %1688 = vmatpush1.msra.mxu0 0.0
    %1689 = vmatprep.subr.mxu0 0.0
    %1690 = vmatpush1.msra.mxu0 0.0
    %1691 = vmatprep.subr.mxu0 0.0
    %1692 = vmatpush1.msra.mxu0 0.0
    %1693 = vmatprep.subr.mxu0 0.0
    %1694 = vmatpush1.msra.mxu0 0.0
    %1695 = vmatprep.subr.mxu0 0.0
    %1696 = vmatpush1.msra.mxu0 0.0
    %1697 = vmatprep.mubr.f32.mxu0 0.0
    %1698 = vmatmul.mubr.f32.gmra.mrb[0].mxu0 %v1535
    %v1699 = vpop.f32.mrb[0].mxu0
    %v1700 = vadd.f32 0.0, %v1699
    %v1701 = vpop.f32.mrb[0].mxu0
    %v1702 = vadd.f32 0.0, %v1701
    %1703 = vdwg.mxu0
    %1704 = vmatprep.subr.mxu0 %v1554
    %1705 = vmatpush1.msra.mxu0 %v1551
    %1706 = vmatprep.subr.mxu0 0.0
    %1707 = vmatpush1.msra.mxu0 0.0
    %1708 = vmatprep.subr.mxu0 0.0
    %1709 = vmatpush1.msra.mxu0 0.0
    %1710 = vmatprep.subr.mxu0 0.0
    %1711 = vmatpush1.msra.mxu0 0.0
    %1712 = vmatprep.subr.mxu0 0.0
    %1713 = vmatpush1.msra.mxu0 0.0
    %1714 = vmatprep.subr.mxu0 0.0
    %1715 = vmatpush1.msra.mxu0 0.0
    %1716 = vmatprep.subr.mxu0 0.0
    %1717 = vmatpush1.msra.mxu0 0.0
    %1718 = vmatprep.subr.mxu0 0.0
    %1719 = vmatpush1.msra.mxu0 0.0
    %1720 = vmatprep.subr.mxu0 0.0
    %1721 = vmatpush1.msra.mxu0 0.0
    %1722 = vmatprep.subr.mxu0 0.0
    %1723 = vmatpush1.msra.mxu0 0.0
    %1724 = vmatprep.subr.mxu0 0.0
    %1725 = vmatpush1.msra.mxu0 0.0
    %1726 = vmatprep.subr.mxu0 0.0
    %1727 = vmatpush1.msra.mxu0 0.0
    %1728 = vmatprep.subr.mxu0 0.0
    %1729 = vmatpush1.msra.mxu0 0.0
    %1730 = vmatprep.subr.mxu0 0.0
    %1731 = vmatpush1.msra.mxu0 0.0
    %1732 = vmatprep.subr.mxu0 0.0
    %1733 = vmatpush1.msra.mxu0 0.0
    %1734 = vmatprep.subr.mxu0 0.0
    %1735 = vmatpush1.msra.mxu0 0.0
    %1736 = vmatprep.subr.mxu0 0.0
    %1737 = vmatpush1.msra.mxu0 0.0
    %1738 = vmatprep.subr.mxu0 0.0
    %1739 = vmatpush1.msra.mxu0 0.0
    %1740 = vmatprep.subr.mxu0 0.0
    %1741 = vmatpush1.msra.mxu0 0.0
    %1742 = vmatprep.subr.mxu0 0.0
    %1743 = vmatpush1.msra.mxu0 0.0
    %1744 = vmatprep.subr.mxu0 0.0
    %1745 = vmatpush1.msra.mxu0 0.0
    %1746 = vmatprep.subr.mxu0 0.0
    %1747 = vmatpush1.msra.mxu0 0.0
    %1748 = vmatprep.subr.mxu0 0.0
    %1749 = vmatpush1.msra.mxu0 0.0
    %1750 = vmatprep.subr.mxu0 0.0
    %1751 = vmatpush1.msra.mxu0 0.0
    %1752 = vmatprep.subr.mxu0 0.0
    %1753 = vmatpush1.msra.mxu0 0.0
    %1754 = vmatprep.subr.mxu0 0.0
    %1755 = vmatpush1.msra.mxu0 0.0
    %1756 = vmatprep.subr.mxu0 0.0
    %1757 = vmatpush1.msra.mxu0 0.0
    %1758 = vmatprep.subr.mxu0 0.0
    %1759 = vmatpush1.msra.mxu0 0.0
    %1760 = vmatprep.subr.mxu0 0.0
    %1761 = vmatpush1.msra.mxu0 0.0
    %1762 = vmatprep.subr.mxu0 0.0
    %1763 = vmatpush1.msra.mxu0 0.0
    %1764 = vmatprep.subr.mxu0 0.0
    %1765 = vmatpush1.msra.mxu0 0.0
    %1766 = vmatprep.subr.mxu0 0.0
    %1767 = vmatpush1.msra.mxu0 0.0
    %1768 = vmatprep.mubr.f32.mxu0 0.0
    %1769 = vmatmul.mubr.f32.gmra.mrb[0].mxu0 %v1535
    %v1770 = vpop.f32.mrb[0].mxu0
    %v1771 = vadd.f32 0.0, %v1770
    %v1772 = vpop.f32.mrb[0].mxu0
    %v1773 = vadd.f32 0.0, %v1772
    %1774 = vdwg.mxu0
    %1775 = vmatprep.subr.mxu0 %v1560
    %1776 = vmatpush1.msra.mxu0 %v1557
    %1777 = vmatprep.subr.mxu0 0.0
    %1778 = vmatpush1.msra.mxu0 0.0
    %1779 = vmatprep.subr.mxu0 0.0
    %1780 = vmatpush1.msra.mxu0 0.0
    %1781 = vmatprep.subr.mxu0 0.0
    %1782 = vmatpush1.msra.mxu0 0.0
    %1783 = vmatprep.subr.mxu0 0.0
    %1784 = vmatpush1.msra.mxu0 0.0
    %1785 = vmatprep.subr.mxu0 0.0
    %1786 = vmatpush1.msra.mxu0 0.0
    %1787 = vmatprep.subr.mxu0 0.0
    %1788 = vmatpush1.msra.mxu0 0.0
    %1789 = vmatprep.subr.mxu0 0.0
    %1790 = vmatpush1.msra.mxu0 0.0
    %1791 = vmatprep.subr.mxu0 0.0
    %1792 = vmatpush1.msra.mxu0 0.0
    %1793 = vmatprep.subr.mxu0 0.0
    %1794 = vmatpush1.msra.mxu0 0.0
    %1795 = vmatprep.subr.mxu0 0.0
    %1796 = vmatpush1.msra.mxu0 0.0
    %1797 = vmatprep.subr.mxu0 0.0
    %1798 = vmatpush1.msra.mxu0 0.0
    %1799 = vmatprep.subr.mxu0 0.0
    %1800 = vmatpush1.msra.mxu0 0.0
    %1801 = vmatprep.subr.mxu0 0.0
    %1802 = vmatpush1.msra.mxu0 0.0
    %1803 = vmatprep.subr.mxu0 0.0
    %1804 = vmatpush1.msra.mxu0 0.0
    %1805 = vmatprep.subr.mxu0 0.0
    %1806 = vmatpush1.msra.mxu0 0.0
    %1807 = vmatprep.subr.mxu0 0.0
    %1808 = vmatpush1.msra.mxu0 0.0
    %1809 = vmatprep.subr.mxu0 0.0
    %1810 = vmatpush1.msra.mxu0 0.0
    %1811 = vmatprep.subr.mxu0 0.0
    %1812 = vmatpush1.msra.mxu0 0.0
    %1813 = vmatprep.subr.mxu0 0.0
    %1814 = vmatpush1.msra.mxu0 0.0
    %1815 = vmatprep.subr.mxu0 0.0
    %1816 = vmatpush1.msra.mxu0 0.0
    %1817 = vmatprep.subr.mxu0 0.0
    %1818 = vmatpush1.msra.mxu0 0.0
    %1819 = vmatprep.subr.mxu0 0.0
    %1820 = vmatpush1.msra.mxu0 0.0
    %1821 = vmatprep.subr.mxu0 0.0
    %1822 = vmatpush1.msra.mxu0 0.0
    %1823 = vmatprep.subr.mxu0 0.0
    %1824 = vmatpush1.msra.mxu0 0.0
    %1825 = vmatprep.subr.mxu0 0.0
    %1826 = vmatpush1.msra.mxu0 0.0
    %1827 = vmatprep.subr.mxu0 0.0
    %1828 = vmatpush1.msra.mxu0 0.0
    %1829 = vmatprep.subr.mxu0 0.0
    %1830 = vmatpush1.msra.mxu0 0.0
    %1831 = vmatprep.subr.mxu0 0.0
    %1832 = vmatpush1.msra.mxu0 0.0
    %1833 = vmatprep.subr.mxu0 0.0
    %1834 = vmatpush1.msra.mxu0 0.0
    %1835 = vmatprep.subr.mxu0 0.0
    %1836 = vmatpush1.msra.mxu0 0.0
    %1837 = vmatprep.subr.mxu0 0.0
    %1838 = vmatpush1.msra.mxu0 0.0
    %1839 = vmatprep.mubr.f32.mxu0 0.0
    %1840 = vmatmul.mubr.f32.gmra.mrb[0].mxu0 %v1535
    %v1841 = vpop.f32.mrb[0].mxu0
    %v1842 = vadd.f32 0.0, %v1841
    %v1843 = vpop.f32.mrb[0].mxu0
    %v1844 = vadd.f32 0.0, %v1843
    %1845 = vdwg.mxu0
    %v1846 = vadd.f32 %v1515, %v1629
    %v1847 = vadd.f32 %v1516, %v1631
    %v1848 = vadd.f32 %v1517, %v1700
    %v1849 = vadd.f32 %v1518, %v1702
    %v1850 = vadd.f32 %v1519, %v1771
    %v1851 = vadd.f32 %v1520, %v1773
    %v1852 = vadd.f32 %v1521, %v1842
    %v1853 = vadd.f32 %v1522, %v1844
    %v1854 = vld [vmem:[#allocation13] sm:$0xff]
    %v1856 = vlaneseq
    %v1857 = vshrl.u32 %v1856, 7
    %v1858 = vsub.s32 0, %v1857
    %v1859 = vrot.slane %v1854, %v1858
    %v1860 = vlaneseq
    %v1861 = vshrl.u32 %v1860, 7
    %v1862 = vsub.s32 1, %v1861
    %v1863 = vrot.slane %v1854, %v1862
    %v1864 = vlaneseq
    %v1865 = vshrl.u32 %v1864, 7
    %v1866 = vsub.s32 2, %v1865
    %v1867 = vrot.slane %v1854, %v1866
    %v1868 = vlaneseq
    %v1869 = vshrl.u32 %v1868, 7
    %v1870 = vsub.s32 3, %v1869
    %v1871 = vrot.slane %v1854, %v1870
    %v1872 = vlaneseq
    %v1873 = vshrl.u32 %v1872, 7
    %v1874 = vsub.s32 4, %v1873
    %v1875 = vrot.slane %v1854, %v1874
    %v1876 = vlaneseq
    %v1877 = vshrl.u32 %v1876, 7
    %v1878 = vsub.s32 5, %v1877
    %v1879 = vrot.slane %v1854, %v1878
    %v1880 = vlaneseq
    %v1881 = vshrl.u32 %v1880, 7
    %v1882 = vsub.s32 6, %v1881
    %v1883 = vrot.slane %v1854, %v1882
    %v1884 = vlaneseq
    %v1885 = vshrl.u32 %v1884, 7
    %v1886 = vsub.s32 7, %v1885
    %v1887 = vrot.slane %v1854, %v1886
    %v1896 = vadd.f32 %v1846, %v1859
    %v1897 = vadd.f32 %v1847, %v1863
    %v1898 = vadd.f32 %v1848, %v1867
    %v1899 = vadd.f32 %v1849, %v1871
    %v1900 = vadd.f32 %v1850, %v1875
    %v1901 = vadd.f32 %v1851, %v1879
    %v1902 = vadd.f32 %v1852, %v1883
    %v1903 = vadd.f32 %v1853, %v1887
    %v1904 = vmax.f32 %v1896, 0.0
    %v1905 = vmax.f32 %v1897, 0.0
    %v1906 = vmax.f32 %v1898, 0.0
    %v1907 = vmax.f32 %v1899, 0.0
    %v1908 = vmax.f32 %v1900, 0.0
    %v1909 = vmax.f32 %v1901, 0.0
    %v1910 = vmax.f32 %v1902, 0.0
    %v1911 = vmax.f32 %v1903, 0.0
    %v1912 = vpack.c.bf16 %v1904, %v1904
    %v1913 = vpack.c.bf16 %v1905, %v1905
    %v1914 = vpack.c.bf16 %v1906, %v1906
    %v1915 = vpack.c.bf16 %v1907, %v1907
    %v1916 = vpack.c.bf16 %v1908, %v1908
    %v1917 = vpack.c.bf16 %v1909, %v1909
    %v1918 = vpack.c.bf16 %v1910, %v1910
    %v1919 = vpack.c.bf16 %v1911, %v1911
    %v1920 = vld [vmem:[#allocation14] sm:$0xff]
    %v1921 = vld [vmem:[#allocation14 + $0x8] sm:$0xff]
    %v1922 = vld [vmem:[#allocation14 + $0x10] sm:$0xff]
    %v1923 = vld [vmem:[#allocation14 + $0x18] sm:$0xff]
    %v1924 = vld [vmem:[#allocation14 + $0x20] sm:$0xff]
    %v1925 = vld [vmem:[#allocation14 + $0x28] sm:$0xff]
    %v1926 = vld [vmem:[#allocation14 + $0x30] sm:$0xff]
    %v1927 = vld [vmem:[#allocation14 + $0x38] sm:$0xff]
    %v1928 = vld [vmem:[#allocation14 + $0x40] sm:$0xff]
    %v1929 = vld [vmem:[#allocation14 + $0x48] sm:$0xff]
    %v1930 = vld [vmem:[#allocation14 + $0x50] sm:$0xff]
    %v1931 = vld [vmem:[#allocation14 + $0x58] sm:$0xff]
    %v1932 = vld [vmem:[#allocation14 + $0x60] sm:$0xff]
    %v1933 = vld [vmem:[#allocation14 + $0x68] sm:$0xff]
    %v1934 = vld [vmem:[#allocation14 + $0x70] sm:$0xff]
    %v1935 = vld [vmem:[#allocation14 + $0x78] sm:$0xff]
    %v1936 = vld [vmem:[#allocation14 + $0x80] sm:$0xff]
    %v1937 = vld [vmem:[#allocation14 + $0x88] sm:$0xff]
    %v1938 = vld [vmem:[#allocation14 + $0x90] sm:$0xff]
    %v1939 = vld [vmem:[#allocation14 + $0x98] sm:$0xff]
    %v1940 = vld [vmem:[#allocation14 + $0xa0] sm:$0xff]
    %v1941 = vld [vmem:[#allocation14 + $0xa8] sm:$0xff]
    %v1942 = vld [vmem:[#allocation14 + $0xb0] sm:$0xff]
    %v1943 = vld [vmem:[#allocation14 + $0xb8] sm:$0xff]
    %v1944 = vld [vmem:[#allocation14 + $0xc0] sm:$0xff]
    %v1945 = vld [vmem:[#allocation14 + $0xc8] sm:$0xff]
    %v1946 = vld [vmem:[#allocation14 + $0xd0] sm:$0xff]
    %v1947 = vld [vmem:[#allocation14 + $0xd8] sm:$0xff]
    %v1948 = vld [vmem:[#allocation14 + $0xe0] sm:$0xff]
    %v1949 = vld [vmem:[#allocation14 + $0xe8] sm:$0xff]
    %v1950 = vld [vmem:[#allocation14 + $0xf0] sm:$0xff]
    %v1951 = vld [vmem:[#allocation14 + $0xf8] sm:$0xff]
    %v1952 = vld [vmem:[#allocation14 + $0x100] sm:$0xff]
    %v1953 = vld [vmem:[#allocation14 + $0x108] sm:$0xff]
    %v1954 = vld [vmem:[#allocation14 + $0x110] sm:$0xff]
    %v1955 = vld [vmem:[#allocation14 + $0x118] sm:$0xff]
    %v1956 = vld [vmem:[#allocation14 + $0x120] sm:$0xff]
    %v1957 = vld [vmem:[#allocation14 + $0x128] sm:$0xff]
    %v1958 = vld [vmem:[#allocation14 + $0x130] sm:$0xff]
    %v1959 = vld [vmem:[#allocation14 + $0x138] sm:$0xff]
    %v1960 = vld [vmem:[#allocation14 + $0x140] sm:$0xff]
    %v1961 = vld [vmem:[#allocation14 + $0x148] sm:$0xff]
    %v1962 = vld [vmem:[#allocation14 + $0x150] sm:$0xff]
    %v1963 = vld [vmem:[#allocation14 + $0x158] sm:$0xff]
    %v1964 = vld [vmem:[#allocation14 + $0x160] sm:$0xff]
    %v1965 = vld [vmem:[#allocation14 + $0x168] sm:$0xff]
    %v1966 = vld [vmem:[#allocation14 + $0x170] sm:$0xff]
    %v1967 = vld [vmem:[#allocation14 + $0x178] sm:$0xff]
    %v1968 = vld [vmem:[#allocation14 + $0x180] sm:$0xff]
    %v1969 = vld [vmem:[#allocation14 + $0x188] sm:$0xff]
    %v1970 = vld [vmem:[#allocation14 + $0x190] sm:$0xff]
    %v1971 = vld [vmem:[#allocation14 + $0x198] sm:$0xff]
    %v1972 = vld [vmem:[#allocation14 + $0x1a0] sm:$0xff]
    %v1973 = vld [vmem:[#allocation14 + $0x1a8] sm:$0xff]
    %v1974 = vld [vmem:[#allocation14 + $0x1b0] sm:$0xff]
    %v1975 = vld [vmem:[#allocation14 + $0x1b8] sm:$0xff]
    %v1976 = vld [vmem:[#allocation14 + $0x1c0] sm:$0xff]
    %v1977 = vld [vmem:[#allocation14 + $0x1c8] sm:$0xff]
    %v1978 = vld [vmem:[#allocation14 + $0x1d0] sm:$0xff]
    %v1979 = vld [vmem:[#allocation14 + $0x1d8] sm:$0xff]
    %v1980 = vld [vmem:[#allocation14 + $0x1e0] sm:$0xff]
    %v1981 = vld [vmem:[#allocation14 + $0x1e8] sm:$0xff]
    %v1982 = vld [vmem:[#allocation14 + $0x1f0] sm:$0xff]
    %v1983 = vld [vmem:[#allocation14 + $0x1f8] sm:$0xff]
    %v1984 = vld [vmem:[#allocation14 + $0x200] sm:$0xff]
    %v1985 = vld [vmem:[#allocation14 + $0x208] sm:$0xff]
    %v1986 = vld [vmem:[#allocation14 + $0x210] sm:$0xff]
    %v1987 = vld [vmem:[#allocation14 + $0x218] sm:$0xff]
    %v1988 = vld [vmem:[#allocation14 + $0x220] sm:$0xff]
    %v1989 = vld [vmem:[#allocation14 + $0x228] sm:$0xff]
    %v1990 = vld [vmem:[#allocation14 + $0x230] sm:$0xff]
    %v1991 = vld [vmem:[#allocation14 + $0x238] sm:$0xff]
    %v1992 = vld [vmem:[#allocation14 + $0x240] sm:$0xff]
    %v1993 = vld [vmem:[#allocation14 + $0x248] sm:$0xff]
    %v1994 = vld [vmem:[#allocation14 + $0x250] sm:$0xff]
    %v1995 = vld [vmem:[#allocation14 + $0x258] sm:$0xff]
    %v1996 = vld [vmem:[#allocation14 + $0x260] sm:$0xff]
    %v1997 = vld [vmem:[#allocation14 + $0x268] sm:$0xff]
    %v1998 = vld [vmem:[#allocation14 + $0x270] sm:$0xff]
    %v1999 = vld [vmem:[#allocation14 + $0x278] sm:$0xff]
    %v2000 = vld [vmem:[#allocation14 + $0x280] sm:$0xff]
    %v2001 = vld [vmem:[#allocation14 + $0x288] sm:$0xff]
    %v2002 = vld [vmem:[#allocation14 + $0x290] sm:$0xff]
    %v2003 = vld [vmem:[#allocation14 + $0x298] sm:$0xff]
    %v2004 = vld [vmem:[#allocation14 + $0x2a0] sm:$0xff]
    %v2005 = vld [vmem:[#allocation14 + $0x2a8] sm:$0xff]
    %v2006 = vld [vmem:[#allocation14 + $0x2b0] sm:$0xff]
    %v2007 = vld [vmem:[#allocation14 + $0x2b8] sm:$0xff]
    %v2008 = vld [vmem:[#allocation14 + $0x2c0] sm:$0xff]
    %v2009 = vld [vmem:[#allocation14 + $0x2c8] sm:$0xff]
    %v2010 = vld [vmem:[#allocation14 + $0x2d0] sm:$0xff]
    %v2011 = vld [vmem:[#allocation14 + $0x2d8] sm:$0xff]
    %v2012 = vld [vmem:[#allocation14 + $0x2e0] sm:$0xff]
    %v2013 = vld [vmem:[#allocation14 + $0x2e8] sm:$0xff]
    %v2014 = vld [vmem:[#allocation14 + $0x2f0] sm:$0xff]
    %v2015 = vld [vmem:[#allocation14 + $0x2f8] sm:$0xff]
    %v2016 = vld [vmem:[#allocation14 + $0x300] sm:$0xff]
    %v2017 = vld [vmem:[#allocation14 + $0x308] sm:$0xff]
    %v2018 = vld [vmem:[#allocation14 + $0x310] sm:$0xff]
    %v2019 = vld [vmem:[#allocation14 + $0x318] sm:$0xff]
    %v2020 = vld [vmem:[#allocation14 + $0x320] sm:$0xff]
    %v2021 = vld [vmem:[#allocation14 + $0x328] sm:$0xff]
    %v2022 = vld [vmem:[#allocation14 + $0x330] sm:$0xff]
    %v2023 = vld [vmem:[#allocation14 + $0x338] sm:$0xff]
    %v2024 = vld [vmem:[#allocation14 + $0x340] sm:$0xff]
    %v2025 = vld [vmem:[#allocation14 + $0x348] sm:$0xff]
    %v2026 = vld [vmem:[#allocation14 + $0x350] sm:$0xff]
    %v2027 = vld [vmem:[#allocation14 + $0x358] sm:$0xff]
    %v2028 = vld [vmem:[#allocation14 + $0x360] sm:$0xff]
    %v2029 = vld [vmem:[#allocation14 + $0x368] sm:$0xff]
    %v2030 = vld [vmem:[#allocation14 + $0x370] sm:$0xff]
    %v2031 = vld [vmem:[#allocation14 + $0x378] sm:$0xff]
    %v2032 = vld [vmem:[#allocation14 + $0x380] sm:$0xff]
    %v2033 = vld [vmem:[#allocation14 + $0x388] sm:$0xff]
    %v2034 = vld [vmem:[#allocation14 + $0x390] sm:$0xff]
    %v2035 = vld [vmem:[#allocation14 + $0x398] sm:$0xff]
    %v2036 = vld [vmem:[#allocation14 + $0x3a0] sm:$0xff]
    %v2037 = vld [vmem:[#allocation14 + $0x3a8] sm:$0xff]
    %v2038 = vld [vmem:[#allocation14 + $0x3b0] sm:$0xff]
    %v2039 = vld [vmem:[#allocation14 + $0x3b8] sm:$0xff]
    %v2040 = vld [vmem:[#allocation14 + $0x3c0] sm:$0xff]
    %v2041 = vld [vmem:[#allocation14 + $0x3c8] sm:$0xff]
    %v2042 = vld [vmem:[#allocation14 + $0x3d0] sm:$0xff]
    %v2043 = vld [vmem:[#allocation14 + $0x3d8] sm:$0xff]
    %v2044 = vld [vmem:[#allocation14 + $0x3e0] sm:$0xff]
    %v2045 = vld [vmem:[#allocation14 + $0x3e8] sm:$0xff]
    %v2046 = vld [vmem:[#allocation14 + $0x3f0] sm:$0xff]
    %v2047 = vld [vmem:[#allocation14 + $0x3f8] sm:$0xff]
    %v2048 = vld [vmem:[#allocation14 + $0x400] sm:$0xff]
    %v2049 = vld [vmem:[#allocation14 + $0x408] sm:$0xff]
    %v2050 = vld [vmem:[#allocation14 + $0x410] sm:$0xff]
    %v2051 = vld [vmem:[#allocation14 + $0x418] sm:$0xff]
    %v2052 = vld [vmem:[#allocation14 + $0x420] sm:$0xff]
    %v2053 = vld [vmem:[#allocation14 + $0x428] sm:$0xff]
    %v2054 = vld [vmem:[#allocation14 + $0x430] sm:$0xff]
    %v2055 = vld [vmem:[#allocation14 + $0x438] sm:$0xff]
    %v2056 = vld [vmem:[#allocation14 + $0x440] sm:$0xff]
    %v2057 = vld [vmem:[#allocation14 + $0x448] sm:$0xff]
    %v2058 = vld [vmem:[#allocation14 + $0x450] sm:$0xff]
    %v2059 = vld [vmem:[#allocation14 + $0x458] sm:$0xff]
    %v2060 = vld [vmem:[#allocation14 + $0x460] sm:$0xff]
    %v2061 = vld [vmem:[#allocation14 + $0x468] sm:$0xff]
    %v2062 = vld [vmem:[#allocation14 + $0x470] sm:$0xff]
    %v2063 = vld [vmem:[#allocation14 + $0x478] sm:$0xff]
    %v2064 = vld [vmem:[#allocation14 + $0x480] sm:$0xff]
    %v2065 = vld [vmem:[#allocation14 + $0x488] sm:$0xff]
    %v2066 = vld [vmem:[#allocation14 + $0x490] sm:$0xff]
    %v2067 = vld [vmem:[#allocation14 + $0x498] sm:$0xff]
    %v2068 = vld [vmem:[#allocation14 + $0x4a0] sm:$0xff]
    %v2069 = vld [vmem:[#allocation14 + $0x4a8] sm:$0xff]
    %v2070 = vld [vmem:[#allocation14 + $0x4b0] sm:$0xff]
    %v2071 = vld [vmem:[#allocation14 + $0x4b8] sm:$0xff]
    %v2072 = vld [vmem:[#allocation14 + $0x4c0] sm:$0xff]
    %v2073 = vld [vmem:[#allocation14 + $0x4c8] sm:$0xff]
    %v2074 = vld [vmem:[#allocation14 + $0x4d0] sm:$0xff]
    %v2075 = vld [vmem:[#allocation14 + $0x4d8] sm:$0xff]
    %v2076 = vld [vmem:[#allocation14 + $0x4e0] sm:$0xff]
    %v2077 = vld [vmem:[#allocation14 + $0x4e8] sm:$0xff]
    %v2078 = vld [vmem:[#allocation14 + $0x4f0] sm:$0xff]
    %v2079 = vld [vmem:[#allocation14 + $0x4f8] sm:$0xff]
    %v2080 = vld [vmem:[#allocation14 + $0x500] sm:$0xff]
    %v2081 = vld [vmem:[#allocation14 + $0x508] sm:$0xff]
    %v2082 = vld [vmem:[#allocation14 + $0x510] sm:$0xff]
    %v2083 = vld [vmem:[#allocation14 + $0x518] sm:$0xff]
    %v2084 = vld [vmem:[#allocation14 + $0x520] sm:$0xff]
    %v2085 = vld [vmem:[#allocation14 + $0x528] sm:$0xff]
    %v2086 = vld [vmem:[#allocation14 + $0x530] sm:$0xff]
    %v2087 = vld [vmem:[#allocation14 + $0x538] sm:$0xff]
    %v2088 = vld [vmem:[#allocation14 + $0x540] sm:$0xff]
    %v2089 = vld [vmem:[#allocation14 + $0x548] sm:$0xff]
    %v2090 = vld [vmem:[#allocation14 + $0x550] sm:$0xff]
    %v2091 = vld [vmem:[#allocation14 + $0x558] sm:$0xff]
    %v2092 = vld [vmem:[#allocation14 + $0x560] sm:$0xff]
    %v2093 = vld [vmem:[#allocation14 + $0x568] sm:$0xff]
    %v2094 = vld [vmem:[#allocation14 + $0x570] sm:$0xff]
    %v2095 = vld [vmem:[#allocation14 + $0x578] sm:$0xff]
    %v2096 = vld [vmem:[#allocation14 + $0x580] sm:$0xff]
    %v2097 = vld [vmem:[#allocation14 + $0x588] sm:$0xff]
    %v2098 = vld [vmem:[#allocation14 + $0x590] sm:$0xff]
    %v2099 = vld [vmem:[#allocation14 + $0x598] sm:$0xff]
    %v2100 = vld [vmem:[#allocation14 + $0x5a0] sm:$0xff]
    %v2101 = vld [vmem:[#allocation14 + $0x5a8] sm:$0xff]
    %v2102 = vld [vmem:[#allocation14 + $0x5b0] sm:$0xff]
    %v2103 = vld [vmem:[#allocation14 + $0x5b8] sm:$0xff]
    %v2104 = vld [vmem:[#allocation14 + $0x5c0] sm:$0xff]
    %v2105 = vld [vmem:[#allocation14 + $0x5c8] sm:$0xff]
    %v2106 = vld [vmem:[#allocation14 + $0x5d0] sm:$0xff]
    %v2107 = vld [vmem:[#allocation14 + $0x5d8] sm:$0xff]
    %v2108 = vld [vmem:[#allocation14 + $0x5e0] sm:$0xff]
    %v2109 = vld [vmem:[#allocation14 + $0x5e8] sm:$0xff]
    %v2110 = vld [vmem:[#allocation14 + $0x5f0] sm:$0xff]
    %v2111 = vld [vmem:[#allocation14 + $0x5f8] sm:$0xff]
    %v2112 = vld [vmem:[#allocation14 + $0x600] sm:$0xff]
    %v2113 = vld [vmem:[#allocation14 + $0x608] sm:$0xff]
    %v2114 = vld [vmem:[#allocation14 + $0x610] sm:$0xff]
    %v2115 = vld [vmem:[#allocation14 + $0x618] sm:$0xff]
    %v2116 = vld [vmem:[#allocation14 + $0x620] sm:$0xff]
    %v2117 = vld [vmem:[#allocation14 + $0x628] sm:$0xff]
    %v2118 = vld [vmem:[#allocation14 + $0x630] sm:$0xff]
    %v2119 = vld [vmem:[#allocation14 + $0x638] sm:$0xff]
    %v2120 = vld [vmem:[#allocation14 + $0x640] sm:$0xff]
    %v2121 = vld [vmem:[#allocation14 + $0x648] sm:$0xff]
    %v2122 = vld [vmem:[#allocation14 + $0x650] sm:$0xff]
    %v2123 = vld [vmem:[#allocation14 + $0x658] sm:$0xff]
    %v2124 = vld [vmem:[#allocation14 + $0x660] sm:$0xff]
    %v2125 = vld [vmem:[#allocation14 + $0x668] sm:$0xff]
    %v2126 = vld [vmem:[#allocation14 + $0x670] sm:$0xff]
    %v2127 = vld [vmem:[#allocation14 + $0x678] sm:$0xff]
    %v2128 = vld [vmem:[#allocation14 + $0x680] sm:$0xff]
    %v2129 = vld [vmem:[#allocation14 + $0x688] sm:$0xff]
    %v2130 = vld [vmem:[#allocation14 + $0x690] sm:$0xff]
    %v2131 = vld [vmem:[#allocation14 + $0x698] sm:$0xff]
    %v2132 = vld [vmem:[#allocation14 + $0x6a0] sm:$0xff]
    %v2133 = vld [vmem:[#allocation14 + $0x6a8] sm:$0xff]
    %v2134 = vld [vmem:[#allocation14 + $0x6b0] sm:$0xff]
    %v2135 = vld [vmem:[#allocation14 + $0x6b8] sm:$0xff]
    %v2136 = vld [vmem:[#allocation14 + $0x6c0] sm:$0xff]
    %v2137 = vld [vmem:[#allocation14 + $0x6c8] sm:$0xff]
    %v2138 = vld [vmem:[#allocation14 + $0x6d0] sm:$0xff]
    %v2139 = vld [vmem:[#allocation14 + $0x6d8] sm:$0xff]
    %v2140 = vld [vmem:[#allocation14 + $0x6e0] sm:$0xff]
    %v2141 = vld [vmem:[#allocation14 + $0x6e8] sm:$0xff]
    %v2142 = vld [vmem:[#allocation14 + $0x6f0] sm:$0xff]
    %v2143 = vld [vmem:[#allocation14 + $0x6f8] sm:$0xff]
    %v2144 = vld [vmem:[#allocation14 + $0x700] sm:$0xff]
    %v2145 = vld [vmem:[#allocation14 + $0x708] sm:$0xff]
    %v2146 = vld [vmem:[#allocation14 + $0x710] sm:$0xff]
    %v2147 = vld [vmem:[#allocation14 + $0x718] sm:$0xff]
    %v2148 = vld [vmem:[#allocation14 + $0x720] sm:$0xff]
    %v2149 = vld [vmem:[#allocation14 + $0x728] sm:$0xff]
    %v2150 = vld [vmem:[#allocation14 + $0x730] sm:$0xff]
    %v2151 = vld [vmem:[#allocation14 + $0x738] sm:$0xff]
    %v2152 = vld [vmem:[#allocation14 + $0x740] sm:$0xff]
    %v2153 = vld [vmem:[#allocation14 + $0x748] sm:$0xff]
    %v2154 = vld [vmem:[#allocation14 + $0x750] sm:$0xff]
    %v2155 = vld [vmem:[#allocation14 + $0x758] sm:$0xff]
    %v2156 = vld [vmem:[#allocation14 + $0x760] sm:$0xff]
    %v2157 = vld [vmem:[#allocation14 + $0x768] sm:$0xff]
    %v2158 = vld [vmem:[#allocation14 + $0x770] sm:$0xff]
    %v2159 = vld [vmem:[#allocation14 + $0x778] sm:$0xff]
    %v2160 = vld [vmem:[#allocation14 + $0x780] sm:$0xff]
    %v2161 = vld [vmem:[#allocation14 + $0x788] sm:$0xff]
    %v2162 = vld [vmem:[#allocation14 + $0x790] sm:$0xff]
    %v2163 = vld [vmem:[#allocation14 + $0x798] sm:$0xff]
    %v2164 = vld [vmem:[#allocation14 + $0x7a0] sm:$0xff]
    %v2165 = vld [vmem:[#allocation14 + $0x7a8] sm:$0xff]
    %v2166 = vld [vmem:[#allocation14 + $0x7b0] sm:$0xff]
    %v2167 = vld [vmem:[#allocation14 + $0x7b8] sm:$0xff]
    %v2168 = vld [vmem:[#allocation14 + $0x7c0] sm:$0xff]
    %v2169 = vld [vmem:[#allocation14 + $0x7c8] sm:$0xff]
    %v2170 = vld [vmem:[#allocation14 + $0x7d0] sm:$0xff]
    %v2171 = vld [vmem:[#allocation14 + $0x7d8] sm:$0xff]
    %v2172 = vld [vmem:[#allocation14 + $0x7e0] sm:$0xff]
    %v2173 = vld [vmem:[#allocation14 + $0x7e8] sm:$0xff]
    %v2174 = vld [vmem:[#allocation14 + $0x7f0] sm:$0xff]
    %v2175 = vld [vmem:[#allocation14 + $0x7f8] sm:$0xff]
    %v2176 = vld [vmem:[#allocation14 + $0x800] sm:$0xff]
    %v2177 = vld [vmem:[#allocation14 + $0x808] sm:$0xff]
    %v2178 = vld [vmem:[#allocation14 + $0x810] sm:$0xff]
    %v2179 = vld [vmem:[#allocation14 + $0x818] sm:$0xff]
    %v2180 = vld [vmem:[#allocation14 + $0x820] sm:$0xff]
    %v2181 = vld [vmem:[#allocation14 + $0x828] sm:$0xff]
    %v2182 = vld [vmem:[#allocation14 + $0x830] sm:$0xff]
    %v2183 = vld [vmem:[#allocation14 + $0x838] sm:$0xff]
    %v2184 = vld [vmem:[#allocation14 + $0x840] sm:$0xff]
    %v2185 = vld [vmem:[#allocation14 + $0x848] sm:$0xff]
    %v2186 = vld [vmem:[#allocation14 + $0x850] sm:$0xff]
    %v2187 = vld [vmem:[#allocation14 + $0x858] sm:$0xff]
    %v2188 = vld [vmem:[#allocation14 + $0x860] sm:$0xff]
    %v2189 = vld [vmem:[#allocation14 + $0x868] sm:$0xff]
    %v2190 = vld [vmem:[#allocation14 + $0x870] sm:$0xff]
    %v2191 = vld [vmem:[#allocation14 + $0x878] sm:$0xff]
    %v2192 = vld [vmem:[#allocation14 + $0x880] sm:$0xff]
    %v2193 = vld [vmem:[#allocation14 + $0x888] sm:$0xff]
    %v2194 = vld [vmem:[#allocation14 + $0x890] sm:$0xff]
    %v2195 = vld [vmem:[#allocation14 + $0x898] sm:$0xff]
    %v2196 = vld [vmem:[#allocation14 + $0x8a0] sm:$0xff]
    %v2197 = vld [vmem:[#allocation14 + $0x8a8] sm:$0xff]
    %v2198 = vld [vmem:[#allocation14 + $0x8b0] sm:$0xff]
    %v2199 = vld [vmem:[#allocation14 + $0x8b8] sm:$0xff]
    %v2200 = vld [vmem:[#allocation14 + $0x8c0] sm:$0xff]
    %v2201 = vld [vmem:[#allocation14 + $0x8c8] sm:$0xff]
    %v2202 = vld [vmem:[#allocation14 + $0x8d0] sm:$0xff]
    %v2203 = vld [vmem:[#allocation14 + $0x8d8] sm:$0xff]
    %v2204 = vld [vmem:[#allocation14 + $0x8e0] sm:$0xff]
    %v2205 = vld [vmem:[#allocation14 + $0x8e8] sm:$0xff]
    %v2206 = vld [vmem:[#allocation14 + $0x8f0] sm:$0xff]
    %v2207 = vld [vmem:[#allocation14 + $0x8f8] sm:$0xff]
    %v2208 = vld [vmem:[#allocation14 + $0x900] sm:$0xff]
    %v2209 = vld [vmem:[#allocation14 + $0x908] sm:$0xff]
    %v2210 = vld [vmem:[#allocation14 + $0x910] sm:$0xff]
    %v2211 = vld [vmem:[#allocation14 + $0x918] sm:$0xff]
    %v2212 = vld [vmem:[#allocation14 + $0x920] sm:$0xff]
    %v2213 = vld [vmem:[#allocation14 + $0x928] sm:$0xff]
    %v2214 = vld [vmem:[#allocation14 + $0x930] sm:$0xff]
    %v2215 = vld [vmem:[#allocation14 + $0x938] sm:$0xff]
    %v2216 = vld [vmem:[#allocation14 + $0x940] sm:$0xff]
    %v2217 = vld [vmem:[#allocation14 + $0x948] sm:$0xff]
    %v2218 = vld [vmem:[#allocation14 + $0x950] sm:$0xff]
    %v2219 = vld [vmem:[#allocation14 + $0x958] sm:$0xff]
    %v2220 = vld [vmem:[#allocation14 + $0x960] sm:$0xff]
    %v2221 = vld [vmem:[#allocation14 + $0x968] sm:$0xff]
    %v2222 = vld [vmem:[#allocation14 + $0x970] sm:$0xff]
    %v2223 = vld [vmem:[#allocation14 + $0x978] sm:$0xff]
    %v2224 = vld [vmem:[#allocation14 + $0x980] sm:$0xff]
    %v2225 = vld [vmem:[#allocation14 + $0x988] sm:$0xff]
    %v2226 = vld [vmem:[#allocation14 + $0x990] sm:$0xff]
    %v2227 = vld [vmem:[#allocation14 + $0x998] sm:$0xff]
    %v2228 = vld [vmem:[#allocation14 + $0x9a0] sm:$0xff]
    %v2229 = vld [vmem:[#allocation14 + $0x9a8] sm:$0xff]
    %v2230 = vld [vmem:[#allocation14 + $0x9b0] sm:$0xff]
    %v2231 = vld [vmem:[#allocation14 + $0x9b8] sm:$0xff]
    %v2232 = vld [vmem:[#allocation14 + $0x9c0] sm:$0xff]
    %v2233 = vld [vmem:[#allocation14 + $0x9c8] sm:$0xff]
    %v2234 = vld [vmem:[#allocation14 + $0x9d0] sm:$0xff]
    %v2235 = vld [vmem:[#allocation14 + $0x9d8] sm:$0xff]
    %v2236 = vld [vmem:[#allocation14 + $0x9e0] sm:$0xff]
    %v2237 = vld [vmem:[#allocation14 + $0x9e8] sm:$0xff]
    %v2238 = vld [vmem:[#allocation14 + $0x9f0] sm:$0xff]
    %v2239 = vld [vmem:[#allocation14 + $0x9f8] sm:$0xff]
    %v2240 = vld [vmem:[#allocation14 + $0xa00] sm:$0xff]
    %v2241 = vld [vmem:[#allocation14 + $0xa08] sm:$0xff]
    %v2242 = vld [vmem:[#allocation14 + $0xa10] sm:$0xff]
    %v2243 = vld [vmem:[#allocation14 + $0xa18] sm:$0xff]
    %v2244 = vld [vmem:[#allocation14 + $0xa20] sm:$0xff]
    %v2245 = vld [vmem:[#allocation14 + $0xa28] sm:$0xff]
    %v2246 = vld [vmem:[#allocation14 + $0xa30] sm:$0xff]
    %v2247 = vld [vmem:[#allocation14 + $0xa38] sm:$0xff]
    %v2248 = vld [vmem:[#allocation14 + $0xa40] sm:$0xff]
    %v2249 = vld [vmem:[#allocation14 + $0xa48] sm:$0xff]
    %v2250 = vld [vmem:[#allocation14 + $0xa50] sm:$0xff]
    %v2251 = vld [vmem:[#allocation14 + $0xa58] sm:$0xff]
    %v2252 = vld [vmem:[#allocation14 + $0xa60] sm:$0xff]
    %v2253 = vld [vmem:[#allocation14 + $0xa68] sm:$0xff]
    %v2254 = vld [vmem:[#allocation14 + $0xa70] sm:$0xff]
    %v2255 = vld [vmem:[#allocation14 + $0xa78] sm:$0xff]
    %v2256 = vld [vmem:[#allocation14 + $0xa80] sm:$0xff]
    %v2257 = vld [vmem:[#allocation14 + $0xa88] sm:$0xff]
    %v2258 = vld [vmem:[#allocation14 + $0xa90] sm:$0xff]
    %v2259 = vld [vmem:[#allocation14 + $0xa98] sm:$0xff]
    %v2260 = vld [vmem:[#allocation14 + $0xaa0] sm:$0xff]
    %v2261 = vld [vmem:[#allocation14 + $0xaa8] sm:$0xff]
    %v2262 = vld [vmem:[#allocation14 + $0xab0] sm:$0xff]
    %v2263 = vld [vmem:[#allocation14 + $0xab8] sm:$0xff]
    %v2264 = vld [vmem:[#allocation14 + $0xac0] sm:$0xff]
    %v2265 = vld [vmem:[#allocation14 + $0xac8] sm:$0xff]
    %v2266 = vld [vmem:[#allocation14 + $0xad0] sm:$0xff]
    %v2267 = vld [vmem:[#allocation14 + $0xad8] sm:$0xff]
    %v2268 = vld [vmem:[#allocation14 + $0xae0] sm:$0xff]
    %v2269 = vld [vmem:[#allocation14 + $0xae8] sm:$0xff]
    %v2270 = vld [vmem:[#allocation14 + $0xaf0] sm:$0xff]
    %v2271 = vld [vmem:[#allocation14 + $0xaf8] sm:$0xff]
    %v2272 = vld [vmem:[#allocation14 + $0xb00] sm:$0xff]
    %v2273 = vld [vmem:[#allocation14 + $0xb08] sm:$0xff]
    %v2274 = vld [vmem:[#allocation14 + $0xb10] sm:$0xff]
    %v2275 = vld [vmem:[#allocation14 + $0xb18] sm:$0xff]
    %v2276 = vld [vmem:[#allocation14 + $0xb20] sm:$0xff]
    %v2277 = vld [vmem:[#allocation14 + $0xb28] sm:$0xff]
    %v2278 = vld [vmem:[#allocation14 + $0xb30] sm:$0xff]
    %v2279 = vld [vmem:[#allocation14 + $0xb38] sm:$0xff]
    %v2280 = vld [vmem:[#allocation14 + $0xb40] sm:$0xff]
    %v2281 = vld [vmem:[#allocation14 + $0xb48] sm:$0xff]
    %v2282 = vld [vmem:[#allocation14 + $0xb50] sm:$0xff]
    %v2283 = vld [vmem:[#allocation14 + $0xb58] sm:$0xff]
    %v2284 = vld [vmem:[#allocation14 + $0xb60] sm:$0xff]
    %v2285 = vld [vmem:[#allocation14 + $0xb68] sm:$0xff]
    %v2286 = vld [vmem:[#allocation14 + $0xb70] sm:$0xff]
    %v2287 = vld [vmem:[#allocation14 + $0xb78] sm:$0xff]
    %v2288 = vld [vmem:[#allocation14 + $0xb80] sm:$0xff]
    %v2289 = vld [vmem:[#allocation14 + $0xb88] sm:$0xff]
    %v2290 = vld [vmem:[#allocation14 + $0xb90] sm:$0xff]
    %v2291 = vld [vmem:[#allocation14 + $0xb98] sm:$0xff]
    %v2292 = vld [vmem:[#allocation14 + $0xba0] sm:$0xff]
    %v2293 = vld [vmem:[#allocation14 + $0xba8] sm:$0xff]
    %v2294 = vld [vmem:[#allocation14 + $0xbb0] sm:$0xff]
    %v2295 = vld [vmem:[#allocation14 + $0xbb8] sm:$0xff]
    %v2296 = vld [vmem:[#allocation14 + $0xbc0] sm:$0xff]
    %v2297 = vld [vmem:[#allocation14 + $0xbc8] sm:$0xff]
    %v2298 = vld [vmem:[#allocation14 + $0xbd0] sm:$0xff]
    %v2299 = vld [vmem:[#allocation14 + $0xbd8] sm:$0xff]
    %v2300 = vld [vmem:[#allocation14 + $0xbe0] sm:$0xff]
    %v2301 = vld [vmem:[#allocation14 + $0xbe8] sm:$0xff]
    %v2302 = vld [vmem:[#allocation14 + $0xbf0] sm:$0xff]
    %v2303 = vld [vmem:[#allocation14 + $0xbf8] sm:$0xff]
    %v2304 = vld [vmem:[#allocation14 + $0xc00] sm:$0xff]
    %v2305 = vld [vmem:[#allocation14 + $0xc08] sm:$0xff]
    %v2306 = vld [vmem:[#allocation14 + $0xc10] sm:$0xff]
    %v2307 = vld [vmem:[#allocation14 + $0xc18] sm:$0xff]
    %v2308 = vld [vmem:[#allocation14 + $0xc20] sm:$0xff]
    %v2309 = vld [vmem:[#allocation14 + $0xc28] sm:$0xff]
    %v2310 = vld [vmem:[#allocation14 + $0xc30] sm:$0xff]
    %v2311 = vld [vmem:[#allocation14 + $0xc38] sm:$0xff]
    %v2312 = vld [vmem:[#allocation14 + $0xc40] sm:$0xff]
    %v2313 = vld [vmem:[#allocation14 + $0xc48] sm:$0xff]
    %v2314 = vld [vmem:[#allocation14 + $0xc50] sm:$0xff]
    %v2315 = vld [vmem:[#allocation14 + $0xc58] sm:$0xff]
    %v2316 = vld [vmem:[#allocation14 + $0xc60] sm:$0xff]
    %v2317 = vld [vmem:[#allocation14 + $0xc68] sm:$0xff]
    %v2318 = vld [vmem:[#allocation14 + $0xc70] sm:$0xff]
    %v2319 = vld [vmem:[#allocation14 + $0xc78] sm:$0xff]
    %v2320 = vld [vmem:[#allocation14 + $0xc80] sm:$0xff]
    %v2321 = vld [vmem:[#allocation14 + $0xc88] sm:$0xff]
    %v2322 = vld [vmem:[#allocation14 + $0xc90] sm:$0xff]
    %v2323 = vld [vmem:[#allocation14 + $0xc98] sm:$0xff]
    %v2324 = vld [vmem:[#allocation14 + $0xca0] sm:$0xff]
    %v2325 = vld [vmem:[#allocation14 + $0xca8] sm:$0xff]
    %v2326 = vld [vmem:[#allocation14 + $0xcb0] sm:$0xff]
    %v2327 = vld [vmem:[#allocation14 + $0xcb8] sm:$0xff]
    %v2328 = vld [vmem:[#allocation14 + $0xcc0] sm:$0xff]
    %v2329 = vld [vmem:[#allocation14 + $0xcc8] sm:$0xff]
    %v2330 = vld [vmem:[#allocation14 + $0xcd0] sm:$0xff]
    %v2331 = vld [vmem:[#allocation14 + $0xcd8] sm:$0xff]
    %v2332 = vld [vmem:[#allocation14 + $0xce0] sm:$0xff]
    %v2333 = vld [vmem:[#allocation14 + $0xce8] sm:$0xff]
    %v2334 = vld [vmem:[#allocation14 + $0xcf0] sm:$0xff]
    %v2335 = vld [vmem:[#allocation14 + $0xcf8] sm:$0xff]
    %v2336 = vld [vmem:[#allocation14 + $0xd00] sm:$0xff]
    %v2337 = vld [vmem:[#allocation14 + $0xd08] sm:$0xff]
    %v2338 = vld [vmem:[#allocation14 + $0xd10] sm:$0xff]
    %v2339 = vld [vmem:[#allocation14 + $0xd18] sm:$0xff]
    %v2340 = vld [vmem:[#allocation14 + $0xd20] sm:$0xff]
    %v2341 = vld [vmem:[#allocation14 + $0xd28] sm:$0xff]
    %v2342 = vld [vmem:[#allocation14 + $0xd30] sm:$0xff]
    %v2343 = vld [vmem:[#allocation14 + $0xd38] sm:$0xff]
    %v2344 = vld [vmem:[#allocation14 + $0xd40] sm:$0xff]
    %v2345 = vld [vmem:[#allocation14 + $0xd48] sm:$0xff]
    %v2346 = vld [vmem:[#allocation14 + $0xd50] sm:$0xff]
    %v2347 = vld [vmem:[#allocation14 + $0xd58] sm:$0xff]
    %v2348 = vld [vmem:[#allocation14 + $0xd60] sm:$0xff]
    %v2349 = vld [vmem:[#allocation14 + $0xd68] sm:$0xff]
    %v2350 = vld [vmem:[#allocation14 + $0xd70] sm:$0xff]
    %v2351 = vld [vmem:[#allocation14 + $0xd78] sm:$0xff]
    %v2352 = vld [vmem:[#allocation14 + $0xd80] sm:$0xff]
    %v2353 = vld [vmem:[#allocation14 + $0xd88] sm:$0xff]
    %v2354 = vld [vmem:[#allocation14 + $0xd90] sm:$0xff]
    %v2355 = vld [vmem:[#allocation14 + $0xd98] sm:$0xff]
    %v2356 = vld [vmem:[#allocation14 + $0xda0] sm:$0xff]
    %v2357 = vld [vmem:[#allocation14 + $0xda8] sm:$0xff]
    %v2358 = vld [vmem:[#allocation14 + $0xdb0] sm:$0xff]
    %v2359 = vld [vmem:[#allocation14 + $0xdb8] sm:$0xff]
    %v2360 = vld [vmem:[#allocation14 + $0xdc0] sm:$0xff]
    %v2361 = vld [vmem:[#allocation14 + $0xdc8] sm:$0xff]
    %v2362 = vld [vmem:[#allocation14 + $0xdd0] sm:$0xff]
    %v2363 = vld [vmem:[#allocation14 + $0xdd8] sm:$0xff]
    %v2364 = vld [vmem:[#allocation14 + $0xde0] sm:$0xff]
    %v2365 = vld [vmem:[#allocation14 + $0xde8] sm:$0xff]
    %v2366 = vld [vmem:[#allocation14 + $0xdf0] sm:$0xff]
    %v2367 = vld [vmem:[#allocation14 + $0xdf8] sm:$0xff]
    %v2368 = vld [vmem:[#allocation14 + $0xe00] sm:$0xff]
    %v2369 = vld [vmem:[#allocation14 + $0xe08] sm:$0xff]
    %v2370 = vld [vmem:[#allocation14 + $0xe10] sm:$0xff]
    %v2371 = vld [vmem:[#allocation14 + $0xe18] sm:$0xff]
    %v2372 = vld [vmem:[#allocation14 + $0xe20] sm:$0xff]
    %v2373 = vld [vmem:[#allocation14 + $0xe28] sm:$0xff]
    %v2374 = vld [vmem:[#allocation14 + $0xe30] sm:$0xff]
    %v2375 = vld [vmem:[#allocation14 + $0xe38] sm:$0xff]
    %v2376 = vld [vmem:[#allocation14 + $0xe40] sm:$0xff]
    %v2377 = vld [vmem:[#allocation14 + $0xe48] sm:$0xff]
    %v2378 = vld [vmem:[#allocation14 + $0xe50] sm:$0xff]
    %v2379 = vld [vmem:[#allocation14 + $0xe58] sm:$0xff]
    %v2380 = vld [vmem:[#allocation14 + $0xe60] sm:$0xff]
    %v2381 = vld [vmem:[#allocation14 + $0xe68] sm:$0xff]
    %v2382 = vld [vmem:[#allocation14 + $0xe70] sm:$0xff]
    %v2383 = vld [vmem:[#allocation14 + $0xe78] sm:$0xff]
    %v2384 = vld [vmem:[#allocation14 + $0xe80] sm:$0xff]
    %v2385 = vld [vmem:[#allocation14 + $0xe88] sm:$0xff]
    %v2386 = vld [vmem:[#allocation14 + $0xe90] sm:$0xff]
    %v2387 = vld [vmem:[#allocation14 + $0xe98] sm:$0xff]
    %v2388 = vld [vmem:[#allocation14 + $0xea0] sm:$0xff]
    %v2389 = vld [vmem:[#allocation14 + $0xea8] sm:$0xff]
    %v2390 = vld [vmem:[#allocation14 + $0xeb0] sm:$0xff]
    %v2391 = vld [vmem:[#allocation14 + $0xeb8] sm:$0xff]
    %v2392 = vld [vmem:[#allocation14 + $0xec0] sm:$0xff]
    %v2393 = vld [vmem:[#allocation14 + $0xec8] sm:$0xff]
    %v2394 = vld [vmem:[#allocation14 + $0xed0] sm:$0xff]
    %v2395 = vld [vmem:[#allocation14 + $0xed8] sm:$0xff]
    %v2396 = vld [vmem:[#allocation14 + $0xee0] sm:$0xff]
    %v2397 = vld [vmem:[#allocation14 + $0xee8] sm:$0xff]
    %v2398 = vld [vmem:[#allocation14 + $0xef0] sm:$0xff]
    %v2399 = vld [vmem:[#allocation14 + $0xef8] sm:$0xff]
    %v2400 = vld [vmem:[#allocation14 + $0xf00] sm:$0xff]
    %v2401 = vld [vmem:[#allocation14 + $0xf08] sm:$0xff]
    %v2402 = vld [vmem:[#allocation14 + $0xf10] sm:$0xff]
    %v2403 = vld [vmem:[#allocation14 + $0xf18] sm:$0xff]
    %v2404 = vld [vmem:[#allocation14 + $0xf20] sm:$0xff]
    %v2405 = vld [vmem:[#allocation14 + $0xf28] sm:$0xff]
    %v2406 = vld [vmem:[#allocation14 + $0xf30] sm:$0xff]
    %v2407 = vld [vmem:[#allocation14 + $0xf38] sm:$0xff]
    %v2408 = vld [vmem:[#allocation14 + $0xf40] sm:$0xff]
    %v2409 = vld [vmem:[#allocation14 + $0xf48] sm:$0xff]
    %v2410 = vld [vmem:[#allocation14 + $0xf50] sm:$0xff]
    %v2411 = vld [vmem:[#allocation14 + $0xf58] sm:$0xff]
    %v2412 = vld [vmem:[#allocation14 + $0xf60] sm:$0xff]
    %v2413 = vld [vmem:[#allocation14 + $0xf68] sm:$0xff]
    %v2414 = vld [vmem:[#allocation14 + $0xf70] sm:$0xff]
    %v2415 = vld [vmem:[#allocation14 + $0xf78] sm:$0xff]
    %v2416 = vld [vmem:[#allocation14 + $0xf80] sm:$0xff]
    %v2417 = vld [vmem:[#allocation14 + $0xf88] sm:$0xff]
    %v2418 = vld [vmem:[#allocation14 + $0xf90] sm:$0xff]
    %v2419 = vld [vmem:[#allocation14 + $0xf98] sm:$0xff]
    %v2420 = vld [vmem:[#allocation14 + $0xfa0] sm:$0xff]
    %v2421 = vld [vmem:[#allocation14 + $0xfa8] sm:$0xff]
    %v2422 = vld [vmem:[#allocation14 + $0xfb0] sm:$0xff]
    %v2423 = vld [vmem:[#allocation14 + $0xfb8] sm:$0xff]
    %v2424 = vld [vmem:[#allocation14 + $0xfc0] sm:$0xff]
    %v2425 = vld [vmem:[#allocation14 + $0xfc8] sm:$0xff]
    %v2426 = vld [vmem:[#allocation14 + $0xfd0] sm:$0xff]
    %v2427 = vld [vmem:[#allocation14 + $0xfd8] sm:$0xff]
    %v2428 = vld [vmem:[#allocation14 + $0xfe0] sm:$0xff]
    %v2429 = vld [vmem:[#allocation14 + $0xfe8] sm:$0xff]
    %v2430 = vld [vmem:[#allocation14 + $0xff0] sm:$0xff]
    %v2431 = vld [vmem:[#allocation14 + $0xff8] sm:$0xff]
    %v2432 = vld [vmem:[#allocation16] sm:$0xff]
    %v2434 = vlaneseq
    %v2435 = vshrl.u32 %v2434, 7
    %v2436 = vsub.s32 0, %v2435
    %v2437 = vrot.slane %v2432, %v2436
    %v2438 = vlaneseq
    %v2439 = vshrl.u32 %v2438, 7
    %v2440 = vsub.s32 1, %v2439
    %v2441 = vrot.slane %v2432, %v2440
    %v2442 = vlaneseq
    %v2443 = vshrl.u32 %v2442, 7
    %v2444 = vsub.s32 2, %v2443
    %v2445 = vrot.slane %v2432, %v2444
    %v2446 = vlaneseq
    %v2447 = vshrl.u32 %v2446, 7
    %v2448 = vsub.s32 3, %v2447
    %v2449 = vrot.slane %v2432, %v2448
    %v2450 = vlaneseq
    %v2451 = vshrl.u32 %v2450, 7
    %v2452 = vsub.s32 4, %v2451
    %v2453 = vrot.slane %v2432, %v2452
    %v2454 = vlaneseq
    %v2455 = vshrl.u32 %v2454, 7
    %v2456 = vsub.s32 5, %v2455
    %v2457 = vrot.slane %v2432, %v2456
    %v2458 = vlaneseq
    %v2459 = vshrl.u32 %v2458, 7
    %v2460 = vsub.s32 6, %v2459
    %v2461 = vrot.slane %v2432, %v2460
    %v2462 = vlaneseq
    %v2463 = vshrl.u32 %v2462, 7
    %v2464 = vsub.s32 7, %v2463
    %v2465 = vrot.slane %v2432, %v2464
    %v2986 = vunpack.c.l.b16 %v1920
    %v2987 = vunpack.c.h.b16 %v1920
    %v2988 = vunpack.c.l.b16 %v1921
    %v2989 = vunpack.c.h.b16 %v1921
    %v2990 = vunpack.c.l.b16 %v1922
    %v2991 = vunpack.c.h.b16 %v1922
    %v2992 = vunpack.c.l.b16 %v1923
    %v2993 = vunpack.c.h.b16 %v1923
    %v2994 = vunpack.c.l.b16 %v1924
    %v2995 = vunpack.c.h.b16 %v1924
    %v2996 = vunpack.c.l.b16 %v1925
    %v2997 = vunpack.c.h.b16 %v1925
    %v2998 = vunpack.c.l.b16 %v1926
    %v2999 = vunpack.c.h.b16 %v1926
    %v3000 = vunpack.c.l.b16 %v1927
    %v3001 = vunpack.c.h.b16 %v1927
    %v3002 = vunpack.c.l.b16 %v1928
    %v3003 = vunpack.c.h.b16 %v1928
    %v3004 = vunpack.c.l.b16 %v1929
    %v3005 = vunpack.c.h.b16 %v1929
    %v3006 = vunpack.c.l.b16 %v1930
    %v3007 = vunpack.c.h.b16 %v1930
    %v3008 = vunpack.c.l.b16 %v1931
    %v3009 = vunpack.c.h.b16 %v1931
    %v3010 = vunpack.c.l.b16 %v1932
    %v3011 = vunpack.c.h.b16 %v1932
    %v3012 = vunpack.c.l.b16 %v1933
    %v3013 = vunpack.c.h.b16 %v1933
    %v3014 = vunpack.c.l.b16 %v1934
    %v3015 = vunpack.c.h.b16 %v1934
    %v3016 = vunpack.c.l.b16 %v1935
    %v3017 = vunpack.c.h.b16 %v1935
    %v3018 = vunpack.c.l.b16 %v1936
    %v3019 = vunpack.c.h.b16 %v1936
    %v3020 = vunpack.c.l.b16 %v1937
    %v3021 = vunpack.c.h.b16 %v1937
    %v3022 = vunpack.c.l.b16 %v1938
    %v3023 = vunpack.c.h.b16 %v1938
    %v3024 = vunpack.c.l.b16 %v1939
    %v3025 = vunpack.c.h.b16 %v1939
    %v3026 = vunpack.c.l.b16 %v1940
    %v3027 = vunpack.c.h.b16 %v1940
    %v3028 = vunpack.c.l.b16 %v1941
    %v3029 = vunpack.c.h.b16 %v1941
    %v3030 = vunpack.c.l.b16 %v1942
    %v3031 = vunpack.c.h.b16 %v1942
    %v3032 = vunpack.c.l.b16 %v1943
    %v3033 = vunpack.c.h.b16 %v1943
    %v3034 = vunpack.c.l.b16 %v1944
    %v3035 = vunpack.c.h.b16 %v1944
    %v3036 = vunpack.c.l.b16 %v1945
    %v3037 = vunpack.c.h.b16 %v1945
    %v3038 = vunpack.c.l.b16 %v1946
    %v3039 = vunpack.c.h.b16 %v1946
    %v3040 = vunpack.c.l.b16 %v1947
    %v3041 = vunpack.c.h.b16 %v1947
    %v3042 = vunpack.c.l.b16 %v1948
    %v3043 = vunpack.c.h.b16 %v1948
    %v3044 = vunpack.c.l.b16 %v1949
    %v3045 = vunpack.c.h.b16 %v1949
    %v3046 = vunpack.c.l.b16 %v1950
    %v3047 = vunpack.c.h.b16 %v1950
    %v3048 = vunpack.c.l.b16 %v1951
    %v3049 = vunpack.c.h.b16 %v1951
    %v3050 = vunpack.c.l.b16 %v1952
    %v3051 = vunpack.c.h.b16 %v1952
    %v3052 = vunpack.c.l.b16 %v1953
    %v3053 = vunpack.c.h.b16 %v1953
    %v3054 = vunpack.c.l.b16 %v1954
    %v3055 = vunpack.c.h.b16 %v1954
    %v3056 = vunpack.c.l.b16 %v1955
    %v3057 = vunpack.c.h.b16 %v1955
    %v3058 = vunpack.c.l.b16 %v1956
    %v3059 = vunpack.c.h.b16 %v1956
    %v3060 = vunpack.c.l.b16 %v1957
    %v3061 = vunpack.c.h.b16 %v1957
    %v3062 = vunpack.c.l.b16 %v1958
    %v3063 = vunpack.c.h.b16 %v1958
    %v3064 = vunpack.c.l.b16 %v1959
    %v3065 = vunpack.c.h.b16 %v1959
    %v3066 = vunpack.c.l.b16 %v1960
    %v3067 = vunpack.c.h.b16 %v1960
    %v3068 = vunpack.c.l.b16 %v1961
    %v3069 = vunpack.c.h.b16 %v1961
    %v3070 = vunpack.c.l.b16 %v1962
    %v3071 = vunpack.c.h.b16 %v1962
    %v3072 = vunpack.c.l.b16 %v1963
    %v3073 = vunpack.c.h.b16 %v1963
    %v3074 = vunpack.c.l.b16 %v1964
    %v3075 = vunpack.c.h.b16 %v1964
    %v3076 = vunpack.c.l.b16 %v1965
    %v3077 = vunpack.c.h.b16 %v1965
    %v3078 = vunpack.c.l.b16 %v1966
    %v3079 = vunpack.c.h.b16 %v1966
    %v3080 = vunpack.c.l.b16 %v1967
    %v3081 = vunpack.c.h.b16 %v1967
    %v3082 = vunpack.c.l.b16 %v1968
    %v3083 = vunpack.c.h.b16 %v1968
    %v3084 = vunpack.c.l.b16 %v1969
    %v3085 = vunpack.c.h.b16 %v1969
    %v3086 = vunpack.c.l.b16 %v1970
    %v3087 = vunpack.c.h.b16 %v1970
    %v3088 = vunpack.c.l.b16 %v1971
    %v3089 = vunpack.c.h.b16 %v1971
    %v3090 = vunpack.c.l.b16 %v1972
    %v3091 = vunpack.c.h.b16 %v1972
    %v3092 = vunpack.c.l.b16 %v1973
    %v3093 = vunpack.c.h.b16 %v1973
    %v3094 = vunpack.c.l.b16 %v1974
    %v3095 = vunpack.c.h.b16 %v1974
    %v3096 = vunpack.c.l.b16 %v1975
    %v3097 = vunpack.c.h.b16 %v1975
    %v3098 = vunpack.c.l.b16 %v1976
    %v3099 = vunpack.c.h.b16 %v1976
    %v3100 = vunpack.c.l.b16 %v1977
    %v3101 = vunpack.c.h.b16 %v1977
    %v3102 = vunpack.c.l.b16 %v1978
    %v3103 = vunpack.c.h.b16 %v1978
    %v3104 = vunpack.c.l.b16 %v1979
    %v3105 = vunpack.c.h.b16 %v1979
    %v3106 = vunpack.c.l.b16 %v1980
    %v3107 = vunpack.c.h.b16 %v1980
    %v3108 = vunpack.c.l.b16 %v1981
    %v3109 = vunpack.c.h.b16 %v1981
    %v3110 = vunpack.c.l.b16 %v1982
    %v3111 = vunpack.c.h.b16 %v1982
    %v3112 = vunpack.c.l.b16 %v1983
    %v3113 = vunpack.c.h.b16 %v1983
    %v3114 = vunpack.c.l.b16 %v1984
    %v3115 = vunpack.c.h.b16 %v1984
    %v3116 = vunpack.c.l.b16 %v1985
    %v3117 = vunpack.c.h.b16 %v1985
    %v3118 = vunpack.c.l.b16 %v1986
    %v3119 = vunpack.c.h.b16 %v1986
    %v3120 = vunpack.c.l.b16 %v1987
    %v3121 = vunpack.c.h.b16 %v1987
    %v3122 = vunpack.c.l.b16 %v1988
    %v3123 = vunpack.c.h.b16 %v1988
    %v3124 = vunpack.c.l.b16 %v1989
    %v3125 = vunpack.c.h.b16 %v1989
    %v3126 = vunpack.c.l.b16 %v1990
    %v3127 = vunpack.c.h.b16 %v1990
    %v3128 = vunpack.c.l.b16 %v1991
    %v3129 = vunpack.c.h.b16 %v1991
    %v3130 = vunpack.c.l.b16 %v1992
    %v3131 = vunpack.c.h.b16 %v1992
    %v3132 = vunpack.c.l.b16 %v1993
    %v3133 = vunpack.c.h.b16 %v1993
    %v3134 = vunpack.c.l.b16 %v1994
    %v3135 = vunpack.c.h.b16 %v1994
    %v3136 = vunpack.c.l.b16 %v1995
    %v3137 = vunpack.c.h.b16 %v1995
    %v3138 = vunpack.c.l.b16 %v1996
    %v3139 = vunpack.c.h.b16 %v1996
    %v3140 = vunpack.c.l.b16 %v1997
    %v3141 = vunpack.c.h.b16 %v1997
    %v3142 = vunpack.c.l.b16 %v1998
    %v3143 = vunpack.c.h.b16 %v1998
    %v3144 = vunpack.c.l.b16 %v1999
    %v3145 = vunpack.c.h.b16 %v1999
    %v3146 = vunpack.c.l.b16 %v2000
    %v3147 = vunpack.c.h.b16 %v2000
    %v3148 = vunpack.c.l.b16 %v2001
    %v3149 = vunpack.c.h.b16 %v2001
    %v3150 = vunpack.c.l.b16 %v2002
    %v3151 = vunpack.c.h.b16 %v2002
    %v3152 = vunpack.c.l.b16 %v2003
    %v3153 = vunpack.c.h.b16 %v2003
    %v3154 = vunpack.c.l.b16 %v2004
    %v3155 = vunpack.c.h.b16 %v2004
    %v3156 = vunpack.c.l.b16 %v2005
    %v3157 = vunpack.c.h.b16 %v2005
    %v3158 = vunpack.c.l.b16 %v2006
    %v3159 = vunpack.c.h.b16 %v2006
    %v3160 = vunpack.c.l.b16 %v2007
    %v3161 = vunpack.c.h.b16 %v2007
    %v3162 = vunpack.c.l.b16 %v2008
    %v3163 = vunpack.c.h.b16 %v2008
    %v3164 = vunpack.c.l.b16 %v2009
    %v3165 = vunpack.c.h.b16 %v2009
    %v3166 = vunpack.c.l.b16 %v2010
    %v3167 = vunpack.c.h.b16 %v2010
    %v3168 = vunpack.c.l.b16 %v2011
    %v3169 = vunpack.c.h.b16 %v2011
    %v3170 = vunpack.c.l.b16 %v2012
    %v3171 = vunpack.c.h.b16 %v2012
    %v3172 = vunpack.c.l.b16 %v2013
    %v3173 = vunpack.c.h.b16 %v2013
    %v3174 = vunpack.c.l.b16 %v2014
    %v3175 = vunpack.c.h.b16 %v2014
    %v3176 = vunpack.c.l.b16 %v2015
    %v3177 = vunpack.c.h.b16 %v2015
    %v3178 = vunpack.c.l.b16 %v2016
    %v3179 = vunpack.c.h.b16 %v2016
    %v3180 = vunpack.c.l.b16 %v2017
    %v3181 = vunpack.c.h.b16 %v2017
    %v3182 = vunpack.c.l.b16 %v2018
    %v3183 = vunpack.c.h.b16 %v2018
    %v3184 = vunpack.c.l.b16 %v2019
    %v3185 = vunpack.c.h.b16 %v2019
    %v3186 = vunpack.c.l.b16 %v2020
    %v3187 = vunpack.c.h.b16 %v2020
    %v3188 = vunpack.c.l.b16 %v2021
    %v3189 = vunpack.c.h.b16 %v2021
    %v3190 = vunpack.c.l.b16 %v2022
    %v3191 = vunpack.c.h.b16 %v2022
    %v3192 = vunpack.c.l.b16 %v2023
    %v3193 = vunpack.c.h.b16 %v2023
    %v3194 = vunpack.c.l.b16 %v2024
    %v3195 = vunpack.c.h.b16 %v2024
    %v3196 = vunpack.c.l.b16 %v2025
    %v3197 = vunpack.c.h.b16 %v2025
    %v3198 = vunpack.c.l.b16 %v2026
    %v3199 = vunpack.c.h.b16 %v2026
    %v3200 = vunpack.c.l.b16 %v2027
    %v3201 = vunpack.c.h.b16 %v2027
    %v3202 = vunpack.c.l.b16 %v2028
    %v3203 = vunpack.c.h.b16 %v2028
    %v3204 = vunpack.c.l.b16 %v2029
    %v3205 = vunpack.c.h.b16 %v2029
    %v3206 = vunpack.c.l.b16 %v2030
    %v3207 = vunpack.c.h.b16 %v2030
    %v3208 = vunpack.c.l.b16 %v2031
    %v3209 = vunpack.c.h.b16 %v2031
    %v3210 = vunpack.c.l.b16 %v2032
    %v3211 = vunpack.c.h.b16 %v2032
    %v3212 = vunpack.c.l.b16 %v2033
    %v3213 = vunpack.c.h.b16 %v2033
    %v3214 = vunpack.c.l.b16 %v2034
    %v3215 = vunpack.c.h.b16 %v2034
    %v3216 = vunpack.c.l.b16 %v2035
    %v3217 = vunpack.c.h.b16 %v2035
    %v3218 = vunpack.c.l.b16 %v2036
    %v3219 = vunpack.c.h.b16 %v2036
    %v3220 = vunpack.c.l.b16 %v2037
    %v3221 = vunpack.c.h.b16 %v2037
    %v3222 = vunpack.c.l.b16 %v2038
    %v3223 = vunpack.c.h.b16 %v2038
    %v3224 = vunpack.c.l.b16 %v2039
    %v3225 = vunpack.c.h.b16 %v2039
    %v3226 = vunpack.c.l.b16 %v2040
    %v3227 = vunpack.c.h.b16 %v2040
    %v3228 = vunpack.c.l.b16 %v2041
    %v3229 = vunpack.c.h.b16 %v2041
    %v3230 = vunpack.c.l.b16 %v2042
    %v3231 = vunpack.c.h.b16 %v2042
    %v3232 = vunpack.c.l.b16 %v2043
    %v3233 = vunpack.c.h.b16 %v2043
    %v3234 = vunpack.c.l.b16 %v2044
    %v3235 = vunpack.c.h.b16 %v2044
    %v3236 = vunpack.c.l.b16 %v2045
    %v3237 = vunpack.c.h.b16 %v2045
    %v3238 = vunpack.c.l.b16 %v2046
    %v3239 = vunpack.c.h.b16 %v2046
    %v3240 = vunpack.c.l.b16 %v2047
    %v3241 = vunpack.c.h.b16 %v2047
    %v3242 = vunpack.c.l.b16 %v2048
    %v3243 = vunpack.c.h.b16 %v2048
    %v3244 = vunpack.c.l.b16 %v2049
    %v3245 = vunpack.c.h.b16 %v2049
    %v3246 = vunpack.c.l.b16 %v2050
    %v3247 = vunpack.c.h.b16 %v2050
    %v3248 = vunpack.c.l.b16 %v2051
    %v3249 = vunpack.c.h.b16 %v2051
    %v3250 = vunpack.c.l.b16 %v2052
    %v3251 = vunpack.c.h.b16 %v2052
    %v3252 = vunpack.c.l.b16 %v2053
    %v3253 = vunpack.c.h.b16 %v2053
    %v3254 = vunpack.c.l.b16 %v2054
    %v3255 = vunpack.c.h.b16 %v2054
    %v3256 = vunpack.c.l.b16 %v2055
    %v3257 = vunpack.c.h.b16 %v2055
    %v3258 = vunpack.c.l.b16 %v2056
    %v3259 = vunpack.c.h.b16 %v2056
    %v3260 = vunpack.c.l.b16 %v2057
    %v3261 = vunpack.c.h.b16 %v2057
    %v3262 = vunpack.c.l.b16 %v2058
    %v3263 = vunpack.c.h.b16 %v2058
    %v3264 = vunpack.c.l.b16 %v2059
    %v3265 = vunpack.c.h.b16 %v2059
    %v3266 = vunpack.c.l.b16 %v2060
    %v3267 = vunpack.c.h.b16 %v2060
    %v3268 = vunpack.c.l.b16 %v2061
    %v3269 = vunpack.c.h.b16 %v2061
    %v3270 = vunpack.c.l.b16 %v2062
    %v3271 = vunpack.c.h.b16 %v2062
    %v3272 = vunpack.c.l.b16 %v2063
    %v3273 = vunpack.c.h.b16 %v2063
    %v3274 = vunpack.c.l.b16 %v2064
    %v3275 = vunpack.c.h.b16 %v2064
    %v3276 = vunpack.c.l.b16 %v2065
    %v3277 = vunpack.c.h.b16 %v2065
    %v3278 = vunpack.c.l.b16 %v2066
    %v3279 = vunpack.c.h.b16 %v2066
    %v3280 = vunpack.c.l.b16 %v2067
    %v3281 = vunpack.c.h.b16 %v2067
    %v3282 = vunpack.c.l.b16 %v2068
    %v3283 = vunpack.c.h.b16 %v2068
    %v3284 = vunpack.c.l.b16 %v2069
    %v3285 = vunpack.c.h.b16 %v2069
    %v3286 = vunpack.c.l.b16 %v2070
    %v3287 = vunpack.c.h.b16 %v2070
    %v3288 = vunpack.c.l.b16 %v2071
    %v3289 = vunpack.c.h.b16 %v2071
    %v3290 = vunpack.c.l.b16 %v2072
    %v3291 = vunpack.c.h.b16 %v2072
    %v3292 = vunpack.c.l.b16 %v2073
    %v3293 = vunpack.c.h.b16 %v2073
    %v3294 = vunpack.c.l.b16 %v2074
    %v3295 = vunpack.c.h.b16 %v2074
    %v3296 = vunpack.c.l.b16 %v2075
    %v3297 = vunpack.c.h.b16 %v2075
    %v3298 = vunpack.c.l.b16 %v2076
    %v3299 = vunpack.c.h.b16 %v2076
    %v3300 = vunpack.c.l.b16 %v2077
    %v3301 = vunpack.c.h.b16 %v2077
    %v3302 = vunpack.c.l.b16 %v2078
    %v3303 = vunpack.c.h.b16 %v2078
    %v3304 = vunpack.c.l.b16 %v2079
    %v3305 = vunpack.c.h.b16 %v2079
    %v3306 = vunpack.c.l.b16 %v2080
    %v3307 = vunpack.c.h.b16 %v2080
    %v3308 = vunpack.c.l.b16 %v2081
    %v3309 = vunpack.c.h.b16 %v2081
    %v3310 = vunpack.c.l.b16 %v2082
    %v3311 = vunpack.c.h.b16 %v2082
    %v3312 = vunpack.c.l.b16 %v2083
    %v3313 = vunpack.c.h.b16 %v2083
    %v3314 = vunpack.c.l.b16 %v2084
    %v3315 = vunpack.c.h.b16 %v2084
    %v3316 = vunpack.c.l.b16 %v2085
    %v3317 = vunpack.c.h.b16 %v2085
    %v3318 = vunpack.c.l.b16 %v2086
    %v3319 = vunpack.c.h.b16 %v2086
    %v3320 = vunpack.c.l.b16 %v2087
    %v3321 = vunpack.c.h.b16 %v2087
    %v3322 = vunpack.c.l.b16 %v2088
    %v3323 = vunpack.c.h.b16 %v2088
    %v3324 = vunpack.c.l.b16 %v2089
    %v3325 = vunpack.c.h.b16 %v2089
    %v3326 = vunpack.c.l.b16 %v2090
    %v3327 = vunpack.c.h.b16 %v2090
    %v3328 = vunpack.c.l.b16 %v2091
    %v3329 = vunpack.c.h.b16 %v2091
    %v3330 = vunpack.c.l.b16 %v2092
    %v3331 = vunpack.c.h.b16 %v2092
    %v3332 = vunpack.c.l.b16 %v2093
    %v3333 = vunpack.c.h.b16 %v2093
    %v3334 = vunpack.c.l.b16 %v2094
    %v3335 = vunpack.c.h.b16 %v2094
    %v3336 = vunpack.c.l.b16 %v2095
    %v3337 = vunpack.c.h.b16 %v2095
    %v3338 = vunpack.c.l.b16 %v2096
    %v3339 = vunpack.c.h.b16 %v2096
    %v3340 = vunpack.c.l.b16 %v2097
    %v3341 = vunpack.c.h.b16 %v2097
    %v3342 = vunpack.c.l.b16 %v2098
    %v3343 = vunpack.c.h.b16 %v2098
    %v3344 = vunpack.c.l.b16 %v2099
    %v3345 = vunpack.c.h.b16 %v2099
    %v3346 = vunpack.c.l.b16 %v2100
    %v3347 = vunpack.c.h.b16 %v2100
    %v3348 = vunpack.c.l.b16 %v2101
    %v3349 = vunpack.c.h.b16 %v2101
    %v3350 = vunpack.c.l.b16 %v2102
    %v3351 = vunpack.c.h.b16 %v2102
    %v3352 = vunpack.c.l.b16 %v2103
    %v3353 = vunpack.c.h.b16 %v2103
    %v3354 = vunpack.c.l.b16 %v2104
    %v3355 = vunpack.c.h.b16 %v2104
    %v3356 = vunpack.c.l.b16 %v2105
    %v3357 = vunpack.c.h.b16 %v2105
    %v3358 = vunpack.c.l.b16 %v2106
    %v3359 = vunpack.c.h.b16 %v2106
    %v3360 = vunpack.c.l.b16 %v2107
    %v3361 = vunpack.c.h.b16 %v2107
    %v3362 = vunpack.c.l.b16 %v2108
    %v3363 = vunpack.c.h.b16 %v2108
    %v3364 = vunpack.c.l.b16 %v2109
    %v3365 = vunpack.c.h.b16 %v2109
    %v3366 = vunpack.c.l.b16 %v2110
    %v3367 = vunpack.c.h.b16 %v2110
    %v3368 = vunpack.c.l.b16 %v2111
    %v3369 = vunpack.c.h.b16 %v2111
    %v3370 = vunpack.c.l.b16 %v2112
    %v3371 = vunpack.c.h.b16 %v2112
    %v3372 = vunpack.c.l.b16 %v2113
    %v3373 = vunpack.c.h.b16 %v2113
    %v3374 = vunpack.c.l.b16 %v2114
    %v3375 = vunpack.c.h.b16 %v2114
    %v3376 = vunpack.c.l.b16 %v2115
    %v3377 = vunpack.c.h.b16 %v2115
    %v3378 = vunpack.c.l.b16 %v2116
    %v3379 = vunpack.c.h.b16 %v2116
    %v3380 = vunpack.c.l.b16 %v2117
    %v3381 = vunpack.c.h.b16 %v2117
    %v3382 = vunpack.c.l.b16 %v2118
    %v3383 = vunpack.c.h.b16 %v2118
    %v3384 = vunpack.c.l.b16 %v2119
    %v3385 = vunpack.c.h.b16 %v2119
    %v3386 = vunpack.c.l.b16 %v2120
    %v3387 = vunpack.c.h.b16 %v2120
    %v3388 = vunpack.c.l.b16 %v2121
    %v3389 = vunpack.c.h.b16 %v2121
    %v3390 = vunpack.c.l.b16 %v2122
    %v3391 = vunpack.c.h.b16 %v2122
    %v3392 = vunpack.c.l.b16 %v2123
    %v3393 = vunpack.c.h.b16 %v2123
    %v3394 = vunpack.c.l.b16 %v2124
    %v3395 = vunpack.c.h.b16 %v2124
    %v3396 = vunpack.c.l.b16 %v2125
    %v3397 = vunpack.c.h.b16 %v2125
    %v3398 = vunpack.c.l.b16 %v2126
    %v3399 = vunpack.c.h.b16 %v2126
    %v3400 = vunpack.c.l.b16 %v2127
    %v3401 = vunpack.c.h.b16 %v2127
    %v3402 = vunpack.c.l.b16 %v2128
    %v3403 = vunpack.c.h.b16 %v2128
    %v3404 = vunpack.c.l.b16 %v2129
    %v3405 = vunpack.c.h.b16 %v2129
    %v3406 = vunpack.c.l.b16 %v2130
    %v3407 = vunpack.c.h.b16 %v2130
    %v3408 = vunpack.c.l.b16 %v2131
    %v3409 = vunpack.c.h.b16 %v2131
    %v3410 = vunpack.c.l.b16 %v2132
    %v3411 = vunpack.c.h.b16 %v2132
    %v3412 = vunpack.c.l.b16 %v2133
    %v3413 = vunpack.c.h.b16 %v2133
    %v3414 = vunpack.c.l.b16 %v2134
    %v3415 = vunpack.c.h.b16 %v2134
    %v3416 = vunpack.c.l.b16 %v2135
    %v3417 = vunpack.c.h.b16 %v2135
    %v3418 = vunpack.c.l.b16 %v2136
    %v3419 = vunpack.c.h.b16 %v2136
    %v3420 = vunpack.c.l.b16 %v2137
    %v3421 = vunpack.c.h.b16 %v2137
    %v3422 = vunpack.c.l.b16 %v2138
    %v3423 = vunpack.c.h.b16 %v2138
    %v3424 = vunpack.c.l.b16 %v2139
    %v3425 = vunpack.c.h.b16 %v2139
    %v3426 = vunpack.c.l.b16 %v2140
    %v3427 = vunpack.c.h.b16 %v2140
    %v3428 = vunpack.c.l.b16 %v2141
    %v3429 = vunpack.c.h.b16 %v2141
    %v3430 = vunpack.c.l.b16 %v2142
    %v3431 = vunpack.c.h.b16 %v2142
    %v3432 = vunpack.c.l.b16 %v2143
    %v3433 = vunpack.c.h.b16 %v2143
    %v3434 = vunpack.c.l.b16 %v2144
    %v3435 = vunpack.c.h.b16 %v2144
    %v3436 = vunpack.c.l.b16 %v2145
    %v3437 = vunpack.c.h.b16 %v2145
    %v3438 = vunpack.c.l.b16 %v2146
    %v3439 = vunpack.c.h.b16 %v2146
    %v3440 = vunpack.c.l.b16 %v2147
    %v3441 = vunpack.c.h.b16 %v2147
    %v3442 = vunpack.c.l.b16 %v2148
    %v3443 = vunpack.c.h.b16 %v2148
    %v3444 = vunpack.c.l.b16 %v2149
    %v3445 = vunpack.c.h.b16 %v2149
    %v3446 = vunpack.c.l.b16 %v2150
    %v3447 = vunpack.c.h.b16 %v2150
    %v3448 = vunpack.c.l.b16 %v2151
    %v3449 = vunpack.c.h.b16 %v2151
    %v3450 = vunpack.c.l.b16 %v2152
    %v3451 = vunpack.c.h.b16 %v2152
    %v3452 = vunpack.c.l.b16 %v2153
    %v3453 = vunpack.c.h.b16 %v2153
    %v3454 = vunpack.c.l.b16 %v2154
    %v3455 = vunpack.c.h.b16 %v2154
    %v3456 = vunpack.c.l.b16 %v2155
    %v3457 = vunpack.c.h.b16 %v2155
    %v3458 = vunpack.c.l.b16 %v2156
    %v3459 = vunpack.c.h.b16 %v2156
    %v3460 = vunpack.c.l.b16 %v2157
    %v3461 = vunpack.c.h.b16 %v2157
    %v3462 = vunpack.c.l.b16 %v2158
    %v3463 = vunpack.c.h.b16 %v2158
    %v3464 = vunpack.c.l.b16 %v2159
    %v3465 = vunpack.c.h.b16 %v2159
    %v3466 = vunpack.c.l.b16 %v2160
    %v3467 = vunpack.c.h.b16 %v2160
    %v3468 = vunpack.c.l.b16 %v2161
    %v3469 = vunpack.c.h.b16 %v2161
    %v3470 = vunpack.c.l.b16 %v2162
    %v3471 = vunpack.c.h.b16 %v2162
    %v3472 = vunpack.c.l.b16 %v2163
    %v3473 = vunpack.c.h.b16 %v2163
    %v3474 = vunpack.c.l.b16 %v2164
    %v3475 = vunpack.c.h.b16 %v2164
    %v3476 = vunpack.c.l.b16 %v2165
    %v3477 = vunpack.c.h.b16 %v2165
    %v3478 = vunpack.c.l.b16 %v2166
    %v3479 = vunpack.c.h.b16 %v2166
    %v3480 = vunpack.c.l.b16 %v2167
    %v3481 = vunpack.c.h.b16 %v2167
    %v3482 = vunpack.c.l.b16 %v2168
    %v3483 = vunpack.c.h.b16 %v2168
    %v3484 = vunpack.c.l.b16 %v2169
    %v3485 = vunpack.c.h.b16 %v2169
    %v3486 = vunpack.c.l.b16 %v2170
    %v3487 = vunpack.c.h.b16 %v2170
    %v3488 = vunpack.c.l.b16 %v2171
    %v3489 = vunpack.c.h.b16 %v2171
    %v3490 = vunpack.c.l.b16 %v2172
    %v3491 = vunpack.c.h.b16 %v2172
    %v3492 = vunpack.c.l.b16 %v2173
    %v3493 = vunpack.c.h.b16 %v2173
    %v3494 = vunpack.c.l.b16 %v2174
    %v3495 = vunpack.c.h.b16 %v2174
    %v3496 = vunpack.c.l.b16 %v2175
    %v3497 = vunpack.c.h.b16 %v2175
    %v3498 = vunpack.c.l.b16 %v2176
    %v3499 = vunpack.c.h.b16 %v2176
    %v3500 = vunpack.c.l.b16 %v2177
    %v3501 = vunpack.c.h.b16 %v2177
    %v3502 = vunpack.c.l.b16 %v2178
    %v3503 = vunpack.c.h.b16 %v2178
    %v3504 = vunpack.c.l.b16 %v2179
    %v3505 = vunpack.c.h.b16 %v2179
    %v3506 = vunpack.c.l.b16 %v2180
    %v3507 = vunpack.c.h.b16 %v2180
    %v3508 = vunpack.c.l.b16 %v2181
    %v3509 = vunpack.c.h.b16 %v2181
    %v3510 = vunpack.c.l.b16 %v2182
    %v3511 = vunpack.c.h.b16 %v2182
    %v3512 = vunpack.c.l.b16 %v2183
    %v3513 = vunpack.c.h.b16 %v2183
    %v3514 = vunpack.c.l.b16 %v2184
    %v3515 = vunpack.c.h.b16 %v2184
    %v3516 = vunpack.c.l.b16 %v2185
    %v3517 = vunpack.c.h.b16 %v2185
    %v3518 = vunpack.c.l.b16 %v2186
    %v3519 = vunpack.c.h.b16 %v2186
    %v3520 = vunpack.c.l.b16 %v2187
    %v3521 = vunpack.c.h.b16 %v2187
    %v3522 = vunpack.c.l.b16 %v2188
    %v3523 = vunpack.c.h.b16 %v2188
    %v3524 = vunpack.c.l.b16 %v2189
    %v3525 = vunpack.c.h.b16 %v2189
    %v3526 = vunpack.c.l.b16 %v2190
    %v3527 = vunpack.c.h.b16 %v2190
    %v3528 = vunpack.c.l.b16 %v2191
    %v3529 = vunpack.c.h.b16 %v2191
    %v3530 = vunpack.c.l.b16 %v2192
    %v3531 = vunpack.c.h.b16 %v2192
    %v3532 = vunpack.c.l.b16 %v2193
    %v3533 = vunpack.c.h.b16 %v2193
    %v3534 = vunpack.c.l.b16 %v2194
    %v3535 = vunpack.c.h.b16 %v2194
    %v3536 = vunpack.c.l.b16 %v2195
    %v3537 = vunpack.c.h.b16 %v2195
    %v3538 = vunpack.c.l.b16 %v2196
    %v3539 = vunpack.c.h.b16 %v2196
    %v3540 = vunpack.c.l.b16 %v2197
    %v3541 = vunpack.c.h.b16 %v2197
    %v3542 = vunpack.c.l.b16 %v2198
    %v3543 = vunpack.c.h.b16 %v2198
    %v3544 = vunpack.c.l.b16 %v2199
    %v3545 = vunpack.c.h.b16 %v2199
    %v3546 = vunpack.c.l.b16 %v2200
    %v3547 = vunpack.c.h.b16 %v2200
    %v3548 = vunpack.c.l.b16 %v2201
    %v3549 = vunpack.c.h.b16 %v2201
    %v3550 = vunpack.c.l.b16 %v2202
    %v3551 = vunpack.c.h.b16 %v2202
    %v3552 = vunpack.c.l.b16 %v2203
    %v3553 = vunpack.c.h.b16 %v2203
    %v3554 = vunpack.c.l.b16 %v2204
    %v3555 = vunpack.c.h.b16 %v2204
    %v3556 = vunpack.c.l.b16 %v2205
    %v3557 = vunpack.c.h.b16 %v2205
    %v3558 = vunpack.c.l.b16 %v2206
    %v3559 = vunpack.c.h.b16 %v2206
    %v3560 = vunpack.c.l.b16 %v2207
    %v3561 = vunpack.c.h.b16 %v2207
    %v3562 = vunpack.c.l.b16 %v2208
    %v3563 = vunpack.c.h.b16 %v2208
    %v3564 = vunpack.c.l.b16 %v2209
    %v3565 = vunpack.c.h.b16 %v2209
    %v3566 = vunpack.c.l.b16 %v2210
    %v3567 = vunpack.c.h.b16 %v2210
    %v3568 = vunpack.c.l.b16 %v2211
    %v3569 = vunpack.c.h.b16 %v2211
    %v3570 = vunpack.c.l.b16 %v2212
    %v3571 = vunpack.c.h.b16 %v2212
    %v3572 = vunpack.c.l.b16 %v2213
    %v3573 = vunpack.c.h.b16 %v2213
    %v3574 = vunpack.c.l.b16 %v2214
    %v3575 = vunpack.c.h.b16 %v2214
    %v3576 = vunpack.c.l.b16 %v2215
    %v3577 = vunpack.c.h.b16 %v2215
    %v3578 = vunpack.c.l.b16 %v2216
    %v3579 = vunpack.c.h.b16 %v2216
    %v3580 = vunpack.c.l.b16 %v2217
    %v3581 = vunpack.c.h.b16 %v2217
    %v3582 = vunpack.c.l.b16 %v2218
    %v3583 = vunpack.c.h.b16 %v2218
    %v3584 = vunpack.c.l.b16 %v2219
    %v3585 = vunpack.c.h.b16 %v2219
    %v3586 = vunpack.c.l.b16 %v2220
    %v3587 = vunpack.c.h.b16 %v2220
    %v3588 = vunpack.c.l.b16 %v2221
    %v3589 = vunpack.c.h.b16 %v2221
    %v3590 = vunpack.c.l.b16 %v2222
    %v3591 = vunpack.c.h.b16 %v2222
    %v3592 = vunpack.c.l.b16 %v2223
    %v3593 = vunpack.c.h.b16 %v2223
    %v3594 = vunpack.c.l.b16 %v2224
    %v3595 = vunpack.c.h.b16 %v2224
    %v3596 = vunpack.c.l.b16 %v2225
    %v3597 = vunpack.c.h.b16 %v2225
    %v3598 = vunpack.c.l.b16 %v2226
    %v3599 = vunpack.c.h.b16 %v2226
    %v3600 = vunpack.c.l.b16 %v2227
    %v3601 = vunpack.c.h.b16 %v2227
    %v3602 = vunpack.c.l.b16 %v2228
    %v3603 = vunpack.c.h.b16 %v2228
    %v3604 = vunpack.c.l.b16 %v2229
    %v3605 = vunpack.c.h.b16 %v2229
    %v3606 = vunpack.c.l.b16 %v2230
    %v3607 = vunpack.c.h.b16 %v2230
    %v3608 = vunpack.c.l.b16 %v2231
    %v3609 = vunpack.c.h.b16 %v2231
    %v3610 = vunpack.c.l.b16 %v2232
    %v3611 = vunpack.c.h.b16 %v2232
    %v3612 = vunpack.c.l.b16 %v2233
    %v3613 = vunpack.c.h.b16 %v2233
    %v3614 = vunpack.c.l.b16 %v2234
    %v3615 = vunpack.c.h.b16 %v2234
    %v3616 = vunpack.c.l.b16 %v2235
    %v3617 = vunpack.c.h.b16 %v2235
    %v3618 = vunpack.c.l.b16 %v2236
    %v3619 = vunpack.c.h.b16 %v2236
    %v3620 = vunpack.c.l.b16 %v2237
    %v3621 = vunpack.c.h.b16 %v2237
    %v3622 = vunpack.c.l.b16 %v2238
    %v3623 = vunpack.c.h.b16 %v2238
    %v3624 = vunpack.c.l.b16 %v2239
    %v3625 = vunpack.c.h.b16 %v2239
    %v3626 = vunpack.c.l.b16 %v2240
    %v3627 = vunpack.c.h.b16 %v2240
    %v3628 = vunpack.c.l.b16 %v2241
    %v3629 = vunpack.c.h.b16 %v2241
    %v3630 = vunpack.c.l.b16 %v2242
    %v3631 = vunpack.c.h.b16 %v2242
    %v3632 = vunpack.c.l.b16 %v2243
    %v3633 = vunpack.c.h.b16 %v2243
    %v3634 = vunpack.c.l.b16 %v2244
    %v3635 = vunpack.c.h.b16 %v2244
    %v3636 = vunpack.c.l.b16 %v2245
    %v3637 = vunpack.c.h.b16 %v2245
    %v3638 = vunpack.c.l.b16 %v2246
    %v3639 = vunpack.c.h.b16 %v2246
    %v3640 = vunpack.c.l.b16 %v2247
    %v3641 = vunpack.c.h.b16 %v2247
    %v3642 = vunpack.c.l.b16 %v2248
    %v3643 = vunpack.c.h.b16 %v2248
    %v3644 = vunpack.c.l.b16 %v2249
    %v3645 = vunpack.c.h.b16 %v2249
    %v3646 = vunpack.c.l.b16 %v2250
    %v3647 = vunpack.c.h.b16 %v2250
    %v3648 = vunpack.c.l.b16 %v2251
    %v3649 = vunpack.c.h.b16 %v2251
    %v3650 = vunpack.c.l.b16 %v2252
    %v3651 = vunpack.c.h.b16 %v2252
    %v3652 = vunpack.c.l.b16 %v2253
    %v3653 = vunpack.c.h.b16 %v2253
    %v3654 = vunpack.c.l.b16 %v2254
    %v3655 = vunpack.c.h.b16 %v2254
    %v3656 = vunpack.c.l.b16 %v2255
    %v3657 = vunpack.c.h.b16 %v2255
    %v3658 = vunpack.c.l.b16 %v2256
    %v3659 = vunpack.c.h.b16 %v2256
    %v3660 = vunpack.c.l.b16 %v2257
    %v3661 = vunpack.c.h.b16 %v2257
    %v3662 = vunpack.c.l.b16 %v2258
    %v3663 = vunpack.c.h.b16 %v2258
    %v3664 = vunpack.c.l.b16 %v2259
    %v3665 = vunpack.c.h.b16 %v2259
    %v3666 = vunpack.c.l.b16 %v2260
    %v3667 = vunpack.c.h.b16 %v2260
    %v3668 = vunpack.c.l.b16 %v2261
    %v3669 = vunpack.c.h.b16 %v2261
    %v3670 = vunpack.c.l.b16 %v2262
    %v3671 = vunpack.c.h.b16 %v2262
    %v3672 = vunpack.c.l.b16 %v2263
    %v3673 = vunpack.c.h.b16 %v2263
    %v3674 = vunpack.c.l.b16 %v2264
    %v3675 = vunpack.c.h.b16 %v2264
    %v3676 = vunpack.c.l.b16 %v2265
    %v3677 = vunpack.c.h.b16 %v2265
    %v3678 = vunpack.c.l.b16 %v2266
    %v3679 = vunpack.c.h.b16 %v2266
    %v3680 = vunpack.c.l.b16 %v2267
    %v3681 = vunpack.c.h.b16 %v2267
    %v3682 = vunpack.c.l.b16 %v2268
    %v3683 = vunpack.c.h.b16 %v2268
    %v3684 = vunpack.c.l.b16 %v2269
    %v3685 = vunpack.c.h.b16 %v2269
    %v3686 = vunpack.c.l.b16 %v2270
    %v3687 = vunpack.c.h.b16 %v2270
    %v3688 = vunpack.c.l.b16 %v2271
    %v3689 = vunpack.c.h.b16 %v2271
    %v3690 = vunpack.c.l.b16 %v2272
    %v3691 = vunpack.c.h.b16 %v2272
    %v3692 = vunpack.c.l.b16 %v2273
    %v3693 = vunpack.c.h.b16 %v2273
    %v3694 = vunpack.c.l.b16 %v2274
    %v3695 = vunpack.c.h.b16 %v2274
    %v3696 = vunpack.c.l.b16 %v2275
    %v3697 = vunpack.c.h.b16 %v2275
    %v3698 = vunpack.c.l.b16 %v2276
    %v3699 = vunpack.c.h.b16 %v2276
    %v3700 = vunpack.c.l.b16 %v2277
    %v3701 = vunpack.c.h.b16 %v2277
    %v3702 = vunpack.c.l.b16 %v2278
    %v3703 = vunpack.c.h.b16 %v2278
    %v3704 = vunpack.c.l.b16 %v2279
    %v3705 = vunpack.c.h.b16 %v2279
    %v3706 = vunpack.c.l.b16 %v2280
    %v3707 = vunpack.c.h.b16 %v2280
    %v3708 = vunpack.c.l.b16 %v2281
    %v3709 = vunpack.c.h.b16 %v2281
    %v3710 = vunpack.c.l.b16 %v2282
    %v3711 = vunpack.c.h.b16 %v2282
    %v3712 = vunpack.c.l.b16 %v2283
    %v3713 = vunpack.c.h.b16 %v2283
    %v3714 = vunpack.c.l.b16 %v2284
    %v3715 = vunpack.c.h.b16 %v2284
    %v3716 = vunpack.c.l.b16 %v2285
    %v3717 = vunpack.c.h.b16 %v2285
    %v3718 = vunpack.c.l.b16 %v2286
    %v3719 = vunpack.c.h.b16 %v2286
    %v3720 = vunpack.c.l.b16 %v2287
    %v3721 = vunpack.c.h.b16 %v2287
    %v3722 = vunpack.c.l.b16 %v2288
    %v3723 = vunpack.c.h.b16 %v2288
    %v3724 = vunpack.c.l.b16 %v2289
    %v3725 = vunpack.c.h.b16 %v2289
    %v3726 = vunpack.c.l.b16 %v2290
    %v3727 = vunpack.c.h.b16 %v2290
    %v3728 = vunpack.c.l.b16 %v2291
    %v3729 = vunpack.c.h.b16 %v2291
    %v3730 = vunpack.c.l.b16 %v2292
    %v3731 = vunpack.c.h.b16 %v2292
    %v3732 = vunpack.c.l.b16 %v2293
    %v3733 = vunpack.c.h.b16 %v2293
    %v3734 = vunpack.c.l.b16 %v2294
    %v3735 = vunpack.c.h.b16 %v2294
    %v3736 = vunpack.c.l.b16 %v2295
    %v3737 = vunpack.c.h.b16 %v2295
    %v3738 = vunpack.c.l.b16 %v2296
    %v3739 = vunpack.c.h.b16 %v2296
    %v3740 = vunpack.c.l.b16 %v2297
    %v3741 = vunpack.c.h.b16 %v2297
    %v3742 = vunpack.c.l.b16 %v2298
    %v3743 = vunpack.c.h.b16 %v2298
    %v3744 = vunpack.c.l.b16 %v2299
    %v3745 = vunpack.c.h.b16 %v2299
    %v3746 = vunpack.c.l.b16 %v2300
    %v3747 = vunpack.c.h.b16 %v2300
    %v3748 = vunpack.c.l.b16 %v2301
    %v3749 = vunpack.c.h.b16 %v2301
    %v3750 = vunpack.c.l.b16 %v2302
    %v3751 = vunpack.c.h.b16 %v2302
    %v3752 = vunpack.c.l.b16 %v2303
    %v3753 = vunpack.c.h.b16 %v2303
    %v3754 = vunpack.c.l.b16 %v2304
    %v3755 = vunpack.c.h.b16 %v2304
    %v3756 = vunpack.c.l.b16 %v2305
    %v3757 = vunpack.c.h.b16 %v2305
    %v3758 = vunpack.c.l.b16 %v2306
    %v3759 = vunpack.c.h.b16 %v2306
    %v3760 = vunpack.c.l.b16 %v2307
    %v3761 = vunpack.c.h.b16 %v2307
    %v3762 = vunpack.c.l.b16 %v2308
    %v3763 = vunpack.c.h.b16 %v2308
    %v3764 = vunpack.c.l.b16 %v2309
    %v3765 = vunpack.c.h.b16 %v2309
    %v3766 = vunpack.c.l.b16 %v2310
    %v3767 = vunpack.c.h.b16 %v2310
    %v3768 = vunpack.c.l.b16 %v2311
    %v3769 = vunpack.c.h.b16 %v2311
    %v3770 = vunpack.c.l.b16 %v2312
    %v3771 = vunpack.c.h.b16 %v2312
    %v3772 = vunpack.c.l.b16 %v2313
    %v3773 = vunpack.c.h.b16 %v2313
    %v3774 = vunpack.c.l.b16 %v2314
    %v3775 = vunpack.c.h.b16 %v2314
    %v3776 = vunpack.c.l.b16 %v2315
    %v3777 = vunpack.c.h.b16 %v2315
    %v3778 = vunpack.c.l.b16 %v2316
    %v3779 = vunpack.c.h.b16 %v2316
    %v3780 = vunpack.c.l.b16 %v2317
    %v3781 = vunpack.c.h.b16 %v2317
    %v3782 = vunpack.c.l.b16 %v2318
    %v3783 = vunpack.c.h.b16 %v2318
    %v3784 = vunpack.c.l.b16 %v2319
    %v3785 = vunpack.c.h.b16 %v2319
    %v3786 = vunpack.c.l.b16 %v2320
    %v3787 = vunpack.c.h.b16 %v2320
    %v3788 = vunpack.c.l.b16 %v2321
    %v3789 = vunpack.c.h.b16 %v2321
    %v3790 = vunpack.c.l.b16 %v2322
    %v3791 = vunpack.c.h.b16 %v2322
    %v3792 = vunpack.c.l.b16 %v2323
    %v3793 = vunpack.c.h.b16 %v2323
    %v3794 = vunpack.c.l.b16 %v2324
    %v3795 = vunpack.c.h.b16 %v2324
    %v3796 = vunpack.c.l.b16 %v2325
    %v3797 = vunpack.c.h.b16 %v2325
    %v3798 = vunpack.c.l.b16 %v2326
    %v3799 = vunpack.c.h.b16 %v2326
    %v3800 = vunpack.c.l.b16 %v2327
    %v3801 = vunpack.c.h.b16 %v2327
    %v3802 = vunpack.c.l.b16 %v2328
    %v3803 = vunpack.c.h.b16 %v2328
    %v3804 = vunpack.c.l.b16 %v2329
    %v3805 = vunpack.c.h.b16 %v2329
    %v3806 = vunpack.c.l.b16 %v2330
    %v3807 = vunpack.c.h.b16 %v2330
    %v3808 = vunpack.c.l.b16 %v2331
    %v3809 = vunpack.c.h.b16 %v2331
    %v3810 = vunpack.c.l.b16 %v2332
    %v3811 = vunpack.c.h.b16 %v2332
    %v3812 = vunpack.c.l.b16 %v2333
    %v3813 = vunpack.c.h.b16 %v2333
    %v3814 = vunpack.c.l.b16 %v2334
    %v3815 = vunpack.c.h.b16 %v2334
    %v3816 = vunpack.c.l.b16 %v2335
    %v3817 = vunpack.c.h.b16 %v2335
    %v3818 = vunpack.c.l.b16 %v2336
    %v3819 = vunpack.c.h.b16 %v2336
    %v3820 = vunpack.c.l.b16 %v2337
    %v3821 = vunpack.c.h.b16 %v2337
    %v3822 = vunpack.c.l.b16 %v2338
    %v3823 = vunpack.c.h.b16 %v2338
    %v3824 = vunpack.c.l.b16 %v2339
    %v3825 = vunpack.c.h.b16 %v2339
    %v3826 = vunpack.c.l.b16 %v2340
    %v3827 = vunpack.c.h.b16 %v2340
    %v3828 = vunpack.c.l.b16 %v2341
    %v3829 = vunpack.c.h.b16 %v2341
    %v3830 = vunpack.c.l.b16 %v2342
    %v3831 = vunpack.c.h.b16 %v2342
    %v3832 = vunpack.c.l.b16 %v2343
    %v3833 = vunpack.c.h.b16 %v2343
    %v3834 = vunpack.c.l.b16 %v2344
    %v3835 = vunpack.c.h.b16 %v2344
    %v3836 = vunpack.c.l.b16 %v2345
    %v3837 = vunpack.c.h.b16 %v2345
    %v3838 = vunpack.c.l.b16 %v2346
    %v3839 = vunpack.c.h.b16 %v2346
    %v3840 = vunpack.c.l.b16 %v2347
    %v3841 = vunpack.c.h.b16 %v2347
    %v3842 = vunpack.c.l.b16 %v2348
    %v3843 = vunpack.c.h.b16 %v2348
    %v3844 = vunpack.c.l.b16 %v2349
    %v3845 = vunpack.c.h.b16 %v2349
    %v3846 = vunpack.c.l.b16 %v2350
    %v3847 = vunpack.c.h.b16 %v2350
    %v3848 = vunpack.c.l.b16 %v2351
    %v3849 = vunpack.c.h.b16 %v2351
    %v3850 = vunpack.c.l.b16 %v2352
    %v3851 = vunpack.c.h.b16 %v2352
    %v3852 = vunpack.c.l.b16 %v2353
    %v3853 = vunpack.c.h.b16 %v2353
    %v3854 = vunpack.c.l.b16 %v2354
    %v3855 = vunpack.c.h.b16 %v2354
    %v3856 = vunpack.c.l.b16 %v2355
    %v3857 = vunpack.c.h.b16 %v2355
    %v3858 = vunpack.c.l.b16 %v2356
    %v3859 = vunpack.c.h.b16 %v2356
    %v3860 = vunpack.c.l.b16 %v2357
    %v3861 = vunpack.c.h.b16 %v2357
    %v3862 = vunpack.c.l.b16 %v2358
    %v3863 = vunpack.c.h.b16 %v2358
    %v3864 = vunpack.c.l.b16 %v2359
    %v3865 = vunpack.c.h.b16 %v2359
    %v3866 = vunpack.c.l.b16 %v2360
    %v3867 = vunpack.c.h.b16 %v2360
    %v3868 = vunpack.c.l.b16 %v2361
    %v3869 = vunpack.c.h.b16 %v2361
    %v3870 = vunpack.c.l.b16 %v2362
    %v3871 = vunpack.c.h.b16 %v2362
    %v3872 = vunpack.c.l.b16 %v2363
    %v3873 = vunpack.c.h.b16 %v2363
    %v3874 = vunpack.c.l.b16 %v2364
    %v3875 = vunpack.c.h.b16 %v2364
    %v3876 = vunpack.c.l.b16 %v2365
    %v3877 = vunpack.c.h.b16 %v2365
    %v3878 = vunpack.c.l.b16 %v2366
    %v3879 = vunpack.c.h.b16 %v2366
    %v3880 = vunpack.c.l.b16 %v2367
    %v3881 = vunpack.c.h.b16 %v2367
    %v3882 = vunpack.c.l.b16 %v2368
    %v3883 = vunpack.c.h.b16 %v2368
    %v3884 = vunpack.c.l.b16 %v2369
    %v3885 = vunpack.c.h.b16 %v2369
    %v3886 = vunpack.c.l.b16 %v2370
    %v3887 = vunpack.c.h.b16 %v2370
    %v3888 = vunpack.c.l.b16 %v2371
    %v3889 = vunpack.c.h.b16 %v2371
    %v3890 = vunpack.c.l.b16 %v2372
    %v3891 = vunpack.c.h.b16 %v2372
    %v3892 = vunpack.c.l.b16 %v2373
    %v3893 = vunpack.c.h.b16 %v2373
    %v3894 = vunpack.c.l.b16 %v2374
    %v3895 = vunpack.c.h.b16 %v2374
    %v3896 = vunpack.c.l.b16 %v2375
    %v3897 = vunpack.c.h.b16 %v2375
    %v3898 = vunpack.c.l.b16 %v2376
    %v3899 = vunpack.c.h.b16 %v2376
    %v3900 = vunpack.c.l.b16 %v2377
    %v3901 = vunpack.c.h.b16 %v2377
    %v3902 = vunpack.c.l.b16 %v2378
    %v3903 = vunpack.c.h.b16 %v2378
    %v3904 = vunpack.c.l.b16 %v2379
    %v3905 = vunpack.c.h.b16 %v2379
    %v3906 = vunpack.c.l.b16 %v2380
    %v3907 = vunpack.c.h.b16 %v2380
    %v3908 = vunpack.c.l.b16 %v2381
    %v3909 = vunpack.c.h.b16 %v2381
    %v3910 = vunpack.c.l.b16 %v2382
    %v3911 = vunpack.c.h.b16 %v2382
    %v3912 = vunpack.c.l.b16 %v2383
    %v3913 = vunpack.c.h.b16 %v2383
    %v3914 = vunpack.c.l.b16 %v2384
    %v3915 = vunpack.c.h.b16 %v2384
    %v3916 = vunpack.c.l.b16 %v2385
    %v3917 = vunpack.c.h.b16 %v2385
    %v3918 = vunpack.c.l.b16 %v2386
    %v3919 = vunpack.c.h.b16 %v2386
    %v3920 = vunpack.c.l.b16 %v2387
    %v3921 = vunpack.c.h.b16 %v2387
    %v3922 = vunpack.c.l.b16 %v2388
    %v3923 = vunpack.c.h.b16 %v2388
    %v3924 = vunpack.c.l.b16 %v2389
    %v3925 = vunpack.c.h.b16 %v2389
    %v3926 = vunpack.c.l.b16 %v2390
    %v3927 = vunpack.c.h.b16 %v2390
    %v3928 = vunpack.c.l.b16 %v2391
    %v3929 = vunpack.c.h.b16 %v2391
    %v3930 = vunpack.c.l.b16 %v2392
    %v3931 = vunpack.c.h.b16 %v2392
    %v3932 = vunpack.c.l.b16 %v2393
    %v3933 = vunpack.c.h.b16 %v2393
    %v3934 = vunpack.c.l.b16 %v2394
    %v3935 = vunpack.c.h.b16 %v2394
    %v3936 = vunpack.c.l.b16 %v2395
    %v3937 = vunpack.c.h.b16 %v2395
    %v3938 = vunpack.c.l.b16 %v2396
    %v3939 = vunpack.c.h.b16 %v2396
    %v3940 = vunpack.c.l.b16 %v2397
    %v3941 = vunpack.c.h.b16 %v2397
    %v3942 = vunpack.c.l.b16 %v2398
    %v3943 = vunpack.c.h.b16 %v2398
    %v3944 = vunpack.c.l.b16 %v2399
    %v3945 = vunpack.c.h.b16 %v2399
    %v3946 = vunpack.c.l.b16 %v2400
    %v3947 = vunpack.c.h.b16 %v2400
    %v3948 = vunpack.c.l.b16 %v2401
    %v3949 = vunpack.c.h.b16 %v2401
    %v3950 = vunpack.c.l.b16 %v2402
    %v3951 = vunpack.c.h.b16 %v2402
    %v3952 = vunpack.c.l.b16 %v2403
    %v3953 = vunpack.c.h.b16 %v2403
    %v3954 = vunpack.c.l.b16 %v2404
    %v3955 = vunpack.c.h.b16 %v2404
    %v3956 = vunpack.c.l.b16 %v2405
    %v3957 = vunpack.c.h.b16 %v2405
    %v3958 = vunpack.c.l.b16 %v2406
    %v3959 = vunpack.c.h.b16 %v2406
    %v3960 = vunpack.c.l.b16 %v2407
    %v3961 = vunpack.c.h.b16 %v2407
    %v3962 = vunpack.c.l.b16 %v2408
    %v3963 = vunpack.c.h.b16 %v2408
    %v3964 = vunpack.c.l.b16 %v2409
    %v3965 = vunpack.c.h.b16 %v2409
    %v3966 = vunpack.c.l.b16 %v2410
    %v3967 = vunpack.c.h.b16 %v2410
    %v3968 = vunpack.c.l.b16 %v2411
    %v3969 = vunpack.c.h.b16 %v2411
    %v3970 = vunpack.c.l.b16 %v2412
    %v3971 = vunpack.c.h.b16 %v2412
    %v3972 = vunpack.c.l.b16 %v2413
    %v3973 = vunpack.c.h.b16 %v2413
    %v3974 = vunpack.c.l.b16 %v2414
    %v3975 = vunpack.c.h.b16 %v2414
    %v3976 = vunpack.c.l.b16 %v2415
    %v3977 = vunpack.c.h.b16 %v2415
    %v3978 = vunpack.c.l.b16 %v2416
    %v3979 = vunpack.c.h.b16 %v2416
    %v3980 = vunpack.c.l.b16 %v2417
    %v3981 = vunpack.c.h.b16 %v2417
    %v3982 = vunpack.c.l.b16 %v2418
    %v3983 = vunpack.c.h.b16 %v2418
    %v3984 = vunpack.c.l.b16 %v2419
    %v3985 = vunpack.c.h.b16 %v2419
    %v3986 = vunpack.c.l.b16 %v2420
    %v3987 = vunpack.c.h.b16 %v2420
    %v3988 = vunpack.c.l.b16 %v2421
    %v3989 = vunpack.c.h.b16 %v2421
    %v3990 = vunpack.c.l.b16 %v2422
    %v3991 = vunpack.c.h.b16 %v2422
    %v3992 = vunpack.c.l.b16 %v2423
    %v3993 = vunpack.c.h.b16 %v2423
    %v3994 = vunpack.c.l.b16 %v2424
    %v3995 = vunpack.c.h.b16 %v2424
    %v3996 = vunpack.c.l.b16 %v2425
    %v3997 = vunpack.c.h.b16 %v2425
    %v3998 = vunpack.c.l.b16 %v2426
    %v3999 = vunpack.c.h.b16 %v2426
    %v4000 = vunpack.c.l.b16 %v2427
    %v4001 = vunpack.c.h.b16 %v2427
    %v4002 = vunpack.c.l.b16 %v2428
    %v4003 = vunpack.c.h.b16 %v2428
    %v4004 = vunpack.c.l.b16 %v2429
    %v4005 = vunpack.c.h.b16 %v2429
    %v4006 = vunpack.c.l.b16 %v2430
    %v4007 = vunpack.c.h.b16 %v2430
    %v4008 = vunpack.c.l.b16 %v2431
    %v4009 = vunpack.c.h.b16 %v2431
    %v4010 = vpack.c.b16 %v2994, %v2986
    %v4011 = vpack.c.b16 %v2995, %v2987
    %v4012 = vpack.c.b16 %v2996, %v2988
    %v4013 = vpack.c.b16 %v2997, %v2989
    %v4014 = vpack.c.b16 %v2998, %v2990
    %v4015 = vpack.c.b16 %v2999, %v2991
    %v4016 = vpack.c.b16 %v3000, %v2992
    %v4017 = vpack.c.b16 %v3001, %v2993
    %v4018 = vpack.c.b16 %v3010, %v3002
    %v4019 = vpack.c.b16 %v3011, %v3003
    %v4020 = vpack.c.b16 %v3012, %v3004
    %v4021 = vpack.c.b16 %v3013, %v3005
    %v4022 = vpack.c.b16 %v3014, %v3006
    %v4023 = vpack.c.b16 %v3015, %v3007
    %v4024 = vpack.c.b16 %v3016, %v3008
    %v4025 = vpack.c.b16 %v3017, %v3009
    %v4026 = vpack.c.b16 %v3026, %v3018
    %v4027 = vpack.c.b16 %v3027, %v3019
    %v4028 = vpack.c.b16 %v3028, %v3020
    %v4029 = vpack.c.b16 %v3029, %v3021
    %v4030 = vpack.c.b16 %v3030, %v3022
    %v4031 = vpack.c.b16 %v3031, %v3023
    %v4032 = vpack.c.b16 %v3032, %v3024
    %v4033 = vpack.c.b16 %v3033, %v3025
    %v4034 = vpack.c.b16 %v3042, %v3034
    %v4035 = vpack.c.b16 %v3043, %v3035
    %v4036 = vpack.c.b16 %v3044, %v3036
    %v4037 = vpack.c.b16 %v3045, %v3037
    %v4038 = vpack.c.b16 %v3046, %v3038
    %v4039 = vpack.c.b16 %v3047, %v3039
    %v4040 = vpack.c.b16 %v3048, %v3040
    %v4041 = vpack.c.b16 %v3049, %v3041
    %v4042 = vpack.c.b16 %v3058, %v3050
    %v4043 = vpack.c.b16 %v3059, %v3051
    %v4044 = vpack.c.b16 %v3060, %v3052
    %v4045 = vpack.c.b16 %v3061, %v3053
    %v4046 = vpack.c.b16 %v3062, %v3054
    %v4047 = vpack.c.b16 %v3063, %v3055
    %v4048 = vpack.c.b16 %v3064, %v3056
    %v4049 = vpack.c.b16 %v3065, %v3057
    %v4050 = vpack.c.b16 %v3074, %v3066
    %v4051 = vpack.c.b16 %v3075, %v3067
    %v4052 = vpack.c.b16 %v3076, %v3068
    %v4053 = vpack.c.b16 %v3077, %v3069
    %v4054 = vpack.c.b16 %v3078, %v3070
    %v4055 = vpack.c.b16 %v3079, %v3071
    %v4056 = vpack.c.b16 %v3080, %v3072
    %v4057 = vpack.c.b16 %v3081, %v3073
    %v4058 = vpack.c.b16 %v3090, %v3082
    %v4059 = vpack.c.b16 %v3091, %v3083
    %v4060 = vpack.c.b16 %v3092, %v3084
    %v4061 = vpack.c.b16 %v3093, %v3085
    %v4062 = vpack.c.b16 %v3094, %v3086
    %v4063 = vpack.c.b16 %v3095, %v3087
    %v4064 = vpack.c.b16 %v3096, %v3088
    %v4065 = vpack.c.b16 %v3097, %v3089
    %v4066 = vpack.c.b16 %v3106, %v3098
    %v4067 = vpack.c.b16 %v3107, %v3099
    %v4068 = vpack.c.b16 %v3108, %v3100
    %v4069 = vpack.c.b16 %v3109, %v3101
    %v4070 = vpack.c.b16 %v3110, %v3102
    %v4071 = vpack.c.b16 %v3111, %v3103
    %v4072 = vpack.c.b16 %v3112, %v3104
    %v4073 = vpack.c.b16 %v3113, %v3105
    %v4074 = vpack.c.b16 %v3122, %v3114
    %v4075 = vpack.c.b16 %v3123, %v3115
    %v4076 = vpack.c.b16 %v3124, %v3116
    %v4077 = vpack.c.b16 %v3125, %v3117
    %v4078 = vpack.c.b16 %v3126, %v3118
    %v4079 = vpack.c.b16 %v3127, %v3119
    %v4080 = vpack.c.b16 %v3128, %v3120
    %v4081 = vpack.c.b16 %v3129, %v3121
    %v4082 = vpack.c.b16 %v3138, %v3130
    %v4083 = vpack.c.b16 %v3139, %v3131
    %v4084 = vpack.c.b16 %v3140, %v3132
    %v4085 = vpack.c.b16 %v3141, %v3133
    %v4086 = vpack.c.b16 %v3142, %v3134
    %v4087 = vpack.c.b16 %v3143, %v3135
    %v4088 = vpack.c.b16 %v3144, %v3136
    %v4089 = vpack.c.b16 %v3145, %v3137
    %v4090 = vpack.c.b16 %v3154, %v3146
    %v4091 = vpack.c.b16 %v3155, %v3147
    %v4092 = vpack.c.b16 %v3156, %v3148
    %v4093 = vpack.c.b16 %v3157, %v3149
    %v4094 = vpack.c.b16 %v3158, %v3150
    %v4095 = vpack.c.b16 %v3159, %v3151
    %v4096 = vpack.c.b16 %v3160, %v3152
    %v4097 = vpack.c.b16 %v3161, %v3153
    %v4098 = vpack.c.b16 %v3170, %v3162
    %v4099 = vpack.c.b16 %v3171, %v3163
    %v4100 = vpack.c.b16 %v3172, %v3164
    %v4101 = vpack.c.b16 %v3173, %v3165
    %v4102 = vpack.c.b16 %v3174, %v3166
    %v4103 = vpack.c.b16 %v3175, %v3167
    %v4104 = vpack.c.b16 %v3176, %v3168
    %v4105 = vpack.c.b16 %v3177, %v3169
    %v4106 = vpack.c.b16 %v3186, %v3178
    %v4107 = vpack.c.b16 %v3187, %v3179
    %v4108 = vpack.c.b16 %v3188, %v3180
    %v4109 = vpack.c.b16 %v3189, %v3181
    %v4110 = vpack.c.b16 %v3190, %v3182
    %v4111 = vpack.c.b16 %v3191, %v3183
    %v4112 = vpack.c.b16 %v3192, %v3184
    %v4113 = vpack.c.b16 %v3193, %v3185
    %v4114 = vpack.c.b16 %v3202, %v3194
    %v4115 = vpack.c.b16 %v3203, %v3195
    %v4116 = vpack.c.b16 %v3204, %v3196
    %v4117 = vpack.c.b16 %v3205, %v3197
    %v4118 = vpack.c.b16 %v3206, %v3198
    %v4119 = vpack.c.b16 %v3207, %v3199
    %v4120 = vpack.c.b16 %v3208, %v3200
    %v4121 = vpack.c.b16 %v3209, %v3201
    %v4122 = vpack.c.b16 %v3218, %v3210
    %v4123 = vpack.c.b16 %v3219, %v3211
    %v4124 = vpack.c.b16 %v3220, %v3212
    %v4125 = vpack.c.b16 %v3221, %v3213
    %v4126 = vpack.c.b16 %v3222, %v3214
    %v4127 = vpack.c.b16 %v3223, %v3215
    %v4128 = vpack.c.b16 %v3224, %v3216
    %v4129 = vpack.c.b16 %v3225, %v3217
    %v4130 = vpack.c.b16 %v3234, %v3226
    %v4131 = vpack.c.b16 %v3235, %v3227
    %v4132 = vpack.c.b16 %v3236, %v3228
    %v4133 = vpack.c.b16 %v3237, %v3229
    %v4134 = vpack.c.b16 %v3238, %v3230
    %v4135 = vpack.c.b16 %v3239, %v3231
    %v4136 = vpack.c.b16 %v3240, %v3232
    %v4137 = vpack.c.b16 %v3241, %v3233
    %v4138 = vpack.c.b16 %v3250, %v3242
    %v4139 = vpack.c.b16 %v3251, %v3243
    %v4140 = vpack.c.b16 %v3252, %v3244
    %v4141 = vpack.c.b16 %v3253, %v3245
    %v4142 = vpack.c.b16 %v3254, %v3246
    %v4143 = vpack.c.b16 %v3255, %v3247
    %v4144 = vpack.c.b16 %v3256, %v3248
    %v4145 = vpack.c.b16 %v3257, %v3249
    %v4146 = vpack.c.b16 %v3266, %v3258
    %v4147 = vpack.c.b16 %v3267, %v3259
    %v4148 = vpack.c.b16 %v3268, %v3260
    %v4149 = vpack.c.b16 %v3269, %v3261
    %v4150 = vpack.c.b16 %v3270, %v3262
    %v4151 = vpack.c.b16 %v3271, %v3263
    %v4152 = vpack.c.b16 %v3272, %v3264
    %v4153 = vpack.c.b16 %v3273, %v3265
    %v4154 = vpack.c.b16 %v3282, %v3274
    %v4155 = vpack.c.b16 %v3283, %v3275
    %v4156 = vpack.c.b16 %v3284, %v3276
    %v4157 = vpack.c.b16 %v3285, %v3277
    %v4158 = vpack.c.b16 %v3286, %v3278
    %v4159 = vpack.c.b16 %v3287, %v3279
    %v4160 = vpack.c.b16 %v3288, %v3280
    %v4161 = vpack.c.b16 %v3289, %v3281
    %v4162 = vpack.c.b16 %v3298, %v3290
    %v4163 = vpack.c.b16 %v3299, %v3291
    %v4164 = vpack.c.b16 %v3300, %v3292
    %v4165 = vpack.c.b16 %v3301, %v3293
    %v4166 = vpack.c.b16 %v3302, %v3294
    %v4167 = vpack.c.b16 %v3303, %v3295
    %v4168 = vpack.c.b16 %v3304, %v3296
    %v4169 = vpack.c.b16 %v3305, %v3297
    %v4170 = vpack.c.b16 %v3314, %v3306
    %v4171 = vpack.c.b16 %v3315, %v3307
    %v4172 = vpack.c.b16 %v3316, %v3308
    %v4173 = vpack.c.b16 %v3317, %v3309
    %v4174 = vpack.c.b16 %v3318, %v3310
    %v4175 = vpack.c.b16 %v3319, %v3311
    %v4176 = vpack.c.b16 %v3320, %v3312
    %v4177 = vpack.c.b16 %v3321, %v3313
    %v4178 = vpack.c.b16 %v3330, %v3322
    %v4179 = vpack.c.b16 %v3331, %v3323
    %v4180 = vpack.c.b16 %v3332, %v3324
    %v4181 = vpack.c.b16 %v3333, %v3325
    %v4182 = vpack.c.b16 %v3334, %v3326
    %v4183 = vpack.c.b16 %v3335, %v3327
    %v4184 = vpack.c.b16 %v3336, %v3328
    %v4185 = vpack.c.b16 %v3337, %v3329
    %v4186 = vpack.c.b16 %v3346, %v3338
    %v4187 = vpack.c.b16 %v3347, %v3339
    %v4188 = vpack.c.b16 %v3348, %v3340
    %v4189 = vpack.c.b16 %v3349, %v3341
    %v4190 = vpack.c.b16 %v3350, %v3342
    %v4191 = vpack.c.b16 %v3351, %v3343
    %v4192 = vpack.c.b16 %v3352, %v3344
    %v4193 = vpack.c.b16 %v3353, %v3345
    %v4194 = vpack.c.b16 %v3362, %v3354
    %v4195 = vpack.c.b16 %v3363, %v3355
    %v4196 = vpack.c.b16 %v3364, %v3356
    %v4197 = vpack.c.b16 %v3365, %v3357
    %v4198 = vpack.c.b16 %v3366, %v3358
    %v4199 = vpack.c.b16 %v3367, %v3359
    %v4200 = vpack.c.b16 %v3368, %v3360
    %v4201 = vpack.c.b16 %v3369, %v3361
    %v4202 = vpack.c.b16 %v3378, %v3370
    %v4203 = vpack.c.b16 %v3379, %v3371
    %v4204 = vpack.c.b16 %v3380, %v3372
    %v4205 = vpack.c.b16 %v3381, %v3373
    %v4206 = vpack.c.b16 %v3382, %v3374
    %v4207 = vpack.c.b16 %v3383, %v3375
    %v4208 = vpack.c.b16 %v3384, %v3376
    %v4209 = vpack.c.b16 %v3385, %v3377
    %v4210 = vpack.c.b16 %v3394, %v3386
    %v4211 = vpack.c.b16 %v3395, %v3387
    %v4212 = vpack.c.b16 %v3396, %v3388
    %v4213 = vpack.c.b16 %v3397, %v3389
    %v4214 = vpack.c.b16 %v3398, %v3390
    %v4215 = vpack.c.b16 %v3399, %v3391
    %v4216 = vpack.c.b16 %v3400, %v3392
    %v4217 = vpack.c.b16 %v3401, %v3393
    %v4218 = vpack.c.b16 %v3410, %v3402
    %v4219 = vpack.c.b16 %v3411, %v3403
    %v4220 = vpack.c.b16 %v3412, %v3404
    %v4221 = vpack.c.b16 %v3413, %v3405
    %v4222 = vpack.c.b16 %v3414, %v3406
    %v4223 = vpack.c.b16 %v3415, %v3407
    %v4224 = vpack.c.b16 %v3416, %v3408
    %v4225 = vpack.c.b16 %v3417, %v3409
    %v4226 = vpack.c.b16 %v3426, %v3418
    %v4227 = vpack.c.b16 %v3427, %v3419
    %v4228 = vpack.c.b16 %v3428, %v3420
    %v4229 = vpack.c.b16 %v3429, %v3421
    %v4230 = vpack.c.b16 %v3430, %v3422
    %v4231 = vpack.c.b16 %v3431, %v3423
    %v4232 = vpack.c.b16 %v3432, %v3424
    %v4233 = vpack.c.b16 %v3433, %v3425
    %v4234 = vpack.c.b16 %v3442, %v3434
    %v4235 = vpack.c.b16 %v3443, %v3435
    %v4236 = vpack.c.b16 %v3444, %v3436
    %v4237 = vpack.c.b16 %v3445, %v3437
    %v4238 = vpack.c.b16 %v3446, %v3438
    %v4239 = vpack.c.b16 %v3447, %v3439
    %v4240 = vpack.c.b16 %v3448, %v3440
    %v4241 = vpack.c.b16 %v3449, %v3441
    %v4242 = vpack.c.b16 %v3458, %v3450
    %v4243 = vpack.c.b16 %v3459, %v3451
    %v4244 = vpack.c.b16 %v3460, %v3452
    %v4245 = vpack.c.b16 %v3461, %v3453
    %v4246 = vpack.c.b16 %v3462, %v3454
    %v4247 = vpack.c.b16 %v3463, %v3455
    %v4248 = vpack.c.b16 %v3464, %v3456
    %v4249 = vpack.c.b16 %v3465, %v3457
    %v4250 = vpack.c.b16 %v3474, %v3466
    %v4251 = vpack.c.b16 %v3475, %v3467
    %v4252 = vpack.c.b16 %v3476, %v3468
    %v4253 = vpack.c.b16 %v3477, %v3469
    %v4254 = vpack.c.b16 %v3478, %v3470
    %v4255 = vpack.c.b16 %v3479, %v3471
    %v4256 = vpack.c.b16 %v3480, %v3472
    %v4257 = vpack.c.b16 %v3481, %v3473
    %v4258 = vpack.c.b16 %v3490, %v3482
    %v4259 = vpack.c.b16 %v3491, %v3483
    %v4260 = vpack.c.b16 %v3492, %v3484
    %v4261 = vpack.c.b16 %v3493, %v3485
    %v4262 = vpack.c.b16 %v3494, %v3486
    %v4263 = vpack.c.b16 %v3495, %v3487
    %v4264 = vpack.c.b16 %v3496, %v3488
    %v4265 = vpack.c.b16 %v3497, %v3489
    %v4266 = vpack.c.b16 %v3506, %v3498
    %v4267 = vpack.c.b16 %v3507, %v3499
    %v4268 = vpack.c.b16 %v3508, %v3500
    %v4269 = vpack.c.b16 %v3509, %v3501
    %v4270 = vpack.c.b16 %v3510, %v3502
    %v4271 = vpack.c.b16 %v3511, %v3503
    %v4272 = vpack.c.b16 %v3512, %v3504
    %v4273 = vpack.c.b16 %v3513, %v3505
    %v4274 = vpack.c.b16 %v3522, %v3514
    %v4275 = vpack.c.b16 %v3523, %v3515
    %v4276 = vpack.c.b16 %v3524, %v3516
    %v4277 = vpack.c.b16 %v3525, %v3517
    %v4278 = vpack.c.b16 %v3526, %v3518
    %v4279 = vpack.c.b16 %v3527, %v3519
    %v4280 = vpack.c.b16 %v3528, %v3520
    %v4281 = vpack.c.b16 %v3529, %v3521
    %v4282 = vpack.c.b16 %v3538, %v3530
    %v4283 = vpack.c.b16 %v3539, %v3531
    %v4284 = vpack.c.b16 %v3540, %v3532
    %v4285 = vpack.c.b16 %v3541, %v3533
    %v4286 = vpack.c.b16 %v3542, %v3534
    %v4287 = vpack.c.b16 %v3543, %v3535
    %v4288 = vpack.c.b16 %v3544, %v3536
    %v4289 = vpack.c.b16 %v3545, %v3537
    %v4290 = vpack.c.b16 %v3554, %v3546
    %v4291 = vpack.c.b16 %v3555, %v3547
    %v4292 = vpack.c.b16 %v3556, %v3548
    %v4293 = vpack.c.b16 %v3557, %v3549
    %v4294 = vpack.c.b16 %v3558, %v3550
    %v4295 = vpack.c.b16 %v3559, %v3551
    %v4296 = vpack.c.b16 %v3560, %v3552
    %v4297 = vpack.c.b16 %v3561, %v3553
    %v4298 = vpack.c.b16 %v3570, %v3562
    %v4299 = vpack.c.b16 %v3571, %v3563
    %v4300 = vpack.c.b16 %v3572, %v3564
    %v4301 = vpack.c.b16 %v3573, %v3565
    %v4302 = vpack.c.b16 %v3574, %v3566
    %v4303 = vpack.c.b16 %v3575, %v3567
    %v4304 = vpack.c.b16 %v3576, %v3568
    %v4305 = vpack.c.b16 %v3577, %v3569
    %v4306 = vpack.c.b16 %v3586, %v3578
    %v4307 = vpack.c.b16 %v3587, %v3579
    %v4308 = vpack.c.b16 %v3588, %v3580
    %v4309 = vpack.c.b16 %v3589, %v3581
    %v4310 = vpack.c.b16 %v3590, %v3582
    %v4311 = vpack.c.b16 %v3591, %v3583
    %v4312 = vpack.c.b16 %v3592, %v3584
    %v4313 = vpack.c.b16 %v3593, %v3585
    %v4314 = vpack.c.b16 %v3602, %v3594
    %v4315 = vpack.c.b16 %v3603, %v3595
    %v4316 = vpack.c.b16 %v3604, %v3596
    %v4317 = vpack.c.b16 %v3605, %v3597
    %v4318 = vpack.c.b16 %v3606, %v3598
    %v4319 = vpack.c.b16 %v3607, %v3599
    %v4320 = vpack.c.b16 %v3608, %v3600
    %v4321 = vpack.c.b16 %v3609, %v3601
    %v4322 = vpack.c.b16 %v3618, %v3610
    %v4323 = vpack.c.b16 %v3619, %v3611
    %v4324 = vpack.c.b16 %v3620, %v3612
    %v4325 = vpack.c.b16 %v3621, %v3613
    %v4326 = vpack.c.b16 %v3622, %v3614
    %v4327 = vpack.c.b16 %v3623, %v3615
    %v4328 = vpack.c.b16 %v3624, %v3616
    %v4329 = vpack.c.b16 %v3625, %v3617
    %v4330 = vpack.c.b16 %v3634, %v3626
    %v4331 = vpack.c.b16 %v3635, %v3627
    %v4332 = vpack.c.b16 %v3636, %v3628
    %v4333 = vpack.c.b16 %v3637, %v3629
    %v4334 = vpack.c.b16 %v3638, %v3630
    %v4335 = vpack.c.b16 %v3639, %v3631
    %v4336 = vpack.c.b16 %v3640, %v3632
    %v4337 = vpack.c.b16 %v3641, %v3633
    %v4338 = vpack.c.b16 %v3650, %v3642
    %v4339 = vpack.c.b16 %v3651, %v3643
    %v4340 = vpack.c.b16 %v3652, %v3644
    %v4341 = vpack.c.b16 %v3653, %v3645
    %v4342 = vpack.c.b16 %v3654, %v3646
    %v4343 = vpack.c.b16 %v3655, %v3647
    %v4344 = vpack.c.b16 %v3656, %v3648
    %v4345 = vpack.c.b16 %v3657, %v3649
    %v4346 = vpack.c.b16 %v3666, %v3658
    %v4347 = vpack.c.b16 %v3667, %v3659
    %v4348 = vpack.c.b16 %v3668, %v3660
    %v4349 = vpack.c.b16 %v3669, %v3661
    %v4350 = vpack.c.b16 %v3670, %v3662
    %v4351 = vpack.c.b16 %v3671, %v3663
    %v4352 = vpack.c.b16 %v3672, %v3664
    %v4353 = vpack.c.b16 %v3673, %v3665
    %v4354 = vpack.c.b16 %v3682, %v3674
    %v4355 = vpack.c.b16 %v3683, %v3675
    %v4356 = vpack.c.b16 %v3684, %v3676
    %v4357 = vpack.c.b16 %v3685, %v3677
    %v4358 = vpack.c.b16 %v3686, %v3678
    %v4359 = vpack.c.b16 %v3687, %v3679
    %v4360 = vpack.c.b16 %v3688, %v3680
    %v4361 = vpack.c.b16 %v3689, %v3681
    %v4362 = vpack.c.b16 %v3698, %v3690
    %v4363 = vpack.c.b16 %v3699, %v3691
    %v4364 = vpack.c.b16 %v3700, %v3692
    %v4365 = vpack.c.b16 %v3701, %v3693
    %v4366 = vpack.c.b16 %v3702, %v3694
    %v4367 = vpack.c.b16 %v3703, %v3695
    %v4368 = vpack.c.b16 %v3704, %v3696
    %v4369 = vpack.c.b16 %v3705, %v3697
    %v4370 = vpack.c.b16 %v3714, %v3706
    %v4371 = vpack.c.b16 %v3715, %v3707
    %v4372 = vpack.c.b16 %v3716, %v3708
    %v4373 = vpack.c.b16 %v3717, %v3709
    %v4374 = vpack.c.b16 %v3718, %v3710
    %v4375 = vpack.c.b16 %v3719, %v3711
    %v4376 = vpack.c.b16 %v3720, %v3712
    %v4377 = vpack.c.b16 %v3721, %v3713
    %v4378 = vpack.c.b16 %v3730, %v3722
    %v4379 = vpack.c.b16 %v3731, %v3723
    %v4380 = vpack.c.b16 %v3732, %v3724
    %v4381 = vpack.c.b16 %v3733, %v3725
    %v4382 = vpack.c.b16 %v3734, %v3726
    %v4383 = vpack.c.b16 %v3735, %v3727
    %v4384 = vpack.c.b16 %v3736, %v3728
    %v4385 = vpack.c.b16 %v3737, %v3729
    %v4386 = vpack.c.b16 %v3746, %v3738
    %v4387 = vpack.c.b16 %v3747, %v3739
    %v4388 = vpack.c.b16 %v3748, %v3740
    %v4389 = vpack.c.b16 %v3749, %v3741
    %v4390 = vpack.c.b16 %v3750, %v3742
    %v4391 = vpack.c.b16 %v3751, %v3743
    %v4392 = vpack.c.b16 %v3752, %v3744
    %v4393 = vpack.c.b16 %v3753, %v3745
    %v4394 = vpack.c.b16 %v3762, %v3754
    %v4395 = vpack.c.b16 %v3763, %v3755
    %v4396 = vpack.c.b16 %v3764, %v3756
    %v4397 = vpack.c.b16 %v3765, %v3757
    %v4398 = vpack.c.b16 %v3766, %v3758
    %v4399 = vpack.c.b16 %v3767, %v3759
    %v4400 = vpack.c.b16 %v3768, %v3760
    %v4401 = vpack.c.b16 %v3769, %v3761
    %v4402 = vpack.c.b16 %v3778, %v3770
    %v4403 = vpack.c.b16 %v3779, %v3771
    %v4404 = vpack.c.b16 %v3780, %v3772
    %v4405 = vpack.c.b16 %v3781, %v3773
    %v4406 = vpack.c.b16 %v3782, %v3774
    %v4407 = vpack.c.b16 %v3783, %v3775
    %v4408 = vpack.c.b16 %v3784, %v3776
    %v4409 = vpack.c.b16 %v3785, %v3777
    %v4410 = vpack.c.b16 %v3794, %v3786
    %v4411 = vpack.c.b16 %v3795, %v3787
    %v4412 = vpack.c.b16 %v3796, %v3788
    %v4413 = vpack.c.b16 %v3797, %v3789
    %v4414 = vpack.c.b16 %v3798, %v3790
    %v4415 = vpack.c.b16 %v3799, %v3791
    %v4416 = vpack.c.b16 %v3800, %v3792
    %v4417 = vpack.c.b16 %v3801, %v3793
    %v4418 = vpack.c.b16 %v3810, %v3802
    %v4419 = vpack.c.b16 %v3811, %v3803
    %v4420 = vpack.c.b16 %v3812, %v3804
    %v4421 = vpack.c.b16 %v3813, %v3805
    %v4422 = vpack.c.b16 %v3814, %v3806
    %v4423 = vpack.c.b16 %v3815, %v3807
    %v4424 = vpack.c.b16 %v3816, %v3808
    %v4425 = vpack.c.b16 %v3817, %v3809
    %v4426 = vpack.c.b16 %v3826, %v3818
    %v4427 = vpack.c.b16 %v3827, %v3819
    %v4428 = vpack.c.b16 %v3828, %v3820
    %v4429 = vpack.c.b16 %v3829, %v3821
    %v4430 = vpack.c.b16 %v3830, %v3822
    %v4431 = vpack.c.b16 %v3831, %v3823
    %v4432 = vpack.c.b16 %v3832, %v3824
    %v4433 = vpack.c.b16 %v3833, %v3825
    %v4434 = vpack.c.b16 %v3842, %v3834
    %v4435 = vpack.c.b16 %v3843, %v3835
    %v4436 = vpack.c.b16 %v3844, %v3836
    %v4437 = vpack.c.b16 %v3845, %v3837
    %v4438 = vpack.c.b16 %v3846, %v3838
    %v4439 = vpack.c.b16 %v3847, %v3839
    %v4440 = vpack.c.b16 %v3848, %v3840
    %v4441 = vpack.c.b16 %v3849, %v3841
    %v4442 = vpack.c.b16 %v3858, %v3850
    %v4443 = vpack.c.b16 %v3859, %v3851
    %v4444 = vpack.c.b16 %v3860, %v3852
    %v4445 = vpack.c.b16 %v3861, %v3853
    %v4446 = vpack.c.b16 %v3862, %v3854
    %v4447 = vpack.c.b16 %v3863, %v3855
    %v4448 = vpack.c.b16 %v3864, %v3856
    %v4449 = vpack.c.b16 %v3865, %v3857
    %v4450 = vpack.c.b16 %v3874, %v3866
    %v4451 = vpack.c.b16 %v3875, %v3867
    %v4452 = vpack.c.b16 %v3876, %v3868
    %v4453 = vpack.c.b16 %v3877, %v3869
    %v4454 = vpack.c.b16 %v3878, %v3870
    %v4455 = vpack.c.b16 %v3879, %v3871
    %v4456 = vpack.c.b16 %v3880, %v3872
    %v4457 = vpack.c.b16 %v3881, %v3873
    %v4458 = vpack.c.b16 %v3890, %v3882
    %v4459 = vpack.c.b16 %v3891, %v3883
    %v4460 = vpack.c.b16 %v3892, %v3884
    %v4461 = vpack.c.b16 %v3893, %v3885
    %v4462 = vpack.c.b16 %v3894, %v3886
    %v4463 = vpack.c.b16 %v3895, %v3887
    %v4464 = vpack.c.b16 %v3896, %v3888
    %v4465 = vpack.c.b16 %v3897, %v3889
    %v4466 = vpack.c.b16 %v3906, %v3898
    %v4467 = vpack.c.b16 %v3907, %v3899
    %v4468 = vpack.c.b16 %v3908, %v3900
    %v4469 = vpack.c.b16 %v3909, %v3901
    %v4470 = vpack.c.b16 %v3910, %v3902
    %v4471 = vpack.c.b16 %v3911, %v3903
    %v4472 = vpack.c.b16 %v3912, %v3904
    %v4473 = vpack.c.b16 %v3913, %v3905
    %v4474 = vpack.c.b16 %v3922, %v3914
    %v4475 = vpack.c.b16 %v3923, %v3915
    %v4476 = vpack.c.b16 %v3924, %v3916
    %v4477 = vpack.c.b16 %v3925, %v3917
    %v4478 = vpack.c.b16 %v3926, %v3918
    %v4479 = vpack.c.b16 %v3927, %v3919
    %v4480 = vpack.c.b16 %v3928, %v3920
    %v4481 = vpack.c.b16 %v3929, %v3921
    %v4482 = vpack.c.b16 %v3938, %v3930
    %v4483 = vpack.c.b16 %v3939, %v3931
    %v4484 = vpack.c.b16 %v3940, %v3932
    %v4485 = vpack.c.b16 %v3941, %v3933
    %v4486 = vpack.c.b16 %v3942, %v3934
    %v4487 = vpack.c.b16 %v3943, %v3935
    %v4488 = vpack.c.b16 %v3944, %v3936
    %v4489 = vpack.c.b16 %v3945, %v3937
    %v4490 = vpack.c.b16 %v3954, %v3946
    %v4491 = vpack.c.b16 %v3955, %v3947
    %v4492 = vpack.c.b16 %v3956, %v3948
    %v4493 = vpack.c.b16 %v3957, %v3949
    %v4494 = vpack.c.b16 %v3958, %v3950
    %v4495 = vpack.c.b16 %v3959, %v3951
    %v4496 = vpack.c.b16 %v3960, %v3952
    %v4497 = vpack.c.b16 %v3961, %v3953
    %v4498 = vpack.c.b16 %v3970, %v3962
    %v4499 = vpack.c.b16 %v3971, %v3963
    %v4500 = vpack.c.b16 %v3972, %v3964
    %v4501 = vpack.c.b16 %v3973, %v3965
    %v4502 = vpack.c.b16 %v3974, %v3966
    %v4503 = vpack.c.b16 %v3975, %v3967
    %v4504 = vpack.c.b16 %v3976, %v3968
    %v4505 = vpack.c.b16 %v3977, %v3969
    %v4506 = vpack.c.b16 %v3986, %v3978
    %v4507 = vpack.c.b16 %v3987, %v3979
    %v4508 = vpack.c.b16 %v3988, %v3980
    %v4509 = vpack.c.b16 %v3989, %v3981
    %v4510 = vpack.c.b16 %v3990, %v3982
    %v4511 = vpack.c.b16 %v3991, %v3983
    %v4512 = vpack.c.b16 %v3992, %v3984
    %v4513 = vpack.c.b16 %v3993, %v3985
    %v4514 = vpack.c.b16 %v4002, %v3994
    %v4515 = vpack.c.b16 %v4003, %v3995
    %v4516 = vpack.c.b16 %v4004, %v3996
    %v4517 = vpack.c.b16 %v4005, %v3997
    %v4518 = vpack.c.b16 %v4006, %v3998
    %v4519 = vpack.c.b16 %v4007, %v3999
    %v4520 = vpack.c.b16 %v4008, %v4000
    %v4521 = vpack.c.b16 %v4009, %v4001
    %5034 = vmatprep.subr.bf16.mxu0 %v4011
    %5035 = vmatpush1.bf16.msra.mxu0 %v4010
    %5036 = vmatprep.subr.bf16.mxu0 %v4019
    %5037 = vmatpush1.bf16.msra.mxu0 %v4018
    %5038 = vmatprep.subr.bf16.mxu0 %v4027
    %5039 = vmatpush1.bf16.msra.mxu0 %v4026
    %5040 = vmatprep.subr.bf16.mxu0 %v4035
    %5041 = vmatpush1.bf16.msra.mxu0 %v4034
    %5042 = vmatprep.subr.bf16.mxu0 %v4043
    %5043 = vmatpush1.bf16.msra.mxu0 %v4042
    %5044 = vmatprep.subr.bf16.mxu0 %v4051
    %5045 = vmatpush1.bf16.msra.mxu0 %v4050
    %5046 = vmatprep.subr.bf16.mxu0 %v4059
    %5047 = vmatpush1.bf16.msra.mxu0 %v4058
    %5048 = vmatprep.subr.bf16.mxu0 %v4067
    %5049 = vmatpush1.bf16.msra.mxu0 %v4066
    %5050 = vmatprep.subr.bf16.mxu0 %v4075
    %5051 = vmatpush1.bf16.msra.mxu0 %v4074
    %5052 = vmatprep.subr.bf16.mxu0 %v4083
    %5053 = vmatpush1.bf16.msra.mxu0 %v4082
    %5054 = vmatprep.subr.bf16.mxu0 %v4091
    %5055 = vmatpush1.bf16.msra.mxu0 %v4090
    %5056 = vmatprep.subr.bf16.mxu0 %v4099
    %5057 = vmatpush1.bf16.msra.mxu0 %v4098
    %5058 = vmatprep.subr.bf16.mxu0 %v4107
    %5059 = vmatpush1.bf16.msra.mxu0 %v4106
    %5060 = vmatprep.subr.bf16.mxu0 %v4115
    %5061 = vmatpush1.bf16.msra.mxu0 %v4114
    %5062 = vmatprep.subr.bf16.mxu0 %v4123
    %5063 = vmatpush1.bf16.msra.mxu0 %v4122
    %5064 = vmatprep.subr.bf16.mxu0 %v4131
    %5065 = vmatpush1.bf16.msra.mxu0 %v4130
    %5066 = vmatprep.mubr.bf16.mxu0 %v1913
    %5067 = vmatmul.mubr.bf16.gmra.mrb[0].mxu0 %v1912
    %v5068 = vpop.f32.mrb[0].mxu0
    %v5069 = vadd.f32 %v2437, %v5068
    %v5070 = vpop.f32.mrb[0].mxu0
    %v5071 = vadd.f32 %v2441, %v5070
    %v5072 = vpop.f32.mrb[0].mxu0
    %v5073 = vpop.f32.mrb[0].mxu0
    %5074 = vdwg.mxu0
    %5075 = vmatprep.subr.bf16.mxu0 %v4139
    %5076 = vmatpush1.bf16.msra.mxu0 %v4138
    %5077 = vmatprep.subr.bf16.mxu0 %v4147
    %5078 = vmatpush1.bf16.msra.mxu0 %v4146
    %5079 = vmatprep.subr.bf16.mxu0 %v4155
    %5080 = vmatpush1.bf16.msra.mxu0 %v4154
    %5081 = vmatprep.subr.bf16.mxu0 %v4163
    %5082 = vmatpush1.bf16.msra.mxu0 %v4162
    %5083 = vmatprep.subr.bf16.mxu0 %v4171
    %5084 = vmatpush1.bf16.msra.mxu0 %v4170
    %5085 = vmatprep.subr.bf16.mxu0 %v4179
    %5086 = vmatpush1.bf16.msra.mxu0 %v4178
    %5087 = vmatprep.subr.bf16.mxu0 %v4187
    %5088 = vmatpush1.bf16.msra.mxu0 %v4186
    %5089 = vmatprep.subr.bf16.mxu0 %v4195
    %5090 = vmatpush1.bf16.msra.mxu0 %v4194
    %5091 = vmatprep.subr.bf16.mxu0 %v4203
    %5092 = vmatpush1.bf16.msra.mxu0 %v4202
    %5093 = vmatprep.subr.bf16.mxu0 %v4211
    %5094 = vmatpush1.bf16.msra.mxu0 %v4210
    %5095 = vmatprep.subr.bf16.mxu0 %v4219
    %5096 = vmatpush1.bf16.msra.mxu0 %v4218
    %5097 = vmatprep.subr.bf16.mxu0 %v4227
    %5098 = vmatpush1.bf16.msra.mxu0 %v4226
    %5099 = vmatprep.subr.bf16.mxu0 %v4235
    %5100 = vmatpush1.bf16.msra.mxu0 %v4234
    %5101 = vmatprep.subr.bf16.mxu0 %v4243
    %5102 = vmatpush1.bf16.msra.mxu0 %v4242
    %5103 = vmatprep.subr.bf16.mxu0 %v4251
    %5104 = vmatpush1.bf16.msra.mxu0 %v4250
    %5105 = vmatprep.subr.bf16.mxu0 %v4259
    %5106 = vmatpush1.bf16.msra.mxu0 %v4258
    %5107 = vmatprep.mubr.bf16.mxu0 %v1915
    %5108 = vmatmul.mubr.bf16.gmra.mrb[0].mxu0 %v1914
    %v5109 = vpop.f32.mrb[0].mxu0
    %v5110 = vadd.f32 %v5069, %v5109
    %v5111 = vpop.f32.mrb[0].mxu0
    %v5112 = vadd.f32 %v5071, %v5111
    %v5113 = vpop.f32.mrb[0].mxu0
    %v5114 = vpop.f32.mrb[0].mxu0
    %5115 = vdwg.mxu0
    %5116 = vmatprep.subr.bf16.mxu0 %v4267
    %5117 = vmatpush1.bf16.msra.mxu0 %v4266
    %5118 = vmatprep.subr.bf16.mxu0 %v4275
    %5119 = vmatpush1.bf16.msra.mxu0 %v4274
    %5120 = vmatprep.subr.bf16.mxu0 %v4283
    %5121 = vmatpush1.bf16.msra.mxu0 %v4282
    %5122 = vmatprep.subr.bf16.mxu0 %v4291
    %5123 = vmatpush1.bf16.msra.mxu0 %v4290
    %5124 = vmatprep.subr.bf16.mxu0 %v4299
    %5125 = vmatpush1.bf16.msra.mxu0 %v4298
    %5126 = vmatprep.subr.bf16.mxu0 %v4307
    %5127 = vmatpush1.bf16.msra.mxu0 %v4306
    %5128 = vmatprep.subr.bf16.mxu0 %v4315
    %5129 = vmatpush1.bf16.msra.mxu0 %v4314
    %5130 = vmatprep.subr.bf16.mxu0 %v4323
    %5131 = vmatpush1.bf16.msra.mxu0 %v4322
    %5132 = vmatprep.subr.bf16.mxu0 %v4331
    %5133 = vmatpush1.bf16.msra.mxu0 %v4330
    %5134 = vmatprep.subr.bf16.mxu0 %v4339
    %5135 = vmatpush1.bf16.msra.mxu0 %v4338
    %5136 = vmatprep.subr.bf16.mxu0 %v4347
    %5137 = vmatpush1.bf16.msra.mxu0 %v4346
    %5138 = vmatprep.subr.bf16.mxu0 %v4355
    %5139 = vmatpush1.bf16.msra.mxu0 %v4354
    %5140 = vmatprep.subr.bf16.mxu0 %v4363
    %5141 = vmatpush1.bf16.msra.mxu0 %v4362
    %5142 = vmatprep.subr.bf16.mxu0 %v4371
    %5143 = vmatpush1.bf16.msra.mxu0 %v4370
    %5144 = vmatprep.subr.bf16.mxu0 %v4379
    %5145 = vmatpush1.bf16.msra.mxu0 %v4378
    %5146 = vmatprep.subr.bf16.mxu0 %v4387
    %5147 = vmatpush1.bf16.msra.mxu0 %v4386
    %5148 = vmatprep.mubr.bf16.mxu0 %v1917
    %5149 = vmatmul.mubr.bf16.gmra.mrb[0].mxu0 %v1916
    %v5150 = vpop.f32.mrb[0].mxu0
    %v5151 = vadd.f32 %v5110, %v5150
    %v5152 = vpop.f32.mrb[0].mxu0
    %v5153 = vadd.f32 %v5112, %v5152
    %v5154 = vpop.f32.mrb[0].mxu0
    %v5155 = vpop.f32.mrb[0].mxu0
    %5156 = vdwg.mxu0
    %5157 = vmatprep.subr.bf16.mxu0 %v4395
    %5158 = vmatpush1.bf16.msra.mxu0 %v4394
    %5159 = vmatprep.subr.bf16.mxu0 %v4403
    %5160 = vmatpush1.bf16.msra.mxu0 %v4402
    %5161 = vmatprep.subr.bf16.mxu0 %v4411
    %5162 = vmatpush1.bf16.msra.mxu0 %v4410
    %5163 = vmatprep.subr.bf16.mxu0 %v4419
    %5164 = vmatpush1.bf16.msra.mxu0 %v4418
    %5165 = vmatprep.subr.bf16.mxu0 %v4427
    %5166 = vmatpush1.bf16.msra.mxu0 %v4426
    %5167 = vmatprep.subr.bf16.mxu0 %v4435
    %5168 = vmatpush1.bf16.msra.mxu0 %v4434
    %5169 = vmatprep.subr.bf16.mxu0 %v4443
    %5170 = vmatpush1.bf16.msra.mxu0 %v4442
    %5171 = vmatprep.subr.bf16.mxu0 %v4451
    %5172 = vmatpush1.bf16.msra.mxu0 %v4450
    %5173 = vmatprep.subr.bf16.mxu0 %v4459
    %5174 = vmatpush1.bf16.msra.mxu0 %v4458
    %5175 = vmatprep.subr.bf16.mxu0 %v4467
    %5176 = vmatpush1.bf16.msra.mxu0 %v4466
    %5177 = vmatprep.subr.bf16.mxu0 %v4475
    %5178 = vmatpush1.bf16.msra.mxu0 %v4474
    %5179 = vmatprep.subr.bf16.mxu0 %v4483
    %5180 = vmatpush1.bf16.msra.mxu0 %v4482
    %5181 = vmatprep.subr.bf16.mxu0 %v4491
    %5182 = vmatpush1.bf16.msra.mxu0 %v4490
    %5183 = vmatprep.subr.bf16.mxu0 %v4499
    %5184 = vmatpush1.bf16.msra.mxu0 %v4498
    %5185 = vmatprep.subr.bf16.mxu0 %v4507
    %5186 = vmatpush1.bf16.msra.mxu0 %v4506
    %5187 = vmatprep.subr.bf16.mxu0 %v4515
    %5188 = vmatpush1.bf16.msra.mxu0 %v4514
    %5189 = vmatprep.mubr.bf16.mxu0 %v1919
    %5190 = vmatmul.mubr.bf16.gmra.mrb[0].mxu0 %v1918
    %v5191 = vpop.f32.mrb[0].mxu0
    %v5192 = vadd.f32 %v5151, %v5191
    %v5193 = vpop.f32.mrb[0].mxu0
    %v5194 = vadd.f32 %v5153, %v5193
    %v5195 = vpop.f32.mrb[0].mxu0
    %v5196 = vpop.f32.mrb[0].mxu0
    %5197 = vdwg.mxu0
    %5198 = vmatprep.subr.bf16.mxu0 %v4013
    %5199 = vmatpush1.bf16.msra.mxu0 %v4012
    %5200 = vmatprep.subr.bf16.mxu0 %v4021
    %5201 = vmatpush1.bf16.msra.mxu0 %v4020
    %5202 = vmatprep.subr.bf16.mxu0 %v4029
    %5203 = vmatpush1.bf16.msra.mxu0 %v4028
    %5204 = vmatprep.subr.bf16.mxu0 %v4037
    %5205 = vmatpush1.bf16.msra.mxu0 %v4036
    %5206 = vmatprep.subr.bf16.mxu0 %v4045
    %5207 = vmatpush1.bf16.msra.mxu0 %v4044
    %5208 = vmatprep.subr.bf16.mxu0 %v4053
    %5209 = vmatpush1.bf16.msra.mxu0 %v4052
    %5210 = vmatprep.subr.bf16.mxu0 %v4061
    %5211 = vmatpush1.bf16.msra.mxu0 %v4060
    %5212 = vmatprep.subr.bf16.mxu0 %v4069
    %5213 = vmatpush1.bf16.msra.mxu0 %v4068
    %5214 = vmatprep.subr.bf16.mxu0 %v4077
    %5215 = vmatpush1.bf16.msra.mxu0 %v4076
    %5216 = vmatprep.subr.bf16.mxu0 %v4085
    %5217 = vmatpush1.bf16.msra.mxu0 %v4084
    %5218 = vmatprep.subr.bf16.mxu0 %v4093
    %5219 = vmatpush1.bf16.msra.mxu0 %v4092
    %5220 = vmatprep.subr.bf16.mxu0 %v4101
    %5221 = vmatpush1.bf16.msra.mxu0 %v4100
    %5222 = vmatprep.subr.bf16.mxu0 %v4109
    %5223 = vmatpush1.bf16.msra.mxu0 %v4108
    %5224 = vmatprep.subr.bf16.mxu0 %v4117
    %5225 = vmatpush1.bf16.msra.mxu0 %v4116
    %5226 = vmatprep.subr.bf16.mxu0 %v4125
    %5227 = vmatpush1.bf16.msra.mxu0 %v4124
    %5228 = vmatprep.subr.bf16.mxu0 %v4133
    %5229 = vmatpush1.bf16.msra.mxu0 %v4132
    %5230 = vmatprep.mubr.bf16.mxu0 %v1913
    %5231 = vmatmul.mubr.bf16.gmra.mrb[0].mxu0 %v1912
    %v5232 = vpop.f32.mrb[0].mxu0
    %v5233 = vadd.f32 %v2445, %v5232
    %v5234 = vpop.f32.mrb[0].mxu0
    %v5235 = vadd.f32 %v2449, %v5234
    %v5236 = vpop.f32.mrb[0].mxu0
    %v5237 = vpop.f32.mrb[0].mxu0
    %5238 = vdwg.mxu0
    %5239 = vmatprep.subr.bf16.mxu0 %v4141
    %5240 = vmatpush1.bf16.msra.mxu0 %v4140
    %5241 = vmatprep.subr.bf16.mxu0 %v4149
    %5242 = vmatpush1.bf16.msra.mxu0 %v4148
    %5243 = vmatprep.subr.bf16.mxu0 %v4157
    %5244 = vmatpush1.bf16.msra.mxu0 %v4156
    %5245 = vmatprep.subr.bf16.mxu0 %v4165
    %5246 = vmatpush1.bf16.msra.mxu0 %v4164
    %5247 = vmatprep.subr.bf16.mxu0 %v4173
    %5248 = vmatpush1.bf16.msra.mxu0 %v4172
    %5249 = vmatprep.subr.bf16.mxu0 %v4181
    %5250 = vmatpush1.bf16.msra.mxu0 %v4180
    %5251 = vmatprep.subr.bf16.mxu0 %v4189
    %5252 = vmatpush1.bf16.msra.mxu0 %v4188
    %5253 = vmatprep.subr.bf16.mxu0 %v4197
    %5254 = vmatpush1.bf16.msra.mxu0 %v4196
    %5255 = vmatprep.subr.bf16.mxu0 %v4205
    %5256 = vmatpush1.bf16.msra.mxu0 %v4204
    %5257 = vmatprep.subr.bf16.mxu0 %v4213
    %5258 = vmatpush1.bf16.msra.mxu0 %v4212
    %5259 = vmatprep.subr.bf16.mxu0 %v4221
    %5260 = vmatpush1.bf16.msra.mxu0 %v4220
    %5261 = vmatprep.subr.bf16.mxu0 %v4229
    %5262 = vmatpush1.bf16.msra.mxu0 %v4228
    %5263 = vmatprep.subr.bf16.mxu0 %v4237
    %5264 = vmatpush1.bf16.msra.mxu0 %v4236
    %5265 = vmatprep.subr.bf16.mxu0 %v4245
    %5266 = vmatpush1.bf16.msra.mxu0 %v4244
    %5267 = vmatprep.subr.bf16.mxu0 %v4253
    %5268 = vmatpush1.bf16.msra.mxu0 %v4252
    %5269 = vmatprep.subr.bf16.mxu0 %v4261
    %5270 = vmatpush1.bf16.msra.mxu0 %v4260
    %5271 = vmatprep.mubr.bf16.mxu0 %v1915
    %5272 = vmatmul.mubr.bf16.gmra.mrb[0].mxu0 %v1914
    %v5273 = vpop.f32.mrb[0].mxu0
    %v5274 = vadd.f32 %v5233, %v5273
    %v5275 = vpop.f32.mrb[0].mxu0
    %v5276 = vadd.f32 %v5235, %v5275
    %v5277 = vpop.f32.mrb[0].mxu0
    %v5278 = vpop.f32.mrb[0].mxu0
    %5279 = vdwg.mxu0
    %5280 = vmatprep.subr.bf16.mxu0 %v4269
    %5281 = vmatpush1.bf16.msra.mxu0 %v4268
    %5282 = vmatprep.subr.bf16.mxu0 %v4277
    %5283 = vmatpush1.bf16.msra.mxu0 %v4276
    %5284 = vmatprep.subr.bf16.mxu0 %v4285
    %5285 = vmatpush1.bf16.msra.mxu0 %v4284
    %5286 = vmatprep.subr.bf16.mxu0 %v4293
    %5287 = vmatpush1.bf16.msra.mxu0 %v4292
    %5288 = vmatprep.subr.bf16.mxu0 %v4301
    %5289 = vmatpush1.bf16.msra.mxu0 %v4300
    %5290 = vmatprep.subr.bf16.mxu0 %v4309
    %5291 = vmatpush1.bf16.msra.mxu0 %v4308
    %5292 = vmatprep.subr.bf16.mxu0 %v4317
    %5293 = vmatpush1.bf16.msra.mxu0 %v4316
    %5294 = vmatprep.subr.bf16.mxu0 %v4325
    %5295 = vmatpush1.bf16.msra.mxu0 %v4324
    %5296 = vmatprep.subr.bf16.mxu0 %v4333
    %5297 = vmatpush1.bf16.msra.mxu0 %v4332
    %5298 = vmatprep.subr.bf16.mxu0 %v4341
    %5299 = vmatpush1.bf16.msra.mxu0 %v4340
    %5300 = vmatprep.subr.bf16.mxu0 %v4349
    %5301 = vmatpush1.bf16.msra.mxu0 %v4348
    %5302 = vmatprep.subr.bf16.mxu0 %v4357
    %5303 = vmatpush1.bf16.msra.mxu0 %v4356
    %5304 = vmatprep.subr.bf16.mxu0 %v4365
    %5305 = vmatpush1.bf16.msra.mxu0 %v4364
    %5306 = vmatprep.subr.bf16.mxu0 %v4373
    %5307 = vmatpush1.bf16.msra.mxu0 %v4372
    %5308 = vmatprep.subr.bf16.mxu0 %v4381
    %5309 = vmatpush1.bf16.msra.mxu0 %v4380
    %5310 = vmatprep.subr.bf16.mxu0 %v4389
    %5311 = vmatpush1.bf16.msra.mxu0 %v4388
    %5312 = vmatprep.mubr.bf16.mxu0 %v1917
    %5313 = vmatmul.mubr.bf16.gmra.mrb[0].mxu0 %v1916
    %v5314 = vpop.f32.mrb[0].mxu0
    %v5315 = vadd.f32 %v5274, %v5314
    %v5316 = vpop.f32.mrb[0].mxu0
    %v5317 = vadd.f32 %v5276, %v5316
    %v5318 = vpop.f32.mrb[0].mxu0
    %v5319 = vpop.f32.mrb[0].mxu0
    %5320 = vdwg.mxu0
    %5321 = vmatprep.subr.bf16.mxu0 %v4397
    %5322 = vmatpush1.bf16.msra.mxu0 %v4396
    %5323 = vmatprep.subr.bf16.mxu0 %v4405
    %5324 = vmatpush1.bf16.msra.mxu0 %v4404
    %5325 = vmatprep.subr.bf16.mxu0 %v4413
    %5326 = vmatpush1.bf16.msra.mxu0 %v4412
    %5327 = vmatprep.subr.bf16.mxu0 %v4421
    %5328 = vmatpush1.bf16.msra.mxu0 %v4420
    %5329 = vmatprep.subr.bf16.mxu0 %v4429
    %5330 = vmatpush1.bf16.msra.mxu0 %v4428
    %5331 = vmatprep.subr.bf16.mxu0 %v4437
    %5332 = vmatpush1.bf16.msra.mxu0 %v4436
    %5333 = vmatprep.subr.bf16.mxu0 %v4445
    %5334 = vmatpush1.bf16.msra.mxu0 %v4444
    %5335 = vmatprep.subr.bf16.mxu0 %v4453
    %5336 = vmatpush1.bf16.msra.mxu0 %v4452
    %5337 = vmatprep.subr.bf16.mxu0 %v4461
    %5338 = vmatpush1.bf16.msra.mxu0 %v4460
    %5339 = vmatprep.subr.bf16.mxu0 %v4469
    %5340 = vmatpush1.bf16.msra.mxu0 %v4468
    %5341 = vmatprep.subr.bf16.mxu0 %v4477
    %5342 = vmatpush1.bf16.msra.mxu0 %v4476
    %5343 = vmatprep.subr.bf16.mxu0 %v4485
    %5344 = vmatpush1.bf16.msra.mxu0 %v4484
    %5345 = vmatprep.subr.bf16.mxu0 %v4493
    %5346 = vmatpush1.bf16.msra.mxu0 %v4492
    %5347 = vmatprep.subr.bf16.mxu0 %v4501
    %5348 = vmatpush1.bf16.msra.mxu0 %v4500
    %5349 = vmatprep.subr.bf16.mxu0 %v4509
    %5350 = vmatpush1.bf16.msra.mxu0 %v4508
    %5351 = vmatprep.subr.bf16.mxu0 %v4517
    %5352 = vmatpush1.bf16.msra.mxu0 %v4516
    %5353 = vmatprep.mubr.bf16.mxu0 %v1919
    %5354 = vmatmul.mubr.bf16.gmra.mrb[0].mxu0 %v1918
    %v5355 = vpop.f32.mrb[0].mxu0
    %v5356 = vadd.f32 %v5315, %v5355
    %v5357 = vpop.f32.mrb[0].mxu0
    %v5358 = vadd.f32 %v5317, %v5357
    %v5359 = vpop.f32.mrb[0].mxu0
    %v5360 = vpop.f32.mrb[0].mxu0
    %5361 = vdwg.mxu0
    %5362 = vmatprep.subr.bf16.mxu0 %v4015
    %5363 = vmatpush1.bf16.msra.mxu0 %v4014
    %5364 = vmatprep.subr.bf16.mxu0 %v4023
    %5365 = vmatpush1.bf16.msra.mxu0 %v4022
    %5366 = vmatprep.subr.bf16.mxu0 %v4031
    %5367 = vmatpush1.bf16.msra.mxu0 %v4030
    %5368 = vmatprep.subr.bf16.mxu0 %v4039
    %5369 = vmatpush1.bf16.msra.mxu0 %v4038
    %5370 = vmatprep.subr.bf16.mxu0 %v4047
    %5371 = vmatpush1.bf16.msra.mxu0 %v4046
    %5372 = vmatprep.subr.bf16.mxu0 %v4055
    %5373 = vmatpush1.bf16.msra.mxu0 %v4054
    %5374 = vmatprep.subr.bf16.mxu0 %v4063
    %5375 = vmatpush1.bf16.msra.mxu0 %v4062
    %5376 = vmatprep.subr.bf16.mxu0 %v4071
    %5377 = vmatpush1.bf16.msra.mxu0 %v4070
    %5378 = vmatprep.subr.bf16.mxu0 %v4079
    %5379 = vmatpush1.bf16.msra.mxu0 %v4078
    %5380 = vmatprep.subr.bf16.mxu0 %v4087
    %5381 = vmatpush1.bf16.msra.mxu0 %v4086
    %5382 = vmatprep.subr.bf16.mxu0 %v4095
    %5383 = vmatpush1.bf16.msra.mxu0 %v4094
    %5384 = vmatprep.subr.bf16.mxu0 %v4103
    %5385 = vmatpush1.bf16.msra.mxu0 %v4102
    %5386 = vmatprep.subr.bf16.mxu0 %v4111
    %5387 = vmatpush1.bf16.msra.mxu0 %v4110
    %5388 = vmatprep.subr.bf16.mxu0 %v4119
    %5389 = vmatpush1.bf16.msra.mxu0 %v4118
    %5390 = vmatprep.subr.bf16.mxu0 %v4127
    %5391 = vmatpush1.bf16.msra.mxu0 %v4126
    %5392 = vmatprep.subr.bf16.mxu0 %v4135
    %5393 = vmatpush1.bf16.msra.mxu0 %v4134
    %5394 = vmatprep.mubr.bf16.mxu0 %v1913
    %5395 = vmatmul.mubr.bf16.gmra.mrb[0].mxu0 %v1912
    %v5396 = vpop.f32.mrb[0].mxu0
    %v5397 = vadd.f32 %v2453, %v5396
    %v5398 = vpop.f32.mrb[0].mxu0
    %v5399 = vadd.f32 %v2457, %v5398
    %v5400 = vpop.f32.mrb[0].mxu0
    %v5401 = vpop.f32.mrb[0].mxu0
    %5402 = vdwg.mxu0
    %5403 = vmatprep.subr.bf16.mxu0 %v4143
    %5404 = vmatpush1.bf16.msra.mxu0 %v4142
    %5405 = vmatprep.subr.bf16.mxu0 %v4151
    %5406 = vmatpush1.bf16.msra.mxu0 %v4150
    %5407 = vmatprep.subr.bf16.mxu0 %v4159
    %5408 = vmatpush1.bf16.msra.mxu0 %v4158
    %5409 = vmatprep.subr.bf16.mxu0 %v4167
    %5410 = vmatpush1.bf16.msra.mxu0 %v4166
    %5411 = vmatprep.subr.bf16.mxu0 %v4175
    %5412 = vmatpush1.bf16.msra.mxu0 %v4174
    %5413 = vmatprep.subr.bf16.mxu0 %v4183
    %5414 = vmatpush1.bf16.msra.mxu0 %v4182
    %5415 = vmatprep.subr.bf16.mxu0 %v4191
    %5416 = vmatpush1.bf16.msra.mxu0 %v4190
    %5417 = vmatprep.subr.bf16.mxu0 %v4199
    %5418 = vmatpush1.bf16.msra.mxu0 %v4198
    %5419 = vmatprep.subr.bf16.mxu0 %v4207
    %5420 = vmatpush1.bf16.msra.mxu0 %v4206
    %5421 = vmatprep.subr.bf16.mxu0 %v4215
    %5422 = vmatpush1.bf16.msra.mxu0 %v4214
    %5423 = vmatprep.subr.bf16.mxu0 %v4223
    %5424 = vmatpush1.bf16.msra.mxu0 %v4222
    %5425 = vmatprep.subr.bf16.mxu0 %v4231
    %5426 = vmatpush1.bf16.msra.mxu0 %v4230
    %5427 = vmatprep.subr.bf16.mxu0 %v4239
    %5428 = vmatpush1.bf16.msra.mxu0 %v4238
    %5429 = vmatprep.subr.bf16.mxu0 %v4247
    %5430 = vmatpush1.bf16.msra.mxu0 %v4246
    %5431 = vmatprep.subr.bf16.mxu0 %v4255
    %5432 = vmatpush1.bf16.msra.mxu0 %v4254
    %5433 = vmatprep.subr.bf16.mxu0 %v4263
    %5434 = vmatpush1.bf16.msra.mxu0 %v4262
    %5435 = vmatprep.mubr.bf16.mxu0 %v1915
    %5436 = vmatmul.mubr.bf16.gmra.mrb[0].mxu0 %v1914
    %v5437 = vpop.f32.mrb[0].mxu0
    %v5438 = vadd.f32 %v5397, %v5437
    %v5439 = vpop.f32.mrb[0].mxu0
    %v5440 = vadd.f32 %v5399, %v5439
    %v5441 = vpop.f32.mrb[0].mxu0
    %v5442 = vpop.f32.mrb[0].mxu0
    %5443 = vdwg.mxu0
    %5444 = vmatprep.subr.bf16.mxu0 %v4271
    %5445 = vmatpush1.bf16.msra.mxu0 %v4270
    %5446 = vmatprep.subr.bf16.mxu0 %v4279
    %5447 = vmatpush1.bf16.msra.mxu0 %v4278
    %5448 = vmatprep.subr.bf16.mxu0 %v4287
    %5449 = vmatpush1.bf16.msra.mxu0 %v4286
    %5450 = vmatprep.subr.bf16.mxu0 %v4295
    %5451 = vmatpush1.bf16.msra.mxu0 %v4294
    %5452 = vmatprep.subr.bf16.mxu0 %v4303
    %5453 = vmatpush1.bf16.msra.mxu0 %v4302
    %5454 = vmatprep.subr.bf16.mxu0 %v4311
    %5455 = vmatpush1.bf16.msra.mxu0 %v4310
    %5456 = vmatprep.subr.bf16.mxu0 %v4319
    %5457 = vmatpush1.bf16.msra.mxu0 %v4318
    %5458 = vmatprep.subr.bf16.mxu0 %v4327
    %5459 = vmatpush1.bf16.msra.mxu0 %v4326
    %5460 = vmatprep.subr.bf16.mxu0 %v4335
    %5461 = vmatpush1.bf16.msra.mxu0 %v4334
    %5462 = vmatprep.subr.bf16.mxu0 %v4343
    %5463 = vmatpush1.bf16.msra.mxu0 %v4342
    %5464 = vmatprep.subr.bf16.mxu0 %v4351
    %5465 = vmatpush1.bf16.msra.mxu0 %v4350
    %5466 = vmatprep.subr.bf16.mxu0 %v4359
    %5467 = vmatpush1.bf16.msra.mxu0 %v4358
    %5468 = vmatprep.subr.bf16.mxu0 %v4367
    %5469 = vmatpush1.bf16.msra.mxu0 %v4366
    %5470 = vmatprep.subr.bf16.mxu0 %v4375
    %5471 = vmatpush1.bf16.msra.mxu0 %v4374
    %5472 = vmatprep.subr.bf16.mxu0 %v4383
    %5473 = vmatpush1.bf16.msra.mxu0 %v4382
    %5474 = vmatprep.subr.bf16.mxu0 %v4391
    %5475 = vmatpush1.bf16.msra.mxu0 %v4390
    %5476 = vmatprep.mubr.bf16.mxu0 %v1917
    %5477 = vmatmul.mubr.bf16.gmra.mrb[0].mxu0 %v1916
    %v5478 = vpop.f32.mrb[0].mxu0
    %v5479 = vadd.f32 %v5438, %v5478
    %v5480 = vpop.f32.mrb[0].mxu0
    %v5481 = vadd.f32 %v5440, %v5480
    %v5482 = vpop.f32.mrb[0].mxu0
    %v5483 = vpop.f32.mrb[0].mxu0
    %5484 = vdwg.mxu0
    %5485 = vmatprep.subr.bf16.mxu0 %v4399
    %5486 = vmatpush1.bf16.msra.mxu0 %v4398
    %5487 = vmatprep.subr.bf16.mxu0 %v4407
    %5488 = vmatpush1.bf16.msra.mxu0 %v4406
    %5489 = vmatprep.subr.bf16.mxu0 %v4415
    %5490 = vmatpush1.bf16.msra.mxu0 %v4414
    %5491 = vmatprep.subr.bf16.mxu0 %v4423
    %5492 = vmatpush1.bf16.msra.mxu0 %v4422
    %5493 = vmatprep.subr.bf16.mxu0 %v4431
    %5494 = vmatpush1.bf16.msra.mxu0 %v4430
    %5495 = vmatprep.subr.bf16.mxu0 %v4439
    %5496 = vmatpush1.bf16.msra.mxu0 %v4438
    %5497 = vmatprep.subr.bf16.mxu0 %v4447
    %5498 = vmatpush1.bf16.msra.mxu0 %v4446
    %5499 = vmatprep.subr.bf16.mxu0 %v4455
    %5500 = vmatpush1.bf16.msra.mxu0 %v4454
    %5501 = vmatprep.subr.bf16.mxu0 %v4463
    %5502 = vmatpush1.bf16.msra.mxu0 %v4462
    %5503 = vmatprep.subr.bf16.mxu0 %v4471
    %5504 = vmatpush1.bf16.msra.mxu0 %v4470
    %5505 = vmatprep.subr.bf16.mxu0 %v4479
    %5506 = vmatpush1.bf16.msra.mxu0 %v4478
    %5507 = vmatprep.subr.bf16.mxu0 %v4487
    %5508 = vmatpush1.bf16.msra.mxu0 %v4486
    %5509 = vmatprep.subr.bf16.mxu0 %v4495
    %5510 = vmatpush1.bf16.msra.mxu0 %v4494
    %5511 = vmatprep.subr.bf16.mxu0 %v4503
    %5512 = vmatpush1.bf16.msra.mxu0 %v4502
    %5513 = vmatprep.subr.bf16.mxu0 %v4511
    %5514 = vmatpush1.bf16.msra.mxu0 %v4510
    %5515 = vmatprep.subr.bf16.mxu0 %v4519
    %5516 = vmatpush1.bf16.msra.mxu0 %v4518
    %5517 = vmatprep.mubr.bf16.mxu0 %v1919
    %5518 = vmatmul.mubr.bf16.gmra.mrb[0].mxu0 %v1918
    %v5519 = vpop.f32.mrb[0].mxu0
    %v5520 = vadd.f32 %v5479, %v5519
    %v5521 = vpop.f32.mrb[0].mxu0
    %v5522 = vadd.f32 %v5481, %v5521
    %v5523 = vpop.f32.mrb[0].mxu0
    %v5524 = vpop.f32.mrb[0].mxu0
    %5525 = vdwg.mxu0
    %5526 = vmatprep.subr.bf16.mxu0 %v4017
    %5527 = vmatpush1.bf16.msra.mxu0 %v4016
    %5528 = vmatprep.subr.bf16.mxu0 %v4025
    %5529 = vmatpush1.bf16.msra.mxu0 %v4024
    %5530 = vmatprep.subr.bf16.mxu0 %v4033
    %5531 = vmatpush1.bf16.msra.mxu0 %v4032
    %5532 = vmatprep.subr.bf16.mxu0 %v4041
    %5533 = vmatpush1.bf16.msra.mxu0 %v4040
    %5534 = vmatprep.subr.bf16.mxu0 %v4049
    %5535 = vmatpush1.bf16.msra.mxu0 %v4048
    %5536 = vmatprep.subr.bf16.mxu0 %v4057
    %5537 = vmatpush1.bf16.msra.mxu0 %v4056
    %5538 = vmatprep.subr.bf16.mxu0 %v4065
    %5539 = vmatpush1.bf16.msra.mxu0 %v4064
    %5540 = vmatprep.subr.bf16.mxu0 %v4073
    %5541 = vmatpush1.bf16.msra.mxu0 %v4072
    %5542 = vmatprep.subr.bf16.mxu0 %v4081
    %5543 = vmatpush1.bf16.msra.mxu0 %v4080
    %5544 = vmatprep.subr.bf16.mxu0 %v4089
    %5545 = vmatpush1.bf16.msra.mxu0 %v4088
    %5546 = vmatprep.subr.bf16.mxu0 %v4097
    %5547 = vmatpush1.bf16.msra.mxu0 %v4096
    %5548 = vmatprep.subr.bf16.mxu0 %v4105
    %5549 = vmatpush1.bf16.msra.mxu0 %v4104
    %5550 = vmatprep.subr.bf16.mxu0 %v4113
    %5551 = vmatpush1.bf16.msra.mxu0 %v4112
    %5552 = vmatprep.subr.bf16.mxu0 %v4121
    %5553 = vmatpush1.bf16.msra.mxu0 %v4120
    %5554 = vmatprep.subr.bf16.mxu0 %v4129
    %5555 = vmatpush1.bf16.msra.mxu0 %v4128
    %5556 = vmatprep.subr.bf16.mxu0 %v4137
    %5557 = vmatpush1.bf16.msra.mxu0 %v4136
    %5558 = vmatprep.mubr.bf16.mxu0 %v1913
    %5559 = vmatmul.mubr.bf16.gmra.mrb[0].mxu0 %v1912
    %v5560 = vpop.f32.mrb[0].mxu0
    %v5561 = vadd.f32 %v2461, %v5560
    %v5562 = vpop.f32.mrb[0].mxu0
    %v5563 = vadd.f32 %v2465, %v5562
    %v5564 = vpop.f32.mrb[0].mxu0
    %v5565 = vpop.f32.mrb[0].mxu0
    %5566 = vdwg.mxu0
    %5567 = vmatprep.subr.bf16.mxu0 %v4145
    %5568 = vmatpush1.bf16.msra.mxu0 %v4144
    %5569 = vmatprep.subr.bf16.mxu0 %v4153
    %5570 = vmatpush1.bf16.msra.mxu0 %v4152
    %5571 = vmatprep.subr.bf16.mxu0 %v4161
    %5572 = vmatpush1.bf16.msra.mxu0 %v4160
    %5573 = vmatprep.subr.bf16.mxu0 %v4169
    %5574 = vmatpush1.bf16.msra.mxu0 %v4168
    %5575 = vmatprep.subr.bf16.mxu0 %v4177
    %5576 = vmatpush1.bf16.msra.mxu0 %v4176
    %5577 = vmatprep.subr.bf16.mxu0 %v4185
    %5578 = vmatpush1.bf16.msra.mxu0 %v4184
    %5579 = vmatprep.subr.bf16.mxu0 %v4193
    %5580 = vmatpush1.bf16.msra.mxu0 %v4192
    %5581 = vmatprep.subr.bf16.mxu0 %v4201
    %5582 = vmatpush1.bf16.msra.mxu0 %v4200
    %5583 = vmatprep.subr.bf16.mxu0 %v4209
    %5584 = vmatpush1.bf16.msra.mxu0 %v4208
    %5585 = vmatprep.subr.bf16.mxu0 %v4217
    %5586 = vmatpush1.bf16.msra.mxu0 %v4216
    %5587 = vmatprep.subr.bf16.mxu0 %v4225
    %5588 = vmatpush1.bf16.msra.mxu0 %v4224
    %5589 = vmatprep.subr.bf16.mxu0 %v4233
    %5590 = vmatpush1.bf16.msra.mxu0 %v4232
    %5591 = vmatprep.subr.bf16.mxu0 %v4241
    %5592 = vmatpush1.bf16.msra.mxu0 %v4240
    %5593 = vmatprep.subr.bf16.mxu0 %v4249
    %5594 = vmatpush1.bf16.msra.mxu0 %v4248
    %5595 = vmatprep.subr.bf16.mxu0 %v4257
    %5596 = vmatpush1.bf16.msra.mxu0 %v4256
    %5597 = vmatprep.subr.bf16.mxu0 %v4265
    %5598 = vmatpush1.bf16.msra.mxu0 %v4264
    %5599 = vmatprep.mubr.bf16.mxu0 %v1915
    %5600 = vmatmul.mubr.bf16.gmra.mrb[0].mxu0 %v1914
    %v5601 = vpop.f32.mrb[0].mxu0
    %v5602 = vadd.f32 %v5561, %v5601
    %v5603 = vpop.f32.mrb[0].mxu0
    %v5604 = vadd.f32 %v5563, %v5603
    %v5605 = vpop.f32.mrb[0].mxu0
    %v5606 = vpop.f32.mrb[0].mxu0
    %5607 = vdwg.mxu0
    %5608 = vmatprep.subr.bf16.mxu0 %v4273
    %5609 = vmatpush1.bf16.msra.mxu0 %v4272
    %5610 = vmatprep.subr.bf16.mxu0 %v4281
    %5611 = vmatpush1.bf16.msra.mxu0 %v4280
    %5612 = vmatprep.subr.bf16.mxu0 %v4289
    %5613 = vmatpush1.bf16.msra.mxu0 %v4288
    %5614 = vmatprep.subr.bf16.mxu0 %v4297
    %5615 = vmatpush1.bf16.msra.mxu0 %v4296
    %5616 = vmatprep.subr.bf16.mxu0 %v4305
    %5617 = vmatpush1.bf16.msra.mxu0 %v4304
    %5618 = vmatprep.subr.bf16.mxu0 %v4313
    %5619 = vmatpush1.bf16.msra.mxu0 %v4312
    %5620 = vmatprep.subr.bf16.mxu0 %v4321
    %5621 = vmatpush1.bf16.msra.mxu0 %v4320
    %5622 = vmatprep.subr.bf16.mxu0 %v4329
    %5623 = vmatpush1.bf16.msra.mxu0 %v4328
    %5624 = vmatprep.subr.bf16.mxu0 %v4337
    %5625 = vmatpush1.bf16.msra.mxu0 %v4336
    %5626 = vmatprep.subr.bf16.mxu0 %v4345
    %5627 = vmatpush1.bf16.msra.mxu0 %v4344
    %5628 = vmatprep.subr.bf16.mxu0 %v4353
    %5629 = vmatpush1.bf16.msra.mxu0 %v4352
    %5630 = vmatprep.subr.bf16.mxu0 %v4361
    %5631 = vmatpush1.bf16.msra.mxu0 %v4360
    %5632 = vmatprep.subr.bf16.mxu0 %v4369
    %5633 = vmatpush1.bf16.msra.mxu0 %v4368
    %5634 = vmatprep.subr.bf16.mxu0 %v4377
    %5635 = vmatpush1.bf16.msra.mxu0 %v4376
    %5636 = vmatprep.subr.bf16.mxu0 %v4385
    %5637 = vmatpush1.bf16.msra.mxu0 %v4384
    %5638 = vmatprep.subr.bf16.mxu0 %v4393
    %5639 = vmatpush1.bf16.msra.mxu0 %v4392
    %5640 = vmatprep.mubr.bf16.mxu0 %v1917
    %5641 = vmatmul.mubr.bf16.gmra.mrb[0].mxu0 %v1916
    %v5642 = vpop.f32.mrb[0].mxu0
    %v5643 = vadd.f32 %v5602, %v5642
    %v5644 = vpop.f32.mrb[0].mxu0
    %v5645 = vadd.f32 %v5604, %v5644
    %v5646 = vpop.f32.mrb[0].mxu0
    %v5647 = vpop.f32.mrb[0].mxu0
    %5648 = vdwg.mxu0
    %5649 = vmatprep.subr.bf16.mxu0 %v4401
    %5650 = vmatpush1.bf16.msra.mxu0 %v4400
    %5651 = vmatprep.subr.bf16.mxu0 %v4409
    %5652 = vmatpush1.bf16.msra.mxu0 %v4408
    %5653 = vmatprep.subr.bf16.mxu0 %v4417
    %5654 = vmatpush1.bf16.msra.mxu0 %v4416
    %5655 = vmatprep.subr.bf16.mxu0 %v4425
    %5656 = vmatpush1.bf16.msra.mxu0 %v4424
    %5657 = vmatprep.subr.bf16.mxu0 %v4433
    %5658 = vmatpush1.bf16.msra.mxu0 %v4432
    %5659 = vmatprep.subr.bf16.mxu0 %v4441
    %5660 = vmatpush1.bf16.msra.mxu0 %v4440
    %5661 = vmatprep.subr.bf16.mxu0 %v4449
    %5662 = vmatpush1.bf16.msra.mxu0 %v4448
    %5663 = vmatprep.subr.bf16.mxu0 %v4457
    %5664 = vmatpush1.bf16.msra.mxu0 %v4456
    %5665 = vmatprep.subr.bf16.mxu0 %v4465
    %5666 = vmatpush1.bf16.msra.mxu0 %v4464
    %5667 = vmatprep.subr.bf16.mxu0 %v4473
    %5668 = vmatpush1.bf16.msra.mxu0 %v4472
    %5669 = vmatprep.subr.bf16.mxu0 %v4481
    %5670 = vmatpush1.bf16.msra.mxu0 %v4480
    %5671 = vmatprep.subr.bf16.mxu0 %v4489
    %5672 = vmatpush1.bf16.msra.mxu0 %v4488
    %5673 = vmatprep.subr.bf16.mxu0 %v4497
    %5674 = vmatpush1.bf16.msra.mxu0 %v4496
    %5675 = vmatprep.subr.bf16.mxu0 %v4505
    %5676 = vmatpush1.bf16.msra.mxu0 %v4504
    %5677 = vmatprep.subr.bf16.mxu0 %v4513
    %5678 = vmatpush1.bf16.msra.mxu0 %v4512
    %5679 = vmatprep.subr.bf16.mxu0 %v4521
    %5680 = vmatpush1.bf16.msra.mxu0 %v4520
    %5681 = vmatprep.mubr.bf16.mxu0 %v1919
    %5682 = vmatmul.mubr.bf16.gmra.mrb[0].mxu0 %v1918
    %v5683 = vpop.f32.mrb[0].mxu0
    %v5684 = vadd.f32 %v5643, %v5683
    %v5685 = vpop.f32.mrb[0].mxu0
    %v5686 = vadd.f32 %v5645, %v5685
    %v5687 = vpop.f32.mrb[0].mxu0
    %v5688 = vpop.f32.mrb[0].mxu0
    %5689 = vdwg.mxu0
    %v5690 = vmax.f32 %v5192, 0.0
    %v5691 = vmax.f32 %v5194, 0.0
    %v5692 = vmax.f32 %v5356, 0.0
    %v5693 = vmax.f32 %v5358, 0.0
    %v5694 = vmax.f32 %v5520, 0.0
    %v5695 = vmax.f32 %v5522, 0.0
    %v5696 = vmax.f32 %v5684, 0.0
    %v5697 = vmax.f32 %v5686, 0.0
    %v5698 = vpack.c.bf16 %v5690, %v5690
    %v5699 = vpack.c.bf16 %v5691, %v5691
    %v5700 = vpack.c.bf16 %v5692, %v5692
    %v5701 = vpack.c.bf16 %v5693, %v5693
    %v5702 = vpack.c.bf16 %v5694, %v5694
    %v5703 = vpack.c.bf16 %v5695, %v5695
    %v5704 = vpack.c.bf16 %v5696, %v5696
    %v5705 = vpack.c.bf16 %v5697, %v5697
    %v5706 = vld [vmem:[#allocation17] sm:$0xf]
    %v5707 = vld [vmem:[#allocation17 + $0x4] sm:$0xf]
    %v5708 = vld [vmem:[#allocation17 + $0x8] sm:$0xf]
    %v5709 = vld [vmem:[#allocation17 + $0xc] sm:$0xf]
    %v5710 = vld [vmem:[#allocation17 + $0x10] sm:$0xf]
    %v5711 = vld [vmem:[#allocation17 + $0x14] sm:$0xf]
    %v5712 = vld [vmem:[#allocation17 + $0x18] sm:$0xf]
    %v5713 = vld [vmem:[#allocation17 + $0x1c] sm:$0xf]
    %v5714 = vld [vmem:[#allocation17 + $0x20] sm:$0xf]
    %v5715 = vld [vmem:[#allocation17 + $0x24] sm:$0xf]
    %v5716 = vld [vmem:[#allocation17 + $0x28] sm:$0xf]
    %v5717 = vld [vmem:[#allocation17 + $0x2c] sm:$0xf]
    %v5718 = vld [vmem:[#allocation17 + $0x30] sm:$0xf]
    %v5719 = vld [vmem:[#allocation17 + $0x34] sm:$0xf]
    %v5720 = vld [vmem:[#allocation17 + $0x38] sm:$0xf]
    %v5721 = vld [vmem:[#allocation17 + $0x3c] sm:$0xf]
    %v5722 = vld [vmem:[#allocation17 + $0x40] sm:$0xf]
    %v5723 = vld [vmem:[#allocation17 + $0x44] sm:$0xf]
    %v5724 = vld [vmem:[#allocation17 + $0x48] sm:$0xf]
    %v5725 = vld [vmem:[#allocation17 + $0x4c] sm:$0xf]
    %v5726 = vld [vmem:[#allocation17 + $0x50] sm:$0xf]
    %v5727 = vld [vmem:[#allocation17 + $0x54] sm:$0xf]
    %v5728 = vld [vmem:[#allocation17 + $0x58] sm:$0xf]
    %v5729 = vld [vmem:[#allocation17 + $0x5c] sm:$0xf]
    %v5730 = vld [vmem:[#allocation17 + $0x60] sm:$0xf]
    %v5731 = vld [vmem:[#allocation17 + $0x64] sm:$0xf]
    %v5732 = vld [vmem:[#allocation17 + $0x68] sm:$0xf]
    %v5733 = vld [vmem:[#allocation17 + $0x6c] sm:$0xf]
    %v5734 = vld [vmem:[#allocation17 + $0x70] sm:$0xf]
    %v5735 = vld [vmem:[#allocation17 + $0x74] sm:$0xf]
    %v5736 = vld [vmem:[#allocation17 + $0x78] sm:$0xf]
    %v5737 = vld [vmem:[#allocation17 + $0x7c] sm:$0xf]
    %v5738 = vld [vmem:[#allocation17 + $0x80] sm:$0xf]
    %v5739 = vld [vmem:[#allocation17 + $0x84] sm:$0xf]
    %v5740 = vld [vmem:[#allocation17 + $0x88] sm:$0xf]
    %v5741 = vld [vmem:[#allocation17 + $0x8c] sm:$0xf]
    %v5742 = vld [vmem:[#allocation17 + $0x90] sm:$0xf]
    %v5743 = vld [vmem:[#allocation17 + $0x94] sm:$0xf]
    %v5744 = vld [vmem:[#allocation17 + $0x98] sm:$0xf]
    %v5745 = vld [vmem:[#allocation17 + $0x9c] sm:$0xf]
    %v5746 = vld [vmem:[#allocation17 + $0xa0] sm:$0xf]
    %v5747 = vld [vmem:[#allocation17 + $0xa4] sm:$0xf]
    %v5748 = vld [vmem:[#allocation17 + $0xa8] sm:$0xf]
    %v5749 = vld [vmem:[#allocation17 + $0xac] sm:$0xf]
    %v5750 = vld [vmem:[#allocation17 + $0xb0] sm:$0xf]
    %v5751 = vld [vmem:[#allocation17 + $0xb4] sm:$0xf]
    %v5752 = vld [vmem:[#allocation17 + $0xb8] sm:$0xf]
    %v5753 = vld [vmem:[#allocation17 + $0xbc] sm:$0xf]
    %v5754 = vld [vmem:[#allocation17 + $0xc0] sm:$0xf]
    %v5755 = vld [vmem:[#allocation17 + $0xc4] sm:$0xf]
    %v5756 = vld [vmem:[#allocation17 + $0xc8] sm:$0xf]
    %v5757 = vld [vmem:[#allocation17 + $0xcc] sm:$0xf]
    %v5758 = vld [vmem:[#allocation17 + $0xd0] sm:$0xf]
    %v5759 = vld [vmem:[#allocation17 + $0xd4] sm:$0xf]
    %v5760 = vld [vmem:[#allocation17 + $0xd8] sm:$0xf]
    %v5761 = vld [vmem:[#allocation17 + $0xdc] sm:$0xf]
    %v5762 = vld [vmem:[#allocation17 + $0xe0] sm:$0xf]
    %v5763 = vld [vmem:[#allocation17 + $0xe4] sm:$0xf]
    %v5764 = vld [vmem:[#allocation17 + $0xe8] sm:$0xf]
    %v5765 = vld [vmem:[#allocation17 + $0xec] sm:$0xf]
    %v5766 = vld [vmem:[#allocation17 + $0xf0] sm:$0xf]
    %v5767 = vld [vmem:[#allocation17 + $0xf4] sm:$0xf]
    %v5768 = vld [vmem:[#allocation17 + $0xf8] sm:$0xf]
    %v5769 = vld [vmem:[#allocation17 + $0xfc] sm:$0xf]
    %v5770 = vld [vmem:[#allocation17 + $0x100] sm:$0xf]
    %v5771 = vld [vmem:[#allocation17 + $0x104] sm:$0xf]
    %v5772 = vld [vmem:[#allocation17 + $0x108] sm:$0xf]
    %v5773 = vld [vmem:[#allocation17 + $0x10c] sm:$0xf]
    %v5774 = vld [vmem:[#allocation17 + $0x110] sm:$0xf]
    %v5775 = vld [vmem:[#allocation17 + $0x114] sm:$0xf]
    %v5776 = vld [vmem:[#allocation17 + $0x118] sm:$0xf]
    %v5777 = vld [vmem:[#allocation17 + $0x11c] sm:$0xf]
    %v5778 = vld [vmem:[#allocation17 + $0x120] sm:$0xf]
    %v5779 = vld [vmem:[#allocation17 + $0x124] sm:$0xf]
    %v5780 = vld [vmem:[#allocation17 + $0x128] sm:$0xf]
    %v5781 = vld [vmem:[#allocation17 + $0x12c] sm:$0xf]
    %v5782 = vld [vmem:[#allocation17 + $0x130] sm:$0xf]
    %v5783 = vld [vmem:[#allocation17 + $0x134] sm:$0xf]
    %v5784 = vld [vmem:[#allocation17 + $0x138] sm:$0xf]
    %v5785 = vld [vmem:[#allocation17 + $0x13c] sm:$0xf]
    %v5786 = vld [vmem:[#allocation17 + $0x140] sm:$0xf]
    %v5787 = vld [vmem:[#allocation17 + $0x144] sm:$0xf]
    %v5788 = vld [vmem:[#allocation17 + $0x148] sm:$0xf]
    %v5789 = vld [vmem:[#allocation17 + $0x14c] sm:$0xf]
    %v5790 = vld [vmem:[#allocation17 + $0x150] sm:$0xf]
    %v5791 = vld [vmem:[#allocation17 + $0x154] sm:$0xf]
    %v5792 = vld [vmem:[#allocation17 + $0x158] sm:$0xf]
    %v5793 = vld [vmem:[#allocation17 + $0x15c] sm:$0xf]
    %v5794 = vld [vmem:[#allocation17 + $0x160] sm:$0xf]
    %v5795 = vld [vmem:[#allocation17 + $0x164] sm:$0xf]
    %v5796 = vld [vmem:[#allocation17 + $0x168] sm:$0xf]
    %v5797 = vld [vmem:[#allocation17 + $0x16c] sm:$0xf]
    %v5798 = vld [vmem:[#allocation17 + $0x170] sm:$0xf]
    %v5799 = vld [vmem:[#allocation17 + $0x174] sm:$0xf]
    %v5800 = vld [vmem:[#allocation17 + $0x178] sm:$0xf]
    %v5801 = vld [vmem:[#allocation17 + $0x17c] sm:$0xf]
    %v5802 = vld [vmem:[#allocation17 + $0x180] sm:$0xf]
    %v5803 = vld [vmem:[#allocation17 + $0x184] sm:$0xf]
    %v5804 = vld [vmem:[#allocation17 + $0x188] sm:$0xf]
    %v5805 = vld [vmem:[#allocation17 + $0x18c] sm:$0xf]
    %v5806 = vld [vmem:[#allocation17 + $0x190] sm:$0xf]
    %v5807 = vld [vmem:[#allocation17 + $0x194] sm:$0xf]
    %v5808 = vld [vmem:[#allocation17 + $0x198] sm:$0xf]
    %v5809 = vld [vmem:[#allocation17 + $0x19c] sm:$0xf]
    %v5810 = vld [vmem:[#allocation17 + $0x1a0] sm:$0xf]
    %v5811 = vld [vmem:[#allocation17 + $0x1a4] sm:$0xf]
    %v5812 = vld [vmem:[#allocation17 + $0x1a8] sm:$0xf]
    %v5813 = vld [vmem:[#allocation17 + $0x1ac] sm:$0xf]
    %v5814 = vld [vmem:[#allocation17 + $0x1b0] sm:$0xf]
    %v5815 = vld [vmem:[#allocation17 + $0x1b4] sm:$0xf]
    %v5816 = vld [vmem:[#allocation17 + $0x1b8] sm:$0xf]
    %v5817 = vld [vmem:[#allocation17 + $0x1bc] sm:$0xf]
    %v5818 = vld [vmem:[#allocation17 + $0x1c0] sm:$0xf]
    %v5819 = vld [vmem:[#allocation17 + $0x1c4] sm:$0xf]
    %v5820 = vld [vmem:[#allocation17 + $0x1c8] sm:$0xf]
    %v5821 = vld [vmem:[#allocation17 + $0x1cc] sm:$0xf]
    %v5822 = vld [vmem:[#allocation17 + $0x1d0] sm:$0xf]
    %v5823 = vld [vmem:[#allocation17 + $0x1d4] sm:$0xf]
    %v5824 = vld [vmem:[#allocation17 + $0x1d8] sm:$0xf]
    %v5825 = vld [vmem:[#allocation17 + $0x1dc] sm:$0xf]
    %v5826 = vld [vmem:[#allocation17 + $0x1e0] sm:$0xf]
    %v5827 = vld [vmem:[#allocation17 + $0x1e4] sm:$0xf]
    %v5828 = vld [vmem:[#allocation17 + $0x1e8] sm:$0xf]
    %v5829 = vld [vmem:[#allocation17 + $0x1ec] sm:$0xf]
    %v5830 = vld [vmem:[#allocation17 + $0x1f0] sm:$0xf]
    %v5831 = vld [vmem:[#allocation17 + $0x1f4] sm:$0xf]
    %v5832 = vld [vmem:[#allocation17 + $0x1f8] sm:$0xf]
    %v5833 = vld [vmem:[#allocation17 + $0x1fc] sm:$0xf]
    %v5834 = vld [vmem:[#allocation19] sm:$0x1]
    %v5836 = vlaneseq
    %v5837 = vshrl.u32 %v5836, 7
    %v5838 = vsub.s32 0, %v5837
    %v5839 = vrot.slane %v5834, %v5838
    %v5969 = vunpack.c.l.b16 %v5706
    %v5970 = vunpack.c.l.b16 %v5707
    %v5971 = vunpack.c.l.b16 %v5708
    %v5972 = vunpack.c.l.b16 %v5709
    %v5973 = vunpack.c.l.b16 %v5710
    %v5974 = vunpack.c.l.b16 %v5711
    %v5975 = vunpack.c.l.b16 %v5712
    %v5976 = vunpack.c.l.b16 %v5713
    %v5977 = vunpack.c.l.b16 %v5714
    %v5978 = vunpack.c.l.b16 %v5715
    %v5979 = vunpack.c.l.b16 %v5716
    %v5980 = vunpack.c.l.b16 %v5717
    %v5981 = vunpack.c.l.b16 %v5718
    %v5982 = vunpack.c.l.b16 %v5719
    %v5983 = vunpack.c.l.b16 %v5720
    %v5984 = vunpack.c.l.b16 %v5721
    %v5985 = vunpack.c.l.b16 %v5722
    %v5986 = vunpack.c.l.b16 %v5723
    %v5987 = vunpack.c.l.b16 %v5724
    %v5988 = vunpack.c.l.b16 %v5725
    %v5989 = vunpack.c.l.b16 %v5726
    %v5990 = vunpack.c.l.b16 %v5727
    %v5991 = vunpack.c.l.b16 %v5728
    %v5992 = vunpack.c.l.b16 %v5729
    %v5993 = vunpack.c.l.b16 %v5730
    %v5994 = vunpack.c.l.b16 %v5731
    %v5995 = vunpack.c.l.b16 %v5732
    %v5996 = vunpack.c.l.b16 %v5733
    %v5997 = vunpack.c.l.b16 %v5734
    %v5998 = vunpack.c.l.b16 %v5735
    %v5999 = vunpack.c.l.b16 %v5736
    %v6000 = vunpack.c.l.b16 %v5737
    %v6001 = vunpack.c.l.b16 %v5738
    %v6002 = vunpack.c.l.b16 %v5739
    %v6003 = vunpack.c.l.b16 %v5740
    %v6004 = vunpack.c.l.b16 %v5741
    %v6005 = vunpack.c.l.b16 %v5742
    %v6006 = vunpack.c.l.b16 %v5743
    %v6007 = vunpack.c.l.b16 %v5744
    %v6008 = vunpack.c.l.b16 %v5745
    %v6009 = vunpack.c.l.b16 %v5746
    %v6010 = vunpack.c.l.b16 %v5747
    %v6011 = vunpack.c.l.b16 %v5748
    %v6012 = vunpack.c.l.b16 %v5749
    %v6013 = vunpack.c.l.b16 %v5750
    %v6014 = vunpack.c.l.b16 %v5751
    %v6015 = vunpack.c.l.b16 %v5752
    %v6016 = vunpack.c.l.b16 %v5753
    %v6017 = vunpack.c.l.b16 %v5754
    %v6018 = vunpack.c.l.b16 %v5755
    %v6019 = vunpack.c.l.b16 %v5756
    %v6020 = vunpack.c.l.b16 %v5757
    %v6021 = vunpack.c.l.b16 %v5758
    %v6022 = vunpack.c.l.b16 %v5759
    %v6023 = vunpack.c.l.b16 %v5760
    %v6024 = vunpack.c.l.b16 %v5761
    %v6025 = vunpack.c.l.b16 %v5762
    %v6026 = vunpack.c.l.b16 %v5763
    %v6027 = vunpack.c.l.b16 %v5764
    %v6028 = vunpack.c.l.b16 %v5765
    %v6029 = vunpack.c.l.b16 %v5766
    %v6030 = vunpack.c.l.b16 %v5767
    %v6031 = vunpack.c.l.b16 %v5768
    %v6032 = vunpack.c.l.b16 %v5769
    %v6033 = vunpack.c.l.b16 %v5770
    %v6034 = vunpack.c.l.b16 %v5771
    %v6035 = vunpack.c.l.b16 %v5772
    %v6036 = vunpack.c.l.b16 %v5773
    %v6037 = vunpack.c.l.b16 %v5774
    %v6038 = vunpack.c.l.b16 %v5775
    %v6039 = vunpack.c.l.b16 %v5776
    %v6040 = vunpack.c.l.b16 %v5777
    %v6041 = vunpack.c.l.b16 %v5778
    %v6042 = vunpack.c.l.b16 %v5779
    %v6043 = vunpack.c.l.b16 %v5780
    %v6044 = vunpack.c.l.b16 %v5781
    %v6045 = vunpack.c.l.b16 %v5782
    %v6046 = vunpack.c.l.b16 %v5783
    %v6047 = vunpack.c.l.b16 %v5784
    %v6048 = vunpack.c.l.b16 %v5785
    %v6049 = vunpack.c.l.b16 %v5786
    %v6050 = vunpack.c.l.b16 %v5787
    %v6051 = vunpack.c.l.b16 %v5788
    %v6052 = vunpack.c.l.b16 %v5789
    %v6053 = vunpack.c.l.b16 %v5790
    %v6054 = vunpack.c.l.b16 %v5791
    %v6055 = vunpack.c.l.b16 %v5792
    %v6056 = vunpack.c.l.b16 %v5793
    %v6057 = vunpack.c.l.b16 %v5794
    %v6058 = vunpack.c.l.b16 %v5795
    %v6059 = vunpack.c.l.b16 %v5796
    %v6060 = vunpack.c.l.b16 %v5797
    %v6061 = vunpack.c.l.b16 %v5798
    %v6062 = vunpack.c.l.b16 %v5799
    %v6063 = vunpack.c.l.b16 %v5800
    %v6064 = vunpack.c.l.b16 %v5801
    %v6065 = vunpack.c.l.b16 %v5802
    %v6066 = vunpack.c.l.b16 %v5803
    %v6067 = vunpack.c.l.b16 %v5804
    %v6068 = vunpack.c.l.b16 %v5805
    %v6069 = vunpack.c.l.b16 %v5806
    %v6070 = vunpack.c.l.b16 %v5807
    %v6071 = vunpack.c.l.b16 %v5808
    %v6072 = vunpack.c.l.b16 %v5809
    %v6073 = vunpack.c.l.b16 %v5810
    %v6074 = vunpack.c.l.b16 %v5811
    %v6075 = vunpack.c.l.b16 %v5812
    %v6076 = vunpack.c.l.b16 %v5813
    %v6077 = vunpack.c.l.b16 %v5814
    %v6078 = vunpack.c.l.b16 %v5815
    %v6079 = vunpack.c.l.b16 %v5816
    %v6080 = vunpack.c.l.b16 %v5817
    %v6081 = vunpack.c.l.b16 %v5818
    %v6082 = vunpack.c.l.b16 %v5819
    %v6083 = vunpack.c.l.b16 %v5820
    %v6084 = vunpack.c.l.b16 %v5821
    %v6085 = vunpack.c.l.b16 %v5822
    %v6086 = vunpack.c.l.b16 %v5823
    %v6087 = vunpack.c.l.b16 %v5824
    %v6088 = vunpack.c.l.b16 %v5825
    %v6089 = vunpack.c.l.b16 %v5826
    %v6090 = vunpack.c.l.b16 %v5827
    %v6091 = vunpack.c.l.b16 %v5828
    %v6092 = vunpack.c.l.b16 %v5829
    %v6093 = vunpack.c.l.b16 %v5830
    %v6094 = vunpack.c.l.b16 %v5831
    %v6095 = vunpack.c.l.b16 %v5832
    %v6096 = vunpack.c.l.b16 %v5833
    %v6097 = vpack.c.b16 %v5970, %v5969
    %v6098 = vpack.c.b16 %v5972, %v5971
    %v6099 = vpack.c.b16 %v5974, %v5973
    %v6100 = vpack.c.b16 %v5976, %v5975
    %v6101 = vpack.c.b16 %v5978, %v5977
    %v6102 = vpack.c.b16 %v5980, %v5979
    %v6103 = vpack.c.b16 %v5982, %v5981
    %v6104 = vpack.c.b16 %v5984, %v5983
    %v6105 = vpack.c.b16 %v5986, %v5985
    %v6106 = vpack.c.b16 %v5988, %v5987
    %v6107 = vpack.c.b16 %v5990, %v5989
    %v6108 = vpack.c.b16 %v5992, %v5991
    %v6109 = vpack.c.b16 %v5994, %v5993
    %v6110 = vpack.c.b16 %v5996, %v5995
    %v6111 = vpack.c.b16 %v5998, %v5997
    %v6112 = vpack.c.b16 %v6000, %v5999
    %v6113 = vpack.c.b16 %v6002, %v6001
    %v6114 = vpack.c.b16 %v6004, %v6003
    %v6115 = vpack.c.b16 %v6006, %v6005
    %v6116 = vpack.c.b16 %v6008, %v6007
    %v6117 = vpack.c.b16 %v6010, %v6009
    %v6118 = vpack.c.b16 %v6012, %v6011
    %v6119 = vpack.c.b16 %v6014, %v6013
    %v6120 = vpack.c.b16 %v6016, %v6015
    %v6121 = vpack.c.b16 %v6018, %v6017
    %v6122 = vpack.c.b16 %v6020, %v6019
    %v6123 = vpack.c.b16 %v6022, %v6021
    %v6124 = vpack.c.b16 %v6024, %v6023
    %v6125 = vpack.c.b16 %v6026, %v6025
    %v6126 = vpack.c.b16 %v6028, %v6027
    %v6127 = vpack.c.b16 %v6030, %v6029
    %v6128 = vpack.c.b16 %v6032, %v6031
    %v6129 = vpack.c.b16 %v6034, %v6033
    %v6130 = vpack.c.b16 %v6036, %v6035
    %v6131 = vpack.c.b16 %v6038, %v6037
    %v6132 = vpack.c.b16 %v6040, %v6039
    %v6133 = vpack.c.b16 %v6042, %v6041
    %v6134 = vpack.c.b16 %v6044, %v6043
    %v6135 = vpack.c.b16 %v6046, %v6045
    %v6136 = vpack.c.b16 %v6048, %v6047
    %v6137 = vpack.c.b16 %v6050, %v6049
    %v6138 = vpack.c.b16 %v6052, %v6051
    %v6139 = vpack.c.b16 %v6054, %v6053
    %v6140 = vpack.c.b16 %v6056, %v6055
    %v6141 = vpack.c.b16 %v6058, %v6057
    %v6142 = vpack.c.b16 %v6060, %v6059
    %v6143 = vpack.c.b16 %v6062, %v6061
    %v6144 = vpack.c.b16 %v6064, %v6063
    %v6145 = vpack.c.b16 %v6066, %v6065
    %v6146 = vpack.c.b16 %v6068, %v6067
    %v6147 = vpack.c.b16 %v6070, %v6069
    %v6148 = vpack.c.b16 %v6072, %v6071
    %v6149 = vpack.c.b16 %v6074, %v6073
    %v6150 = vpack.c.b16 %v6076, %v6075
    %v6151 = vpack.c.b16 %v6078, %v6077
    %v6152 = vpack.c.b16 %v6080, %v6079
    %v6153 = vpack.c.b16 %v6082, %v6081
    %v6154 = vpack.c.b16 %v6084, %v6083
    %v6155 = vpack.c.b16 %v6086, %v6085
    %v6156 = vpack.c.b16 %v6088, %v6087
    %v6157 = vpack.c.b16 %v6090, %v6089
    %v6158 = vpack.c.b16 %v6092, %v6091
    %v6159 = vpack.c.b16 %v6094, %v6093
    %v6160 = vpack.c.b16 %v6096, %v6095
    %6225 = vmatprep.subr.bf16.mxu0 0
    %6226 = vmatpush1.bf16.msra.mxu0 %v6097
    %6227 = vmatprep.subr.bf16.mxu0 0
    %6228 = vmatpush1.bf16.msra.mxu0 %v6098
    %6229 = vmatprep.subr.bf16.mxu0 0
    %6230 = vmatpush1.bf16.msra.mxu0 %v6099
    %6231 = vmatprep.subr.bf16.mxu0 0
    %6232 = vmatpush1.bf16.msra.mxu0 %v6100
    %6233 = vmatprep.subr.bf16.mxu0 0
    %6234 = vmatpush1.bf16.msra.mxu0 %v6101
    %6235 = vmatprep.subr.bf16.mxu0 0
    %6236 = vmatpush1.bf16.msra.mxu0 %v6102
    %6237 = vmatprep.subr.bf16.mxu0 0
    %6238 = vmatpush1.bf16.msra.mxu0 %v6103
    %6239 = vmatprep.subr.bf16.mxu0 0
    %6240 = vmatpush1.bf16.msra.mxu0 %v6104
    %6241 = vmatprep.subr.bf16.mxu0 0
    %6242 = vmatpush1.bf16.msra.mxu0 %v6105
    %6243 = vmatprep.subr.bf16.mxu0 0
    %6244 = vmatpush1.bf16.msra.mxu0 %v6106
    %6245 = vmatprep.subr.bf16.mxu0 0
    %6246 = vmatpush1.bf16.msra.mxu0 %v6107
    %6247 = vmatprep.subr.bf16.mxu0 0
    %6248 = vmatpush1.bf16.msra.mxu0 %v6108
    %6249 = vmatprep.subr.bf16.mxu0 0
    %6250 = vmatpush1.bf16.msra.mxu0 %v6109
    %6251 = vmatprep.subr.bf16.mxu0 0
    %6252 = vmatpush1.bf16.msra.mxu0 %v6110
    %6253 = vmatprep.subr.bf16.mxu0 0
    %6254 = vmatpush1.bf16.msra.mxu0 %v6111
    %6255 = vmatprep.subr.bf16.mxu0 0
    %6256 = vmatpush1.bf16.msra.mxu0 %v6112
    %6257 = vmatprep.mubr.bf16.mxu0 %v5699
    %6258 = vmatmul.mubr.bf16.gmra.mrb[0].mxu0 %v5698
    %v6259 = vpop.f32.mrb[0].mxu0
    %v6260 = vadd.f32 %v5839, %v6259
    %v6261 = vpop.f32.mrb[0].mxu0
    %v6262 = vpop.f32.mrb[0].mxu0
    %v6263 = vpop.f32.mrb[0].mxu0
    %6264 = vdwg.mxu0
    %6265 = vmatprep.subr.bf16.mxu0 0
    %6266 = vmatpush1.bf16.msra.mxu0 %v6113
    %6267 = vmatprep.subr.bf16.mxu0 0
    %6268 = vmatpush1.bf16.msra.mxu0 %v6114
    %6269 = vmatprep.subr.bf16.mxu0 0
    %6270 = vmatpush1.bf16.msra.mxu0 %v6115
    %6271 = vmatprep.subr.bf16.mxu0 0
    %6272 = vmatpush1.bf16.msra.mxu0 %v6116
    %6273 = vmatprep.subr.bf16.mxu0 0
    %6274 = vmatpush1.bf16.msra.mxu0 %v6117
    %6275 = vmatprep.subr.bf16.mxu0 0
    %6276 = vmatpush1.bf16.msra.mxu0 %v6118
    %6277 = vmatprep.subr.bf16.mxu0 0
    %6278 = vmatpush1.bf16.msra.mxu0 %v6119
    %6279 = vmatprep.subr.bf16.mxu0 0
    %6280 = vmatpush1.bf16.msra.mxu0 %v6120
    %6281 = vmatprep.subr.bf16.mxu0 0
    %6282 = vmatpush1.bf16.msra.mxu0 %v6121
    %6283 = vmatprep.subr.bf16.mxu0 0
    %6284 = vmatpush1.bf16.msra.mxu0 %v6122
    %6285 = vmatprep.subr.bf16.mxu0 0
    %6286 = vmatpush1.bf16.msra.mxu0 %v6123
    %6287 = vmatprep.subr.bf16.mxu0 0
    %6288 = vmatpush1.bf16.msra.mxu0 %v6124
    %6289 = vmatprep.subr.bf16.mxu0 0
    %6290 = vmatpush1.bf16.msra.mxu0 %v6125
    %6291 = vmatprep.subr.bf16.mxu0 0
    %6292 = vmatpush1.bf16.msra.mxu0 %v6126
    %6293 = vmatprep.subr.bf16.mxu0 0
    %6294 = vmatpush1.bf16.msra.mxu0 %v6127
    %6295 = vmatprep.subr.bf16.mxu0 0
    %6296 = vmatpush1.bf16.msra.mxu0 %v6128
    %6297 = vmatprep.mubr.bf16.mxu0 %v5701
    %6298 = vmatmul.mubr.bf16.gmra.mrb[0].mxu0 %v5700
    %v6299 = vpop.f32.mrb[0].mxu0
    %v6300 = vadd.f32 %v6260, %v6299
    %v6301 = vpop.f32.mrb[0].mxu0
    %v6302 = vpop.f32.mrb[0].mxu0
    %v6303 = vpop.f32.mrb[0].mxu0
    %6304 = vdwg.mxu0
    %6305 = vmatprep.subr.bf16.mxu0 0
    %6306 = vmatpush1.bf16.msra.mxu0 %v6129
    %6307 = vmatprep.subr.bf16.mxu0 0
    %6308 = vmatpush1.bf16.msra.mxu0 %v6130
    %6309 = vmatprep.subr.bf16.mxu0 0
    %6310 = vmatpush1.bf16.msra.mxu0 %v6131
    %6311 = vmatprep.subr.bf16.mxu0 0
    %6312 = vmatpush1.bf16.msra.mxu0 %v6132
    %6313 = vmatprep.subr.bf16.mxu0 0
    %6314 = vmatpush1.bf16.msra.mxu0 %v6133
    %6315 = vmatprep.subr.bf16.mxu0 0
    %6316 = vmatpush1.bf16.msra.mxu0 %v6134
    %6317 = vmatprep.subr.bf16.mxu0 0
    %6318 = vmatpush1.bf16.msra.mxu0 %v6135
    %6319 = vmatprep.subr.bf16.mxu0 0
    %6320 = vmatpush1.bf16.msra.mxu0 %v6136
    %6321 = vmatprep.subr.bf16.mxu0 0
    %6322 = vmatpush1.bf16.msra.mxu0 %v6137
    %6323 = vmatprep.subr.bf16.mxu0 0
    %6324 = vmatpush1.bf16.msra.mxu0 %v6138
    %6325 = vmatprep.subr.bf16.mxu0 0
    %6326 = vmatpush1.bf16.msra.mxu0 %v6139
    %6327 = vmatprep.subr.bf16.mxu0 0
    %6328 = vmatpush1.bf16.msra.mxu0 %v6140
    %6329 = vmatprep.subr.bf16.mxu0 0
    %6330 = vmatpush1.bf16.msra.mxu0 %v6141
    %6331 = vmatprep.subr.bf16.mxu0 0
    %6332 = vmatpush1.bf16.msra.mxu0 %v6142
    %6333 = vmatprep.subr.bf16.mxu0 0
    %6334 = vmatpush1.bf16.msra.mxu0 %v6143
    %6335 = vmatprep.subr.bf16.mxu0 0
    %6336 = vmatpush1.bf16.msra.mxu0 %v6144
    %6337 = vmatprep.mubr.bf16.mxu0 %v5703
    %6338 = vmatmul.mubr.bf16.gmra.mrb[0].mxu0 %v5702
    %v6339 = vpop.f32.mrb[0].mxu0
    %v6340 = vadd.f32 %v6300, %v6339
    %v6341 = vpop.f32.mrb[0].mxu0
    %v6342 = vpop.f32.mrb[0].mxu0
    %v6343 = vpop.f32.mrb[0].mxu0
    %6344 = vdwg.mxu0
    %6345 = vmatprep.subr.bf16.mxu0 0
    %6346 = vmatpush1.bf16.msra.mxu0 %v6145
    %6347 = vmatprep.subr.bf16.mxu0 0
    %6348 = vmatpush1.bf16.msra.mxu0 %v6146
    %6349 = vmatprep.subr.bf16.mxu0 0
    %6350 = vmatpush1.bf16.msra.mxu0 %v6147
    %6351 = vmatprep.subr.bf16.mxu0 0
    %6352 = vmatpush1.bf16.msra.mxu0 %v6148
    %6353 = vmatprep.subr.bf16.mxu0 0
    %6354 = vmatpush1.bf16.msra.mxu0 %v6149
    %6355 = vmatprep.subr.bf16.mxu0 0
    %6356 = vmatpush1.bf16.msra.mxu0 %v6150
    %6357 = vmatprep.subr.bf16.mxu0 0
    %6358 = vmatpush1.bf16.msra.mxu0 %v6151
    %6359 = vmatprep.subr.bf16.mxu0 0
    %6360 = vmatpush1.bf16.msra.mxu0 %v6152
    %6361 = vmatprep.subr.bf16.mxu0 0
    %6362 = vmatpush1.bf16.msra.mxu0 %v6153
    %6363 = vmatprep.subr.bf16.mxu0 0
    %6364 = vmatpush1.bf16.msra.mxu0 %v6154
    %6365 = vmatprep.subr.bf16.mxu0 0
    %6366 = vmatpush1.bf16.msra.mxu0 %v6155
    %6367 = vmatprep.subr.bf16.mxu0 0
    %6368 = vmatpush1.bf16.msra.mxu0 %v6156
    %6369 = vmatprep.subr.bf16.mxu0 0
    %6370 = vmatpush1.bf16.msra.mxu0 %v6157
    %6371 = vmatprep.subr.bf16.mxu0 0
    %6372 = vmatpush1.bf16.msra.mxu0 %v6158
    %6373 = vmatprep.subr.bf16.mxu0 0
    %6374 = vmatpush1.bf16.msra.mxu0 %v6159
    %6375 = vmatprep.subr.bf16.mxu0 0
    %6376 = vmatpush1.bf16.msra.mxu0 %v6160
    %6377 = vmatprep.mubr.bf16.mxu0 %v5705
    %6378 = vmatmul.mubr.bf16.gmra.mrb[0].mxu0 %v5704
    %v6379 = vpop.f32.mrb[0].mxu0
    %v6380 = vadd.f32 %v6340, %v6379
    %v6381 = vpop.f32.mrb[0].mxu0
    %v6382 = vpop.f32.mrb[0].mxu0
    %v6383 = vpop.f32.mrb[0].mxu0
    %6384 = vdwg.mxu0
    %6385 = vst [vmem:[#allocation20] sm:$0xff] %v6380
    // Predicated region
    $region90: #{tpu_custom_call.1} parent=1 // pred_check
      _
    $region91: #{tpu_custom_call.1} parent=1 // pred_check_branch
      %6387 = sbr.rel (0) target = $region93
    $region92: #{tpu_custom_call.1} parent=1 // pred_region
      %s6389 = ssub.s32 128, 128
      %6390 = vsyncadd [#allocation4], %s6389
      %s6392 = sshll.u32 [#allocation20], 4
      %s6393 = int_to_ptr.vmem [resolvable:$true] %s6392
      %6395 = dma.vmem_to_hbm [thread:$0]  %s6393, 128, %s11, [#allocation4]
    $region93: #{tpu_custom_call.1} parent=1 // pred_fallthru
      _
    // Predicated region
    $region94: #{tpu_custom_call.1} parent=1 // pred_check
      _
    $region95: #{tpu_custom_call.1} parent=1 // pred_check_branch
      %6397 = sbr.rel (0) target = $region97
    $region96: #{tpu_custom_call.1} parent=1 // pred_region
      %6398 = dma.done [#allocation4], 128
    $region97: #{tpu_custom_call.1} parent=1 // pred_fallthru
      _
    %6399 = vsyncpa [#allocation3], 1
    %6400 = vsyncpa [#allocation6], 1
    %6401 = vsyncpa [#allocation9], 1
    %6402 = vsyncpa [#allocation12], 1
    %6403 = vsyncpa [#allocation15], 1
    %6404 = vsyncpa [#allocation18], 1
    %6405 = vsyncpa [#allocation4], 1

// kernel: tpu_custom_call.1
$region0: #{tpu_custom_call.1}
  #allocation0 [shape = 'u32[]', space=smem, size = 0x4, offset = 0x4, fixed_abs, tag = 'smem constant byte address 0x4 - core index']
  #allocation1 [shape = 'u32[144,128]{1,0:T(1,128)}', space=vmem, size = 0x12000, scoped, tag = 'internal scratch']
  %s0 = inlined_call_operand.hbm [shape: f32[8,10], index: 0, kind: input, shape index: {}]
  %s1 = inlined_call_operand.hbm [shape: f32[10,1024], index: 1, kind: input, shape index: {}]
  %s2 = inlined_call_operand.hbm [shape: f32[7,1024], index: 2, kind: input, shape index: {}]
  %s3 = inlined_call_operand.hbm [shape: f32[12,1024], index: 3, kind: input, shape index: {}]
  %s4 = inlined_call_operand.hbm [shape: f32[12,1024], index: 4, kind: input, shape index: {}]
  %s5 = inlined_call_operand.hbm [shape: f32[6,1024], index: 5, kind: input, shape index: {}]
  %s6 = inlined_call_operand.hbm [shape: f32[1,1024], index: 6, kind: input, shape index: {}]
  %s7 = inlined_call_operand.hbm [shape: bf16[1024,1024], index: 7, kind: input, shape index: {}]
  %s8 = inlined_call_operand.hbm [shape: f32[1,1024], index: 8, kind: input, shape index: {}]
  %s9 = inlined_call_operand.hbm [shape: bf16[1024,128], index: 9, kind: input, shape index: {}]
  %s10 = inlined_call_operand.hbm [shape: f32[1,128], index: 10, kind: input, shape index: {}]
  %s11 = inlined_call_operand.hbm [shape: f32[8,128], index: 11, kind: output, shape index: {}]
  %s12 = sld [smem:[#allocation0]]
  $region98: #{tpu_custom_call.1} parent=0
    _
  %s14 = ssub.s32 1, %s12
  %s15 = scalar_select 0, %s14, %s12
  $region1: #{tpu_custom_call.1} parent=0
    #allocation2 [shape = 'u8[4096]{0}', space=vmem, size = 0x1000, scoped, tag = 'input window, operand 0, single buffered']
    #allocation3 [shape = 's32[1]{0}', space=sflag, size = 0x4, scoped, tag = 'scoped memory for tpu_custom_call.1']
    #allocation4 [shape = 's32[1]{0}', space=sflag, size = 0x4, scoped, tag = 'scoped memory for tpu_custom_call.1']
    #allocation5 [shape = 'u8[65536]{0}', space=vmem, size = 0x10000, scoped, tag = 'input window, operand 1, single buffered']
    #allocation6 [shape = 's32[1]{0}', space=sflag, size = 0x4, scoped, tag = 'scoped memory for tpu_custom_call.1']
    #allocation7 [shape = 'u8[32768]{0}', space=vmem, size = 0x8000, scoped, tag = 'input window, operand 2, single buffered']
    #allocation8 [shape = 'u8[65536]{0}', space=vmem, size = 0x10000, scoped, tag = 'input window, operand 3, single buffered']
    #allocation9 [shape = 's32[1]{0}', space=sflag, size = 0x4, scoped, tag = 'scoped memory for tpu_custom_call.1']
    #allocation10 [shape = 'u8[65536]{0}', space=vmem, size = 0x10000, scoped, tag = 'input window, operand 4, single buffered']
    #allocation11 [shape = 'u8[32768]{0}', space=vmem, size = 0x8000, scoped, tag = 'input window, operand 5, single buffered']
    #allocation12 [shape = 's32[1]{0}', space=sflag, size = 0x4, scoped, tag = 'scoped memory for tpu_custom_call.1']
    #allocation13 [shape = 'u8[4096]{0}', space=vmem, size = 0x1000, scoped, tag = 'input window, operand 6, single buffered']
    #allocation14 [shape = 'u8[2097152]{0}', space=vmem, size = 0x200000, scoped, tag = 'input window, operand 7, single buffered']
    #allocation15 [shape = 's32[1]{0}', space=sflag, size = 0x4, scoped, tag = 'scoped memory for tpu_custom_call.1']
    #allocation16 [shape = 'u8[4096]{0}', space=vmem, size = 0x1000, scoped, tag = 'input window, operand 8, single buffered']
    #allocation17 [shape = 'u8[262144]{0}', space=vmem, size = 0x40000, scoped, tag = 'input window, operand 9, single buffered']
    #allocation18 [shape = 's32[1]{0}', space=sflag, size = 0x4, scoped, tag = 'scoped memory for tpu_custom_call.1']
    #allocation19 [shape = 'u8[512]{0}', space=vmem, size = 0x400, scoped, tag = 'input window, operand 10, single buffered']
    #allocation20 [shape = 'u8[4096]{0}', space=vmem, size = 0x1000, scoped, tag = 'output window, operand 0, single buffered']
    %16 = vsyncpa [#allocation3], 0
    %17 = vsyncpa [#allocation6], 0
    %18 = vsyncpa [#allocation9], 0
    %19 = vsyncpa [#allocation12], 0
    %20 = vsyncpa [#allocation15], 0
    %21 = vsyncpa [#allocation18], 0
    %22 = vsyncpa [#allocation4], 0
    // Predicated region
    $region2: #{tpu_custom_call.1} parent=1 // pred_check
      _
    $region3: #{tpu_custom_call.1} parent=1 // pred_check_branch
      %24 = sbr.rel (0) target = $region5
    $region4: #{tpu_custom_call.1} parent=1 // pred_region
      %s26 = ssub.s32 128, 128
      %27 = vsyncadd [#allocation3], %s26
      %s29 = sshll.u32 [#allocation2], 4
      %s30 = int_to_ptr.vmem [resolvable:$true] %s29
      %32 = dma.hbm_to_vmem [thread:$0]  %s0, 128, %s30, [#allocation3]
    $region5: #{tpu_custom_call.1} parent=1 // pred_fallthru
      _
    // Predicated region
    $region6: #{tpu_custom_call.1} parent=1 // pred_check
      _
    $region7: #{tpu_custom_call.1} parent=1 // pred_check_branch
      %34 = sbr.rel (0) target = $region9
    $region8: #{tpu_custom_call.1} parent=1 // pred_region
      %s36 = ssub.s32 2048, 2048
      %37 = vsyncadd [#allocation6], %s36
      %s38 = sshll.u32 [#allocation5], 4
      %s39 = int_to_ptr.vmem [resolvable:$true] %s38
      %44 = dma.hbm_to_vmem [thread:$0]  %s1, 2048, %s39, [#allocation6], 1024, 1024, 64
    $region9: #{tpu_custom_call.1} parent=1 // pred_fallthru
      _
    // Predicated region
    $region10: #{tpu_custom_call.1} parent=1 // pred_check
      _
    $region11: #{tpu_custom_call.1} parent=1 // pred_check_branch
      %46 = sbr.rel (0) target = $region13
    $region12: #{tpu_custom_call.1} parent=1 // pred_region
      %s48 = ssub.s32 1024, 1024
      %49 = vsyncadd [#allocation6], %s48
      %s51 = sshll.u32 [#allocation7], 4
      %s52 = int_to_ptr.vmem [resolvable:$true] %s51
      %54 = dma.hbm_to_vmem [thread:$0]  %s2, 1024, %s52, [#allocation6]
    $region13: #{tpu_custom_call.1} parent=1 // pred_fallthru
      _
    // Predicated region
    $region14: #{tpu_custom_call.1} parent=1 // pred_check
      _
    $region15: #{tpu_custom_call.1} parent=1 // pred_check_branch
      %56 = sbr.rel (0) target = $region17
    $region16: #{tpu_custom_call.1} parent=1 // pred_region
      %s58 = ssub.s32 2048, 2048
      %59 = vsyncadd [#allocation9], %s58
      %s60 = sshll.u32 [#allocation8], 4
      %s61 = int_to_ptr.vmem [resolvable:$true] %s60
      %66 = dma.hbm_to_vmem [thread:$0]  %s3, 2048, %s61, [#allocation9], 1024, 1024, 64
    $region17: #{tpu_custom_call.1} parent=1 // pred_fallthru
      _
    // Predicated region
    $region18: #{tpu_custom_call.1} parent=1 // pred_check
      _
    $region19: #{tpu_custom_call.1} parent=1 // pred_check_branch
      %68 = sbr.rel (0) target = $region21
    $region20: #{tpu_custom_call.1} parent=1 // pred_region
      %s70 = ssub.s32 2048, 2048
      %71 = vsyncadd [#allocation9], %s70
      %s72 = sshll.u32 [#allocation10], 4
      %s73 = int_to_ptr.vmem [resolvable:$true] %s72
      %78 = dma.hbm_to_vmem [thread:$0]  %s4, 2048, %s73, [#allocation9], 1024, 1024, 64
    $region21: #{tpu_custom_call.1} parent=1 // pred_fallthru
      _
    // Predicated region
    $region22: #{tpu_custom_call.1} parent=1 // pred_check
      _
    $region23: #{tpu_custom_call.1} parent=1 // pred_check_branch
      %80 = sbr.rel (0) target = $region25
    $region24: #{tpu_custom_call.1} parent=1 // pred_region
      %s82 = ssub.s32 1024, 1024
      %83 = vsyncadd [#allocation12], %s82
      %s85 = sshll.u32 [#allocation11], 4
      %s86 = int_to_ptr.vmem [resolvable:$true] %s85
      %88 = dma.hbm_to_vmem [thread:$0]  %s5, 1024, %s86, [#allocation12]
    $region25: #{tpu_custom_call.1} parent=1 // pred_fallthru
      _
    // Predicated region
    $region26: #{tpu_custom_call.1} parent=1 // pred_check
      _
    $region27: #{tpu_custom_call.1} parent=1 // pred_check_branch
      %90 = sbr.rel (0) target = $region29
    $region28: #{tpu_custom_call.1} parent=1 // pred_region
      %s92 = ssub.s32 128, 128
      %93 = vsyncadd [#allocation12], %s92
      %s95 = sshll.u32 [#allocation13], 4
      %s96 = int_to_ptr.vmem [resolvable:$true] %s95
      %98 = dma.hbm_to_vmem [thread:$0]  %s6, 128, %s96, [#allocation12]
    $region29: #{tpu_custom_call.1} parent=1 // pred_fallthru
      _
    // Predicated region
    $region30: #{tpu_custom_call.1} parent=1 // pred_check
      _
    $region31: #{tpu_custom_call.1} parent=1 // pred_check_branch
      %100 = sbr.rel (0) target = $region33
    $region32: #{tpu_custom_call.1} parent=1 // pred_region
      %s102 = ssub.s32 65536, 65536
      %103 = vsyncadd [#allocation15], %s102
      %s104 = sshll.u32 [#allocation14], 4
      %s105 = int_to_ptr.vmem [resolvable:$true] %s104
      %110 = dma.hbm_to_vmem [thread:$0]  %s7, 65536, %s105, [#allocation15], 512, 512, 32
    $region33: #{tpu_custom_call.1} parent=1 // pred_fallthru
      _
    // Predicated region
    $region34: #{tpu_custom_call.1} parent=1 // pred_check
      _
    $region35: #{tpu_custom_call.1} parent=1 // pred_check_branch
      %112 = sbr.rel (0) target = $region37
    $region36: #{tpu_custom_call.1} parent=1 // pred_region
      %s114 = ssub.s32 128, 128
      %115 = vsyncadd [#allocation15], %s114
      %s117 = sshll.u32 [#allocation16], 4
      %s118 = int_to_ptr.vmem [resolvable:$true] %s117
      %120 = dma.hbm_to_vmem [thread:$0]  %s8, 128, %s118, [#allocation15]
    $region37: #{tpu_custom_call.1} parent=1 // pred_fallthru
      _
    // Predicated region
    $region38: #{tpu_custom_call.1} parent=1 // pred_check
      _
    $region39: #{tpu_custom_call.1} parent=1 // pred_check_branch
      %122 = sbr.rel (0) target = $region41
    $region40: #{tpu_custom_call.1} parent=1 // pred_region
      %s124 = ssub.s32 8192, 8192
      %125 = vsyncadd [#allocation18], %s124
      %s126 = sshll.u32 [#allocation17], 4
      %s127 = int_to_ptr.vmem [resolvable:$true] %s126
      %132 = dma.hbm_to_vmem [thread:$0]  %s9, 8192, %s127, [#allocation18], 64, 64, 4
    $region41: #{tpu_custom_call.1} parent=1 // pred_fallthru
      _
    // Predicated region
    $region42: #{tpu_custom_call.1} parent=1 // pred_check
      _
    $region43: #{tpu_custom_call.1} parent=1 // pred_check_branch
      %134 = sbr.rel (0) target = $region45
    $region44: #{tpu_custom_call.1} parent=1 // pred_region
      %s136 = ssub.s32 16, 16
      %137 = vsyncadd [#allocation18], %s136
      %s139 = sshll.u32 [#allocation19], 4
      %s140 = int_to_ptr.vmem [resolvable:$true] %s139
      %142 = dma.hbm_to_vmem [thread:$0]  %s10, 16, %s140, [#allocation18]
    $region45: #{tpu_custom_call.1} parent=1 // pred_fallthru
      _
    // Predicated region
    $region46: #{tpu_custom_call.1} parent=1 // pred_check
      _
    $region47: #{tpu_custom_call.1} parent=1 // pred_check_branch
      %144 = sbr.rel (0) target = $region49
    $region48: #{tpu_custom_call.1} parent=1 // pred_region
      %145 = dma.done [#allocation3], 128
    $region49: #{tpu_custom_call.1} parent=1 // pred_fallthru
      _
    // Predicated region
    $region50: #{tpu_custom_call.1} parent=1 // pred_check
      _
    $region51: #{tpu_custom_call.1} parent=1 // pred_check_branch
      %147 = sbr.rel (0) target = $region53
    $region52: #{tpu_custom_call.1} parent=1 // pred_region
      %148 = dma.done [#allocation6], 2048
    $region53: #{tpu_custom_call.1} parent=1 // pred_fallthru
      _
    // Predicated region
    $region54: #{tpu_custom_call.1} parent=1 // pred_check
      _
    $region55: #{tpu_custom_call.1} parent=1 // pred_check_branch
      %150 = sbr.rel (0) target = $region57
    $region56: #{tpu_custom_call.1} parent=1 // pred_region
      %151 = dma.done [#allocation6], 1024
    $region57: #{tpu_custom_call.1} parent=1 // pred_fallthru
      _
    // Predicated region
    $region58: #{tpu_custom_call.1} parent=1 // pred_check
      _
    $region59: #{tpu_custom_call.1} parent=1 // pred_check_branch
      %153 = sbr.rel (0) target = $region61
    $region60: #{tpu_custom_call.1} parent=1 // pred_region
      %154 = dma.done [#allocation9], 2048
    $region61: #{tpu_custom_call.1} parent=1 // pred_fallthru
      _
    // Predicated region
    $region62: #{tpu_custom_call.1} parent=1 // pred_check
      _
    $region63: #{tpu_custom_call.1} parent=1 // pred_check_branch
      %156 = sbr.rel (0) target = $region65
    $region64: #{tpu_custom_call.1} parent=1 // pred_region
      %157 = dma.done [#allocation9], 2048
    $region65: #{tpu_custom_call.1} parent=1 // pred_fallthru
      _
    // Predicated region
    $region66: #{tpu_custom_call.1} parent=1 // pred_check
      _
    $region67: #{tpu_custom_call.1} parent=1 // pred_check_branch
      %159 = sbr.rel (0) target = $region69
    $region68: #{tpu_custom_call.1} parent=1 // pred_region
      %160 = dma.done [#allocation12], 1024
    $region69: #{tpu_custom_call.1} parent=1 // pred_fallthru
      _
    // Predicated region
    $region70: #{tpu_custom_call.1} parent=1 // pred_check
      _
    $region71: #{tpu_custom_call.1} parent=1 // pred_check_branch
      %162 = sbr.rel (0) target = $region73
    $region72: #{tpu_custom_call.1} parent=1 // pred_region
      %163 = dma.done [#allocation12], 128
    $region73: #{tpu_custom_call.1} parent=1 // pred_fallthru
      _
    // Predicated region
    $region74: #{tpu_custom_call.1} parent=1 // pred_check
      _
    $region75: #{tpu_custom_call.1} parent=1 // pred_check_branch
      %165 = sbr.rel (0) target = $region77
    $region76: #{tpu_custom_call.1} parent=1 // pred_region
      %166 = dma.done [#allocation15], 65536
    $region77: #{tpu_custom_call.1} parent=1 // pred_fallthru
      _
    // Predicated region
    $region78: #{tpu_custom_call.1} parent=1 // pred_check
      _
    $region79: #{tpu_custom_call.1} parent=1 // pred_check_branch
      %168 = sbr.rel (0) target = $region81
    $region80: #{tpu_custom_call.1} parent=1 // pred_region
      %169 = dma.done [#allocation15], 128
    $region81: #{tpu_custom_call.1} parent=1 // pred_fallthru
      _
    // Predicated region
    $region82: #{tpu_custom_call.1} parent=1 // pred_check
      _
    $region83: #{tpu_custom_call.1} parent=1 // pred_check_branch
      %171 = sbr.rel (0) target = $region85
    $region84: #{tpu_custom_call.1} parent=1 // pred_region
      %172 = dma.done [#allocation18], 8192
    $region85: #{tpu_custom_call.1} parent=1 // pred_fallthru
      _
    // Predicated region
    $region86: #{tpu_custom_call.1} parent=1 // pred_check
      _
    $region87: #{tpu_custom_call.1} parent=1 // pred_check_branch
      %174 = sbr.rel (0) target = $region89
    $region88: #{tpu_custom_call.1} parent=1 // pred_region
      %175 = dma.done [#allocation18], 16
    $region89: #{tpu_custom_call.1} parent=1 // pred_fallthru
      _
    %v177 = vld [vmem:[#allocation2] sm:$0xff]
    %v178 = vld [vmem:[#allocation5] sm:$0xff]
    %v179 = vld [vmem:[#allocation5 + $0x8] sm:$0xff]
    %v180 = vld [vmem:[#allocation5 + $0x10] sm:$0xff]
    %v181 = vld [vmem:[#allocation5 + $0x18] sm:$0xff]
    %v182 = vld [vmem:[#allocation5 + $0x20] sm:$0xff]
    %v183 = vld [vmem:[#allocation5 + $0x28] sm:$0xff]
    %v184 = vld [vmem:[#allocation5 + $0x30] sm:$0xff]
    %v185 = vld [vmem:[#allocation5 + $0x38] sm:$0xff]
    %v186 = vld [vmem:[#allocation5 + $0x40] sm:$0x3]
    %v187 = vld [vmem:[#allocation5 + $0x48] sm:$0x3]
    %v188 = vld [vmem:[#allocation5 + $0x50] sm:$0x3]
    %v189 = vld [vmem:[#allocation5 + $0x58] sm:$0x3]
    %v190 = vld [vmem:[#allocation5 + $0x60] sm:$0x3]
    %v191 = vld [vmem:[#allocation5 + $0x68] sm:$0x3]
    %v192 = vld [vmem:[#allocation5 + $0x70] sm:$0x3]
    %v193 = vld [vmem:[#allocation5 + $0x78] sm:$0x3]
    %v194 = vcvt.f32.s32.to.zero.pseudo %v177
    %v195 = vlaneseq
    %v196 = vand.u32 %v195, 127
    %197 = vset.pattern.permute.xlu0 0
    %198 = vperm.xlu0 %197, %v194
    %v199 = vpop.permute.xlu0 %198
    %vm200 = vcmp.eq.s32.totalorder %v199, %v196
    %v201 = vsel %vm200, 1.0, 0.0
    %v202 = vld [vmem:[#allocation7] sm:$0x7f]
    %v203 = vld [vmem:[#allocation7 + $0x8] sm:$0x7f]
    %v204 = vld [vmem:[#allocation7 + $0x10] sm:$0x7f]
    %v205 = vld [vmem:[#allocation7 + $0x18] sm:$0x7f]
    %v206 = vld [vmem:[#allocation7 + $0x20] sm:$0x7f]
    %v207 = vld [vmem:[#allocation7 + $0x28] sm:$0x7f]
    %v208 = vld [vmem:[#allocation7 + $0x30] sm:$0x7f]
    %v209 = vld [vmem:[#allocation7 + $0x38] sm:$0x7f]
    %210 = vset.pattern.permute.xlu0 1
    %211 = vperm.xlu0 %210, %v194
    %v212 = vpop.permute.xlu0 %211
    %vm213 = vcmp.eq.s32.totalorder %v212, %v196
    %v214 = vsel %vm213, 1.0, 0.0
    %vm215 = vcmask 56320
    %v217 = vsel %vm215, %v214, 0
    %vm219 = vcmask 1046528
    %v221 = vsel %vm219, %v202, 0
    %v224 = vsel %vm219, %v203, 0
    %v227 = vsel %vm219, %v204, 0
    %v230 = vsel %vm219, %v205, 0
    %v233 = vsel %vm219, %v206, 0
    %v236 = vsel %vm219, %v207, 0
    %v239 = vsel %vm219, %v208, 0
    %v242 = vsel %vm219, %v209, 0
    %244 = vmatprep.subr.mxu0 %v224
    %245 = vmatpush1.msra.mxu0 %v221
    %246 = vmatprep.subr.mxu0 0.0
    %247 = vmatpush1.msra.mxu0 0.0
    %248 = vmatprep.subr.mxu0 0.0
    %249 = vmatpush1.msra.mxu0 0.0
    %250 = vmatprep.subr.mxu0 0.0
    %251 = vmatpush1.msra.mxu0 0.0
    %252 = vmatprep.subr.mxu0 0.0
    %253 = vmatpush1.msra.mxu0 0.0
    %254 = vmatprep.subr.mxu0 0.0
    %255 = vmatpush1.msra.mxu0 0.0
    %256 = vmatprep.subr.mxu0 0.0
    %257 = vmatpush1.msra.mxu0 0.0
    %258 = vmatprep.subr.mxu0 0.0
    %259 = vmatpush1.msra.mxu0 0.0
    %260 = vmatprep.subr.mxu0 0.0
    %261 = vmatpush1.msra.mxu0 0.0
    %262 = vmatprep.subr.mxu0 0.0
    %263 = vmatpush1.msra.mxu0 0.0
    %264 = vmatprep.subr.mxu0 0.0
    %265 = vmatpush1.msra.mxu0 0.0
    %266 = vmatprep.subr.mxu0 0.0
    %267 = vmatpush1.msra.mxu0 0.0
    %268 = vmatprep.subr.mxu0 0.0
    %269 = vmatpush1.msra.mxu0 0.0
    %270 = vmatprep.subr.mxu0 0.0
    %271 = vmatpush1.msra.mxu0 0.0
    %272 = vmatprep.subr.mxu0 0.0
    %273 = vmatpush1.msra.mxu0 0.0
    %274 = vmatprep.subr.mxu0 0.0
    %275 = vmatpush1.msra.mxu0 0.0
    %276 = vmatprep.subr.mxu0 0.0
    %277 = vmatpush1.msra.mxu0 0.0
    %278 = vmatprep.subr.mxu0 0.0
    %279 = vmatpush1.msra.mxu0 0.0
    %280 = vmatprep.subr.mxu0 0.0
    %281 = vmatpush1.msra.mxu0 0.0
    %282 = vmatprep.subr.mxu0 0.0
    %283 = vmatpush1.msra.mxu0 0.0
    %284 = vmatprep.subr.mxu0 0.0
    %285 = vmatpush1.msra.mxu0 0.0
    %286 = vmatprep.subr.mxu0 0.0
    %287 = vmatpush1.msra.mxu0 0.0
    %288 = vmatprep.subr.mxu0 0.0
    %289 = vmatpush1.msra.mxu0 0.0
    %290 = vmatprep.subr.mxu0 0.0
    %291 = vmatpush1.msra.mxu0 0.0
    %292 = vmatprep.subr.mxu0 0.0
    %293 = vmatpush1.msra.mxu0 0.0
    %294 = vmatprep.subr.mxu0 0.0
    %295 = vmatpush1.msra.mxu0 0.0
    %296 = vmatprep.subr.mxu0 0.0
    %297 = vmatpush1.msra.mxu0 0.0
    %298 = vmatprep.subr.mxu0 0.0
    %299 = vmatpush1.msra.mxu0 0.0
    %300 = vmatprep.subr.mxu0 0.0
    %301 = vmatpush1.msra.mxu0 0.0
    %302 = vmatprep.subr.mxu0 0.0
    %303 = vmatpush1.msra.mxu0 0.0
    %304 = vmatprep.subr.mxu0 0.0
    %305 = vmatpush1.msra.mxu0 0.0
    %306 = vmatprep.subr.mxu0 0.0
    %307 = vmatpush1.msra.mxu0 0.0
    %308 = vmatprep.mubr.f32.mxu0 0.0
    %309 = vmatmul.mubr.f32.gmra.mrb[0].mxu0 %v217
    %v310 = vpop.f32.mrb[0].mxu0
    %v311 = vadd.f32 0.0, %v310
    %v312 = vpop.f32.mrb[0].mxu0
    %v313 = vadd.f32 0.0, %v312
    %314 = vdwg.mxu0
    %315 = vmatprep.subr.mxu0 %v230
    %316 = vmatpush1.msra.mxu0 %v227
    %317 = vmatprep.subr.mxu0 0.0
    %318 = vmatpush1.msra.mxu0 0.0
    %319 = vmatprep.subr.mxu0 0.0
    %320 = vmatpush1.msra.mxu0 0.0
    %321 = vmatprep.subr.mxu0 0.0
    %322 = vmatpush1.msra.mxu0 0.0
    %323 = vmatprep.subr.mxu0 0.0
    %324 = vmatpush1.msra.mxu0 0.0
    %325 = vmatprep.subr.mxu0 0.0
    %326 = vmatpush1.msra.mxu0 0.0
    %327 = vmatprep.subr.mxu0 0.0
    %328 = vmatpush1.msra.mxu0 0.0
    %329 = vmatprep.subr.mxu0 0.0
    %330 = vmatpush1.msra.mxu0 0.0
    %331 = vmatprep.subr.mxu0 0.0
    %332 = vmatpush1.msra.mxu0 0.0
    %333 = vmatprep.subr.mxu0 0.0
    %334 = vmatpush1.msra.mxu0 0.0
    %335 = vmatprep.subr.mxu0 0.0
    %336 = vmatpush1.msra.mxu0 0.0
    %337 = vmatprep.subr.mxu0 0.0
    %338 = vmatpush1.msra.mxu0 0.0
    %339 = vmatprep.subr.mxu0 0.0
    %340 = vmatpush1.msra.mxu0 0.0
    %341 = vmatprep.subr.mxu0 0.0
    %342 = vmatpush1.msra.mxu0 0.0
    %343 = vmatprep.subr.mxu0 0.0
    %344 = vmatpush1.msra.mxu0 0.0
    %345 = vmatprep.subr.mxu0 0.0
    %346 = vmatpush1.msra.mxu0 0.0
    %347 = vmatprep.subr.mxu0 0.0
    %348 = vmatpush1.msra.mxu0 0.0
    %349 = vmatprep.subr.mxu0 0.0
    %350 = vmatpush1.msra.mxu0 0.0
    %351 = vmatprep.subr.mxu0 0.0
    %352 = vmatpush1.msra.mxu0 0.0
    %353 = vmatprep.subr.mxu0 0.0
    %354 = vmatpush1.msra.mxu0 0.0
    %355 = vmatprep.subr.mxu0 0.0
    %356 = vmatpush1.msra.mxu0 0.0
    %357 = vmatprep.subr.mxu0 0.0
    %358 = vmatpush1.msra.mxu0 0.0
    %359 = vmatprep.subr.mxu0 0.0
    %360 = vmatpush1.msra.mxu0 0.0
    %361 = vmatprep.subr.mxu0 0.0
    %362 = vmatpush1.msra.mxu0 0.0
    %363 = vmatprep.subr.mxu0 0.0
    %364 = vmatpush1.msra.mxu0 0.0
    %365 = vmatprep.subr.mxu0 0.0
    %366 = vmatpush1.msra.mxu0 0.0
    %367 = vmatprep.subr.mxu0 0.0
    %368 = vmatpush1.msra.mxu0 0.0
    %369 = vmatprep.subr.mxu0 0.0
    %370 = vmatpush1.msra.mxu0 0.0
    %371 = vmatprep.subr.mxu0 0.0
    %372 = vmatpush1.msra.mxu0 0.0
    %373 = vmatprep.subr.mxu0 0.0
    %374 = vmatpush1.msra.mxu0 0.0
    %375 = vmatprep.subr.mxu0 0.0
    %376 = vmatpush1.msra.mxu0 0.0
    %377 = vmatprep.subr.mxu0 0.0
    %378 = vmatpush1.msra.mxu0 0.0
    %379 = vmatprep.mubr.f32.mxu0 0.0
    %380 = vmatmul.mubr.f32.gmra.mrb[0].mxu0 %v217
    %v381 = vpop.f32.mrb[0].mxu0
    %v382 = vadd.f32 0.0, %v381
    %v383 = vpop.f32.mrb[0].mxu0
    %v384 = vadd.f32 0.0, %v383
    %385 = vdwg.mxu0
    %386 = vmatprep.subr.mxu0 %v236
    %387 = vmatpush1.msra.mxu0 %v233
    %388 = vmatprep.subr.mxu0 0.0
    %389 = vmatpush1.msra.mxu0 0.0
    %390 = vmatprep.subr.mxu0 0.0
    %391 = vmatpush1.msra.mxu0 0.0
    %392 = vmatprep.subr.mxu0 0.0
    %393 = vmatpush1.msra.mxu0 0.0
    %394 = vmatprep.subr.mxu0 0.0
    %395 = vmatpush1.msra.mxu0 0.0
    %396 = vmatprep.subr.mxu0 0.0
    %397 = vmatpush1.msra.mxu0 0.0
    %398 = vmatprep.subr.mxu0 0.0
    %399 = vmatpush1.msra.mxu0 0.0
    %400 = vmatprep.subr.mxu0 0.0
    %401 = vmatpush1.msra.mxu0 0.0
    %402 = vmatprep.subr.mxu0 0.0
    %403 = vmatpush1.msra.mxu0 0.0
    %404 = vmatprep.subr.mxu0 0.0
    %405 = vmatpush1.msra.mxu0 0.0
    %406 = vmatprep.subr.mxu0 0.0
    %407 = vmatpush1.msra.mxu0 0.0
    %408 = vmatprep.subr.mxu0 0.0
    %409 = vmatpush1.msra.mxu0 0.0
    %410 = vmatprep.subr.mxu0 0.0
    %411 = vmatpush1.msra.mxu0 0.0
    %412 = vmatprep.subr.mxu0 0.0
    %413 = vmatpush1.msra.mxu0 0.0
    %414 = vmatprep.subr.mxu0 0.0
    %415 = vmatpush1.msra.mxu0 0.0
    %416 = vmatprep.subr.mxu0 0.0
    %417 = vmatpush1.msra.mxu0 0.0
    %418 = vmatprep.subr.mxu0 0.0
    %419 = vmatpush1.msra.mxu0 0.0
    %420 = vmatprep.subr.mxu0 0.0
    %421 = vmatpush1.msra.mxu0 0.0
    %422 = vmatprep.subr.mxu0 0.0
    %423 = vmatpush1.msra.mxu0 0.0
    %424 = vmatprep.subr.mxu0 0.0
    %425 = vmatpush1.msra.mxu0 0.0
    %426 = vmatprep.subr.mxu0 0.0
    %427 = vmatpush1.msra.mxu0 0.0
    %428 = vmatprep.subr.mxu0 0.0
    %429 = vmatpush1.msra.mxu0 0.0
    %430 = vmatprep.subr.mxu0 0.0
    %431 = vmatpush1.msra.mxu0 0.0
    %432 = vmatprep.subr.mxu0 0.0
    %433 = vmatpush1.msra.mxu0 0.0
    %434 = vmatprep.subr.mxu0 0.0
    %435 = vmatpush1.msra.mxu0 0.0
    %436 = vmatprep.subr.mxu0 0.0
    %437 = vmatpush1.msra.mxu0 0.0
    %438 = vmatprep.subr.mxu0 0.0
    %439 = vmatpush1.msra.mxu0 0.0
    %440 = vmatprep.subr.mxu0 0.0
    %441 = vmatpush1.msra.mxu0 0.0
    %442 = vmatprep.subr.mxu0 0.0
    %443 = vmatpush1.msra.mxu0 0.0
    %444 = vmatprep.subr.mxu0 0.0
    %445 = vmatpush1.msra.mxu0 0.0
    %446 = vmatprep.subr.mxu0 0.0
    %447 = vmatpush1.msra.mxu0 0.0
    %448 = vmatprep.subr.mxu0 0.0
    %449 = vmatpush1.msra.mxu0 0.0
    %450 = vmatprep.mubr.f32.mxu0 0.0
    %451 = vmatmul.mubr.f32.gmra.mrb[0].mxu0 %v217
    %v452 = vpop.f32.mrb[0].mxu0
    %v453 = vadd.f32 0.0, %v452
    %v454 = vpop.f32.mrb[0].mxu0
    %v455 = vadd.f32 0.0, %v454
    %456 = vdwg.mxu0
    %457 = vmatprep.subr.mxu0 %v242
    %458 = vmatpush1.msra.mxu0 %v239
    %459 = vmatprep.subr.mxu0 0.0
    %460 = vmatpush1.msra.mxu0 0.0
    %461 = vmatprep.subr.mxu0 0.0
    %462 = vmatpush1.msra.mxu0 0.0
    %463 = vmatprep.subr.mxu0 0.0
    %464 = vmatpush1.msra.mxu0 0.0
    %465 = vmatprep.subr.mxu0 0.0
    %466 = vmatpush1.msra.mxu0 0.0
    %467 = vmatprep.subr.mxu0 0.0
    %468 = vmatpush1.msra.mxu0 0.0
    %469 = vmatprep.subr.mxu0 0.0
    %470 = vmatpush1.msra.mxu0 0.0
    %471 = vmatprep.subr.mxu0 0.0
    %472 = vmatpush1.msra.mxu0 0.0
    %473 = vmatprep.subr.mxu0 0.0
    %474 = vmatpush1.msra.mxu0 0.0
    %475 = vmatprep.subr.mxu0 0.0
    %476 = vmatpush1.msra.mxu0 0.0
    %477 = vmatprep.subr.mxu0 0.0
    %478 = vmatpush1.msra.mxu0 0.0
    %479 = vmatprep.subr.mxu0 0.0
    %480 = vmatpush1.msra.mxu0 0.0
    %481 = vmatprep.subr.mxu0 0.0
    %482 = vmatpush1.msra.mxu0 0.0
    %483 = vmatprep.subr.mxu0 0.0
    %484 = vmatpush1.msra.mxu0 0.0
    %485 = vmatprep.subr.mxu0 0.0
    %486 = vmatpush1.msra.mxu0 0.0
    %487 = vmatprep.subr.mxu0 0.0
    %488 = vmatpush1.msra.mxu0 0.0
    %489 = vmatprep.subr.mxu0 0.0
    %490 = vmatpush1.msra.mxu0 0.0
    %491 = vmatprep.subr.mxu0 0.0
    %492 = vmatpush1.msra.mxu0 0.0
    %493 = vmatprep.subr.mxu0 0.0
    %494 = vmatpush1.msra.mxu0 0.0
    %495 = vmatprep.subr.mxu0 0.0
    %496 = vmatpush1.msra.mxu0 0.0
    %497 = vmatprep.subr.mxu0 0.0
    %498 = vmatpush1.msra.mxu0 0.0
    %499 = vmatprep.subr.mxu0 0.0
    %500 = vmatpush1.msra.mxu0 0.0
    %501 = vmatprep.subr.mxu0 0.0
    %502 = vmatpush1.msra.mxu0 0.0
    %503 = vmatprep.subr.mxu0 0.0
    %504 = vmatpush1.msra.mxu0 0.0
    %505 = vmatprep.subr.mxu0 0.0
    %506 = vmatpush1.msra.mxu0 0.0
    %507 = vmatprep.subr.mxu0 0.0
    %508 = vmatpush1.msra.mxu0 0.0
    %509 = vmatprep.subr.mxu0 0.0
    %510 = vmatpush1.msra.mxu0 0.0
    %511 = vmatprep.subr.mxu0 0.0
    %512 = vmatpush1.msra.mxu0 0.0
    %513 = vmatprep.subr.mxu0 0.0
    %514 = vmatpush1.msra.mxu0 0.0
    %515 = vmatprep.subr.mxu0 0.0
    %516 = vmatpush1.msra.mxu0 0.0
    %517 = vmatprep.subr.mxu0 0.0
    %518 = vmatpush1.msra.mxu0 0.0
    %519 = vmatprep.subr.mxu0 0.0
    %520 = vmatpush1.msra.mxu0 0.0
    %521 = vmatprep.mubr.f32.mxu0 0.0
    %522 = vmatmul.mubr.f32.gmra.mrb[0].mxu0 %v217
    %v523 = vpop.f32.mrb[0].mxu0
    %v524 = vadd.f32 0.0, %v523
    %v525 = vpop.f32.mrb[0].mxu0
    %v526 = vadd.f32 0.0, %v525
    %527 = vdwg.mxu0
    %vm528 = vcmask 80896
    %v530 = vsel %vm528, %v201, 0
    %vm532 = vcmask 1041408
    %v534 = vsel %vm532, %v186, 0
    %v537 = vsel %vm532, %v187, 0
    %v540 = vsel %vm532, %v188, 0
    %v543 = vsel %vm532, %v189, 0
    %v546 = vsel %vm532, %v190, 0
    %v549 = vsel %vm532, %v191, 0
    %v552 = vsel %vm532, %v192, 0
    %v555 = vsel %vm532, %v193, 0
    %557 = vmatprep.subr.mxu0 %v179
    %558 = vmatpush1.msra.mxu0 %v178
    %559 = vmatprep.subr.mxu0 %v537
    %560 = vmatpush1.msra.mxu0 %v534
    %561 = vmatprep.subr.mxu0 0.0
    %562 = vmatpush1.msra.mxu0 0.0
    %563 = vmatprep.subr.mxu0 0.0
    %564 = vmatpush1.msra.mxu0 0.0
    %565 = vmatprep.subr.mxu0 0.0
    %566 = vmatpush1.msra.mxu0 0.0
    %567 = vmatprep.subr.mxu0 0.0
    %568 = vmatpush1.msra.mxu0 0.0
    %569 = vmatprep.subr.mxu0 0.0
    %570 = vmatpush1.msra.mxu0 0.0
    %571 = vmatprep.subr.mxu0 0.0
    %572 = vmatpush1.msra.mxu0 0.0
    %573 = vmatprep.subr.mxu0 0.0
    %574 = vmatpush1.msra.mxu0 0.0
    %575 = vmatprep.subr.mxu0 0.0
    %576 = vmatpush1.msra.mxu0 0.0
    %577 = vmatprep.subr.mxu0 0.0
    %578 = vmatpush1.msra.mxu0 0.0
    %579 = vmatprep.subr.mxu0 0.0
    %580 = vmatpush1.msra.mxu0 0.0
    %581 = vmatprep.subr.mxu0 0.0
    %582 = vmatpush1.msra.mxu0 0.0
    %583 = vmatprep.subr.mxu0 0.0
    %584 = vmatpush1.msra.mxu0 0.0
    %585 = vmatprep.subr.mxu0 0.0
    %586 = vmatpush1.msra.mxu0 0.0
    %587 = vmatprep.subr.mxu0 0.0
    %588 = vmatpush1.msra.mxu0 0.0
    %589 = vmatprep.subr.mxu0 0.0
    %590 = vmatpush1.msra.mxu0 0.0
    %591 = vmatprep.subr.mxu0 0.0
    %592 = vmatpush1.msra.mxu0 0.0
    %593 = vmatprep.subr.mxu0 0.0
    %594 = vmatpush1.msra.mxu0 0.0
    %595 = vmatprep.subr.mxu0 0.0
    %596 = vmatpush1.msra.mxu0 0.0
    %597 = vmatprep.subr.mxu0 0.0
    %598 = vmatpush1.msra.mxu0 0.0
    %599 = vmatprep.subr.mxu0 0.0
    %600 = vmatpush1.msra.mxu0 0.0
    %601 = vmatprep.subr.mxu0 0.0
    %602 = vmatpush1.msra.mxu0 0.0
    %603 = vmatprep.subr.mxu0 0.0
    %604 = vmatpush1.msra.mxu0 0.0
    %605 = vmatprep.subr.mxu0 0.0
    %606 = vmatpush1.msra.mxu0 0.0
    %607 = vmatprep.subr.mxu0 0.0
    %608 = vmatpush1.msra.mxu0 0.0
    %609 = vmatprep.subr.mxu0 0.0
    %610 = vmatpush1.msra.mxu0 0.0
    %611 = vmatprep.subr.mxu0 0.0
    %612 = vmatpush1.msra.mxu0 0.0
    %613 = vmatprep.subr.mxu0 0.0
    %614 = vmatpush1.msra.mxu0 0.0
    %615 = vmatprep.subr.mxu0 0.0
    %616 = vmatpush1.msra.mxu0 0.0
    %617 = vmatprep.subr.mxu0 0.0
    %618 = vmatpush1.msra.mxu0 0.0
    %619 = vmatprep.subr.mxu0 0.0
    %620 = vmatpush1.msra.mxu0 0.0
    %621 = vmatprep.mubr.f32.mxu0 0.0
    %622 = vmatmul.mubr.f32.gmra.mrb[0].mxu0 %v530
    %v623 = vpop.f32.mrb[0].mxu0
    %v624 = vadd.f32 %v311, %v623
    %v625 = vpop.f32.mrb[0].mxu0
    %v626 = vadd.f32 %v313, %v625
    %627 = vdwg.mxu0
    %628 = vmatprep.subr.mxu0 %v181
    %629 = vmatpush1.msra.mxu0 %v180
    %630 = vmatprep.subr.mxu0 %v543
    %631 = vmatpush1.msra.mxu0 %v540
    %632 = vmatprep.subr.mxu0 0.0
    %633 = vmatpush1.msra.mxu0 0.0
    %634 = vmatprep.subr.mxu0 0.0
    %635 = vmatpush1.msra.mxu0 0.0
    %636 = vmatprep.subr.mxu0 0.0
    %637 = vmatpush1.msra.mxu0 0.0
    %638 = vmatprep.subr.mxu0 0.0
    %639 = vmatpush1.msra.mxu0 0.0
    %640 = vmatprep.subr.mxu0 0.0
    %641 = vmatpush1.msra.mxu0 0.0
    %642 = vmatprep.subr.mxu0 0.0
    %643 = vmatpush1.msra.mxu0 0.0
    %644 = vmatprep.subr.mxu0 0.0
    %645 = vmatpush1.msra.mxu0 0.0
    %646 = vmatprep.subr.mxu0 0.0
    %647 = vmatpush1.msra.mxu0 0.0
    %648 = vmatprep.subr.mxu0 0.0
    %649 = vmatpush1.msra.mxu0 0.0
    %650 = vmatprep.subr.mxu0 0.0
    %651 = vmatpush1.msra.mxu0 0.0
    %652 = vmatprep.subr.mxu0 0.0
    %653 = vmatpush1.msra.mxu0 0.0
    %654 = vmatprep.subr.mxu0 0.0
    %655 = vmatpush1.msra.mxu0 0.0
    %656 = vmatprep.subr.mxu0 0.0
    %657 = vmatpush1.msra.mxu0 0.0
    %658 = vmatprep.subr.mxu0 0.0
    %659 = vmatpush1.msra.mxu0 0.0
    %660 = vmatprep.subr.mxu0 0.0
    %661 = vmatpush1.msra.mxu0 0.0
    %662 = vmatprep.subr.mxu0 0.0
    %663 = vmatpush1.msra.mxu0 0.0
    %664 = vmatprep.subr.mxu0 0.0
    %665 = vmatpush1.msra.mxu0 0.0
    %666 = vmatprep.subr.mxu0 0.0
    %667 = vmatpush1.msra.mxu0 0.0
    %668 = vmatprep.subr.mxu0 0.0
    %669 = vmatpush1.msra.mxu0 0.0
    %670 = vmatprep.subr.mxu0 0.0
    %671 = vmatpush1.msra.mxu0 0.0
    %672 = vmatprep.subr.mxu0 0.0
    %673 = vmatpush1.msra.mxu0 0.0
    %674 = vmatprep.subr.mxu0 0.0
    %675 = vmatpush1.msra.mxu0 0.0
    %676 = vmatprep.subr.mxu0 0.0
    %677 = vmatpush1.msra.mxu0 0.0
    %678 = vmatprep.subr.mxu0 0.0
    %679 = vmatpush1.msra.mxu0 0.0
    %680 = vmatprep.subr.mxu0 0.0
    %681 = vmatpush1.msra.mxu0 0.0
    %682 = vmatprep.subr.mxu0 0.0
    %683 = vmatpush1.msra.mxu0 0.0
    %684 = vmatprep.subr.mxu0 0.0
    %685 = vmatpush1.msra.mxu0 0.0
    %686 = vmatprep.subr.mxu0 0.0
    %687 = vmatpush1.msra.mxu0 0.0
    %688 = vmatprep.subr.mxu0 0.0
    %689 = vmatpush1.msra.mxu0 0.0
    %690 = vmatprep.subr.mxu0 0.0
    %691 = vmatpush1.msra.mxu0 0.0
    %692 = vmatprep.mubr.f32.mxu0 0.0
    %693 = vmatmul.mubr.f32.gmra.mrb[0].mxu0 %v530
    %v694 = vpop.f32.mrb[0].mxu0
    %v695 = vadd.f32 %v382, %v694
    %v696 = vpop.f32.mrb[0].mxu0
    %v697 = vadd.f32 %v384, %v696
    %698 = vdwg.mxu0
    %699 = vmatprep.subr.mxu0 %v183
    %700 = vmatpush1.msra.mxu0 %v182
    %701 = vmatprep.subr.mxu0 %v549
    %702 = vmatpush1.msra.mxu0 %v546
    %703 = vmatprep.subr.mxu0 0.0
    %704 = vmatpush1.msra.mxu0 0.0
    %705 = vmatprep.subr.mxu0 0.0
    %706 = vmatpush1.msra.mxu0 0.0
    %707 = vmatprep.subr.mxu0 0.0
    %708 = vmatpush1.msra.mxu0 0.0
    %709 = vmatprep.subr.mxu0 0.0
    %710 = vmatpush1.msra.mxu0 0.0
    %711 = vmatprep.subr.mxu0 0.0
    %712 = vmatpush1.msra.mxu0 0.0
    %713 = vmatprep.subr.mxu0 0.0
    %714 = vmatpush1.msra.mxu0 0.0
    %715 = vmatprep.subr.mxu0 0.0
    %716 = vmatpush1.msra.mxu0 0.0
    %717 = vmatprep.subr.mxu0 0.0
    %718 = vmatpush1.msra.mxu0 0.0
    %719 = vmatprep.subr.mxu0 0.0
    %720 = vmatpush1.msra.mxu0 0.0
    %721 = vmatprep.subr.mxu0 0.0
    %722 = vmatpush1.msra.mxu0 0.0
    %723 = vmatprep.subr.mxu0 0.0
    %724 = vmatpush1.msra.mxu0 0.0
    %725 = vmatprep.subr.mxu0 0.0
    %726 = vmatpush1.msra.mxu0 0.0
    %727 = vmatprep.subr.mxu0 0.0
    %728 = vmatpush1.msra.mxu0 0.0
    %729 = vmatprep.subr.mxu0 0.0
    %730 = vmatpush1.msra.mxu0 0.0
    %731 = vmatprep.subr.mxu0 0.0
    %732 = vmatpush1.msra.mxu0 0.0
    %733 = vmatprep.subr.mxu0 0.0
    %734 = vmatpush1.msra.mxu0 0.0
    %735 = vmatprep.subr.mxu0 0.0
    %736 = vmatpush1.msra.mxu0 0.0
    %737 = vmatprep.subr.mxu0 0.0
    %738 = vmatpush1.msra.mxu0 0.0
    %739 = vmatprep.subr.mxu0 0.0
    %740 = vmatpush1.msra.mxu0 0.0
    %741 = vmatprep.subr.mxu0 0.0
    %742 = vmatpush1.msra.mxu0 0.0
    %743 = vmatprep.subr.mxu0 0.0
    %744 = vmatpush1.msra.mxu0 0.0
    %745 = vmatprep.subr.mxu0 0.0
    %746 = vmatpush1.msra.mxu0 0.0
    %747 = vmatprep.subr.mxu0 0.0
    %748 = vmatpush1.msra.mxu0 0.0
    %749 = vmatprep.subr.mxu0 0.0
    %750 = vmatpush1.msra.mxu0 0.0
    %751 = vmatprep.subr.mxu0 0.0
    %752 = vmatpush1.msra.mxu0 0.0
    %753 = vmatprep.subr.mxu0 0.0
    %754 = vmatpush1.msra.mxu0 0.0
    %755 = vmatprep.subr.mxu0 0.0
    %756 = vmatpush1.msra.mxu0 0.0
    %757 = vmatprep.subr.mxu0 0.0
    %758 = vmatpush1.msra.mxu0 0.0
    %759 = vmatprep.subr.mxu0 0.0
    %760 = vmatpush1.msra.mxu0 0.0
    %761 = vmatprep.subr.mxu0 0.0
    %762 = vmatpush1.msra.mxu0 0.0
    %763 = vmatprep.mubr.f32.mxu0 0.0
    %764 = vmatmul.mubr.f32.gmra.mrb[0].mxu0 %v530
    %v765 = vpop.f32.mrb[0].mxu0
    %v766 = vadd.f32 %v453, %v765
    %v767 = vpop.f32.mrb[0].mxu0
    %v768 = vadd.f32 %v455, %v767
    %769 = vdwg.mxu0
    %770 = vmatprep.subr.mxu0 %v185
    %771 = vmatpush1.msra.mxu0 %v184
    %772 = vmatprep.subr.mxu0 %v555
    %773 = vmatpush1.msra.mxu0 %v552
    %774 = vmatprep.subr.mxu0 0.0
    %775 = vmatpush1.msra.mxu0 0.0
    %776 = vmatprep.subr.mxu0 0.0
    %777 = vmatpush1.msra.mxu0 0.0
    %778 = vmatprep.subr.mxu0 0.0
    %779 = vmatpush1.msra.mxu0 0.0
    %780 = vmatprep.subr.mxu0 0.0
    %781 = vmatpush1.msra.mxu0 0.0
    %782 = vmatprep.subr.mxu0 0.0
    %783 = vmatpush1.msra.mxu0 0.0
    %784 = vmatprep.subr.mxu0 0.0
    %785 = vmatpush1.msra.mxu0 0.0
    %786 = vmatprep.subr.mxu0 0.0
    %787 = vmatpush1.msra.mxu0 0.0
    %788 = vmatprep.subr.mxu0 0.0
    %789 = vmatpush1.msra.mxu0 0.0
    %790 = vmatprep.subr.mxu0 0.0
    %791 = vmatpush1.msra.mxu0 0.0
    %792 = vmatprep.subr.mxu0 0.0
    %793 = vmatpush1.msra.mxu0 0.0
    %794 = vmatprep.subr.mxu0 0.0
    %795 = vmatpush1.msra.mxu0 0.0
    %796 = vmatprep.subr.mxu0 0.0
    %797 = vmatpush1.msra.mxu0 0.0
    %798 = vmatprep.subr.mxu0 0.0
    %799 = vmatpush1.msra.mxu0 0.0
    %800 = vmatprep.subr.mxu0 0.0
    %801 = vmatpush1.msra.mxu0 0.0
    %802 = vmatprep.subr.mxu0 0.0
    %803 = vmatpush1.msra.mxu0 0.0
    %804 = vmatprep.subr.mxu0 0.0
    %805 = vmatpush1.msra.mxu0 0.0
    %806 = vmatprep.subr.mxu0 0.0
    %807 = vmatpush1.msra.mxu0 0.0
    %808 = vmatprep.subr.mxu0 0.0
    %809 = vmatpush1.msra.mxu0 0.0
    %810 = vmatprep.subr.mxu0 0.0
    %811 = vmatpush1.msra.mxu0 0.0
    %812 = vmatprep.subr.mxu0 0.0
    %813 = vmatpush1.msra.mxu0 0.0
    %814 = vmatprep.subr.mxu0 0.0
    %815 = vmatpush1.msra.mxu0 0.0
    %816 = vmatprep.subr.mxu0 0.0
    %817 = vmatpush1.msra.mxu0 0.0
    %818 = vmatprep.subr.mxu0 0.0
    %819 = vmatpush1.msra.mxu0 0.0
    %820 = vmatprep.subr.mxu0 0.0
    %821 = vmatpush1.msra.mxu0 0.0
    %822 = vmatprep.subr.mxu0 0.0
    %823 = vmatpush1.msra.mxu0 0.0
    %824 = vmatprep.subr.mxu0 0.0
    %825 = vmatpush1.msra.mxu0 0.0
    %826 = vmatprep.subr.mxu0 0.0
    %827 = vmatpush1.msra.mxu0 0.0
    %828 = vmatprep.subr.mxu0 0.0
    %829 = vmatpush1.msra.mxu0 0.0
    %830 = vmatprep.subr.mxu0 0.0
    %831 = vmatpush1.msra.mxu0 0.0
    %832 = vmatprep.subr.mxu0 0.0
    %833 = vmatpush1.msra.mxu0 0.0
    %834 = vmatprep.mubr.f32.mxu0 0.0
    %835 = vmatmul.mubr.f32.gmra.mrb[0].mxu0 %v530
    %v836 = vpop.f32.mrb[0].mxu0
    %v837 = vadd.f32 %v524, %v836
    %v838 = vpop.f32.mrb[0].mxu0
    %v839 = vadd.f32 %v526, %v838
    %840 = vdwg.mxu0
    %v841 = vld [vmem:[#allocation8] sm:$0xff]
    %v842 = vld [vmem:[#allocation8 + $0x8] sm:$0xff]
    %v843 = vld [vmem:[#allocation8 + $0x10] sm:$0xff]
    %v844 = vld [vmem:[#allocation8 + $0x18] sm:$0xff]
    %v845 = vld [vmem:[#allocation8 + $0x20] sm:$0xff]
    %v846 = vld [vmem:[#allocation8 + $0x28] sm:$0xff]
    %v847 = vld [vmem:[#allocation8 + $0x30] sm:$0xff]
    %v848 = vld [vmem:[#allocation8 + $0x38] sm:$0xff]
    %v849 = vld [vmem:[#allocation8 + $0x40] sm:$0xf]
    %v850 = vld [vmem:[#allocation8 + $0x48] sm:$0xf]
    %v851 = vld [vmem:[#allocation8 + $0x50] sm:$0xf]
    %v852 = vld [vmem:[#allocation8 + $0x58] sm:$0xf]
    %v853 = vld [vmem:[#allocation8 + $0x60] sm:$0xf]
    %v854 = vld [vmem:[#allocation8 + $0x68] sm:$0xf]
    %v855 = vld [vmem:[#allocation8 + $0x70] sm:$0xf]
    %v856 = vld [vmem:[#allocation8 + $0x78] sm:$0xf]
    %857 = vset.pattern.permute.xlu0 2
    %858 = vperm.xlu0 %857, %v194
    %v859 = vpop.permute.xlu0 %858
    %vm860 = vcmp.eq.s32.totalorder %v859, %v196
    %v861 = vsel %vm860, 1.0, 0.0
    %vm862 = vcmask 97280
    %v864 = vsel %vm862, %v861, 0
    %vm866 = vcmask 1043456
    %v868 = vsel %vm866, %v849, 0
    %v871 = vsel %vm866, %v850, 0
    %v874 = vsel %vm866, %v851, 0
    %v877 = vsel %vm866, %v852, 0
    %v880 = vsel %vm866, %v853, 0
    %v883 = vsel %vm866, %v854, 0
    %v886 = vsel %vm866, %v855, 0
    %v889 = vsel %vm866, %v856, 0
    %891 = vmatprep.subr.mxu0 %v842
    %892 = vmatpush1.msra.mxu0 %v841
    %893 = vmatprep.subr.mxu0 %v871
    %894 = vmatpush1.msra.mxu0 %v868
    %895 = vmatprep.subr.mxu0 0.0
    %896 = vmatpush1.msra.mxu0 0.0
    %897 = vmatprep.subr.mxu0 0.0
    %898 = vmatpush1.msra.mxu0 0.0
    %899 = vmatprep.subr.mxu0 0.0
    %900 = vmatpush1.msra.mxu0 0.0
    %901 = vmatprep.subr.mxu0 0.0
    %902 = vmatpush1.msra.mxu0 0.0
    %903 = vmatprep.subr.mxu0 0.0
    %904 = vmatpush1.msra.mxu0 0.0
    %905 = vmatprep.subr.mxu0 0.0
    %906 = vmatpush1.msra.mxu0 0.0
    %907 = vmatprep.subr.mxu0 0.0
    %908 = vmatpush1.msra.mxu0 0.0
    %909 = vmatprep.subr.mxu0 0.0
    %910 = vmatpush1.msra.mxu0 0.0
    %911 = vmatprep.subr.mxu0 0.0
    %912 = vmatpush1.msra.mxu0 0.0
    %913 = vmatprep.subr.mxu0 0.0
    %914 = vmatpush1.msra.mxu0 0.0
    %915 = vmatprep.subr.mxu0 0.0
    %916 = vmatpush1.msra.mxu0 0.0
    %917 = vmatprep.subr.mxu0 0.0
    %918 = vmatpush1.msra.mxu0 0.0
    %919 = vmatprep.subr.mxu0 0.0
    %920 = vmatpush1.msra.mxu0 0.0
    %921 = vmatprep.subr.mxu0 0.0
    %922 = vmatpush1.msra.mxu0 0.0
    %923 = vmatprep.subr.mxu0 0.0
    %924 = vmatpush1.msra.mxu0 0.0
    %925 = vmatprep.subr.mxu0 0.0
    %926 = vmatpush1.msra.mxu0 0.0
    %927 = vmatprep.subr.mxu0 0.0
    %928 = vmatpush1.msra.mxu0 0.0
    %929 = vmatprep.subr.mxu0 0.0
    %930 = vmatpush1.msra.mxu0 0.0
    %931 = vmatprep.subr.mxu0 0.0
    %932 = vmatpush1.msra.mxu0 0.0
    %933 = vmatprep.subr.mxu0 0.0
    %934 = vmatpush1.msra.mxu0 0.0
    %935 = vmatprep.subr.mxu0 0.0
    %936 = vmatpush1.msra.mxu0 0.0
    %937 = vmatprep.subr.mxu0 0.0
    %938 = vmatpush1.msra.mxu0 0.0
    %939 = vmatprep.subr.mxu0 0.0
    %940 = vmatpush1.msra.mxu0 0.0
    %941 = vmatprep.subr.mxu0 0.0
    %942 = vmatpush1.msra.mxu0 0.0
    %943 = vmatprep.subr.mxu0 0.0
    %944 = vmatpush1.msra.mxu0 0.0
    %945 = vmatprep.subr.mxu0 0.0
    %946 = vmatpush1.msra.mxu0 0.0
    %947 = vmatprep.subr.mxu0 0.0
    %948 = vmatpush1.msra.mxu0 0.0
    %949 = vmatprep.subr.mxu0 0.0
    %950 = vmatpush1.msra.mxu0 0.0
    %951 = vmatprep.subr.mxu0 0.0
    %952 = vmatpush1.msra.mxu0 0.0
    %953 = vmatprep.subr.mxu0 0.0
    %954 = vmatpush1.msra.mxu0 0.0
    %955 = vmatprep.mubr.f32.mxu0 0.0
    %956 = vmatmul.mubr.f32.gmra.mrb[0].mxu0 %v864
    %v957 = vpop.f32.mrb[0].mxu0
    %v958 = vadd.f32 0.0, %v957
    %v959 = vpop.f32.mrb[0].mxu0
    %v960 = vadd.f32 0.0, %v959
    %961 = vdwg.mxu0
    %962 = vmatprep.subr.mxu0 %v844
    %963 = vmatpush1.msra.mxu0 %v843
    %964 = vmatprep.subr.mxu0 %v877
    %965 = vmatpush1.msra.mxu0 %v874
    %966 = vmatprep.subr.mxu0 0.0
    %967 = vmatpush1.msra.mxu0 0.0
    %968 = vmatprep.subr.mxu0 0.0
    %969 = vmatpush1.msra.mxu0 0.0
    %970 = vmatprep.subr.mxu0 0.0
    %971 = vmatpush1.msra.mxu0 0.0
    %972 = vmatprep.subr.mxu0 0.0
    %973 = vmatpush1.msra.mxu0 0.0
    %974 = vmatprep.subr.mxu0 0.0
    %975 = vmatpush1.msra.mxu0 0.0
    %976 = vmatprep.subr.mxu0 0.0
    %977 = vmatpush1.msra.mxu0 0.0
    %978 = vmatprep.subr.mxu0 0.0
    %979 = vmatpush1.msra.mxu0 0.0
    %980 = vmatprep.subr.mxu0 0.0
    %981 = vmatpush1.msra.mxu0 0.0
    %982 = vmatprep.subr.mxu0 0.0
    %983 = vmatpush1.msra.mxu0 0.0
    %984 = vmatprep.subr.mxu0 0.0
    %985 = vmatpush1.msra.mxu0 0.0
    %986 = vmatprep.subr.mxu0 0.0
    %987 = vmatpush1.msra.mxu0 0.0
    %988 = vmatprep.subr.mxu0 0.0
    %989 = vmatpush1.msra.mxu0 0.0
    %990 = vmatprep.subr.mxu0 0.0
    %991 = vmatpush1.msra.mxu0 0.0
    %992 = vmatprep.subr.mxu0 0.0
    %993 = vmatpush1.msra.mxu0 0.0
    %994 = vmatprep.subr.mxu0 0.0
    %995 = vmatpush1.msra.mxu0 0.0
    %996 = vmatprep.subr.mxu0 0.0
    %997 = vmatpush1.msra.mxu0 0.0
    %998 = vmatprep.subr.mxu0 0.0
    %999 = vmatpush1.msra.mxu0 0.0
    %1000 = vmatprep.subr.mxu0 0.0
    %1001 = vmatpush1.msra.mxu0 0.0
    %1002 = vmatprep.subr.mxu0 0.0
    %1003 = vmatpush1.msra.mxu0 0.0
    %1004 = vmatprep.subr.mxu0 0.0
    %1005 = vmatpush1.msra.mxu0 0.0
    %1006 = vmatprep.subr.mxu0 0.0
    %1007 = vmatpush1.msra.mxu0 0.0
    %1008 = vmatprep.subr.mxu0 0.0
    %1009 = vmatpush1.msra.mxu0 0.0
    %1010 = vmatprep.subr.mxu0 0.0
    %1011 = vmatpush1.msra.mxu0 0.0
    %1012 = vmatprep.subr.mxu0 0.0
    %1013 = vmatpush1.msra.mxu0 0.0
    %1014 = vmatprep.subr.mxu0 0.0
    %1015 = vmatpush1.msra.mxu0 0.0
    %1016 = vmatprep.subr.mxu0 0.0
    %1017 = vmatpush1.msra.mxu0 0.0
    %1018 = vmatprep.subr.mxu0 0.0
    %1019 = vmatpush1.msra.mxu0 0.0
    %1020 = vmatprep.subr.mxu0 0.0
    %1021 = vmatpush1.msra.mxu0 0.0
    %1022 = vmatprep.subr.mxu0 0.0
    %1023 = vmatpush1.msra.mxu0 0.0
    %1024 = vmatprep.subr.mxu0 0.0
    %1025 = vmatpush1.msra.mxu0 0.0
    %1026 = vmatprep.mubr.f32.mxu0 0.0
    %1027 = vmatmul.mubr.f32.gmra.mrb[0].mxu0 %v864
    %v1028 = vpop.f32.mrb[0].mxu0
    %v1029 = vadd.f32 0.0, %v1028
    %v1030 = vpop.f32.mrb[0].mxu0
    %v1031 = vadd.f32 0.0, %v1030
    %1032 = vdwg.mxu0
    %1033 = vmatprep.subr.mxu0 %v846
    %1034 = vmatpush1.msra.mxu0 %v845
    %1035 = vmatprep.subr.mxu0 %v883
    %1036 = vmatpush1.msra.mxu0 %v880
    %1037 = vmatprep.subr.mxu0 0.0
    %1038 = vmatpush1.msra.mxu0 0.0
    %1039 = vmatprep.subr.mxu0 0.0
    %1040 = vmatpush1.msra.mxu0 0.0
    %1041 = vmatprep.subr.mxu0 0.0
    %1042 = vmatpush1.msra.mxu0 0.0
    %1043 = vmatprep.subr.mxu0 0.0
    %1044 = vmatpush1.msra.mxu0 0.0
    %1045 = vmatprep.subr.mxu0 0.0
    %1046 = vmatpush1.msra.mxu0 0.0
    %1047 = vmatprep.subr.mxu0 0.0
    %1048 = vmatpush1.msra.mxu0 0.0
    %1049 = vmatprep.subr.mxu0 0.0
    %1050 = vmatpush1.msra.mxu0 0.0
    %1051 = vmatprep.subr.mxu0 0.0
    %1052 = vmatpush1.msra.mxu0 0.0
    %1053 = vmatprep.subr.mxu0 0.0
    %1054 = vmatpush1.msra.mxu0 0.0
    %1055 = vmatprep.subr.mxu0 0.0
    %1056 = vmatpush1.msra.mxu0 0.0
    %1057 = vmatprep.subr.mxu0 0.0
    %1058 = vmatpush1.msra.mxu0 0.0
    %1059 = vmatprep.subr.mxu0 0.0
    %1060 = vmatpush1.msra.mxu0 0.0
    %1061 = vmatprep.subr.mxu0 0.0
    %1062 = vmatpush1.msra.mxu0 0.0
    %1063 = vmatprep.subr.mxu0 0.0
    %1064 = vmatpush1.msra.mxu0 0.0
    %1065 = vmatprep.subr.mxu0 0.0
    %1066 = vmatpush1.msra.mxu0 0.0
    %1067 = vmatprep.subr.mxu0 0.0
    %1068 = vmatpush1.msra.mxu0 0.0
    %1069 = vmatprep.subr.mxu0 0.0
    %1070 = vmatpush1.msra.mxu0 0.0
    %1071 = vmatprep.subr.mxu0 0.0
    %1072 = vmatpush1.msra.mxu0 0.0
    %1073 = vmatprep.subr.mxu0 0.0
    %1074 = vmatpush1.msra.mxu0 0.0
    %1075 = vmatprep.subr.mxu0 0.0
    %1076 = vmatpush1.msra.mxu0 0.0
    %1077 = vmatprep.subr.mxu0 0.0
    %1078 = vmatpush1.msra.mxu0 0.0
    %1079 = vmatprep.subr.mxu0 0.0
    %1080 = vmatpush1.msra.mxu0 0.0
    %1081 = vmatprep.subr.mxu0 0.0
    %1082 = vmatpush1.msra.mxu0 0.0
    %1083 = vmatprep.subr.mxu0 0.0
    %1084 = vmatpush1.msra.mxu0 0.0
    %1085 = vmatprep.subr.mxu0 0.0
    %1086 = vmatpush1.msra.mxu0 0.0
    %1087 = vmatprep.subr.mxu0 0.0
    %1088 = vmatpush1.msra.mxu0 0.0
    %1089 = vmatprep.subr.mxu0 0.0
    %1090 = vmatpush1.msra.mxu0 0.0
    %1091 = vmatprep.subr.mxu0 0.0
    %1092 = vmatpush1.msra.mxu0 0.0
    %1093 = vmatprep.subr.mxu0 0.0
    %1094 = vmatpush1.msra.mxu0 0.0
    %1095 = vmatprep.subr.mxu0 0.0
    %1096 = vmatpush1.msra.mxu0 0.0
    %1097 = vmatprep.mubr.f32.mxu0 0.0
    %1098 = vmatmul.mubr.f32.gmra.mrb[0].mxu0 %v864
    %v1099 = vpop.f32.mrb[0].mxu0
    %v1100 = vadd.f32 0.0, %v1099
    %v1101 = vpop.f32.mrb[0].mxu0
    %v1102 = vadd.f32 0.0, %v1101
    %1103 = vdwg.mxu0
    %1104 = vmatprep.subr.mxu0 %v848
    %1105 = vmatpush1.msra.mxu0 %v847
    %1106 = vmatprep.subr.mxu0 %v889
    %1107 = vmatpush1.msra.mxu0 %v886
    %1108 = vmatprep.subr.mxu0 0.0
    %1109 = vmatpush1.msra.mxu0 0.0
    %1110 = vmatprep.subr.mxu0 0.0
    %1111 = vmatpush1.msra.mxu0 0.0
    %1112 = vmatprep.subr.mxu0 0.0
    %1113 = vmatpush1.msra.mxu0 0.0
    %1114 = vmatprep.subr.mxu0 0.0
    %1115 = vmatpush1.msra.mxu0 0.0
    %1116 = vmatprep.subr.mxu0 0.0
    %1117 = vmatpush1.msra.mxu0 0.0
    %1118 = vmatprep.subr.mxu0 0.0
    %1119 = vmatpush1.msra.mxu0 0.0
    %1120 = vmatprep.subr.mxu0 0.0
    %1121 = vmatpush1.msra.mxu0 0.0
    %1122 = vmatprep.subr.mxu0 0.0
    %1123 = vmatpush1.msra.mxu0 0.0
    %1124 = vmatprep.subr.mxu0 0.0
    %1125 = vmatpush1.msra.mxu0 0.0
    %1126 = vmatprep.subr.mxu0 0.0
    %1127 = vmatpush1.msra.mxu0 0.0
    %1128 = vmatprep.subr.mxu0 0.0
    %1129 = vmatpush1.msra.mxu0 0.0
    %1130 = vmatprep.subr.mxu0 0.0
    %1131 = vmatpush1.msra.mxu0 0.0
    %1132 = vmatprep.subr.mxu0 0.0
    %1133 = vmatpush1.msra.mxu0 0.0
    %1134 = vmatprep.subr.mxu0 0.0
    %1135 = vmatpush1.msra.mxu0 0.0
    %1136 = vmatprep.subr.mxu0 0.0
    %1137 = vmatpush1.msra.mxu0 0.0
    %1138 = vmatprep.subr.mxu0 0.0
    %1139 = vmatpush1.msra.mxu0 0.0
    %1140 = vmatprep.subr.mxu0 0.0
    %1141 = vmatpush1.msra.mxu0 0.0
    %1142 = vmatprep.subr.mxu0 0.0
    %1143 = vmatpush1.msra.mxu0 0.0
    %1144 = vmatprep.subr.mxu0 0.0
    %1145 = vmatpush1.msra.mxu0 0.0
    %1146 = vmatprep.subr.mxu0 0.0
    %1147 = vmatpush1.msra.mxu0 0.0
    %1148 = vmatprep.subr.mxu0 0.0
    %1149 = vmatpush1.msra.mxu0 0.0
    %1150 = vmatprep.subr.mxu0 0.0
    %1151 = vmatpush1.msra.mxu0 0.0
    %1152 = vmatprep.subr.mxu0 0.0
    %1153 = vmatpush1.msra.mxu0 0.0
    %1154 = vmatprep.subr.mxu0 0.0
    %1155 = vmatpush1.msra.mxu0 0.0
    %1156 = vmatprep.subr.mxu0 0.0
    %1157 = vmatpush1.msra.mxu0 0.0
    %1158 = vmatprep.subr.mxu0 0.0
    %1159 = vmatpush1.msra.mxu0 0.0
    %1160 = vmatprep.subr.mxu0 0.0
    %1161 = vmatpush1.msra.mxu0 0.0
    %1162 = vmatprep.subr.mxu0 0.0
    %1163 = vmatpush1.msra.mxu0 0.0
    %1164 = vmatprep.subr.mxu0 0.0
    %1165 = vmatpush1.msra.mxu0 0.0
    %1166 = vmatprep.subr.mxu0 0.0
    %1167 = vmatpush1.msra.mxu0 0.0
    %1168 = vmatprep.mubr.f32.mxu0 0.0
    %1169 = vmatmul.mubr.f32.gmra.mrb[0].mxu0 %v864
    %v1170 = vpop.f32.mrb[0].mxu0
    %v1171 = vadd.f32 0.0, %v1170
    %v1172 = vpop.f32.mrb[0].mxu0
    %v1173 = vadd.f32 0.0, %v1172
    %1174 = vdwg.mxu0
    %v1175 = vadd.f32 %v624, %v958
    %v1176 = vadd.f32 %v626, %v960
    %v1177 = vadd.f32 %v695, %v1029
    %v1178 = vadd.f32 %v697, %v1031
    %v1179 = vadd.f32 %v766, %v1100
    %v1180 = vadd.f32 %v768, %v1102
    %v1181 = vadd.f32 %v837, %v1171
    %v1182 = vadd.f32 %v839, %v1173
    %v1183 = vld [vmem:[#allocation10] sm:$0xff]
    %v1184 = vld [vmem:[#allocation10 + $0x8] sm:$0xff]
    %v1185 = vld [vmem:[#allocation10 + $0x10] sm:$0xff]
    %v1186 = vld [vmem:[#allocation10 + $0x18] sm:$0xff]
    %v1187 = vld [vmem:[#allocation10 + $0x20] sm:$0xff]
    %v1188 = vld [vmem:[#allocation10 + $0x28] sm:$0xff]
    %v1189 = vld [vmem:[#allocation10 + $0x30] sm:$0xff]
    %v1190 = vld [vmem:[#allocation10 + $0x38] sm:$0xff]
    %v1191 = vld [vmem:[#allocation10 + $0x40] sm:$0xf]
    %v1192 = vld [vmem:[#allocation10 + $0x48] sm:$0xf]
    %v1193 = vld [vmem:[#allocation10 + $0x50] sm:$0xf]
    %v1194 = vld [vmem:[#allocation10 + $0x58] sm:$0xf]
    %v1195 = vld [vmem:[#allocation10 + $0x60] sm:$0xf]
    %v1196 = vld [vmem:[#allocation10 + $0x68] sm:$0xf]
    %v1197 = vld [vmem:[#allocation10 + $0x70] sm:$0xf]
    %v1198 = vld [vmem:[#allocation10 + $0x78] sm:$0xf]
    %1199 = vset.pattern.permute.xlu0 3
    %1200 = vperm.xlu0 %1199, %v194
    %v1201 = vpop.permute.xlu0 %1200
    %vm1202 = vcmp.eq.s32.totalorder %v1201, %v196
    %v1203 = vsel %vm1202, 1.0, 0.0
    %v1205 = vsel %vm862, %v1203, 0
    %v1208 = vsel %vm866, %v1191, 0
    %v1211 = vsel %vm866, %v1192, 0
    %v1214 = vsel %vm866, %v1193, 0
    %v1217 = vsel %vm866, %v1194, 0
    %v1220 = vsel %vm866, %v1195, 0
    %v1223 = vsel %vm866, %v1196, 0
    %v1226 = vsel %vm866, %v1197, 0
    %v1229 = vsel %vm866, %v1198, 0
    %1231 = vmatprep.subr.mxu0 %v1184
    %1232 = vmatpush1.msra.mxu0 %v1183
    %1233 = vmatprep.subr.mxu0 %v1211
    %1234 = vmatpush1.msra.mxu0 %v1208
    %1235 = vmatprep.subr.mxu0 0.0
    %1236 = vmatpush1.msra.mxu0 0.0
    %1237 = vmatprep.subr.mxu0 0.0
    %1238 = vmatpush1.msra.mxu0 0.0
    %1239 = vmatprep.subr.mxu0 0.0
    %1240 = vmatpush1.msra.mxu0 0.0
    %1241 = vmatprep.subr.mxu0 0.0
    %1242 = vmatpush1.msra.mxu0 0.0
    %1243 = vmatprep.subr.mxu0 0.0
    %1244 = vmatpush1.msra.mxu0 0.0
    %1245 = vmatprep.subr.mxu0 0.0
    %1246 = vmatpush1.msra.mxu0 0.0
    %1247 = vmatprep.subr.mxu0 0.0
    %1248 = vmatpush1.msra.mxu0 0.0
    %1249 = vmatprep.subr.mxu0 0.0
    %1250 = vmatpush1.msra.mxu0 0.0
    %1251 = vmatprep.subr.mxu0 0.0
    %1252 = vmatpush1.msra.mxu0 0.0
    %1253 = vmatprep.subr.mxu0 0.0
    %1254 = vmatpush1.msra.mxu0 0.0
    %1255 = vmatprep.subr.mxu0 0.0
    %1256 = vmatpush1.msra.mxu0 0.0
    %1257 = vmatprep.subr.mxu0 0.0
    %1258 = vmatpush1.msra.mxu0 0.0
    %1259 = vmatprep.subr.mxu0 0.0
    %1260 = vmatpush1.msra.mxu0 0.0
    %1261 = vmatprep.subr.mxu0 0.0
    %1262 = vmatpush1.msra.mxu0 0.0
    %1263 = vmatprep.subr.mxu0 0.0
    %1264 = vmatpush1.msra.mxu0 0.0
    %1265 = vmatprep.subr.mxu0 0.0
    %1266 = vmatpush1.msra.mxu0 0.0
    %1267 = vmatprep.subr.mxu0 0.0
    %1268 = vmatpush1.msra.mxu0 0.0
    %1269 = vmatprep.subr.mxu0 0.0
    %1270 = vmatpush1.msra.mxu0 0.0
    %1271 = vmatprep.subr.mxu0 0.0
    %1272 = vmatpush1.msra.mxu0 0.0
    %1273 = vmatprep.subr.mxu0 0.0
    %1274 = vmatpush1.msra.mxu0 0.0
    %1275 = vmatprep.subr.mxu0 0.0
    %1276 = vmatpush1.msra.mxu0 0.0
    %1277 = vmatprep.subr.mxu0 0.0
    %1278 = vmatpush1.msra.mxu0 0.0
    %1279 = vmatprep.subr.mxu0 0.0
    %1280 = vmatpush1.msra.mxu0 0.0
    %1281 = vmatprep.subr.mxu0 0.0
    %1282 = vmatpush1.msra.mxu0 0.0
    %1283 = vmatprep.subr.mxu0 0.0
    %1284 = vmatpush1.msra.mxu0 0.0
    %1285 = vmatprep.subr.mxu0 0.0
    %1286 = vmatpush1.msra.mxu0 0.0
    %1287 = vmatprep.subr.mxu0 0.0
    %1288 = vmatpush1.msra.mxu0 0.0
    %1289 = vmatprep.subr.mxu0 0.0
    %1290 = vmatpush1.msra.mxu0 0.0
    %1291 = vmatprep.subr.mxu0 0.0
    %1292 = vmatpush1.msra.mxu0 0.0
    %1293 = vmatprep.subr.mxu0 0.0
    %1294 = vmatpush1.msra.mxu0 0.0
    %1295 = vmatprep.mubr.f32.mxu0 0.0
    %1296 = vmatmul.mubr.f32.gmra.mrb[0].mxu0 %v1205
    %v1297 = vpop.f32.mrb[0].mxu0
    %v1298 = vadd.f32 0.0, %v1297
    %v1299 = vpop.f32.mrb[0].mxu0
    %v1300 = vadd.f32 0.0, %v1299
    %1301 = vdwg.mxu0
    %1302 = vmatprep.subr.mxu0 %v1186
    %1303 = vmatpush1.msra.mxu0 %v1185
    %1304 = vmatprep.subr.mxu0 %v1217
    %1305 = vmatpush1.msra.mxu0 %v1214
    %1306 = vmatprep.subr.mxu0 0.0
    %1307 = vmatpush1.msra.mxu0 0.0
    %1308 = vmatprep.subr.mxu0 0.0
    %1309 = vmatpush1.msra.mxu0 0.0
    %1310 = vmatprep.subr.mxu0 0.0
    %1311 = vmatpush1.msra.mxu0 0.0
    %1312 = vmatprep.subr.mxu0 0.0
    %1313 = vmatpush1.msra.mxu0 0.0
    %1314 = vmatprep.subr.mxu0 0.0
    %1315 = vmatpush1.msra.mxu0 0.0
    %1316 = vmatprep.subr.mxu0 0.0
    %1317 = vmatpush1.msra.mxu0 0.0
    %1318 = vmatprep.subr.mxu0 0.0
    %1319 = vmatpush1.msra.mxu0 0.0
    %1320 = vmatprep.subr.mxu0 0.0
    %1321 = vmatpush1.msra.mxu0 0.0
    %1322 = vmatprep.subr.mxu0 0.0
    %1323 = vmatpush1.msra.mxu0 0.0
    %1324 = vmatprep.subr.mxu0 0.0
    %1325 = vmatpush1.msra.mxu0 0.0
    %1326 = vmatprep.subr.mxu0 0.0
    %1327 = vmatpush1.msra.mxu0 0.0
    %1328 = vmatprep.subr.mxu0 0.0
    %1329 = vmatpush1.msra.mxu0 0.0
    %1330 = vmatprep.subr.mxu0 0.0
    %1331 = vmatpush1.msra.mxu0 0.0
    %1332 = vmatprep.subr.mxu0 0.0
    %1333 = vmatpush1.msra.mxu0 0.0
    %1334 = vmatprep.subr.mxu0 0.0
    %1335 = vmatpush1.msra.mxu0 0.0
    %1336 = vmatprep.subr.mxu0 0.0
    %1337 = vmatpush1.msra.mxu0 0.0
    %1338 = vmatprep.subr.mxu0 0.0
    %1339 = vmatpush1.msra.mxu0 0.0
    %1340 = vmatprep.subr.mxu0 0.0
    %1341 = vmatpush1.msra.mxu0 0.0
    %1342 = vmatprep.subr.mxu0 0.0
    %1343 = vmatpush1.msra.mxu0 0.0
    %1344 = vmatprep.subr.mxu0 0.0
    %1345 = vmatpush1.msra.mxu0 0.0
    %1346 = vmatprep.subr.mxu0 0.0
    %1347 = vmatpush1.msra.mxu0 0.0
    %1348 = vmatprep.subr.mxu0 0.0
    %1349 = vmatpush1.msra.mxu0 0.0
    %1350 = vmatprep.subr.mxu0 0.0
    %1351 = vmatpush1.msra.mxu0 0.0
    %1352 = vmatprep.subr.mxu0 0.0
    %1353 = vmatpush1.msra.mxu0 0.0
    %1354 = vmatprep.subr.mxu0 0.0
    %1355 = vmatpush1.msra.mxu0 0.0
    %1356 = vmatprep.subr.mxu0 0.0
    %1357 = vmatpush1.msra.mxu0 0.0
    %1358 = vmatprep.subr.mxu0 0.0
    %1359 = vmatpush1.msra.mxu0 0.0
    %1360 = vmatprep.subr.mxu0 0.0
    %1361 = vmatpush1.msra.mxu0 0.0
    %1362 = vmatprep.subr.mxu0 0.0
    %1363 = vmatpush1.msra.mxu0 0.0
    %1364 = vmatprep.subr.mxu0 0.0
    %1365 = vmatpush1.msra.mxu0 0.0
    %1366 = vmatprep.mubr.f32.mxu0 0.0
    %1367 = vmatmul.mubr.f32.gmra.mrb[0].mxu0 %v1205
    %v1368 = vpop.f32.mrb[0].mxu0
    %v1369 = vadd.f32 0.0, %v1368
    %v1370 = vpop.f32.mrb[0].mxu0
    %v1371 = vadd.f32 0.0, %v1370
    %1372 = vdwg.mxu0
    %1373 = vmatprep.subr.mxu0 %v1188
    %1374 = vmatpush1.msra.mxu0 %v1187
    %1375 = vmatprep.subr.mxu0 %v1223
    %1376 = vmatpush1.msra.mxu0 %v1220
    %1377 = vmatprep.subr.mxu0 0.0
    %1378 = vmatpush1.msra.mxu0 0.0
    %1379 = vmatprep.subr.mxu0 0.0
    %1380 = vmatpush1.msra.mxu0 0.0
    %1381 = vmatprep.subr.mxu0 0.0
    %1382 = vmatpush1.msra.mxu0 0.0
    %1383 = vmatprep.subr.mxu0 0.0
    %1384 = vmatpush1.msra.mxu0 0.0
    %1385 = vmatprep.subr.mxu0 0.0
    %1386 = vmatpush1.msra.mxu0 0.0
    %1387 = vmatprep.subr.mxu0 0.0
    %1388 = vmatpush1.msra.mxu0 0.0
    %1389 = vmatprep.subr.mxu0 0.0
    %1390 = vmatpush1.msra.mxu0 0.0
    %1391 = vmatprep.subr.mxu0 0.0
    %1392 = vmatpush1.msra.mxu0 0.0
    %1393 = vmatprep.subr.mxu0 0.0
    %1394 = vmatpush1.msra.mxu0 0.0
    %1395 = vmatprep.subr.mxu0 0.0
    %1396 = vmatpush1.msra.mxu0 0.0
    %1397 = vmatprep.subr.mxu0 0.0
    %1398 = vmatpush1.msra.mxu0 0.0
    %1399 = vmatprep.subr.mxu0 0.0
    %1400 = vmatpush1.msra.mxu0 0.0
    %1401 = vmatprep.subr.mxu0 0.0
    %1402 = vmatpush1.msra.mxu0 0.0
    %1403 = vmatprep.subr.mxu0 0.0
    %1404 = vmatpush1.msra.mxu0 0.0
    %1405 = vmatprep.subr.mxu0 0.0
    %1406 = vmatpush1.msra.mxu0 0.0
    %1407 = vmatprep.subr.mxu0 0.0
    %1408 = vmatpush1.msra.mxu0 0.0
    %1409 = vmatprep.subr.mxu0 0.0
    %1410 = vmatpush1.msra.mxu0 0.0
    %1411 = vmatprep.subr.mxu0 0.0
    %1412 = vmatpush1.msra.mxu0 0.0
    %1413 = vmatprep.subr.mxu0 0.0
    %1414 = vmatpush1.msra.mxu0 0.0
    %1415 = vmatprep.subr.mxu0 0.0
    %1416 = vmatpush1.msra.mxu0 0.0
    %1417 = vmatprep.subr.mxu0 0.0
    %1418 = vmatpush1.msra.mxu0 0.0
    %1419 = vmatprep.subr.mxu0 0.0
    %1420 = vmatpush1.msra.mxu0 0.0
    %1421 = vmatprep.subr.mxu0 0.0
    %1422 = vmatpush1.msra.mxu0 0.0
    %1423 = vmatprep.subr.mxu0 0.0
    %1424 = vmatpush1.msra.mxu0 0.0
    %1425 = vmatprep.subr.mxu0 0.0
    %1426 = vmatpush1.msra.mxu0 0.0
    %1427 = vmatprep.subr.mxu0 0.0
    %1428 = vmatpush1.msra.mxu0 0.0
    %1429 = vmatprep.subr.mxu0 0.0
    %1430 = vmatpush1.msra.mxu0 0.0
    %1431 = vmatprep.subr.mxu0 0.0
    %1432 = vmatpush1.msra.mxu0 0.0
    %1433 = vmatprep.subr.mxu0 0.0
    %1434 = vmatpush1.msra.mxu0 0.0
    %1435 = vmatprep.subr.mxu0 0.0
    %1436 = vmatpush1.msra.mxu0 0.0
    %1437 = vmatprep.mubr.f32.mxu0 0.0
    %1438 = vmatmul.mubr.f32.gmra.mrb[0].mxu0 %v1205
    %v1439 = vpop.f32.mrb[0].mxu0
    %v1440 = vadd.f32 0.0, %v1439
    %v1441 = vpop.f32.mrb[0].mxu0
    %v1442 = vadd.f32 0.0, %v1441
    %1443 = vdwg.mxu0
    %1444 = vmatprep.subr.mxu0 %v1190
    %1445 = vmatpush1.msra.mxu0 %v1189
    %1446 = vmatprep.subr.mxu0 %v1229
    %1447 = vmatpush1.msra.mxu0 %v1226
    %1448 = vmatprep.subr.mxu0 0.0
    %1449 = vmatpush1.msra.mxu0 0.0
    %1450 = vmatprep.subr.mxu0 0.0
    %1451 = vmatpush1.msra.mxu0 0.0
    %1452 = vmatprep.subr.mxu0 0.0
    %1453 = vmatpush1.msra.mxu0 0.0
    %1454 = vmatprep.subr.mxu0 0.0
    %1455 = vmatpush1.msra.mxu0 0.0
    %1456 = vmatprep.subr.mxu0 0.0
    %1457 = vmatpush1.msra.mxu0 0.0
    %1458 = vmatprep.subr.mxu0 0.0
    %1459 = vmatpush1.msra.mxu0 0.0
    %1460 = vmatprep.subr.mxu0 0.0
    %1461 = vmatpush1.msra.mxu0 0.0
    %1462 = vmatprep.subr.mxu0 0.0
    %1463 = vmatpush1.msra.mxu0 0.0
    %1464 = vmatprep.subr.mxu0 0.0
    %1465 = vmatpush1.msra.mxu0 0.0
    %1466 = vmatprep.subr.mxu0 0.0
    %1467 = vmatpush1.msra.mxu0 0.0
    %1468 = vmatprep.subr.mxu0 0.0
    %1469 = vmatpush1.msra.mxu0 0.0
    %1470 = vmatprep.subr.mxu0 0.0
    %1471 = vmatpush1.msra.mxu0 0.0
    %1472 = vmatprep.subr.mxu0 0.0
    %1473 = vmatpush1.msra.mxu0 0.0
    %1474 = vmatprep.subr.mxu0 0.0
    %1475 = vmatpush1.msra.mxu0 0.0
    %1476 = vmatprep.subr.mxu0 0.0
    %1477 = vmatpush1.msra.mxu0 0.0
    %1478 = vmatprep.subr.mxu0 0.0
    %1479 = vmatpush1.msra.mxu0 0.0
    %1480 = vmatprep.subr.mxu0 0.0
    %1481 = vmatpush1.msra.mxu0 0.0
    %1482 = vmatprep.subr.mxu0 0.0
    %1483 = vmatpush1.msra.mxu0 0.0
    %1484 = vmatprep.subr.mxu0 0.0
    %1485 = vmatpush1.msra.mxu0 0.0
    %1486 = vmatprep.subr.mxu0 0.0
    %1487 = vmatpush1.msra.mxu0 0.0
    %1488 = vmatprep.subr.mxu0 0.0
    %1489 = vmatpush1.msra.mxu0 0.0
    %1490 = vmatprep.subr.mxu0 0.0
    %1491 = vmatpush1.msra.mxu0 0.0
    %1492 = vmatprep.subr.mxu0 0.0
    %1493 = vmatpush1.msra.mxu0 0.0
    %1494 = vmatprep.subr.mxu0 0.0
    %1495 = vmatpush1.msra.mxu0 0.0
    %1496 = vmatprep.subr.mxu0 0.0
    %1497 = vmatpush1.msra.mxu0 0.0
    %1498 = vmatprep.subr.mxu0 0.0
    %1499 = vmatpush1.msra.mxu0 0.0
    %1500 = vmatprep.subr.mxu0 0.0
    %1501 = vmatpush1.msra.mxu0 0.0
    %1502 = vmatprep.subr.mxu0 0.0
    %1503 = vmatpush1.msra.mxu0 0.0
    %1504 = vmatprep.subr.mxu0 0.0
    %1505 = vmatpush1.msra.mxu0 0.0
    %1506 = vmatprep.subr.mxu0 0.0
    %1507 = vmatpush1.msra.mxu0 0.0
    %1508 = vmatprep.mubr.f32.mxu0 0.0
    %1509 = vmatmul.mubr.f32.gmra.mrb[0].mxu0 %v1205
    %v1510 = vpop.f32.mrb[0].mxu0
    %v1511 = vadd.f32 0.0, %v1510
    %v1512 = vpop.f32.mrb[0].mxu0
    %v1513 = vadd.f32 0.0, %v1512
    %1514 = vdwg.mxu0
    %v1515 = vadd.f32 %v1175, %v1298
    %v1516 = vadd.f32 %v1176, %v1300
    %v1517 = vadd.f32 %v1177, %v1369
    %v1518 = vadd.f32 %v1178, %v1371
    %v1519 = vadd.f32 %v1179, %v1440
    %v1520 = vadd.f32 %v1180, %v1442
    %v1521 = vadd.f32 %v1181, %v1511
    %v1522 = vadd.f32 %v1182, %v1513
    %v1523 = vld [vmem:[#allocation11] sm:$0x3f]
    %v1524 = vld [vmem:[#allocation11 + $0x8] sm:$0x3f]
    %v1525 = vld [vmem:[#allocation11 + $0x10] sm:$0x3f]
    %v1526 = vld [vmem:[#allocation11 + $0x18] sm:$0x3f]
    %v1527 = vld [vmem:[#allocation11 + $0x20] sm:$0x3f]
    %v1528 = vld [vmem:[#allocation11 + $0x28] sm:$0x3f]
    %v1529 = vld [vmem:[#allocation11 + $0x30] sm:$0x3f]
    %v1530 = vld [vmem:[#allocation11 + $0x38] sm:$0x3f]
    %1532 = vrot.lane.b32.xlu0 %v177, 124
    %v1533 = vpop.permute.xlu0 %1532
    %vm1534 = vcmask 48128
    %v1535 = vsel %vm1534, %v1533, 0
    %vm1537 = vcmask 1045504
    %v1539 = vsel %vm1537, %v1523, 0
    %v1542 = vsel %vm1537, %v1524, 0
    %v1545 = vsel %vm1537, %v1525, 0
    %v1548 = vsel %vm1537, %v1526, 0
    %v1551 = vsel %vm1537, %v1527, 0
    %v1554 = vsel %vm1537, %v1528, 0
    %v1557 = vsel %vm1537, %v1529, 0
    %v1560 = vsel %vm1537, %v1530, 0
    %1562 = vmatprep.subr.mxu0 %v1542
    %1563 = vmatpush1.msra.mxu0 %v1539
    %1564 = vmatprep.subr.mxu0 0.0
    %1565 = vmatpush1.msra.mxu0 0.0
    %1566 = vmatprep.subr.mxu0 0.0
    %1567 = vmatpush1.msra.mxu0 0.0
    %1568 = vmatprep.subr.mxu0 0.0
    %1569 = vmatpush1.msra.mxu0 0.0
    %1570 = vmatprep.subr.mxu0 0.0
    %1571 = vmatpush1.msra.mxu0 0.0
    %1572 = vmatprep.subr.mxu0 0.0
    %1573 = vmatpush1.msra.mxu0 0.0
    %1574 = vmatprep.subr.mxu0 0.0
    %1575 = vmatpush1.msra.mxu0 0.0
    %1576 = vmatprep.subr.mxu0 0.0
    %1577 = vmatpush1.msra.mxu0 0.0
    %1578 = vmatprep.subr.mxu0 0.0
    %1579 = vmatpush1.msra.mxu0 0.0
    %1580 = vmatprep.subr.mxu0 0.0
    %1581 = vmatpush1.msra.mxu0 0.0
    %1582 = vmatprep.subr.mxu0 0.0
    %1583 = vmatpush1.msra.mxu0 0.0
    %1584 = vmatprep.subr.mxu0 0.0
    %1585 = vmatpush1.msra.mxu0 0.0
    %1586 = vmatprep.subr.mxu0 0.0
    %1587 = vmatpush1.msra.mxu0 0.0
    %1588 = vmatprep.subr.mxu0 0.0
    %1589 = vmatpush1.msra.mxu0 0.0
    %1590 = vmatprep.subr.mxu0 0.0
    %1591 = vmatpush1.msra.mxu0 0.0
    %1592 = vmatprep.subr.mxu0 0.0
    %1593 = vmatpush1.msra.mxu0 0.0
    %1594 = vmatprep.subr.mxu0 0.0
    %1595 = vmatpush1.msra.mxu0 0.0
    %1596 = vmatprep.subr.mxu0 0.0
    %1597 = vmatpush1.msra.mxu0 0.0
    %1598 = vmatprep.subr.mxu0 0.0
    %1599 = vmatpush1.msra.mxu0 0.0
    %1600 = vmatprep.subr.mxu0 0.0
    %1601 = vmatpush1.msra.mxu0 0.0
    %1602 = vmatprep.subr.mxu0 0.0
    %1603 = vmatpush1.msra.mxu0 0.0
    %1604 = vmatprep.subr.mxu0 0.0
    %1605 = vmatpush1.msra.mxu0 0.0
    %1606 = vmatprep.subr.mxu0 0.0
    %1607 = vmatpush1.msra.mxu0 0.0
    %1608 = vmatprep.subr.mxu0 0.0
    %1609 = vmatpush1.msra.mxu0 0.0
    %1610 = vmatprep.subr.mxu0 0.0
    %1611 = vmatpush1.msra.mxu0 0.0
    %1612 = vmatprep.subr.mxu0 0.0
    %1613 = vmatpush1.msra.mxu0 0.0
    %1614 = vmatprep.subr.mxu0 0.0
    %1615 = vmatpush1.msra.mxu0 0.0
    %1616 = vmatprep.subr.mxu0 0.0
    %1617 = vmatpush1.msra.mxu0 0.0
    %1618 = vmatprep.subr.mxu0 0.0
    %1619 = vmatpush1.msra.mxu0 0.0
    %1620 = vmatprep.subr.mxu0 0.0
    %1621 = vmatpush1.msra.mxu0 0.0
    %1622 = vmatprep.subr.mxu0 0.0
    %1623 = vmatpush1.msra.mxu0 0.0
    %1624 = vmatprep.subr.mxu0 0.0
    %1625 = vmatpush1.msra.mxu0 0.0
    %1626 = vmatprep.mubr.f32.mxu0 0.0
    %1627 = vmatmul.mubr.f32.gmra.mrb[0].mxu0 %v1535
    %v1628 = vpop.f32.mrb[0].mxu0
    %v1629 = vadd.f32 0.0, %v1628
    %v1630 = vpop.f32.mrb[0].mxu0
    %v1631 = vadd.f32 0.0, %v1630
    %1632 = vdwg.mxu0
    %1633 = vmatprep.subr.mxu0 %v1548
    %1634 = vmatpush1.msra.mxu0 %v1545
    %1635 = vmatprep.subr.mxu0 0.0
    %1636 = vmatpush1.msra.mxu0 0.0
    %1637 = vmatprep.subr.mxu0 0.0
    %1638 = vmatpush1.msra.mxu0 0.0
    %1639 = vmatprep.subr.mxu0 0.0
    %1640 = vmatpush1.msra.mxu0 0.0
    %1641 = vmatprep.subr.mxu0 0.0
    %1642 = vmatpush1.msra.mxu0 0.0
    %1643 = vmatprep.subr.mxu0 0.0
    %1644 = vmatpush1.msra.mxu0 0.0
    %1645 = vmatprep.subr.mxu0 0.0
    %1646 = vmatpush1.msra.mxu0 0.0
    %1647 = vmatprep.subr.mxu0 0.0
    %1648 = vmatpush1.msra.mxu0 0.0
    %1649 = vmatprep.subr.mxu0 0.0
    %1650 = vmatpush1.msra.mxu0 0.0
    %1651 = vmatprep.subr.mxu0 0.0
    %1652 = vmatpush1.msra.mxu0 0.0
    %1653 = vmatprep.subr.mxu0 0.0
    %1654 = vmatpush1.msra.mxu0 0.0
    %1655 = vmatprep.subr.mxu0 0.0
    %1656 = vmatpush1.msra.mxu0 0.0
    %1657 = vmatprep.subr.mxu0 0.0
    %1658 = vmatpush1.msra.mxu0 0.0
    %1659 = vmatprep.subr.mxu0 0.0
    %1660 = vmatpush1.msra.mxu0 0.0
    %1661 = vmatprep.subr.mxu0 0.0
    %1662 = vmatpush1.msra.mxu0 0.0
    %1663 = vmatprep.subr.mxu0 0.0
    %1664 = vmatpush1.msra.mxu0 0.0
    %1665 = vmatprep.subr.mxu0 0.0
    %1666 = vmatpush1.msra.mxu0 0.0
    %1667 = vmatprep.subr.mxu0 0.0
    %1668 = vmatpush1.msra.mxu0 0.0
    %1669 = vmatprep.subr.mxu0 0.0
    %1670 = vmatpush1.msra.mxu0 0.0
    %1671 = vmatprep.subr.mxu0 0.0
    %1672 = vmatpush1.msra.mxu0 0.0
    %1673 = vmatprep.subr.mxu0 0.0
    %1674 = vmatpush1.msra.mxu0 0.0
    %1675 = vmatprep.subr.mxu0 0.0
    %1676 = vmatpush1.msra.mxu0 0.0
    %1677 = vmatprep.subr.mxu0 0.0
    %1678 = vmatpush1.msra.mxu0 0.0
    %1679 = vmatprep.subr.mxu0 0.0
    %1680 = vmatpush1.msra.mxu0 0.0
    %1681 = vmatprep.subr.mxu0 0.0
    %1682 = vmatpush1.msra.mxu0 0.0
    %1683 = vmatprep.subr.mxu0 0.0
    %1684 = vmatpush1.msra.mxu0 0.0
    %1685 = vmatprep.subr.mxu0 0.0
    %1686 = vmatpush1.msra.mxu0 0.0
    %1687 = vmatprep.subr.mxu0 0.0
    %1688 = vmatpush1.msra.mxu0 0.0
    %1689 = vmatprep.subr.mxu0 0.0
    %1690 = vmatpush1.msra.mxu0 0.0
    %1691 = vmatprep.subr.mxu0 0.0
    %1692 = vmatpush1.msra.mxu0 0.0
    %1693 = vmatprep.subr.mxu0 0.0
    %1694 = vmatpush1.msra.mxu0 0.0
    %1695 = vmatprep.subr.mxu0 0.0
    %1696 = vmatpush1.msra.mxu0 0.0
    %1697 = vmatprep.mubr.f32.mxu0 0.0
    %1698 = vmatmul.mubr.f32.gmra.mrb[0].mxu0 %v1535
    %v1699 = vpop.f32.mrb[0].mxu0
    %v1700 = vadd.f32 0.0, %v1699
    %v1701 = vpop.f32.mrb[0].mxu0
    %v1702 = vadd.f32 0.0, %v1701
    %1703 = vdwg.mxu0
    %1704 = vmatprep.subr.mxu0 %v1554
    %1705 = vmatpush1.msra.mxu0 %v1551
    %1706 = vmatprep.subr.mxu0 0.0
    %1707 = vmatpush1.msra.mxu0 0.0
    %1708 = vmatprep.subr.mxu0 0.0
    %1709 = vmatpush1.msra.mxu0 0.0
    %1710 = vmatprep.subr.mxu0 0.0
    %1711 = vmatpush1.msra.mxu0 0.0
    %1712 = vmatprep.subr.mxu0 0.0
    %1713 = vmatpush1.msra.mxu0 0.0
    %1714 = vmatprep.subr.mxu0 0.0
    %1715 = vmatpush1.msra.mxu0 0.0
    %1716 = vmatprep.subr.mxu0 0.0
    %1717 = vmatpush1.msra.mxu0 0.0
    %1718 = vmatprep.subr.mxu0 0.0
    %1719 = vmatpush1.msra.mxu0 0.0
    %1720 = vmatprep.subr.mxu0 0.0
    %1721 = vmatpush1.msra.mxu0 0.0
    %1722 = vmatprep.subr.mxu0 0.0
    %1723 = vmatpush1.msra.mxu0 0.0
    %1724 = vmatprep.subr.mxu0 0.0
    %1725 = vmatpush1.msra.mxu0 0.0
    %1726 = vmatprep.subr.mxu0 0.0
    %1727 = vmatpush1.msra.mxu0 0.0
    %1728 = vmatprep.subr.mxu0 0.0
    %1729 = vmatpush1.msra.mxu0 0.0
    %1730 = vmatprep.subr.mxu0 0.0
    %1731 = vmatpush1.msra.mxu0 0.0
    %1732 = vmatprep.subr.mxu0 0.0
    %1733 = vmatpush1.msra.mxu0 0.0
    %1734 = vmatprep.subr.mxu0 0.0
    %1735 = vmatpush1.msra.mxu0 0.0
    %1736 = vmatprep.subr.mxu0 0.0
    %1737 = vmatpush1.msra.mxu0 0.0
    %1738 = vmatprep.subr.mxu0 0.0
    %1739 = vmatpush1.msra.mxu0 0.0
    %1740 = vmatprep.subr.mxu0 0.0
    %1741 = vmatpush1.msra.mxu0 0.0
    %1742 = vmatprep.subr.mxu0 0.0
    %1743 = vmatpush1.msra.mxu0 0.0
    %1744 = vmatprep.subr.mxu0 0.0
    %1745 = vmatpush1.msra.mxu0 0.0
    %1746 = vmatprep.subr.mxu0 0.0
    %1747 = vmatpush1.msra.mxu0 0.0
    %1748 = vmatprep.subr.mxu0 0.0
    %1749 = vmatpush1.msra.mxu0 0.0
    %1750 = vmatprep.subr.mxu0 0.0
    %1751 = vmatpush1.msra.mxu0 0.0
    %1752 = vmatprep.subr.mxu0 0.0
    %1753 = vmatpush1.msra.mxu0 0.0
    %1754 = vmatprep.subr.mxu0 0.0
    %1755 = vmatpush1.msra.mxu0 0.0
    %1756 = vmatprep.subr.mxu0 0.0
    %1757 = vmatpush1.msra.mxu0 0.0
    %1758 = vmatprep.subr.mxu0 0.0
    %1759 = vmatpush1.msra.mxu0 0.0
    %1760 = vmatprep.subr.mxu0 0.0
    %1761 = vmatpush1.msra.mxu0 0.0
    %1762 = vmatprep.subr.mxu0 0.0
    %1763 = vmatpush1.msra.mxu0 0.0
    %1764 = vmatprep.subr.mxu0 0.0
    %1765 = vmatpush1.msra.mxu0 0.0
    %1766 = vmatprep.subr.mxu0 0.0
    %1767 = vmatpush1.msra.mxu0 0.0
    %1768 = vmatprep.mubr.f32.mxu0 0.0
    %1769 = vmatmul.mubr.f32.gmra.mrb[0].mxu0 %v1535
    %v1770 = vpop.f32.mrb[0].mxu0
    %v1771 = vadd.f32 0.0, %v1770
    %v1772 = vpop.f32.mrb[0].mxu0
    %v1773 = vadd.f32 0.0, %v1772
    %1774 = vdwg.mxu0
    %1775 = vmatprep.subr.mxu0 %v1560
    %1776 = vmatpush1.msra.mxu0 %v1557
    %1777 = vmatprep.subr.mxu0 0.0
    %1778 = vmatpush1.msra.mxu0 0.0
    %1779 = vmatprep.subr.mxu0 0.0
    %1780 = vmatpush1.msra.mxu0 0.0
    %1781 = vmatprep.subr.mxu0 0.0
    %1782 = vmatpush1.msra.mxu0 0.0
    %1783 = vmatprep.subr.mxu0 0.0
    %1784 = vmatpush1.msra.mxu0 0.0
    %1785 = vmatprep.subr.mxu0 0.0
    %1786 = vmatpush1.msra.mxu0 0.0
    %1787 = vmatprep.subr.mxu0 0.0
    %1788 = vmatpush1.msra.mxu0 0.0
    %1789 = vmatprep.subr.mxu0 0.0
    %1790 = vmatpush1.msra.mxu0 0.0
    %1791 = vmatprep.subr.mxu0 0.0
    %1792 = vmatpush1.msra.mxu0 0.0
    %1793 = vmatprep.subr.mxu0 0.0
    %1794 = vmatpush1.msra.mxu0 0.0
    %1795 = vmatprep.subr.mxu0 0.0
    %1796 = vmatpush1.msra.mxu0 0.0
    %1797 = vmatprep.subr.mxu0 0.0
    %1798 = vmatpush1.msra.mxu0 0.0
    %1799 = vmatprep.subr.mxu0 0.0
    %1800 = vmatpush1.msra.mxu0 0.0
    %1801 = vmatprep.subr.mxu0 0.0
    %1802 = vmatpush1.msra.mxu0 0.0
    %1803 = vmatprep.subr.mxu0 0.0
    %1804 = vmatpush1.msra.mxu0 0.0
    %1805 = vmatprep.subr.mxu0 0.0
    %1806 = vmatpush1.msra.mxu0 0.0
    %1807 = vmatprep.subr.mxu0 0.0
    %1808 = vmatpush1.msra.mxu0 0.0
    %1809 = vmatprep.subr.mxu0 0.0
    %1810 = vmatpush1.msra.mxu0 0.0
    %1811 = vmatprep.subr.mxu0 0.0
    %1812 = vmatpush1.msra.mxu0 0.0
    %1813 = vmatprep.subr.mxu0 0.0
    %1814 = vmatpush1.msra.mxu0 0.0
    %1815 = vmatprep.subr.mxu0 0.0
    %1816 = vmatpush1.msra.mxu0 0.0
    %1817 = vmatprep.subr.mxu0 0.0
    %1818 = vmatpush1.msra.mxu0 0.0
    %1819 = vmatprep.subr.mxu0 0.0
    %1820 = vmatpush1.msra.mxu0 0.0
    %1821 = vmatprep.subr.mxu0 0.0
    %1822 = vmatpush1.msra.mxu0 0.0
    %1823 = vmatprep.subr.mxu0 0.0
    %1824 = vmatpush1.msra.mxu0 0.0
    %1825 = vmatprep.subr.mxu0 0.0
    %1826 = vmatpush1.msra.mxu0 0.0
    %1827 = vmatprep.subr.mxu0 0.0
    %1828 = vmatpush1.msra.mxu0 0.0
    %1829 = vmatprep.subr.mxu0 0.0
    %1830 = vmatpush1.msra.mxu0 0.0
    %1831 = vmatprep.subr.mxu0 0.0
    %1832 = vmatpush1.msra.mxu0 0.0
    %1833 = vmatprep.subr.mxu0 0.0
    %1834 = vmatpush1.msra.mxu0 0.0
    %1835 = vmatprep.subr.mxu0 0.0
    %1836 = vmatpush1.msra.mxu0 0.0
    %1837 = vmatprep.subr.mxu0 0.0
    %1838 = vmatpush1.msra.mxu0 0.0
    %1839 = vmatprep.mubr.f32.mxu0 0.0
    %1840 = vmatmul.mubr.f32.gmra.mrb[0].mxu0 %v1535
    %v1841 = vpop.f32.mrb[0].mxu0
    %v1842 = vadd.f32 0.0, %v1841
    %v1843 = vpop.f32.mrb[0].mxu0
    %v1844 = vadd.f32 0.0, %v1843
    %1845 = vdwg.mxu0
    %v1846 = vadd.f32 %v1515, %v1629
    %v1847 = vadd.f32 %v1516, %v1631
    %v1848 = vadd.f32 %v1517, %v1700
    %v1849 = vadd.f32 %v1518, %v1702
    %v1850 = vadd.f32 %v1519, %v1771
    %v1851 = vadd.f32 %v1520, %v1773
    %v1852 = vadd.f32 %v1521, %v1842
    %v1853 = vadd.f32 %v1522, %v1844
    %v1854 = vld [vmem:[#allocation13] sm:$0xff]
    %v1856 = vlaneseq
    %v1857 = vshrl.u32 %v1856, 7
    %v1858 = vsub.s32 0, %v1857
    %v1859 = vrot.slane %v1854, %v1858
    %v1860 = vlaneseq
    %v1861 = vshrl.u32 %v1860, 7
    %v1862 = vsub.s32 1, %v1861
    %v1863 = vrot.slane %v1854, %v1862
    %v1864 = vlaneseq
    %v1865 = vshrl.u32 %v1864, 7
    %v1866 = vsub.s32 2, %v1865
    %v1867 = vrot.slane %v1854, %v1866
    %v1868 = vlaneseq
    %v1869 = vshrl.u32 %v1868, 7
    %v1870 = vsub.s32 3, %v1869
    %v1871 = vrot.slane %v1854, %v1870
    %v1872 = vlaneseq
    %v1873 = vshrl.u32 %v1872, 7
    %v1874 = vsub.s32 4, %v1873
    %v1875 = vrot.slane %v1854, %v1874
    %v1876 = vlaneseq
    %v1877 = vshrl.u32 %v1876, 7
    %v1878 = vsub.s32 5, %v1877
    %v1879 = vrot.slane %v1854, %v1878
    %v1880 = vlaneseq
    %v1881 = vshrl.u32 %v1880, 7
    %v1882 = vsub.s32 6, %v1881
    %v1883 = vrot.slane %v1854, %v1882
    %v1884 = vlaneseq
    %v1885 = vshrl.u32 %v1884, 7
    %v1886 = vsub.s32 7, %v1885
    %v1887 = vrot.slane %v1854, %v1886
    %v1896 = vadd.f32 %v1846, %v1859
    %v1897 = vadd.f32 %v1847, %v1863
    %v1898 = vadd.f32 %v1848, %v1867
    %v1899 = vadd.f32 %v1849, %v1871
    %v1900 = vadd.f32 %v1850, %v1875
    %v1901 = vadd.f32 %v1851, %v1879
    %v1902 = vadd.f32 %v1852, %v1883
    %v1903 = vadd.f32 %v1853, %v1887
    %v1904 = vmax.f32 %v1896, 0.0
    %v1905 = vmax.f32 %v1897, 0.0
    %v1906 = vmax.f32 %v1898, 0.0
    %v1907 = vmax.f32 %v1899, 0.0
    %v1908 = vmax.f32 %v1900, 0.0
    %v1909 = vmax.f32 %v1901, 0.0
    %v1910 = vmax.f32 %v1902, 0.0
    %v1911 = vmax.f32 %v1903, 0.0
    %v1912 = vpack.c.bf16 %v1904, %v1904
    %v1913 = vpack.c.bf16 %v1905, %v1905
    %v1914 = vpack.c.bf16 %v1906, %v1906
    %v1915 = vpack.c.bf16 %v1907, %v1907
    %v1916 = vpack.c.bf16 %v1908, %v1908
    %v1917 = vpack.c.bf16 %v1909, %v1909
    %v1918 = vpack.c.bf16 %v1910, %v1910
    %v1919 = vpack.c.bf16 %v1911, %v1911
    %v1920 = vld [vmem:[#allocation14] sm:$0xff]
    %v1921 = vld [vmem:[#allocation14 + $0x8] sm:$0xff]
    %v1922 = vld [vmem:[#allocation14 + $0x10] sm:$0xff]
    %v1923 = vld [vmem:[#allocation14 + $0x18] sm:$0xff]
    %v1924 = vld [vmem:[#allocation14 + $0x20] sm:$0xff]
    %v1925 = vld [vmem:[#allocation14 + $0x28] sm:$0xff]
    %v1926 = vld [vmem:[#allocation14 + $0x30] sm:$0xff]
    %v1927 = vld [vmem:[#allocation14 + $0x38] sm:$0xff]
    %v1928 = vld [vmem:[#allocation14 + $0x40] sm:$0xff]
    %v1929 = vld [vmem:[#allocation14 + $0x48] sm:$0xff]
    %v1930 = vld [vmem:[#allocation14 + $0x50] sm:$0xff]
    %v1931 = vld [vmem:[#allocation14 + $0x58] sm:$0xff]
    %v1932 = vld [vmem:[#allocation14 + $0x60] sm:$0xff]
    %v1933 = vld [vmem:[#allocation14 + $0x68] sm:$0xff]
    %v1934 = vld [vmem:[#allocation14 + $0x70] sm:$0xff]
    %v1935 = vld [vmem:[#allocation14 + $0x78] sm:$0xff]
    %v1936 = vld [vmem:[#allocation14 + $0x80] sm:$0xff]
    %v1937 = vld [vmem:[#allocation14 + $0x88] sm:$0xff]
    %v1938 = vld [vmem:[#allocation14 + $0x90] sm:$0xff]
    %v1939 = vld [vmem:[#allocation14 + $0x98] sm:$0xff]
    %v1940 = vld [vmem:[#allocation14 + $0xa0] sm:$0xff]
    %v1941 = vld [vmem:[#allocation14 + $0xa8] sm:$0xff]
    %v1942 = vld [vmem:[#allocation14 + $0xb0] sm:$0xff]
    %v1943 = vld [vmem:[#allocation14 + $0xb8] sm:$0xff]
    %v1944 = vld [vmem:[#allocation14 + $0xc0] sm:$0xff]
    %v1945 = vld [vmem:[#allocation14 + $0xc8] sm:$0xff]
    %v1946 = vld [vmem:[#allocation14 + $0xd0] sm:$0xff]
    %v1947 = vld [vmem:[#allocation14 + $0xd8] sm:$0xff]
    %v1948 = vld [vmem:[#allocation14 + $0xe0] sm:$0xff]
    %v1949 = vld [vmem:[#allocation14 + $0xe8] sm:$0xff]
    %v1950 = vld [vmem:[#allocation14 + $0xf0] sm:$0xff]
    %v1951 = vld [vmem:[#allocation14 + $0xf8] sm:$0xff]
    %v1952 = vld [vmem:[#allocation14 + $0x100] sm:$0xff]
    %v1953 = vld [vmem:[#allocation14 + $0x108] sm:$0xff]
    %v1954 = vld [vmem:[#allocation14 + $0x110] sm:$0xff]
    %v1955 = vld [vmem:[#allocation14 + $0x118] sm:$0xff]
    %v1956 = vld [vmem:[#allocation14 + $0x120] sm:$0xff]
    %v1957 = vld [vmem:[#allocation14 + $0x128] sm:$0xff]
    %v1958 = vld [vmem:[#allocation14 + $0x130] sm:$0xff]
    %v1959 = vld [vmem:[#allocation14 + $0x138] sm:$0xff]
    %v1960 = vld [vmem:[#allocation14 + $0x140] sm:$0xff]
    %v1961 = vld [vmem:[#allocation14 + $0x148] sm:$0xff]
    %v1962 = vld [vmem:[#allocation14 + $0x150] sm:$0xff]
    %v1963 = vld [vmem:[#allocation14 + $0x158] sm:$0xff]
    %v1964 = vld [vmem:[#allocation14 + $0x160] sm:$0xff]
    %v1965 = vld [vmem:[#allocation14 + $0x168] sm:$0xff]
    %v1966 = vld [vmem:[#allocation14 + $0x170] sm:$0xff]
    %v1967 = vld [vmem:[#allocation14 + $0x178] sm:$0xff]
    %v1968 = vld [vmem:[#allocation14 + $0x180] sm:$0xff]
    %v1969 = vld [vmem:[#allocation14 + $0x188] sm:$0xff]
    %v1970 = vld [vmem:[#allocation14 + $0x190] sm:$0xff]
    %v1971 = vld [vmem:[#allocation14 + $0x198] sm:$0xff]
    %v1972 = vld [vmem:[#allocation14 + $0x1a0] sm:$0xff]
    %v1973 = vld [vmem:[#allocation14 + $0x1a8] sm:$0xff]
    %v1974 = vld [vmem:[#allocation14 + $0x1b0] sm:$0xff]
    %v1975 = vld [vmem:[#allocation14 + $0x1b8] sm:$0xff]
    %v1976 = vld [vmem:[#allocation14 + $0x1c0] sm:$0xff]
    %v1977 = vld [vmem:[#allocation14 + $0x1c8] sm:$0xff]
    %v1978 = vld [vmem:[#allocation14 + $0x1d0] sm:$0xff]
    %v1979 = vld [vmem:[#allocation14 + $0x1d8] sm:$0xff]
    %v1980 = vld [vmem:[#allocation14 + $0x1e0] sm:$0xff]
    %v1981 = vld [vmem:[#allocation14 + $0x1e8] sm:$0xff]
    %v1982 = vld [vmem:[#allocation14 + $0x1f0] sm:$0xff]
    %v1983 = vld [vmem:[#allocation14 + $0x1f8] sm:$0xff]
    %v1984 = vld [vmem:[#allocation14 + $0x200] sm:$0xff]
    %v1985 = vld [vmem:[#allocation14 + $0x208] sm:$0xff]
    %v1986 = vld [vmem:[#allocation14 + $0x210] sm:$0xff]
    %v1987 = vld [vmem:[#allocation14 + $0x218] sm:$0xff]
    %v1988 = vld [vmem:[#allocation14 + $0x220] sm:$0xff]
    %v1989 = vld [vmem:[#allocation14 + $0x228] sm:$0xff]
    %v1990 = vld [vmem:[#allocation14 + $0x230] sm:$0xff]
    %v1991 = vld [vmem:[#allocation14 + $0x238] sm:$0xff]
    %v1992 = vld [vmem:[#allocation14 + $0x240] sm:$0xff]
    %v1993 = vld [vmem:[#allocation14 + $0x248] sm:$0xff]
    %v1994 = vld [vmem:[#allocation14 + $0x250] sm:$0xff]
    %v1995 = vld [vmem:[#allocation14 + $0x258] sm:$0xff]
    %v1996 = vld [vmem:[#allocation14 + $0x260] sm:$0xff]
    %v1997 = vld [vmem:[#allocation14 + $0x268] sm:$0xff]
    %v1998 = vld [vmem:[#allocation14 + $0x270] sm:$0xff]
    %v1999 = vld [vmem:[#allocation14 + $0x278] sm:$0xff]
    %v2000 = vld [vmem:[#allocation14 + $0x280] sm:$0xff]
    %v2001 = vld [vmem:[#allocation14 + $0x288] sm:$0xff]
    %v2002 = vld [vmem:[#allocation14 + $0x290] sm:$0xff]
    %v2003 = vld [vmem:[#allocation14 + $0x298] sm:$0xff]
    %v2004 = vld [vmem:[#allocation14 + $0x2a0] sm:$0xff]
    %v2005 = vld [vmem:[#allocation14 + $0x2a8] sm:$0xff]
    %v2006 = vld [vmem:[#allocation14 + $0x2b0] sm:$0xff]
    %v2007 = vld [vmem:[#allocation14 + $0x2b8] sm:$0xff]
    %v2008 = vld [vmem:[#allocation14 + $0x2c0] sm:$0xff]
    %v2009 = vld [vmem:[#allocation14 + $0x2c8] sm:$0xff]
    %v2010 = vld [vmem:[#allocation14 + $0x2d0] sm:$0xff]
    %v2011 = vld [vmem:[#allocation14 + $0x2d8] sm:$0xff]
    %v2012 = vld [vmem:[#allocation14 + $0x2e0] sm:$0xff]
    %v2013 = vld [vmem:[#allocation14 + $0x2e8] sm:$0xff]
    %v2014 = vld [vmem:[#allocation14 + $0x2f0] sm:$0xff]
    %v2015 = vld [vmem:[#allocation14 + $0x2f8] sm:$0xff]
    %v2016 = vld [vmem:[#allocation14 + $0x300] sm:$0xff]
    %v2017 = vld [vmem:[#allocation14 + $0x308] sm:$0xff]
    %v2018 = vld [vmem:[#allocation14 + $0x310] sm:$0xff]
    %v2019 = vld [vmem:[#allocation14 + $0x318] sm:$0xff]
    %v2020 = vld [vmem:[#allocation14 + $0x320] sm:$0xff]
    %v2021 = vld [vmem:[#allocation14 + $0x328] sm:$0xff]
    %v2022 = vld [vmem:[#allocation14 + $0x330] sm:$0xff]
    %v2023 = vld [vmem:[#allocation14 + $0x338] sm:$0xff]
    %v2024 = vld [vmem:[#allocation14 + $0x340] sm:$0xff]
    %v2025 = vld [vmem:[#allocation14 + $0x348] sm:$0xff]
    %v2026 = vld [vmem:[#allocation14 + $0x350] sm:$0xff]
    %v2027 = vld [vmem:[#allocation14 + $0x358] sm:$0xff]
    %v2028 = vld [vmem:[#allocation14 + $0x360] sm:$0xff]
    %v2029 = vld [vmem:[#allocation14 + $0x368] sm:$0xff]
    %v2030 = vld [vmem:[#allocation14 + $0x370] sm:$0xff]
    %v2031 = vld [vmem:[#allocation14 + $0x378] sm:$0xff]
    %v2032 = vld [vmem:[#allocation14 + $0x380] sm:$0xff]
    %v2033 = vld [vmem:[#allocation14 + $0x388] sm:$0xff]
    %v2034 = vld [vmem:[#allocation14 + $0x390] sm:$0xff]
    %v2035 = vld [vmem:[#allocation14 + $0x398] sm:$0xff]
    %v2036 = vld [vmem:[#allocation14 + $0x3a0] sm:$0xff]
    %v2037 = vld [vmem:[#allocation14 + $0x3a8] sm:$0xff]
    %v2038 = vld [vmem:[#allocation14 + $0x3b0] sm:$0xff]
    %v2039 = vld [vmem:[#allocation14 + $0x3b8] sm:$0xff]
    %v2040 = vld [vmem:[#allocation14 + $0x3c0] sm:$0xff]
    %v2041 = vld [vmem:[#allocation14 + $0x3c8] sm:$0xff]
    %v2042 = vld [vmem:[#allocation14 + $0x3d0] sm:$0xff]
    %v2043 = vld [vmem:[#allocation14 + $0x3d8] sm:$0xff]
    %v2044 = vld [vmem:[#allocation14 + $0x3e0] sm:$0xff]
    %v2045 = vld [vmem:[#allocation14 + $0x3e8] sm:$0xff]
    %v2046 = vld [vmem:[#allocation14 + $0x3f0] sm:$0xff]
    %v2047 = vld [vmem:[#allocation14 + $0x3f8] sm:$0xff]
    %v2048 = vld [vmem:[#allocation14 + $0x400] sm:$0xff]
    %v2049 = vld [vmem:[#allocation14 + $0x408] sm:$0xff]
    %v2050 = vld [vmem:[#allocation14 + $0x410] sm:$0xff]
    %v2051 = vld [vmem:[#allocation14 + $0x418] sm:$0xff]
    %v2052 = vld [vmem:[#allocation14 + $0x420] sm:$0xff]
    %v2053 = vld [vmem:[#allocation14 + $0x428] sm:$0xff]
    %v2054 = vld [vmem:[#allocation14 + $0x430] sm:$0xff]
    %v2055 = vld [vmem:[#allocation14 + $0x438] sm:$0xff]
    %v2056 = vld [vmem:[#allocation14 + $0x440] sm:$0xff]
    %v2057 = vld [vmem:[#allocation14 + $0x448] sm:$0xff]
    %v2058 = vld [vmem:[#allocation14 + $0x450] sm:$0xff]
    %v2059 = vld [vmem:[#allocation14 + $0x458] sm:$0xff]
    %v2060 = vld [vmem:[#allocation14 + $0x460] sm:$0xff]
    %v2061 = vld [vmem:[#allocation14 + $0x468] sm:$0xff]
    %v2062 = vld [vmem:[#allocation14 + $0x470] sm:$0xff]
    %v2063 = vld [vmem:[#allocation14 + $0x478] sm:$0xff]
    %v2064 = vld [vmem:[#allocation14 + $0x480] sm:$0xff]
    %v2065 = vld [vmem:[#allocation14 + $0x488] sm:$0xff]
    %v2066 = vld [vmem:[#allocation14 + $0x490] sm:$0xff]
    %v2067 = vld [vmem:[#allocation14 + $0x498] sm:$0xff]
    %v2068 = vld [vmem:[#allocation14 + $0x4a0] sm:$0xff]
    %v2069 = vld [vmem:[#allocation14 + $0x4a8] sm:$0xff]
    %v2070 = vld [vmem:[#allocation14 + $0x4b0] sm:$0xff]
    %v2071 = vld [vmem:[#allocation14 + $0x4b8] sm:$0xff]
    %v2072 = vld [vmem:[#allocation14 + $0x4c0] sm:$0xff]
    %v2073 = vld [vmem:[#allocation14 + $0x4c8] sm:$0xff]
    %v2074 = vld [vmem:[#allocation14 + $0x4d0] sm:$0xff]
    %v2075 = vld [vmem:[#allocation14 + $0x4d8] sm:$0xff]
    %v2076 = vld [vmem:[#allocation14 + $0x4e0] sm:$0xff]
    %v2077 = vld [vmem:[#allocation14 + $0x4e8] sm:$0xff]
    %v2078 = vld [vmem:[#allocation14 + $0x4f0] sm:$0xff]
    %v2079 = vld [vmem:[#allocation14 + $0x4f8] sm:$0xff]
    %v2080 = vld [vmem:[#allocation14 + $0x500] sm:$0xff]
    %v2081 = vld [vmem:[#allocation14 + $0x508] sm:$0xff]
    %v2082 = vld [vmem:[#allocation14 + $0x510] sm:$0xff]
    %v2083 = vld [vmem:[#allocation14 + $0x518] sm:$0xff]
    %v2084 = vld [vmem:[#allocation14 + $0x520] sm:$0xff]
    %v2085 = vld [vmem:[#allocation14 + $0x528] sm:$0xff]
    %v2086 = vld [vmem:[#allocation14 + $0x530] sm:$0xff]
    %v2087 = vld [vmem:[#allocation14 + $0x538] sm:$0xff]
    %v2088 = vld [vmem:[#allocation14 + $0x540] sm:$0xff]
    %v2089 = vld [vmem:[#allocation14 + $0x548] sm:$0xff]
    %v2090 = vld [vmem:[#allocation14 + $0x550] sm:$0xff]
    %v2091 = vld [vmem:[#allocation14 + $0x558] sm:$0xff]
    %v2092 = vld [vmem:[#allocation14 + $0x560] sm:$0xff]
    %v2093 = vld [vmem:[#allocation14 + $0x568] sm:$0xff]
    %v2094 = vld [vmem:[#allocation14 + $0x570] sm:$0xff]
    %v2095 = vld [vmem:[#allocation14 + $0x578] sm:$0xff]
    %v2096 = vld [vmem:[#allocation14 + $0x580] sm:$0xff]
    %v2097 = vld [vmem:[#allocation14 + $0x588] sm:$0xff]
    %v2098 = vld [vmem:[#allocation14 + $0x590] sm:$0xff]
    %v2099 = vld [vmem:[#allocation14 + $0x598] sm:$0xff]
    %v2100 = vld [vmem:[#allocation14 + $0x5a0] sm:$0xff]
    %v2101 = vld [vmem:[#allocation14 + $0x5a8] sm:$0xff]
    %v2102 = vld [vmem:[#allocation14 + $0x5b0] sm:$0xff]
    %v2103 = vld [vmem:[#allocation14 + $0x5b8] sm:$0xff]
    %v2104 = vld [vmem:[#allocation14 + $0x5c0] sm:$0xff]
    %v2105 = vld [vmem:[#allocation14 + $0x5c8] sm:$0xff]
    %v2106 = vld [vmem:[#allocation14 + $0x5d0] sm:$0xff]
    %v2107 = vld [vmem:[#allocation14 + $0x5d8] sm:$0xff]
    %v2108 = vld [vmem:[#allocation14 + $0x5e0] sm:$0xff]
    %v2109 = vld [vmem:[#allocation14 + $0x5e8] sm:$0xff]
    %v2110 = vld [vmem:[#allocation14 + $0x5f0] sm:$0xff]
    %v2111 = vld [vmem:[#allocation14 + $0x5f8] sm:$0xff]
    %v2112 = vld [vmem:[#allocation14 + $0x600] sm:$0xff]
    %v2113 = vld [vmem:[#allocation14 + $0x608] sm:$0xff]
    %v2114 = vld [vmem:[#allocation14 + $0x610] sm:$0xff]
    %v2115 = vld [vmem:[#allocation14 + $0x618] sm:$0xff]
    %v2116 = vld [vmem:[#allocation14 + $0x620] sm:$0xff]
    %v2117 = vld [vmem:[#allocation14 + $0x628] sm:$0xff]
    %v2118 = vld [vmem:[#allocation14 + $0x630] sm:$0xff]
    %v2119 = vld [vmem:[#allocation14 + $0x638] sm:$0xff]
    %v2120 = vld [vmem:[#allocation14 + $0x640] sm:$0xff]
    %v2121 = vld [vmem:[#allocation14 + $0x648] sm:$0xff]
    %v2122 = vld [vmem:[#allocation14 + $0x650] sm:$0xff]
    %v2123 = vld [vmem:[#allocation14 + $0x658] sm:$0xff]
    %v2124 = vld [vmem:[#allocation14 + $0x660] sm:$0xff]
    %v2125 = vld [vmem:[#allocation14 + $0x668] sm:$0xff]
    %v2126 = vld [vmem:[#allocation14 + $0x670] sm:$0xff]
    %v2127 = vld [vmem:[#allocation14 + $0x678] sm:$0xff]
    %v2128 = vld [vmem:[#allocation14 + $0x680] sm:$0xff]
    %v2129 = vld [vmem:[#allocation14 + $0x688] sm:$0xff]
    %v2130 = vld [vmem:[#allocation14 + $0x690] sm:$0xff]
    %v2131 = vld [vmem:[#allocation14 + $0x698] sm:$0xff]
    %v2132 = vld [vmem:[#allocation14 + $0x6a0] sm:$0xff]
    %v2133 = vld [vmem:[#allocation14 + $0x6a8] sm:$0xff]
    %v2134 = vld [vmem:[#allocation14 + $0x6b0] sm:$0xff]
    %v2135 = vld [vmem:[#allocation14 + $0x6b8] sm:$0xff]
    %v2136 = vld [vmem:[#allocation14 + $0x6c0] sm:$0xff]
    %v2137 = vld [vmem:[#allocation14 + $0x6c8] sm:$0xff]
    %v2138 = vld [vmem:[#allocation14 + $0x6d0] sm:$0xff]
    %v2139 = vld [vmem:[#allocation14 + $0x6d8] sm:$0xff]
    %v2140 = vld [vmem:[#allocation14 + $0x6e0] sm:$0xff]
    %v2141 = vld [vmem:[#allocation14 + $0x6e8] sm:$0xff]
    %v2142 = vld [vmem:[#allocation14 + $0x6f0] sm:$0xff]
    %v2143 = vld [vmem:[#allocation14 + $0x6f8] sm:$0xff]
    %v2144 = vld [vmem:[#allocation14 + $0x700] sm:$0xff]
    %v2145 = vld [vmem:[#allocation14 + $0x708] sm:$0xff]
    %v2146 = vld [vmem:[#allocation14 + $0x710] sm:$0xff]
    %v2147 = vld [vmem:[#allocation14 + $0x718] sm:$0xff]
    %v2148 = vld [vmem:[#allocation14 + $0x720] sm:$0xff]
    %v2149 = vld [vmem:[#allocation14 + $0x728] sm:$0xff]
    %v2150 = vld [vmem:[#allocation14 + $0x730] sm:$0xff]
    %v2151 = vld [vmem:[#allocation14 + $0x738] sm:$0xff]
    %v2152 = vld [vmem:[#allocation14 + $0x740] sm:$0xff]
    %v2153 = vld [vmem:[#allocation14 + $0x748] sm:$0xff]
    %v2154 = vld [vmem:[#allocation14 + $0x750] sm:$0xff]
    %v2155 = vld [vmem:[#allocation14 + $0x758] sm:$0xff]
    %v2156 = vld [vmem:[#allocation14 + $0x760] sm:$0xff]
    %v2157 = vld [vmem:[#allocation14 + $0x768] sm:$0xff]
    %v2158 = vld [vmem:[#allocation14 + $0x770] sm:$0xff]
    %v2159 = vld [vmem:[#allocation14 + $0x778] sm:$0xff]
    %v2160 = vld [vmem:[#allocation14 + $0x780] sm:$0xff]
    %v2161 = vld [vmem:[#allocation14 + $0x788] sm:$0xff]
    %v2162 = vld [vmem:[#allocation14 + $0x790] sm:$0xff]
    %v2163 = vld [vmem:[#allocation14 + $0x798] sm:$0xff]
    %v2164 = vld [vmem:[#allocation14 + $0x7a0] sm:$0xff]
    %v2165 = vld [vmem:[#allocation14 + $0x7a8] sm:$0xff]
    %v2166 = vld [vmem:[#allocation14 + $0x7b0] sm:$0xff]
    %v2167 = vld [vmem:[#allocation14 + $0x7b8] sm:$0xff]
    %v2168 = vld [vmem:[#allocation14 + $0x7c0] sm:$0xff]
    %v2169 = vld [vmem:[#allocation14 + $0x7c8] sm:$0xff]
    %v2170 = vld [vmem:[#allocation14 + $0x7d0] sm:$0xff]
    %v2171 = vld [vmem:[#allocation14 + $0x7d8] sm:$0xff]
    %v2172 = vld [vmem:[#allocation14 + $0x7e0] sm:$0xff]
    %v2173 = vld [vmem:[#allocation14 + $0x7e8] sm:$0xff]
    %v2174 = vld [vmem:[#allocation14 + $0x7f0] sm:$0xff]
    %v2175 = vld [vmem:[#allocation14 + $0x7f8] sm:$0xff]
    %v2176 = vld [vmem:[#allocation14 + $0x800] sm:$0xff]
    %v2177 = vld [vmem:[#allocation14 + $0x808] sm:$0xff]
    %v2178 = vld [vmem:[#allocation14 + $0x810] sm:$0xff]
    %v2179 = vld [vmem:[#allocation14 + $0x818] sm:$0xff]
    %v2180 = vld [vmem:[#allocation14 + $0x820] sm:$0xff]
    %v2181 = vld [vmem:[#allocation14 + $0x828] sm:$0xff]
    %v2182 = vld [vmem:[#allocation14 + $0x830] sm:$0xff]
    %v2183 = vld [vmem:[#allocation14 + $0x838] sm:$0xff]
    %v2184 = vld [vmem:[#allocation14 + $0x840] sm:$0xff]
    %v2185 = vld [vmem:[#allocation14 + $0x848] sm:$0xff]
    %v2186 = vld [vmem:[#allocation14 + $0x850] sm:$0xff]
    %v2187 = vld [vmem:[#allocation14 + $0x858] sm:$0xff]
    %v2188 = vld [vmem:[#allocation14 + $0x860] sm:$0xff]
    %v2189 = vld [vmem:[#allocation14 + $0x868] sm:$0xff]
    %v2190 = vld [vmem:[#allocation14 + $0x870] sm:$0xff]
    %v2191 = vld [vmem:[#allocation14 + $0x878] sm:$0xff]
    %v2192 = vld [vmem:[#allocation14 + $0x880] sm:$0xff]
    %v2193 = vld [vmem:[#allocation14 + $0x888] sm:$0xff]
    %v2194 = vld [vmem:[#allocation14 + $0x890] sm:$0xff]
    %v2195 = vld [vmem:[#allocation14 + $0x898] sm:$0xff]
    %v2196 = vld [vmem:[#allocation14 + $0x8a0] sm:$0xff]
    %v2197 = vld [vmem:[#allocation14 + $0x8a8] sm:$0xff]
    %v2198 = vld [vmem:[#allocation14 + $0x8b0] sm:$0xff]
    %v2199 = vld [vmem:[#allocation14 + $0x8b8] sm:$0xff]
    %v2200 = vld [vmem:[#allocation14 + $0x8c0] sm:$0xff]
    %v2201 = vld [vmem:[#allocation14 + $0x8c8] sm:$0xff]
    %v2202 = vld [vmem:[#allocation14 + $0x8d0] sm:$0xff]
    %v2203 = vld [vmem:[#allocation14 + $0x8d8] sm:$0xff]
    %v2204 = vld [vmem:[#allocation14 + $0x8e0] sm:$0xff]
    %v2205 = vld [vmem:[#allocation14 + $0x8e8] sm:$0xff]
    %v2206 = vld [vmem:[#allocation14 + $0x8f0] sm:$0xff]
    %v2207 = vld [vmem:[#allocation14 + $0x8f8] sm:$0xff]
    %v2208 = vld [vmem:[#allocation14 + $0x900] sm:$0xff]
    %v2209 = vld [vmem:[#allocation14 + $0x908] sm:$0xff]
    %v2210 = vld [vmem:[#allocation14 + $0x910] sm:$0xff]
    %v2211 = vld [vmem:[#allocation14 + $0x918] sm:$0xff]
    %v2212 = vld [vmem:[#allocation14 + $0x920] sm:$0xff]
    %v2213 = vld [vmem:[#allocation14 + $0x928] sm:$0xff]
    %v2214 = vld [vmem:[#allocation14 + $0x930] sm:$0xff]
    %v2215 = vld [vmem:[#allocation14 + $0x938] sm:$0xff]
    %v2216 = vld [vmem:[#allocation14 + $0x940] sm:$0xff]
    %v2217 = vld [vmem:[#allocation14 + $0x948] sm:$0xff]
    %v2218 = vld [vmem:[#allocation14 + $0x950] sm:$0xff]
    %v2219 = vld [vmem:[#allocation14 + $0x958] sm:$0xff]
    %v2220 = vld [vmem:[#allocation14 + $0x960] sm:$0xff]
    %v2221 = vld [vmem:[#allocation14 + $0x968] sm:$0xff]
    %v2222 = vld [vmem:[#allocation14 + $0x970] sm:$0xff]
    %v2223 = vld [vmem:[#allocation14 + $0x978] sm:$0xff]
    %v2224 = vld [vmem:[#allocation14 + $0x980] sm:$0xff]
    %v2225 = vld [vmem:[#allocation14 + $0x988] sm:$0xff]
    %v2226 = vld [vmem:[#allocation14 + $0x990] sm:$0xff]
    %v2227 = vld [vmem:[#allocation14 + $0x998] sm:$0xff]
    %v2228 = vld [vmem:[#allocation14 + $0x9a0] sm:$0xff]
    %v2229 = vld [vmem:[#allocation14 + $0x9a8] sm:$0xff]
    %v2230 = vld [vmem:[#allocation14 + $0x9b0] sm:$0xff]
    %v2231 = vld [vmem:[#allocation14 + $0x9b8] sm:$0xff]
    %v2232 = vld [vmem:[#allocation14 + $0x9c0] sm:$0xff]
    %v2233 = vld [vmem:[#allocation14 + $0x9c8] sm:$0xff]
    %v2234 = vld [vmem:[#allocation14 + $0x9d0] sm:$0xff]
    %v2235 = vld [vmem:[#allocation14 + $0x9d8] sm:$0xff]
    %v2236 = vld [vmem:[#allocation14 + $0x9e0] sm:$0xff]
    %v2237 = vld [vmem:[#allocation14 + $0x9e8] sm:$0xff]
    %v2238 = vld [vmem:[#allocation14 + $0x9f0] sm:$0xff]
    %v2239 = vld [vmem:[#allocation14 + $0x9f8] sm:$0xff]
    %v2240 = vld [vmem:[#allocation14 + $0xa00] sm:$0xff]
    %v2241 = vld [vmem:[#allocation14 + $0xa08] sm:$0xff]
    %v2242 = vld [vmem:[#allocation14 + $0xa10] sm:$0xff]
    %v2243 = vld [vmem:[#allocation14 + $0xa18] sm:$0xff]
    %v2244 = vld [vmem:[#allocation14 + $0xa20] sm:$0xff]
    %v2245 = vld [vmem:[#allocation14 + $0xa28] sm:$0xff]
    %v2246 = vld [vmem:[#allocation14 + $0xa30] sm:$0xff]
    %v2247 = vld [vmem:[#allocation14 + $0xa38] sm:$0xff]
    %v2248 = vld [vmem:[#allocation14 + $0xa40] sm:$0xff]
    %v2249 = vld [vmem:[#allocation14 + $0xa48] sm:$0xff]
    %v2250 = vld [vmem:[#allocation14 + $0xa50] sm:$0xff]
    %v2251 = vld [vmem:[#allocation14 + $0xa58] sm:$0xff]
    %v2252 = vld [vmem:[#allocation14 + $0xa60] sm:$0xff]
    %v2253 = vld [vmem:[#allocation14 + $0xa68] sm:$0xff]
    %v2254 = vld [vmem:[#allocation14 + $0xa70] sm:$0xff]
    %v2255 = vld [vmem:[#allocation14 + $0xa78] sm:$0xff]
    %v2256 = vld [vmem:[#allocation14 + $0xa80] sm:$0xff]
    %v2257 = vld [vmem:[#allocation14 + $0xa88] sm:$0xff]
    %v2258 = vld [vmem:[#allocation14 + $0xa90] sm:$0xff]
    %v2259 = vld [vmem:[#allocation14 + $0xa98] sm:$0xff]
    %v2260 = vld [vmem:[#allocation14 + $0xaa0] sm:$0xff]
    %v2261 = vld [vmem:[#allocation14 + $0xaa8] sm:$0xff]
    %v2262 = vld [vmem:[#allocation14 + $0xab0] sm:$0xff]
    %v2263 = vld [vmem:[#allocation14 + $0xab8] sm:$0xff]
    %v2264 = vld [vmem:[#allocation14 + $0xac0] sm:$0xff]
    %v2265 = vld [vmem:[#allocation14 + $0xac8] sm:$0xff]
    %v2266 = vld [vmem:[#allocation14 + $0xad0] sm:$0xff]
    %v2267 = vld [vmem:[#allocation14 + $0xad8] sm:$0xff]
    %v2268 = vld [vmem:[#allocation14 + $0xae0] sm:$0xff]
    %v2269 = vld [vmem:[#allocation14 + $0xae8] sm:$0xff]
    %v2270 = vld [vmem:[#allocation14 + $0xaf0] sm:$0xff]
    %v2271 = vld [vmem:[#allocation14 + $0xaf8] sm:$0xff]
    %v2272 = vld [vmem:[#allocation14 + $0xb00] sm:$0xff]
    %v2273 = vld [vmem:[#allocation14 + $0xb08] sm:$0xff]
    %v2274 = vld [vmem:[#allocation14 + $0xb10] sm:$0xff]
    %v2275 = vld [vmem:[#allocation14 + $0xb18] sm:$0xff]
    %v2276 = vld [vmem:[#allocation14 + $0xb20] sm:$0xff]
    %v2277 = vld [vmem:[#allocation14 + $0xb28] sm:$0xff]
    %v2278 = vld [vmem:[#allocation14 + $0xb30] sm:$0xff]
    %v2279 = vld [vmem:[#allocation14 + $0xb38] sm:$0xff]
    %v2280 = vld [vmem:[#allocation14 + $0xb40] sm:$0xff]
    %v2281 = vld [vmem:[#allocation14 + $0xb48] sm:$0xff]
    %v2282 = vld [vmem:[#allocation14 + $0xb50] sm:$0xff]
    %v2283 = vld [vmem:[#allocation14 + $0xb58] sm:$0xff]
    %v2284 = vld [vmem:[#allocation14 + $0xb60] sm:$0xff]
    %v2285 = vld [vmem:[#allocation14 + $0xb68] sm:$0xff]
    %v2286 = vld [vmem:[#allocation14 + $0xb70] sm:$0xff]
    %v2287 = vld [vmem:[#allocation14 + $0xb78] sm:$0xff]
    %v2288 = vld [vmem:[#allocation14 + $0xb80] sm:$0xff]
    %v2289 = vld [vmem:[#allocation14 + $0xb88] sm:$0xff]
    %v2290 = vld [vmem:[#allocation14 + $0xb90] sm:$0xff]
    %v2291 = vld [vmem:[#allocation14 + $0xb98] sm:$0xff]
    %v2292 = vld [vmem:[#allocation14 + $0xba0] sm:$0xff]
    %v2293 = vld [vmem:[#allocation14 + $0xba8] sm:$0xff]
    %v2294 = vld [vmem:[#allocation14 + $0xbb0] sm:$0xff]
    %v2295 = vld [vmem:[#allocation14 + $0xbb8] sm:$0xff]
    %v2296 = vld [vmem:[#allocation14 + $0xbc0] sm:$0xff]
    %v2297 = vld [vmem:[#allocation14 + $0xbc8] sm:$0xff]
    %v2298 = vld [vmem:[#allocation14 + $0xbd0] sm:$0xff]
    %v2299 = vld [vmem:[#allocation14 + $0xbd8] sm:$0xff]
    %v2300 = vld [vmem:[#allocation14 + $0xbe0] sm:$0xff]
    %v2301 = vld [vmem:[#allocation14 + $0xbe8] sm:$0xff]
    %v2302 = vld [vmem:[#allocation14 + $0xbf0] sm:$0xff]
    %v2303 = vld [vmem:[#allocation14 + $0xbf8] sm:$0xff]
    %v2304 = vld [vmem:[#allocation14 + $0xc00] sm:$0xff]
    %v2305 = vld [vmem:[#allocation14 + $0xc08] sm:$0xff]
    %v2306 = vld [vmem:[#allocation14 + $0xc10] sm:$0xff]
    %v2307 = vld [vmem:[#allocation14 + $0xc18] sm:$0xff]
    %v2308 = vld [vmem:[#allocation14 + $0xc20] sm:$0xff]
    %v2309 = vld [vmem:[#allocation14 + $0xc28] sm:$0xff]
    %v2310 = vld [vmem:[#allocation14 + $0xc30] sm:$0xff]
    %v2311 = vld [vmem:[#allocation14 + $0xc38] sm:$0xff]
    %v2312 = vld [vmem:[#allocation14 + $0xc40] sm:$0xff]
    %v2313 = vld [vmem:[#allocation14 + $0xc48] sm:$0xff]
    %v2314 = vld [vmem:[#allocation14 + $0xc50] sm:$0xff]
    %v2315 = vld [vmem:[#allocation14 + $0xc58] sm:$0xff]
    %v2316 = vld [vmem:[#allocation14 + $0xc60] sm:$0xff]
    %v2317 = vld [vmem:[#allocation14 + $0xc68] sm:$0xff]
    %v2318 = vld [vmem:[#allocation14 + $0xc70] sm:$0xff]
    %v2319 = vld [vmem:[#allocation14 + $0xc78] sm:$0xff]
    %v2320 = vld [vmem:[#allocation14 + $0xc80] sm:$0xff]
    %v2321 = vld [vmem:[#allocation14 + $0xc88] sm:$0xff]
    %v2322 = vld [vmem:[#allocation14 + $0xc90] sm:$0xff]
    %v2323 = vld [vmem:[#allocation14 + $0xc98] sm:$0xff]
    %v2324 = vld [vmem:[#allocation14 + $0xca0] sm:$0xff]
    %v2325 = vld [vmem:[#allocation14 + $0xca8] sm:$0xff]
    %v2326 = vld [vmem:[#allocation14 + $0xcb0] sm:$0xff]
    %v2327 = vld [vmem:[#allocation14 + $0xcb8] sm:$0xff]
    %v2328 = vld [vmem:[#allocation14 + $0xcc0] sm:$0xff]
    %v2329 = vld [vmem:[#allocation14 + $0xcc8] sm:$0xff]
    %v2330 = vld [vmem:[#allocation14 + $0xcd0] sm:$0xff]
    %v2331 = vld [vmem:[#allocation14 + $0xcd8] sm:$0xff]
    %v2332 = vld [vmem:[#allocation14 + $0xce0] sm:$0xff]
    %v2333 = vld [vmem:[#allocation14 + $0xce8] sm:$0xff]
    %v2334 = vld [vmem:[#allocation14 + $0xcf0] sm:$0xff]
    %v2335 = vld [vmem:[#allocation14 + $0xcf8] sm:$0xff]
    %v2336 = vld [vmem:[#allocation14 + $0xd00] sm:$0xff]
    %v2337 = vld [vmem:[#allocation14 + $0xd08] sm:$0xff]
    %v2338 = vld [vmem:[#allocation14 + $0xd10] sm:$0xff]
    %v2339 = vld [vmem:[#allocation14 + $0xd18] sm:$0xff]
    %v2340 = vld [vmem:[#allocation14 + $0xd20] sm:$0xff]
    %v2341 = vld [vmem:[#allocation14 + $0xd28] sm:$0xff]
    %v2342 = vld [vmem:[#allocation14 + $0xd30] sm:$0xff]
    %v2343 = vld [vmem:[#allocation14 + $0xd38] sm:$0xff]
    %v2344 = vld [vmem:[#allocation14 + $0xd40] sm:$0xff]
    %v2345 = vld [vmem:[#allocation14 + $0xd48] sm:$0xff]
    %v2346 = vld [vmem:[#allocation14 + $0xd50] sm:$0xff]
    %v2347 = vld [vmem:[#allocation14 + $0xd58] sm:$0xff]
    %v2348 = vld [vmem:[#allocation14 + $0xd60] sm:$0xff]
    %v2349 = vld [vmem:[#allocation14 + $0xd68] sm:$0xff]
    %v2350 = vld [vmem:[#allocation14 + $0xd70] sm:$0xff]
    %v2351 = vld [vmem:[#allocation14 + $0xd78] sm:$0xff]
    %v2352 = vld [vmem:[#allocation14 + $0xd80] sm:$0xff]
    %v2353 = vld [vmem:[#allocation14 + $0xd88] sm:$0xff]
    %v2354 = vld [vmem:[#allocation14 + $0xd90] sm:$0xff]
    %v2355 = vld [vmem:[#allocation14 + $0xd98] sm:$0xff]
    %v2356 = vld [vmem:[#allocation14 + $0xda0] sm:$0xff]
    %v2357 = vld [vmem:[#allocation14 + $0xda8] sm:$0xff]
    %v2358 = vld [vmem:[#allocation14 + $0xdb0] sm:$0xff]
    %v2359 = vld [vmem:[#allocation14 + $0xdb8] sm:$0xff]
    %v2360 = vld [vmem:[#allocation14 + $0xdc0] sm:$0xff]
    %v2361 = vld [vmem:[#allocation14 + $0xdc8] sm:$0xff]
    %v2362 = vld [vmem:[#allocation14 + $0xdd0] sm:$0xff]
    %v2363 = vld [vmem:[#allocation14 + $0xdd8] sm:$0xff]
    %v2364 = vld [vmem:[#allocation14 + $0xde0] sm:$0xff]
    %v2365 = vld [vmem:[#allocation14 + $0xde8] sm:$0xff]
    %v2366 = vld [vmem:[#allocation14 + $0xdf0] sm:$0xff]
    %v2367 = vld [vmem:[#allocation14 + $0xdf8] sm:$0xff]
    %v2368 = vld [vmem:[#allocation14 + $0xe00] sm:$0xff]
    %v2369 = vld [vmem:[#allocation14 + $0xe08] sm:$0xff]
    %v2370 = vld [vmem:[#allocation14 + $0xe10] sm:$0xff]
    %v2371 = vld [vmem:[#allocation14 + $0xe18] sm:$0xff]
    %v2372 = vld [vmem:[#allocation14 + $0xe20] sm:$0xff]
    %v2373 = vld [vmem:[#allocation14 + $0xe28] sm:$0xff]
    %v2374 = vld [vmem:[#allocation14 + $0xe30] sm:$0xff]
    %v2375 = vld [vmem:[#allocation14 + $0xe38] sm:$0xff]
    %v2376 = vld [vmem:[#allocation14 + $0xe40] sm:$0xff]
    %v2377 = vld [vmem:[#allocation14 + $0xe48] sm:$0xff]
    %v2378 = vld [vmem:[#allocation14 + $0xe50] sm:$0xff]
    %v2379 = vld [vmem:[#allocation14 + $0xe58] sm:$0xff]
    %v2380 = vld [vmem:[#allocation14 + $0xe60] sm:$0xff]
    %v2381 = vld [vmem:[#allocation14 + $0xe68] sm:$0xff]
    %v2382 = vld [vmem:[#allocation14 + $0xe70] sm:$0xff]
    %v2383 = vld [vmem:[#allocation14 + $0xe78] sm:$0xff]
    %v2384 = vld [vmem:[#allocation14 + $0xe80] sm:$0xff]
    %v2385 = vld [vmem:[#allocation14 + $0xe88] sm:$0xff]
    %v2386 = vld [vmem:[#allocation14 + $0xe90] sm:$0xff]
    %v2387 = vld [vmem:[#allocation14 + $0xe98] sm:$0xff]
    %v2388 = vld [vmem:[#allocation14 + $0xea0] sm:$0xff]
    %v2389 = vld [vmem:[#allocation14 + $0xea8] sm:$0xff]
    %v2390 = vld [vmem:[#allocation14 + $0xeb0] sm:$0xff]
    %v2391 = vld [vmem:[#allocation14 + $0xeb8] sm:$0xff]
    %v2392 = vld [vmem:[#allocation14 + $0xec0] sm:$0xff]
    %v2393 = vld [vmem:[#allocation14 + $0xec8] sm:$0xff]
    %v2394 = vld [vmem:[#allocation14 + $0xed0] sm:$0xff]
    %v2395 = vld [vmem:[#allocation14 + $0xed8] sm:$0xff]
    %v2396 = vld [vmem:[#allocation14 + $0xee0] sm:$0xff]
    %v2397 = vld [vmem:[#allocation14 + $0xee8] sm:$0xff]
    %v2398 = vld [vmem:[#allocation14 + $0xef0] sm:$0xff]
    %v2399 = vld [vmem:[#allocation14 + $0xef8] sm:$0xff]
    %v2400 = vld [vmem:[#allocation14 + $0xf00] sm:$0xff]
    %v2401 = vld [vmem:[#allocation14 + $0xf08] sm:$0xff]
    %v2402 = vld [vmem:[#allocation14 + $0xf10] sm:$0xff]
    %v2403 = vld [vmem:[#allocation14 + $0xf18] sm:$0xff]
    %v2404 = vld [vmem:[#allocation14 + $0xf20] sm:$0xff]
    %v2405 = vld [vmem:[#allocation14 + $0xf28] sm:$0xff]
    %v2406 = vld [vmem:[#allocation14 + $0xf30] sm:$0xff]
    %v2407 = vld [vmem:[#allocation14 + $0xf38] sm:$0xff]
    %v2408 = vld [vmem:[#allocation14 + $0xf40] sm:$0xff]
    %v2409 = vld [vmem:[#allocation14 + $0xf48] sm:$0xff]
    %v2410 = vld [vmem:[#allocation14 + $0xf50] sm:$0xff]
    %v2411 = vld [vmem:[#allocation14 + $0xf58] sm:$0xff]
    %v2412 = vld [vmem:[#allocation14 + $0xf60] sm:$0xff]
    %v2413 = vld [vmem:[#allocation14 + $0xf68] sm:$0xff]
    %v2414 = vld [vmem:[#allocation14 + $0xf70] sm:$0xff]
    %v2415 = vld [vmem:[#allocation14 + $0xf78] sm:$0xff]
    %v2416 = vld [vmem:[#allocation14 + $0xf80] sm:$0xff]
    %v2417 = vld [vmem:[#allocation14 + $0xf88] sm:$0xff]
    %v2418 = vld [vmem:[#allocation14 + $0xf90] sm:$0xff]
    %v2419 = vld [vmem:[#allocation14 + $0xf98] sm:$0xff]
    %v2420 = vld [vmem:[#allocation14 + $0xfa0] sm:$0xff]
    %v2421 = vld [vmem:[#allocation14 + $0xfa8] sm:$0xff]
    %v2422 = vld [vmem:[#allocation14 + $0xfb0] sm:$0xff]
    %v2423 = vld [vmem:[#allocation14 + $0xfb8] sm:$0xff]
    %v2424 = vld [vmem:[#allocation14 + $0xfc0] sm:$0xff]
    %v2425 = vld [vmem:[#allocation14 + $0xfc8] sm:$0xff]
    %v2426 = vld [vmem:[#allocation14 + $0xfd0] sm:$0xff]
    %v2427 = vld [vmem:[#allocation14 + $0xfd8] sm:$0xff]
    %v2428 = vld [vmem:[#allocation14 + $0xfe0] sm:$0xff]
    %v2429 = vld [vmem:[#allocation14 + $0xfe8] sm:$0xff]
    %v2430 = vld [vmem:[#allocation14 + $0xff0] sm:$0xff]
    %v2431 = vld [vmem:[#allocation14 + $0xff8] sm:$0xff]
    %v2432 = vld [vmem:[#allocation16] sm:$0xff]
    %v2434 = vlaneseq
    %v2435 = vshrl.u32 %v2434, 7
    %v2436 = vsub.s32 0, %v2435
    %v2437 = vrot.slane %v2432, %v2436
    %v2438 = vlaneseq
    %v2439 = vshrl.u32 %v2438, 7
    %v2440 = vsub.s32 1, %v2439
    %v2441 = vrot.slane %v2432, %v2440
    %v2442 = vlaneseq
    %v2443 = vshrl.u32 %v2442, 7
    %v2444 = vsub.s32 2, %v2443
    %v2445 = vrot.slane %v2432, %v2444
    %v2446 = vlaneseq
    %v2447 = vshrl.u32 %v2446, 7
    %v2448 = vsub.s32 3, %v2447
    %v2449 = vrot.slane %v2432, %v2448
    %v2450 = vlaneseq
    %v2451 = vshrl.u32 %v2450, 7
    %v2452 = vsub.s32 4, %v2451
    %v2453 = vrot.slane %v2432, %v2452
    %v2454 = vlaneseq
    %v2455 = vshrl.u32 %v2454, 7
    %v2456 = vsub.s32 5, %v2455
    %v2457 = vrot.slane %v2432, %v2456
    %v2458 = vlaneseq
    %v2459 = vshrl.u32 %v2458, 7
    %v2460 = vsub.s32 6, %v2459
    %v2461 = vrot.slane %v2432, %v2460
    %v2462 = vlaneseq
    %v2463 = vshrl.u32 %v2462, 7
    %v2464 = vsub.s32 7, %v2463
    %v2465 = vrot.slane %v2432, %v2464
    %v2986 = vunpack.c.l.b16 %v1920
    %v2987 = vunpack.c.h.b16 %v1920
    %v2988 = vunpack.c.l.b16 %v1921
    %v2989 = vunpack.c.h.b16 %v1921
    %v2990 = vunpack.c.l.b16 %v1922
    %v2991 = vunpack.c.h.b16 %v1922
    %v2992 = vunpack.c.l.b16 %v1923
    %v2993 = vunpack.c.h.b16 %v1923
    %v2994 = vunpack.c.l.b16 %v1924
    %v2995 = vunpack.c.h.b16 %v1924
    %v2996 = vunpack.c.l.b16 %v1925
    %v2997 = vunpack.c.h.b16 %v1925
    %v2998 = vunpack.c.l.b16 %v1926
    %v2999 = vunpack.c.h.b16 %v1926
    %v3000 = vunpack.c.l.b16 %v1927
    %v3001 = vunpack.c.h.b16 %v1927
    %v3002 = vunpack.c.l.b16 %v1928
    %v3003 = vunpack.c.h.b16 %v1928
    %v3004 = vunpack.c.l.b16 %v1929
    %v3005 = vunpack.c.h.b16 %v1929
    %v3006 = vunpack.c.l.b16 %v1930
    %v3007 = vunpack.c.h.b16 %v1930
    %v3008 = vunpack.c.l.b16 %v1931
    %v3009 = vunpack.c.h.b16 %v1931
    %v3010 = vunpack.c.l.b16 %v1932
    %v3011 = vunpack.c.h.b16 %v1932
    %v3012 = vunpack.c.l.b16 %v1933
    %v3013 = vunpack.c.h.b16 %v1933
    %v3014 = vunpack.c.l.b16 %v1934
    %v3015 = vunpack.c.h.b16 %v1934
    %v3016 = vunpack.c.l.b16 %v1935
    %v3017 = vunpack.c.h.b16 %v1935
    %v3018 = vunpack.c.l.b16 %v1936
    %v3019 = vunpack.c.h.b16 %v1936
    %v3020 = vunpack.c.l.b16 %v1937
    %v3021 = vunpack.c.h.b16 %v1937
    %v3022 = vunpack.c.l.b16 %v1938
    %v3023 = vunpack.c.h.b16 %v1938
    %v3024 = vunpack.c.l.b16 %v1939
    %v3025 = vunpack.c.h.b16 %v1939
    %v3026 = vunpack.c.l.b16 %v1940
    %v3027 = vunpack.c.h.b16 %v1940
    %v3028 = vunpack.c.l.b16 %v1941
    %v3029 = vunpack.c.h.b16 %v1941
    %v3030 = vunpack.c.l.b16 %v1942
    %v3031 = vunpack.c.h.b16 %v1942
    %v3032 = vunpack.c.l.b16 %v1943
    %v3033 = vunpack.c.h.b16 %v1943
    %v3034 = vunpack.c.l.b16 %v1944
    %v3035 = vunpack.c.h.b16 %v1944
    %v3036 = vunpack.c.l.b16 %v1945
    %v3037 = vunpack.c.h.b16 %v1945
    %v3038 = vunpack.c.l.b16 %v1946
    %v3039 = vunpack.c.h.b16 %v1946
    %v3040 = vunpack.c.l.b16 %v1947
    %v3041 = vunpack.c.h.b16 %v1947
    %v3042 = vunpack.c.l.b16 %v1948
    %v3043 = vunpack.c.h.b16 %v1948
    %v3044 = vunpack.c.l.b16 %v1949
    %v3045 = vunpack.c.h.b16 %v1949
    %v3046 = vunpack.c.l.b16 %v1950
    %v3047 = vunpack.c.h.b16 %v1950
    %v3048 = vunpack.c.l.b16 %v1951
    %v3049 = vunpack.c.h.b16 %v1951
    %v3050 = vunpack.c.l.b16 %v1952
    %v3051 = vunpack.c.h.b16 %v1952
    %v3052 = vunpack.c.l.b16 %v1953
    %v3053 = vunpack.c.h.b16 %v1953
    %v3054 = vunpack.c.l.b16 %v1954
    %v3055 = vunpack.c.h.b16 %v1954
    %v3056 = vunpack.c.l.b16 %v1955
    %v3057 = vunpack.c.h.b16 %v1955
    %v3058 = vunpack.c.l.b16 %v1956
    %v3059 = vunpack.c.h.b16 %v1956
    %v3060 = vunpack.c.l.b16 %v1957
    %v3061 = vunpack.c.h.b16 %v1957
    %v3062 = vunpack.c.l.b16 %v1958
    %v3063 = vunpack.c.h.b16 %v1958
    %v3064 = vunpack.c.l.b16 %v1959
    %v3065 = vunpack.c.h.b16 %v1959
    %v3066 = vunpack.c.l.b16 %v1960
    %v3067 = vunpack.c.h.b16 %v1960
    %v3068 = vunpack.c.l.b16 %v1961
    %v3069 = vunpack.c.h.b16 %v1961
    %v3070 = vunpack.c.l.b16 %v1962
    %v3071 = vunpack.c.h.b16 %v1962
    %v3072 = vunpack.c.l.b16 %v1963
    %v3073 = vunpack.c.h.b16 %v1963
    %v3074 = vunpack.c.l.b16 %v1964
    %v3075 = vunpack.c.h.b16 %v1964
    %v3076 = vunpack.c.l.b16 %v1965
    %v3077 = vunpack.c.h.b16 %v1965
    %v3078 = vunpack.c.l.b16 %v1966
    %v3079 = vunpack.c.h.b16 %v1966
    %v3080 = vunpack.c.l.b16 %v1967
    %v3081 = vunpack.c.h.b16 %v1967
    %v3082 = vunpack.c.l.b16 %v1968
    %v3083 = vunpack.c.h.b16 %v1968
    %v3084 = vunpack.c.l.b16 %v1969
    %v3085 = vunpack.c.h.b16 %v1969
    %v3086 = vunpack.c.l.b16 %v1970
    %v3087 = vunpack.c.h.b16 %v1970
    %v3088 = vunpack.c.l.b16 %v1971
    %v3089 = vunpack.c.h.b16 %v1971
    %v3090 = vunpack.c.l.b16 %v1972
    %v3091 = vunpack.c.h.b16 %v1972
    %v3092 = vunpack.c.l.b16 %v1973
    %v3093 = vunpack.c.h.b16 %v1973
    %v3094 = vunpack.c.l.b16 %v1974
    %v3095 = vunpack.c.h.b16 %v1974
    %v3096 = vunpack.c.l.b16 %v1975
    %v3097 = vunpack.c.h.b16 %v1975
    %v3098 = vunpack.c.l.b16 %v1976
    %v3099 = vunpack.c.h.b16 %v1976
    %v3100 = vunpack.c.l.b16 %v1977
    %v3101 = vunpack.c.h.b16 %v1977
    %v3102 = vunpack.c.l.b16 %v1978
    %v3103 = vunpack.c.h.b16 %v1978
    %v3104 = vunpack.c.l.b16 %v1979
    %v3105 = vunpack.c.h.b16 %v1979
    %v3106 = vunpack.c.l.b16 %v1980
    %v3107 = vunpack.c.h.b16 %v1980
    %v3108 = vunpack.c.l.b16 %v1981
    %v3109 = vunpack.c.h.b16 %v1981
    %v3110 = vunpack.c.l.b16 %v1982
    %v3111 = vunpack.c.h.b16 %v1982
    %v3112 = vunpack.c.l.b16 %v1983
    %v3113 = vunpack.c.h.b16 %v1983
    %v3114 = vunpack.c.l.b16 %v1984
    %v3115 = vunpack.c.h.b16 %v1984
    %v3116 = vunpack.c.l.b16 %v1985
    %v3117 = vunpack.c.h.b16 %v1985
    %v3118 = vunpack.c.l.b16 %v1986
    %v3119 = vunpack.c.h.b16 %v1986
    %v3120 = vunpack.c.l.b16 %v1987
    %v3121 = vunpack.c.h.b16 %v1987
    %v3122 = vunpack.c.l.b16 %v1988
    %v3123 = vunpack.c.h.b16 %v1988
    %v3124 = vunpack.c.l.b16 %v1989
    %v3125 = vunpack.c.h.b16 %v1989
    %v3126 = vunpack.c.l.b16 %v1990
    %v3127 = vunpack.c.h.b16 %v1990
    %v3128 = vunpack.c.l.b16 %v1991
    %v3129 = vunpack.c.h.b16 %v1991
    %v3130 = vunpack.c.l.b16 %v1992
    %v3131 = vunpack.c.h.b16 %v1992
    %v3132 = vunpack.c.l.b16 %v1993
    %v3133 = vunpack.c.h.b16 %v1993
    %v3134 = vunpack.c.l.b16 %v1994
    %v3135 = vunpack.c.h.b16 %v1994
    %v3136 = vunpack.c.l.b16 %v1995
    %v3137 = vunpack.c.h.b16 %v1995
    %v3138 = vunpack.c.l.b16 %v1996
    %v3139 = vunpack.c.h.b16 %v1996
    %v3140 = vunpack.c.l.b16 %v1997
    %v3141 = vunpack.c.h.b16 %v1997
    %v3142 = vunpack.c.l.b16 %v1998
    %v3143 = vunpack.c.h.b16 %v1998
    %v3144 = vunpack.c.l.b16 %v1999
    %v3145 = vunpack.c.h.b16 %v1999
    %v3146 = vunpack.c.l.b16 %v2000
    %v3147 = vunpack.c.h.b16 %v2000
    %v3148 = vunpack.c.l.b16 %v2001
    %v3149 = vunpack.c.h.b16 %v2001
    %v3150 = vunpack.c.l.b16 %v2002
    %v3151 = vunpack.c.h.b16 %v2002
    %v3152 = vunpack.c.l.b16 %v2003
    %v3153 = vunpack.c.h.b16 %v2003
    %v3154 = vunpack.c.l.b16 %v2004
    %v3155 = vunpack.c.h.b16 %v2004
    %v3156 = vunpack.c.l.b16 %v2005
    %v3157 = vunpack.c.h.b16 %v2005
    %v3158 = vunpack.c.l.b16 %v2006
    %v3159 = vunpack.c.h.b16 %v2006
    %v3160 = vunpack.c.l.b16 %v2007
    %v3161 = vunpack.c.h.b16 %v2007
    %v3162 = vunpack.c.l.b16 %v2008
    %v3163 = vunpack.c.h.b16 %v2008
    %v3164 = vunpack.c.l.b16 %v2009
    %v3165 = vunpack.c.h.b16 %v2009
    %v3166 = vunpack.c.l.b16 %v2010
    %v3167 = vunpack.c.h.b16 %v2010
    %v3168 = vunpack.c.l.b16 %v2011
    %v3169 = vunpack.c.h.b16 %v2011
    %v3170 = vunpack.c.l.b16 %v2012
    %v3171 = vunpack.c.h.b16 %v2012
    %v3172 = vunpack.c.l.b16 %v2013
    %v3173 = vunpack.c.h.b16 %v2013
    %v3174 = vunpack.c.l.b16 %v2014
    %v3175 = vunpack.c.h.b16 %v2014
    %v3176 = vunpack.c.l.b16 %v2015
    %v3177 = vunpack.c.h.b16 %v2015
    %v3178 = vunpack.c.l.b16 %v2016
    %v3179 = vunpack.c.h.b16 %v2016
    %v3180 = vunpack.c.l.b16 %v2017
    %v3181 = vunpack.c.h.b16 %v2017
    %v3182 = vunpack.c.l.b16 %v2018
    %v3183 = vunpack.c.h.b16 %v2018
    %v3184 = vunpack.c.l.b16 %v2019
    %v3185 = vunpack.c.h.b16 %v2019
    %v3186 = vunpack.c.l.b16 %v2020
    %v3187 = vunpack.c.h.b16 %v2020
    %v3188 = vunpack.c.l.b16 %v2021
    %v3189 = vunpack.c.h.b16 %v2021
    %v3190 = vunpack.c.l.b16 %v2022
    %v3191 = vunpack.c.h.b16 %v2022
    %v3192 = vunpack.c.l.b16 %v2023
    %v3193 = vunpack.c.h.b16 %v2023
    %v3194 = vunpack.c.l.b16 %v2024
    %v3195 = vunpack.c.h.b16 %v2024
    %v3196 = vunpack.c.l.b16 %v2025
    %v3197 = vunpack.c.h.b16 %v2025
    %v3198 = vunpack.c.l.b16 %v2026
    %v3199 = vunpack.c.h.b16 %v2026
    %v3200 = vunpack.c.l.b16 %v2027
    %v3201 = vunpack.c.h.b16 %v2027
    %v3202 = vunpack.c.l.b16 %v2028
    %v3203 = vunpack.c.h.b16 %v2028
    %v3204 = vunpack.c.l.b16 %v2029
    %v3205 = vunpack.c.h.b16 %v2029
    %v3206 = vunpack.c.l.b16 %v2030
    %v3207 = vunpack.c.h.b16 %v2030
    %v3208 = vunpack.c.l.b16 %v2031
    %v3209 = vunpack.c.h.b16 %v2031
    %v3210 = vunpack.c.l.b16 %v2032
    %v3211 = vunpack.c.h.b16 %v2032
    %v3212 = vunpack.c.l.b16 %v2033
    %v3213 = vunpack.c.h.b16 %v2033
    %v3214 = vunpack.c.l.b16 %v2034
    %v3215 = vunpack.c.h.b16 %v2034
    %v3216 = vunpack.c.l.b16 %v2035
    %v3217 = vunpack.c.h.b16 %v2035
    %v3218 = vunpack.c.l.b16 %v2036
    %v3219 = vunpack.c.h.b16 %v2036
    %v3220 = vunpack.c.l.b16 %v2037
    %v3221 = vunpack.c.h.b16 %v2037
    %v3222 = vunpack.c.l.b16 %v2038
    %v3223 = vunpack.c.h.b16 %v2038
    %v3224 = vunpack.c.l.b16 %v2039
    %v3225 = vunpack.c.h.b16 %v2039
    %v3226 = vunpack.c.l.b16 %v2040
    %v3227 = vunpack.c.h.b16 %v2040
    %v3228 = vunpack.c.l.b16 %v2041
    %v3229 = vunpack.c.h.b16 %v2041
    %v3230 = vunpack.c.l.b16 %v2042
    %v3231 = vunpack.c.h.b16 %v2042
    %v3232 = vunpack.c.l.b16 %v2043
    %v3233 = vunpack.c.h.b16 %v2043
    %v3234 = vunpack.c.l.b16 %v2044
    %v3235 = vunpack.c.h.b16 %v2044
    %v3236 = vunpack.c.l.b16 %v2045
    %v3237 = vunpack.c.h.b16 %v2045
    %v3238 = vunpack.c.l.b16 %v2046
    %v3239 = vunpack.c.h.b16 %v2046
    %v3240 = vunpack.c.l.b16 %v2047
    %v3241 = vunpack.c.h.b16 %v2047
    %v3242 = vunpack.c.l.b16 %v2048
    %v3243 = vunpack.c.h.b16 %v2048
    %v3244 = vunpack.c.l.b16 %v2049
    %v3245 = vunpack.c.h.b16 %v2049
    %v3246 = vunpack.c.l.b16 %v2050
    %v3247 = vunpack.c.h.b16 %v2050
    %v3248 = vunpack.c.l.b16 %v2051
    %v3249 = vunpack.c.h.b16 %v2051
    %v3250 = vunpack.c.l.b16 %v2052
    %v3251 = vunpack.c.h.b16 %v2052
    %v3252 = vunpack.c.l.b16 %v2053
    %v3253 = vunpack.c.h.b16 %v2053
    %v3254 = vunpack.c.l.b16 %v2054
    %v3255 = vunpack.c.h.b16 %v2054
    %v3256 = vunpack.c.l.b16 %v2055
    %v3257 = vunpack.c.h.b16 %v2055
    %v3258 = vunpack.c.l.b16 %v2056
    %v3259 = vunpack.c.h.b16 %v2056
    %v3260 = vunpack.c.l.b16 %v2057
    %v3261 = vunpack.c.h.b16 %v2057
    %v3262 = vunpack.c.l.b16 %v2058
    %v3263 = vunpack.c.h.b16 %v2058
    %v3264 = vunpack.c.l.b16 %v2059
    %v3265 = vunpack.c.h.b16 %v2059
    %v3266 = vunpack.c.l.b16 %v2060
    %v3267 = vunpack.c.h.b16 %v2060
    %v3268 = vunpack.c.l.b16 %v2061
    %v3269 = vunpack.c.h.b16 %v2061
    %v3270 = vunpack.c.l.b16 %v2062
    %v3271 = vunpack.c.h.b16 %v2062
    %v3272 = vunpack.c.l.b16 %v2063
    %v3273 = vunpack.c.h.b16 %v2063
    %v3274 = vunpack.c.l.b16 %v2064
    %v3275 = vunpack.c.h.b16 %v2064
    %v3276 = vunpack.c.l.b16 %v2065
    %v3277 = vunpack.c.h.b16 %v2065
    %v3278 = vunpack.c.l.b16 %v2066
    %v3279 = vunpack.c.h.b16 %v2066
    %v3280 = vunpack.c.l.b16 %v2067
    %v3281 = vunpack.c.h.b16 %v2067
    %v3282 = vunpack.c.l.b16 %v2068
    %v3283 = vunpack.c.h.b16 %v2068
    %v3284 = vunpack.c.l.b16 %v2069
    %v3285 = vunpack.c.h.b16 %v2069
    %v3286 = vunpack.c.l.b16 %v2070
    %v3287 = vunpack.c.h.b16 %v2070
    %v3288 = vunpack.c.l.b16 %v2071
    %v3289 = vunpack.c.h.b16 %v2071
    %v3290 = vunpack.c.l.b16 %v2072
    %v3291 = vunpack.c.h.b16 %v2072
    %v3292 = vunpack.c.l.b16 %v2073
    %v3293 = vunpack.c.h.b16 %v2073
    %v3294 = vunpack.c.l.b16 %v2074
    %v3295 = vunpack.c.h.b16 %v2074
    %v3296 = vunpack.c.l.b16 %v2075
    %v3297 = vunpack.c.h.b16 %v2075
    %v3298 = vunpack.c.l.b16 %v2076
    %v3299 = vunpack.c.h.b16 %v2076
    %v3300 = vunpack.c.l.b16 %v2077
    %v3301 = vunpack.c.h.b16 %v2077
    %v3302 = vunpack.c.l.b16 %v2078
    %v3303 = vunpack.c.h.b16 %v2078
    %v3304 = vunpack.c.l.b16 %v2079
    %v3305 = vunpack.c.h.b16 %v2079
    %v3306 = vunpack.c.l.b16 %v2080
    %v3307 = vunpack.c.h.b16 %v2080
    %v3308 = vunpack.c.l.b16 %v2081
    %v3309 = vunpack.c.h.b16 %v2081
    %v3310 = vunpack.c.l.b16 %v2082
    %v3311 = vunpack.c.h.b16 %v2082
    %v3312 = vunpack.c.l.b16 %v2083
    %v3313 = vunpack.c.h.b16 %v2083
    %v3314 = vunpack.c.l.b16 %v2084
    %v3315 = vunpack.c.h.b16 %v2084
    %v3316 = vunpack.c.l.b16 %v2085
    %v3317 = vunpack.c.h.b16 %v2085
    %v3318 = vunpack.c.l.b16 %v2086
    %v3319 = vunpack.c.h.b16 %v2086
    %v3320 = vunpack.c.l.b16 %v2087
    %v3321 = vunpack.c.h.b16 %v2087
    %v3322 = vunpack.c.l.b16 %v2088
    %v3323 = vunpack.c.h.b16 %v2088
    %v3324 = vunpack.c.l.b16 %v2089
    %v3325 = vunpack.c.h.b16 %v2089
    %v3326 = vunpack.c.l.b16 %v2090
    %v3327 = vunpack.c.h.b16 %v2090
    %v3328 = vunpack.c.l.b16 %v2091
    %v3329 = vunpack.c.h.b16 %v2091
    %v3330 = vunpack.c.l.b16 %v2092
    %v3331 = vunpack.c.h.b16 %v2092
    %v3332 = vunpack.c.l.b16 %v2093
    %v3333 = vunpack.c.h.b16 %v2093
    %v3334 = vunpack.c.l.b16 %v2094
    %v3335 = vunpack.c.h.b16 %v2094
    %v3336 = vunpack.c.l.b16 %v2095
    %v3337 = vunpack.c.h.b16 %v2095
    %v3338 = vunpack.c.l.b16 %v2096
    %v3339 = vunpack.c.h.b16 %v2096
    %v3340 = vunpack.c.l.b16 %v2097
    %v3341 = vunpack.c.h.b16 %v2097
    %v3342 = vunpack.c.l.b16 %v2098
    %v3343 = vunpack.c.h.b16 %v2098
    %v3344 = vunpack.c.l.b16 %v2099
    %v3345 = vunpack.c.h.b16 %v2099
    %v3346 = vunpack.c.l.b16 %v2100
    %v3347 = vunpack.c.h.b16 %v2100
    %v3348 = vunpack.c.l.b16 %v2101
    %v3349 = vunpack.c.h.b16 %v2101
    %v3350 = vunpack.c.l.b16 %v2102
    %v3351 = vunpack.c.h.b16 %v2102
    %v3352 = vunpack.c.l.b16 %v2103
    %v3353 = vunpack.c.h.b16 %v2103
    %v3354 = vunpack.c.l.b16 %v2104
    %v3355 = vunpack.c.h.b16 %v2104
    %v3356 = vunpack.c.l.b16 %v2105
    %v3357 = vunpack.c.h.b16 %v2105
    %v3358 = vunpack.c.l.b16 %v2106
    %v3359 = vunpack.c.h.b16 %v2106
    %v3360 = vunpack.c.l.b16 %v2107
    %v3361 = vunpack.c.h.b16 %v2107
    %v3362 = vunpack.c.l.b16 %v2108
    %v3363 = vunpack.c.h.b16 %v2108
    %v3364 = vunpack.c.l.b16 %v2109
    %v3365 = vunpack.c.h.b16 %v2109
    %v3366 = vunpack.c.l.b16 %v2110
    %v3367 = vunpack.c.h.b16 %v2110
    %v3368 = vunpack.c.l.b16 %v2111
    %v3369 = vunpack.c.h.b16 %v2111
    %v3370 = vunpack.c.l.b16 %v2112
    %v3371 = vunpack.c.h.b16 %v2112
    %v3372 = vunpack.c.l.b16 %v2113
    %v3373 = vunpack.c.h.b16 %v2113
    %v3374 = vunpack.c.l.b16 %v2114
    %v3375 = vunpack.c.h.b16 %v2114
    %v3376 = vunpack.c.l.b16 %v2115
    %v3377 = vunpack.c.h.b16 %v2115
    %v3378 = vunpack.c.l.b16 %v2116
    %v3379 = vunpack.c.h.b16 %v2116
    %v3380 = vunpack.c.l.b16 %v2117
    %v3381 = vunpack.c.h.b16 %v2117
    %v3382 = vunpack.c.l.b16 %v2118
    %v3383 = vunpack.c.h.b16 %v2118
    %v3384 = vunpack.c.l.b16 %v2119
    %v3385 = vunpack.c.h.b16 %v2119
    %v3386 = vunpack.c.l.b16 %v2120
    %v3387 = vunpack.c.h.b16 %v2120
    %v3388 = vunpack.c.l.b16 %v2121
    %v3389 = vunpack.c.h.b16 %v2121
    %v3390 = vunpack.c.l.b16 %v2122
    %v3391 = vunpack.c.h.b16 %v2122
    %v3392 = vunpack.c.l.b16 %v2123
    %v3393 = vunpack.c.h.b16 %v2123
    %v3394 = vunpack.c.l.b16 %v2124
    %v3395 = vunpack.c.h.b16 %v2124
    %v3396 = vunpack.c.l.b16 %v2125
    %v3397 = vunpack.c.h.b16 %v2125
    %v3398 = vunpack.c.l.b16 %v2126
    %v3399 = vunpack.c.h.b16 %v2126
    %v3400 = vunpack.c.l.b16 %v2127
    %v3401 = vunpack.c.h.b16 %v2127
    %v3402 = vunpack.c.l.b16 %v2128
    %v3403 = vunpack.c.h.b16 %v2128
    %v3404 = vunpack.c.l.b16 %v2129
    %v3405 = vunpack.c.h.b16 %v2129
    %v3406 = vunpack.c.l.b16 %v2130
    %v3407 = vunpack.c.h.b16 %v2130
    %v3408 = vunpack.c.l.b16 %v2131
    %v3409 = vunpack.c.h.b16 %v2131
    %v3410 = vunpack.c.l.b16 %v2132
    %v3411 = vunpack.c.h.b16 %v2132
    %v3412 = vunpack.c.l.b16 %v2133
    %v3413 = vunpack.c.h.b16 %v2133
    %v3414 = vunpack.c.l.b16 %v2134
    %v3415 = vunpack.c.h.b16 %v2134
    %v3416 = vunpack.c.l.b16 %v2135
    %v3417 = vunpack.c.h.b16 %v2135
    %v3418 = vunpack.c.l.b16 %v2136
    %v3419 = vunpack.c.h.b16 %v2136
    %v3420 = vunpack.c.l.b16 %v2137
    %v3421 = vunpack.c.h.b16 %v2137
    %v3422 = vunpack.c.l.b16 %v2138
    %v3423 = vunpack.c.h.b16 %v2138
    %v3424 = vunpack.c.l.b16 %v2139
    %v3425 = vunpack.c.h.b16 %v2139
    %v3426 = vunpack.c.l.b16 %v2140
    %v3427 = vunpack.c.h.b16 %v2140
    %v3428 = vunpack.c.l.b16 %v2141
    %v3429 = vunpack.c.h.b16 %v2141
    %v3430 = vunpack.c.l.b16 %v2142
    %v3431 = vunpack.c.h.b16 %v2142
    %v3432 = vunpack.c.l.b16 %v2143
    %v3433 = vunpack.c.h.b16 %v2143
    %v3434 = vunpack.c.l.b16 %v2144
    %v3435 = vunpack.c.h.b16 %v2144
    %v3436 = vunpack.c.l.b16 %v2145
    %v3437 = vunpack.c.h.b16 %v2145
    %v3438 = vunpack.c.l.b16 %v2146
    %v3439 = vunpack.c.h.b16 %v2146
    %v3440 = vunpack.c.l.b16 %v2147
    %v3441 = vunpack.c.h.b16 %v2147
    %v3442 = vunpack.c.l.b16 %v2148
    %v3443 = vunpack.c.h.b16 %v2148
    %v3444 = vunpack.c.l.b16 %v2149
    %v3445 = vunpack.c.h.b16 %v2149
    %v3446 = vunpack.c.l.b16 %v2150
    %v3447 = vunpack.c.h.b16 %v2150
    %v3448 = vunpack.c.l.b16 %v2151
    %v3449 = vunpack.c.h.b16 %v2151
    %v3450 = vunpack.c.l.b16 %v2152
    %v3451 = vunpack.c.h.b16 %v2152
    %v3452 = vunpack.c.l.b16 %v2153
    %v3453 = vunpack.c.h.b16 %v2153
    %v3454 = vunpack.c.l.b16 %v2154
    %v3455 = vunpack.c.h.b16 %v2154
    %v3456 = vunpack.c.l.b16 %v2155
    %v3457 = vunpack.c.h.b16 %v2155
    %v3458 = vunpack.c.l.b16 %v2156
    %v3459 = vunpack.c.h.b16 %v2156
    %v3460 = vunpack.c.l.b16 %v2157
    %v3461 = vunpack.c.h.b16 %v2157
    %v3462 = vunpack.c.l.b16 %v2158
    %v3463 = vunpack.c.h.b16 %v2158
    %v3464 = vunpack.c.l.b16 %v2159
    %v3465 = vunpack.c.h.b16 %v2159
    %v3466 = vunpack.c.l.b16 %v2160
    %v3467 = vunpack.c.h.b16 %v2160
    %v3468 = vunpack.c.l.b16 %v2161
    %v3469 = vunpack.c.h.b16 %v2161
    %v3470 = vunpack.c.l.b16 %v2162
    %v3471 = vunpack.c.h.b16 %v2162
    %v3472 = vunpack.c.l.b16 %v2163
    %v3473 = vunpack.c.h.b16 %v2163
    %v3474 = vunpack.c.l.b16 %v2164
    %v3475 = vunpack.c.h.b16 %v2164
    %v3476 = vunpack.c.l.b16 %v2165
    %v3477 = vunpack.c.h.b16 %v2165
    %v3478 = vunpack.c.l.b16 %v2166
    %v3479 = vunpack.c.h.b16 %v2166
    %v3480 = vunpack.c.l.b16 %v2167
    %v3481 = vunpack.c.h.b16 %v2167
    %v3482 = vunpack.c.l.b16 %v2168
    %v3483 = vunpack.c.h.b16 %v2168
    %v3484 = vunpack.c.l.b16 %v2169
    %v3485 = vunpack.c.h.b16 %v2169
    %v3486 = vunpack.c.l.b16 %v2170
    %v3487 = vunpack.c.h.b16 %v2170
    %v3488 = vunpack.c.l.b16 %v2171
    %v3489 = vunpack.c.h.b16 %v2171
    %v3490 = vunpack.c.l.b16 %v2172
    %v3491 = vunpack.c.h.b16 %v2172
    %v3492 = vunpack.c.l.b16 %v2173
    %v3493 = vunpack.c.h.b16 %v2173
    %v3494 = vunpack.c.l.b16 %v2174
    %v3495 = vunpack.c.h.b16 %v2174
    %v3496 = vunpack.c.l.b16 %v2175
    %v3497 = vunpack.c.h.b16 %v2175
    %v3498 = vunpack.c.l.b16 %v2176
    %v3499 = vunpack.c.h.b16 %v2176
    %v3500 = vunpack.c.l.b16 %v2177
    %v3501 = vunpack.c.h.b16 %v2177
    %v3502 = vunpack.c.l.b16 %v2178
    %v3503 = vunpack.c.h.b16 %v2178
    %v3504 = vunpack.c.l.b16 %v2179
    %v3505 = vunpack.c.h.b16 %v2179
    %v3506 = vunpack.c.l.b16 %v2180
    %v3507 = vunpack.c.h.b16 %v2180
    %v3508 = vunpack.c.l.b16 %v2181
    %v3509 = vunpack.c.h.b16 %v2181
    %v3510 = vunpack.c.l.b16 %v2182
    %v3511 = vunpack.c.h.b16 %v2182
    %v3512 = vunpack.c.l.b16 %v2183
    %v3513 = vunpack.c.h.b16 %v2183
    %v3514 = vunpack.c.l.b16 %v2184
    %v3515 = vunpack.c.h.b16 %v2184
    %v3516 = vunpack.c.l.b16 %v2185
    %v3517 = vunpack.c.h.b16 %v2185
    %v3518 = vunpack.c.l.b16 %v2186
    %v3519 = vunpack.c.h.b16 %v2186
    %v3520 = vunpack.c.l.b16 %v2187
    %v3521 = vunpack.c.h.b16 %v2187
    %v3522 = vunpack.c.l.b16 %v2188
    %v3523 = vunpack.c.h.b16 %v2188
    %v3524 = vunpack.c.l.b16 %v2189
    %v3525 = vunpack.c.h.b16 %v2189
    %v3526 = vunpack.c.l.b16 %v2190
    %v3527 = vunpack.c.h.b16 %v2190
    %v3528 = vunpack.c.l.b16 %v2191
    %v3529 = vunpack.c.h.b16 %v2191
    %v3530 = vunpack.c.l.b16 %v2192
    %v3531 = vunpack.c.h.b16 %v2192
    %v3532 = vunpack.c.l.b16 %v2193
    %v3533 = vunpack.c.h.b16 %v2193
    %v3534 = vunpack.c.l.b16 %v2194
    %v3535 = vunpack.c.h.b16 %v2194
    %v3536 = vunpack.c.l.b16 %v2195
    %v3537 = vunpack.c.h.b16 %v2195
    %v3538 = vunpack.c.l.b16 %v2196
    %v3539 = vunpack.c.h.b16 %v2196
    %v3540 = vunpack.c.l.b16 %v2197
    %v3541 = vunpack.c.h.b16 %v2197
    %v3542 = vunpack.c.l.b16 %v2198
    %v3543 = vunpack.c.h.b16 %v2198
    %v3544 = vunpack.c.l.b16 %v2199
    %v3545 = vunpack.c.h.b16 %v2199
    %v3546 = vunpack.c.l.b16 %v2200
    %v3547 = vunpack.c.h.b16 %v2200
    %v3548 = vunpack.c.l.b16 %v2201
    %v3549 = vunpack.c.h.b16 %v2201
    %v3550 = vunpack.c.l.b16 %v2202
    %v3551 = vunpack.c.h.b16 %v2202
    %v3552 = vunpack.c.l.b16 %v2203
    %v3553 = vunpack.c.h.b16 %v2203
    %v3554 = vunpack.c.l.b16 %v2204
    %v3555 = vunpack.c.h.b16 %v2204
    %v3556 = vunpack.c.l.b16 %v2205
    %v3557 = vunpack.c.h.b16 %v2205
    %v3558 = vunpack.c.l.b16 %v2206
    %v3559 = vunpack.c.h.b16 %v2206
    %v3560 = vunpack.c.l.b16 %v2207
    %v3561 = vunpack.c.h.b16 %v2207
    %v3562 = vunpack.c.l.b16 %v2208
    %v3563 = vunpack.c.h.b16 %v2208
    %v3564 = vunpack.c.l.b16 %v2209
    %v3565 = vunpack.c.h.b16 %v2209
    %v3566 = vunpack.c.l.b16 %v2210
    %v3567 = vunpack.c.h.b16 %v2210
    %v3568 = vunpack.c.l.b16 %v2211
    %v3569 = vunpack.c.h.b16 %v2211
    %v3570 = vunpack.c.l.b16 %v2212
    %v3571 = vunpack.c.h.b16 %v2212
    %v3572 = vunpack.c.l.b16 %v2213
    %v3573 = vunpack.c.h.b16 %v2213
    %v3574 = vunpack.c.l.b16 %v2214
    %v3575 = vunpack.c.h.b16 %v2214
    %v3576 = vunpack.c.l.b16 %v2215
    %v3577 = vunpack.c.h.b16 %v2215
    %v3578 = vunpack.c.l.b16 %v2216
    %v3579 = vunpack.c.h.b16 %v2216
    %v3580 = vunpack.c.l.b16 %v2217
    %v3581 = vunpack.c.h.b16 %v2217
    %v3582 = vunpack.c.l.b16 %v2218
    %v3583 = vunpack.c.h.b16 %v2218
    %v3584 = vunpack.c.l.b16 %v2219
    %v3585 = vunpack.c.h.b16 %v2219
    %v3586 = vunpack.c.l.b16 %v2220
    %v3587 = vunpack.c.h.b16 %v2220
    %v3588 = vunpack.c.l.b16 %v2221
    %v3589 = vunpack.c.h.b16 %v2221
    %v3590 = vunpack.c.l.b16 %v2222
    %v3591 = vunpack.c.h.b16 %v2222
    %v3592 = vunpack.c.l.b16 %v2223
    %v3593 = vunpack.c.h.b16 %v2223
    %v3594 = vunpack.c.l.b16 %v2224
    %v3595 = vunpack.c.h.b16 %v2224
    %v3596 = vunpack.c.l.b16 %v2225
    %v3597 = vunpack.c.h.b16 %v2225
    %v3598 = vunpack.c.l.b16 %v2226
    %v3599 = vunpack.c.h.b16 %v2226
    %v3600 = vunpack.c.l.b16 %v2227
    %v3601 = vunpack.c.h.b16 %v2227
    %v3602 = vunpack.c.l.b16 %v2228
    %v3603 = vunpack.c.h.b16 %v2228
    %v3604 = vunpack.c.l.b16 %v2229
    %v3605 = vunpack.c.h.b16 %v2229
    %v3606 = vunpack.c.l.b16 %v2230
    %v3607 = vunpack.c.h.b16 %v2230
    %v3608 = vunpack.c.l.b16 %v2231
    %v3609 = vunpack.c.h.b16 %v2231
    %v3610 = vunpack.c.l.b16 %v2232
    %v3611 = vunpack.c.h.b16 %v2232
    %v3612 = vunpack.c.l.b16 %v2233
    %v3613 = vunpack.c.h.b16 %v2233
    %v3614 = vunpack.c.l.b16 %v2234
    %v3615 = vunpack.c.h.b16 %v2234
    %v3616 = vunpack.c.l.b16 %v2235
    %v3617 = vunpack.c.h.b16 %v2235
    %v3618 = vunpack.c.l.b16 %v2236
    %v3619 = vunpack.c.h.b16 %v2236
    %v3620 = vunpack.c.l.b16 %v2237
    %v3621 = vunpack.c.h.b16 %v2237
    %v3622 = vunpack.c.l.b16 %v2238
    %v3623 = vunpack.c.h.b16 %v2238
    %v3624 = vunpack.c.l.b16 %v2239
    %v3625 = vunpack.c.h.b16 %v2239
    %v3626 = vunpack.c.l.b16 %v2240
    %v3627 = vunpack.c.h.b16 %v2240
    %v3628 = vunpack.c.l.b16 %v2241
    %v3629 = vunpack.c.h.b16 %v2241
    %v3630 = vunpack.c.l.b16 %v2242
    %v3631 = vunpack.c.h.b16 %v2242
    %v3632 = vunpack.c.l.b16 %v2243
    %v3633 = vunpack.c.h.b16 %v2243
    %v3634 = vunpack.c.l.b16 %v2244
    %v3635 = vunpack.c.h.b16 %v2244
    %v3636 = vunpack.c.l.b16 %v2245
    %v3637 = vunpack.c.h.b16 %v2245
    %v3638 = vunpack.c.l.b16 %v2246
    %v3639 = vunpack.c.h.b16 %v2246
    %v3640 = vunpack.c.l.b16 %v2247
    %v3641 = vunpack.c.h.b16 %v2247
    %v3642 = vunpack.c.l.b16 %v2248
    %v3643 = vunpack.c.h.b16 %v2248
    %v3644 = vunpack.c.l.b16 %v2249
    %v3645 = vunpack.c.h.b16 %v2249
    %v3646 = vunpack.c.l.b16 %v2250
    %v3647 = vunpack.c.h.b16 %v2250
    %v3648 = vunpack.c.l.b16 %v2251
    %v3649 = vunpack.c.h.b16 %v2251
    %v3650 = vunpack.c.l.b16 %v2252
    %v3651 = vunpack.c.h.b16 %v2252
    %v3652 = vunpack.c.l.b16 %v2253
    %v3653 = vunpack.c.h.b16 %v2253
    %v3654 = vunpack.c.l.b16 %v2254
    %v3655 = vunpack.c.h.b16 %v2254
    %v3656 = vunpack.c.l.b16 %v2255
    %v3657 = vunpack.c.h.b16 %v2255
    %v3658 = vunpack.c.l.b16 %v2256
    %v3659 = vunpack.c.h.b16 %v2256
    %v3660 = vunpack.c.l.b16 %v2257
    %v3661 = vunpack.c.h.b16 %v2257
    %v3662 = vunpack.c.l.b16 %v2258
    %v3663 = vunpack.c.h.b16 %v2258
    %v3664 = vunpack.c.l.b16 %v2259
    %v3665 = vunpack.c.h.b16 %v2259
    %v3666 = vunpack.c.l.b16 %v2260
    %v3667 = vunpack.c.h.b16 %v2260
    %v3668 = vunpack.c.l.b16 %v2261
    %v3669 = vunpack.c.h.b16 %v2261
    %v3670 = vunpack.c.l.b16 %v2262
    %v3671 = vunpack.c.h.b16 %v2262
    %v3672 = vunpack.c.l.b16 %v2263
    %v3673 = vunpack.c.h.b16 %v2263
    %v3674 = vunpack.c.l.b16 %v2264
    %v3675 = vunpack.c.h.b16 %v2264
    %v3676 = vunpack.c.l.b16 %v2265
    %v3677 = vunpack.c.h.b16 %v2265
    %v3678 = vunpack.c.l.b16 %v2266
    %v3679 = vunpack.c.h.b16 %v2266
    %v3680 = vunpack.c.l.b16 %v2267
    %v3681 = vunpack.c.h.b16 %v2267
    %v3682 = vunpack.c.l.b16 %v2268
    %v3683 = vunpack.c.h.b16 %v2268
    %v3684 = vunpack.c.l.b16 %v2269
    %v3685 = vunpack.c.h.b16 %v2269
    %v3686 = vunpack.c.l.b16 %v2270
    %v3687 = vunpack.c.h.b16 %v2270
    %v3688 = vunpack.c.l.b16 %v2271
    %v3689 = vunpack.c.h.b16 %v2271
    %v3690 = vunpack.c.l.b16 %v2272
    %v3691 = vunpack.c.h.b16 %v2272
    %v3692 = vunpack.c.l.b16 %v2273
    %v3693 = vunpack.c.h.b16 %v2273
    %v3694 = vunpack.c.l.b16 %v2274
    %v3695 = vunpack.c.h.b16 %v2274
    %v3696 = vunpack.c.l.b16 %v2275
    %v3697 = vunpack.c.h.b16 %v2275
    %v3698 = vunpack.c.l.b16 %v2276
    %v3699 = vunpack.c.h.b16 %v2276
    %v3700 = vunpack.c.l.b16 %v2277
    %v3701 = vunpack.c.h.b16 %v2277
    %v3702 = vunpack.c.l.b16 %v2278
    %v3703 = vunpack.c.h.b16 %v2278
    %v3704 = vunpack.c.l.b16 %v2279
    %v3705 = vunpack.c.h.b16 %v2279
    %v3706 = vunpack.c.l.b16 %v2280
    %v3707 = vunpack.c.h.b16 %v2280
    %v3708 = vunpack.c.l.b16 %v2281
    %v3709 = vunpack.c.h.b16 %v2281
    %v3710 = vunpack.c.l.b16 %v2282
    %v3711 = vunpack.c.h.b16 %v2282
    %v3712 = vunpack.c.l.b16 %v2283
    %v3713 = vunpack.c.h.b16 %v2283
    %v3714 = vunpack.c.l.b16 %v2284
    %v3715 = vunpack.c.h.b16 %v2284
    %v3716 = vunpack.c.l.b16 %v2285
    %v3717 = vunpack.c.h.b16 %v2285
    %v3718 = vunpack.c.l.b16 %v2286
    %v3719 = vunpack.c.h.b16 %v2286
    %v3720 = vunpack.c.l.b16 %v2287
    %v3721 = vunpack.c.h.b16 %v2287
    %v3722 = vunpack.c.l.b16 %v2288
    %v3723 = vunpack.c.h.b16 %v2288
    %v3724 = vunpack.c.l.b16 %v2289
    %v3725 = vunpack.c.h.b16 %v2289
    %v3726 = vunpack.c.l.b16 %v2290
    %v3727 = vunpack.c.h.b16 %v2290
    %v3728 = vunpack.c.l.b16 %v2291
    %v3729 = vunpack.c.h.b16 %v2291
    %v3730 = vunpack.c.l.b16 %v2292
    %v3731 = vunpack.c.h.b16 %v2292
    %v3732 = vunpack.c.l.b16 %v2293
    %v3733 = vunpack.c.h.b16 %v2293
    %v3734 = vunpack.c.l.b16 %v2294
    %v3735 = vunpack.c.h.b16 %v2294
    %v3736 = vunpack.c.l.b16 %v2295
    %v3737 = vunpack.c.h.b16 %v2295
    %v3738 = vunpack.c.l.b16 %v2296
    %v3739 = vunpack.c.h.b16 %v2296
    %v3740 = vunpack.c.l.b16 %v2297
    %v3741 = vunpack.c.h.b16 %v2297
    %v3742 = vunpack.c.l.b16 %v2298
    %v3743 = vunpack.c.h.b16 %v2298
    %v3744 = vunpack.c.l.b16 %v2299
    %v3745 = vunpack.c.h.b16 %v2299
    %v3746 = vunpack.c.l.b16 %v2300
    %v3747 = vunpack.c.h.b16 %v2300
    %v3748 = vunpack.c.l.b16 %v2301
    %v3749 = vunpack.c.h.b16 %v2301
    %v3750 = vunpack.c.l.b16 %v2302
    %v3751 = vunpack.c.h.b16 %v2302
    %v3752 = vunpack.c.l.b16 %v2303
    %v3753 = vunpack.c.h.b16 %v2303
    %v3754 = vunpack.c.l.b16 %v2304
    %v3755 = vunpack.c.h.b16 %v2304
    %v3756 = vunpack.c.l.b16 %v2305
    %v3757 = vunpack.c.h.b16 %v2305
    %v3758 = vunpack.c.l.b16 %v2306
    %v3759 = vunpack.c.h.b16 %v2306
    %v3760 = vunpack.c.l.b16 %v2307
    %v3761 = vunpack.c.h.b16 %v2307
    %v3762 = vunpack.c.l.b16 %v2308
    %v3763 = vunpack.c.h.b16 %v2308
    %v3764 = vunpack.c.l.b16 %v2309
    %v3765 = vunpack.c.h.b16 %v2309
    %v3766 = vunpack.c.l.b16 %v2310
    %v3767 = vunpack.c.h.b16 %v2310
    %v3768 = vunpack.c.l.b16 %v2311
    %v3769 = vunpack.c.h.b16 %v2311
    %v3770 = vunpack.c.l.b16 %v2312
    %v3771 = vunpack.c.h.b16 %v2312
    %v3772 = vunpack.c.l.b16 %v2313
    %v3773 = vunpack.c.h.b16 %v2313
    %v3774 = vunpack.c.l.b16 %v2314
    %v3775 = vunpack.c.h.b16 %v2314
    %v3776 = vunpack.c.l.b16 %v2315
    %v3777 = vunpack.c.h.b16 %v2315
    %v3778 = vunpack.c.l.b16 %v2316
    %v3779 = vunpack.c.h.b16 %v2316
    %v3780 = vunpack.c.l.b16 %v2317
    %v3781 = vunpack.c.h.b16 %v2317
    %v3782 = vunpack.c.l.b16 %v2318
    %v3783 = vunpack.c.h.b16 %v2318
    %v3784 = vunpack.c.l.b16 %v2319
    %v3785 = vunpack.c.h.b16 %v2319
    %v3786 = vunpack.c.l.b16 %v2320
    %v3787 = vunpack.c.h.b16 %v2320
    %v3788 = vunpack.c.l.b16 %v2321
    %v3789 = vunpack.c.h.b16 %v2321
    %v3790 = vunpack.c.l.b16 %v2322
    %v3791 = vunpack.c.h.b16 %v2322
    %v3792 = vunpack.c.l.b16 %v2323
    %v3793 = vunpack.c.h.b16 %v2323
    %v3794 = vunpack.c.l.b16 %v2324
    %v3795 = vunpack.c.h.b16 %v2324
    %v3796 = vunpack.c.l.b16 %v2325
    %v3797 = vunpack.c.h.b16 %v2325
    %v3798 = vunpack.c.l.b16 %v2326
    %v3799 = vunpack.c.h.b16 %v2326
    %v3800 = vunpack.c.l.b16 %v2327
    %v3801 = vunpack.c.h.b16 %v2327
    %v3802 = vunpack.c.l.b16 %v2328
    %v3803 = vunpack.c.h.b16 %v2328
    %v3804 = vunpack.c.l.b16 %v2329
    %v3805 = vunpack.c.h.b16 %v2329
    %v3806 = vunpack.c.l.b16 %v2330
    %v3807 = vunpack.c.h.b16 %v2330
    %v3808 = vunpack.c.l.b16 %v2331
    %v3809 = vunpack.c.h.b16 %v2331
    %v3810 = vunpack.c.l.b16 %v2332
    %v3811 = vunpack.c.h.b16 %v2332
    %v3812 = vunpack.c.l.b16 %v2333
    %v3813 = vunpack.c.h.b16 %v2333
    %v3814 = vunpack.c.l.b16 %v2334
    %v3815 = vunpack.c.h.b16 %v2334
    %v3816 = vunpack.c.l.b16 %v2335
    %v3817 = vunpack.c.h.b16 %v2335
    %v3818 = vunpack.c.l.b16 %v2336
    %v3819 = vunpack.c.h.b16 %v2336
    %v3820 = vunpack.c.l.b16 %v2337
    %v3821 = vunpack.c.h.b16 %v2337
    %v3822 = vunpack.c.l.b16 %v2338
    %v3823 = vunpack.c.h.b16 %v2338
    %v3824 = vunpack.c.l.b16 %v2339
    %v3825 = vunpack.c.h.b16 %v2339
    %v3826 = vunpack.c.l.b16 %v2340
    %v3827 = vunpack.c.h.b16 %v2340
    %v3828 = vunpack.c.l.b16 %v2341
    %v3829 = vunpack.c.h.b16 %v2341
    %v3830 = vunpack.c.l.b16 %v2342
    %v3831 = vunpack.c.h.b16 %v2342
    %v3832 = vunpack.c.l.b16 %v2343
    %v3833 = vunpack.c.h.b16 %v2343
    %v3834 = vunpack.c.l.b16 %v2344
    %v3835 = vunpack.c.h.b16 %v2344
    %v3836 = vunpack.c.l.b16 %v2345
    %v3837 = vunpack.c.h.b16 %v2345
    %v3838 = vunpack.c.l.b16 %v2346
    %v3839 = vunpack.c.h.b16 %v2346
    %v3840 = vunpack.c.l.b16 %v2347
    %v3841 = vunpack.c.h.b16 %v2347
    %v3842 = vunpack.c.l.b16 %v2348
    %v3843 = vunpack.c.h.b16 %v2348
    %v3844 = vunpack.c.l.b16 %v2349
    %v3845 = vunpack.c.h.b16 %v2349
    %v3846 = vunpack.c.l.b16 %v2350
    %v3847 = vunpack.c.h.b16 %v2350
    %v3848 = vunpack.c.l.b16 %v2351
    %v3849 = vunpack.c.h.b16 %v2351
    %v3850 = vunpack.c.l.b16 %v2352
    %v3851 = vunpack.c.h.b16 %v2352
    %v3852 = vunpack.c.l.b16 %v2353
    %v3853 = vunpack.c.h.b16 %v2353
    %v3854 = vunpack.c.l.b16 %v2354
    %v3855 = vunpack.c.h.b16 %v2354
    %v3856 = vunpack.c.l.b16 %v2355
    %v3857 = vunpack.c.h.b16 %v2355
    %v3858 = vunpack.c.l.b16 %v2356
    %v3859 = vunpack.c.h.b16 %v2356
    %v3860 = vunpack.c.l.b16 %v2357
    %v3861 = vunpack.c.h.b16 %v2357
    %v3862 = vunpack.c.l.b16 %v2358
    %v3863 = vunpack.c.h.b16 %v2358
    %v3864 = vunpack.c.l.b16 %v2359
    %v3865 = vunpack.c.h.b16 %v2359
    %v3866 = vunpack.c.l.b16 %v2360
    %v3867 = vunpack.c.h.b16 %v2360
    %v3868 = vunpack.c.l.b16 %v2361
    %v3869 = vunpack.c.h.b16 %v2361
    %v3870 = vunpack.c.l.b16 %v2362
    %v3871 = vunpack.c.h.b16 %v2362
    %v3872 = vunpack.c.l.b16 %v2363
    %v3873 = vunpack.c.h.b16 %v2363
    %v3874 = vunpack.c.l.b16 %v2364
    %v3875 = vunpack.c.h.b16 %v2364
    %v3876 = vunpack.c.l.b16 %v2365
    %v3877 = vunpack.c.h.b16 %v2365
    %v3878 = vunpack.c.l.b16 %v2366
    %v3879 = vunpack.c.h.b16 %v2366
    %v3880 = vunpack.c.l.b16 %v2367
    %v3881 = vunpack.c.h.b16 %v2367
    %v3882 = vunpack.c.l.b16 %v2368
    %v3883 = vunpack.c.h.b16 %v2368
    %v3884 = vunpack.c.l.b16 %v2369
    %v3885 = vunpack.c.h.b16 %v2369
    %v3886 = vunpack.c.l.b16 %v2370
    %v3887 = vunpack.c.h.b16 %v2370
    %v3888 = vunpack.c.l.b16 %v2371
    %v3889 = vunpack.c.h.b16 %v2371
    %v3890 = vunpack.c.l.b16 %v2372
    %v3891 = vunpack.c.h.b16 %v2372
    %v3892 = vunpack.c.l.b16 %v2373
    %v3893 = vunpack.c.h.b16 %v2373
    %v3894 = vunpack.c.l.b16 %v2374
    %v3895 = vunpack.c.h.b16 %v2374
    %v3896 = vunpack.c.l.b16 %v2375
    %v3897 = vunpack.c.h.b16 %v2375
    %v3898 = vunpack.c.l.b16 %v2376
    %v3899 = vunpack.c.h.b16 %v2376
    %v3900 = vunpack.c.l.b16 %v2377
    %v3901 = vunpack.c.h.b16 %v2377
    %v3902 = vunpack.c.l.b16 %v2378
    %v3903 = vunpack.c.h.b16 %v2378
    %v3904 = vunpack.c.l.b16 %v2379
    %v3905 = vunpack.c.h.b16 %v2379
    %v3906 = vunpack.c.l.b16 %v2380
    %v3907 = vunpack.c.h.b16 %v2380
    %v3908 = vunpack.c.l.b16 %v2381
    %v3909 = vunpack.c.h.b16 %v2381
    %v3910 = vunpack.c.l.b16 %v2382
    %v3911 = vunpack.c.h.b16 %v2382
    %v3912 = vunpack.c.l.b16 %v2383
    %v3913 = vunpack.c.h.b16 %v2383
    %v3914 = vunpack.c.l.b16 %v2384
    %v3915 = vunpack.c.h.b16 %v2384
    %v3916 = vunpack.c.l.b16 %v2385
    %v3917 = vunpack.c.h.b16 %v2385
    %v3918 = vunpack.c.l.b16 %v2386
    %v3919 = vunpack.c.h.b16 %v2386
    %v3920 = vunpack.c.l.b16 %v2387
    %v3921 = vunpack.c.h.b16 %v2387
    %v3922 = vunpack.c.l.b16 %v2388
    %v3923 = vunpack.c.h.b16 %v2388
    %v3924 = vunpack.c.l.b16 %v2389
    %v3925 = vunpack.c.h.b16 %v2389
    %v3926 = vunpack.c.l.b16 %v2390
    %v3927 = vunpack.c.h.b16 %v2390
    %v3928 = vunpack.c.l.b16 %v2391
    %v3929 = vunpack.c.h.b16 %v2391
    %v3930 = vunpack.c.l.b16 %v2392
    %v3931 = vunpack.c.h.b16 %v2392
    %v3932 = vunpack.c.l.b16 %v2393
    %v3933 = vunpack.c.h.b16 %v2393
    %v3934 = vunpack.c.l.b16 %v2394
    %v3935 = vunpack.c.h.b16 %v2394
    %v3936 = vunpack.c.l.b16 %v2395
    %v3937 = vunpack.c.h.b16 %v2395
    %v3938 = vunpack.c.l.b16 %v2396
    %v3939 = vunpack.c.h.b16 %v2396
    %v3940 = vunpack.c.l.b16 %v2397
    %v3941 = vunpack.c.h.b16 %v2397
    %v3942 = vunpack.c.l.b16 %v2398
    %v3943 = vunpack.c.h.b16 %v2398
    %v3944 = vunpack.c.l.b16 %v2399
    %v3945 = vunpack.c.h.b16 %v2399
    %v3946 = vunpack.c.l.b16 %v2400
    %v3947 = vunpack.c.h.b16 %v2400
    %v3948 = vunpack.c.l.b16 %v2401
    %v3949 = vunpack.c.h.b16 %v2401
    %v3950 = vunpack.c.l.b16 %v2402
    %v3951 = vunpack.c.h.b16 %v2402
    %v3952 = vunpack.c.l.b16 %v2403
    %v3953 = vunpack.c.h.b16 %v2403
    %v3954 = vunpack.c.l.b16 %v2404
    %v3955 = vunpack.c.h.b16 %v2404
    %v3956 = vunpack.c.l.b16 %v2405
    %v3957 = vunpack.c.h.b16 %v2405
    %v3958 = vunpack.c.l.b16 %v2406
    %v3959 = vunpack.c.h.b16 %v2406
    %v3960 = vunpack.c.l.b16 %v2407
    %v3961 = vunpack.c.h.b16 %v2407
    %v3962 = vunpack.c.l.b16 %v2408
    %v3963 = vunpack.c.h.b16 %v2408
    %v3964 = vunpack.c.l.b16 %v2409
    %v3965 = vunpack.c.h.b16 %v2409
    %v3966 = vunpack.c.l.b16 %v2410
    %v3967 = vunpack.c.h.b16 %v2410
    %v3968 = vunpack.c.l.b16 %v2411
    %v3969 = vunpack.c.h.b16 %v2411
    %v3970 = vunpack.c.l.b16 %v2412
    %v3971 = vunpack.c.h.b16 %v2412
    %v3972 = vunpack.c.l.b16 %v2413
    %v3973 = vunpack.c.h.b16 %v2413
    %v3974 = vunpack.c.l.b16 %v2414
    %v3975 = vunpack.c.h.b16 %v2414
    %v3976 = vunpack.c.l.b16 %v2415
    %v3977 = vunpack.c.h.b16 %v2415
    %v3978 = vunpack.c.l.b16 %v2416
    %v3979 = vunpack.c.h.b16 %v2416
    %v3980 = vunpack.c.l.b16 %v2417
    %v3981 = vunpack.c.h.b16 %v2417
    %v3982 = vunpack.c.l.b16 %v2418
    %v3983 = vunpack.c.h.b16 %v2418
    %v3984 = vunpack.c.l.b16 %v2419
    %v3985 = vunpack.c.h.b16 %v2419
    %v3986 = vunpack.c.l.b16 %v2420
    %v3987 = vunpack.c.h.b16 %v2420
    %v3988 = vunpack.c.l.b16 %v2421
    %v3989 = vunpack.c.h.b16 %v2421
    %v3990 = vunpack.c.l.b16 %v2422
    %v3991 = vunpack.c.h.b16 %v2422
    %v3992 = vunpack.c.l.b16 %v2423
    %v3993 = vunpack.c.h.b16 %v2423
    %v3994 = vunpack.c.l.b16 %v2424
    %v3995 = vunpack.c.h.b16 %v2424
    %v3996 = vunpack.c.l.b16 %v2425
    %v3997 = vunpack.c.h.b16 %v2425
    %v3998 = vunpack.c.l.b16 %v2426
    %v3999 = vunpack.c.h.b16 %v2426
    %v4000 = vunpack.c.l.b16 %v2427
    %v4001 = vunpack.c.h.b16 %v2427
    %v4002 = vunpack.c.l.b16 %v2428
    %v4003 = vunpack.c.h.b16 %v2428
    %v4004 = vunpack.c.l.b16 %v2429
    %v4005 = vunpack.c.h.b16 %v2429
    %v4006 = vunpack.c.l.b16 %v2430
    %v4007 = vunpack.c.h.b16 %v2430
    %v4008 = vunpack.c.l.b16 %v2431
    %v4009 = vunpack.c.h.b16 %v2431
    %v4010 = vpack.c.b16 %v2994, %v2986
    %v4011 = vpack.c.b16 %v2995, %v2987
    %v4012 = vpack.c.b16 %v2996, %v2988
    %v4013 = vpack.c.b16 %v2997, %v2989
    %v4014 = vpack.c.b16 %v2998, %v2990
    %v4015 = vpack.c.b16 %v2999, %v2991
    %v4016 = vpack.c.b16 %v3000, %v2992
    %v4017 = vpack.c.b16 %v3001, %v2993
    %v4018 = vpack.c.b16 %v3010, %v3002
    %v4019 = vpack.c.b16 %v3011, %v3003
    %v4020 = vpack.c.b16 %v3012, %v3004
    %v4021 = vpack.c.b16 %v3013, %v3005
    %v4022 = vpack.c.b16 %v3014, %v3006
    %v4023 = vpack.c.b16 %v3015, %v3007
    %v4024 = vpack.c.b16 %v3016, %v3008
    %v4025 = vpack.c.b16 %v3017, %v3009
    %v4026 = vpack.c.b16 %v3026, %v3018
    %v4027 = vpack.c.b16 %v3027, %v3019
    %v4028 = vpack.c.b16 %v3028, %v3020
    %v4029 = vpack.c.b16 %v3029, %v3021
    %v4030 = vpack.c.b16 %v3030, %v3022
    %v4031 = vpack.c.b16 %v3031, %v3023
    %v4032 = vpack.c.b16 %v3032, %v3024
    %v4033 = vpack.c.b16 %v3033, %v3025
    %v4034 = vpack.c.b16 %v3042, %v3034
    %v4035 = vpack.c.b16 %v3043, %v3035
    %v4036 = vpack.c.b16 %v3044, %v3036
    %v4037 = vpack.c.b16 %v3045, %v3037
    %v4038 = vpack.c.b16 %v3046, %v3038
    %v4039 = vpack.c.b16 %v3047, %v3039
    %v4040 = vpack.c.b16 %v3048, %v3040
    %v4041 = vpack.c.b16 %v3049, %v3041
    %v4042 = vpack.c.b16 %v3058, %v3050
    %v4043 = vpack.c.b16 %v3059, %v3051
    %v4044 = vpack.c.b16 %v3060, %v3052
    %v4045 = vpack.c.b16 %v3061, %v3053
    %v4046 = vpack.c.b16 %v3062, %v3054
    %v4047 = vpack.c.b16 %v3063, %v3055
    %v4048 = vpack.c.b16 %v3064, %v3056
    %v4049 = vpack.c.b16 %v3065, %v3057
    %v4050 = vpack.c.b16 %v3074, %v3066
    %v4051 = vpack.c.b16 %v3075, %v3067
    %v4052 = vpack.c.b16 %v3076, %v3068
    %v4053 = vpack.c.b16 %v3077, %v3069
    %v4054 = vpack.c.b16 %v3078, %v3070
    %v4055 = vpack.c.b16 %v3079, %v3071
    %v4056 = vpack.c.b16 %v3080, %v3072
    %v4057 = vpack.c.b16 %v3081, %v3073
    %v4058 = vpack.c.b16 %v3090, %v3082
    %v4059 = vpack.c.b16 %v3091, %v3083
    %v4060 = vpack.c.b16 %v3092, %v3084
    %v4061 = vpack.c.b16 %v3093, %v3085
    %v4062 = vpack.c.b16 %v3094, %v3086
    %v4063 = vpack.c.b16 %v3095, %v3087
    %v4064 = vpack.c.b16 %v3096, %v3088
    %v4065 = vpack.c.b16 %v3097, %v3089
    %v4066 = vpack.c.b16 %v3106, %v3098
    %v4067 = vpack.c.b16 %v3107, %v3099
    %v4068 = vpack.c.b16 %v3108, %v3100
    %v4069 = vpack.c.b16 %v3109, %v3101
    %v4070 = vpack.c.b16 %v3110, %v3102
    %v4071 = vpack.c.b16 %v3111, %v3103
    %v4072 = vpack.c.b16 %v3112, %v3104
    %v4073 = vpack.c.b16 %v3113, %v3105
    %v4074 = vpack.c.b16 %v3122, %v3114
    %v4075 = vpack.c.b16 %v3123, %v3115
    %v4076 = vpack.c.b16 %v3124, %v3116
    %v4077 = vpack.c.b16 %v3125, %v3117
    %v4078 = vpack.c.b16 %v3126, %v3118
    %v4079 = vpack.c.b16 %v3127, %v3119
    %v4080 = vpack.c.b16 %v3128, %v3120
    %v4081 = vpack.c.b16 %v3129, %v3121
    %v4082 = vpack.c.b16 %v3138, %v3130
    %v4083 = vpack.c.b16 %v3139, %v3131
    %v4084 = vpack.c.b16 %v3140, %v3132
    %v4085 = vpack.c.b16 %v3141, %v3133
    %v4086 = vpack.c.b16 %v3142, %v3134
    %v4087 = vpack.c.b16 %v3143, %v3135
    %v4088 = vpack.c.b16 %v3144, %v3136
    %v4089 = vpack.c.b16 %v3145, %v3137
    %v4090 = vpack.c.b16 %v3154, %v3146
    %v4091 = vpack.c.b16 %v3155, %v3147
    %v4092 = vpack.c.b16 %v3156, %v3148
    %v4093 = vpack.c.b16 %v3157, %v3149
    %v4094 = vpack.c.b16 %v3158, %v3150
    %v4095 = vpack.c.b16 %v3159, %v3151
    %v4096 = vpack.c.b16 %v3160, %v3152
    %v4097 = vpack.c.b16 %v3161, %v3153
    %v4098 = vpack.c.b16 %v3170, %v3162
    %v4099 = vpack.c.b16 %v3171, %v3163
    %v4100 = vpack.c.b16 %v3172, %v3164
    %v4101 = vpack.c.b16 %v3173, %v3165
    %v4102 = vpack.c.b16 %v3174, %v3166
    %v4103 = vpack.c.b16 %v3175, %v3167
    %v4104 = vpack.c.b16 %v3176, %v3168
    %v4105 = vpack.c.b16 %v3177, %v3169
    %v4106 = vpack.c.b16 %v3186, %v3178
    %v4107 = vpack.c.b16 %v3187, %v3179
    %v4108 = vpack.c.b16 %v3188, %v3180
    %v4109 = vpack.c.b16 %v3189, %v3181
    %v4110 = vpack.c.b16 %v3190, %v3182
    %v4111 = vpack.c.b16 %v3191, %v3183
    %v4112 = vpack.c.b16 %v3192, %v3184
    %v4113 = vpack.c.b16 %v3193, %v3185
    %v4114 = vpack.c.b16 %v3202, %v3194
    %v4115 = vpack.c.b16 %v3203, %v3195
    %v4116 = vpack.c.b16 %v3204, %v3196
    %v4117 = vpack.c.b16 %v3205, %v3197
    %v4118 = vpack.c.b16 %v3206, %v3198
    %v4119 = vpack.c.b16 %v3207, %v3199
    %v4120 = vpack.c.b16 %v3208, %v3200
    %v4121 = vpack.c.b16 %v3209, %v3201
    %v4122 = vpack.c.b16 %v3218, %v3210
    %v4123 = vpack.c.b16 %v3219, %v3211
    %v4124 = vpack.c.b16 %v3220, %v3212
    %v4125 = vpack.c.b16 %v3221, %v3213
    %v4126 = vpack.c.b16 %v3222, %v3214
    %v4127 = vpack.c.b16 %v3223, %v3215
    %v4128 = vpack.c.b16 %v3224, %v3216
    %v4129 = vpack.c.b16 %v3225, %v3217
    %v4130 = vpack.c.b16 %v3234, %v3226
    %v4131 = vpack.c.b16 %v3235, %v3227
    %v4132 = vpack.c.b16 %v3236, %v3228
    %v4133 = vpack.c.b16 %v3237, %v3229
    %v4134 = vpack.c.b16 %v3238, %v3230
    %v4135 = vpack.c.b16 %v3239, %v3231
    %v4136 = vpack.c.b16 %v3240, %v3232
    %v4137 = vpack.c.b16 %v3241, %v3233
    %v4138 = vpack.c.b16 %v3250, %v3242
    %v4139 = vpack.c.b16 %v3251, %v3243
    %v4140 = vpack.c.b16 %v3252, %v3244
    %v4141 = vpack.c.b16 %v3253, %v3245
    %v4142 = vpack.c.b16 %v3254, %v3246
    %v4143 = vpack.c.b16 %v3255, %v3247
    %v4144 = vpack.c.b16 %v3256, %v3248
    %v4145 = vpack.c.b16 %v3257, %v3249
    %v4146 = vpack.c.b16 %v3266, %v3258
    %v4147 = vpack.c.b16 %v3267, %v3259
    %v4148 = vpack.c.b16 %v3268, %v3260
    %v4149 = vpack.c.b16 %v3269, %v3261
    %v4150 = vpack.c.b16 %v3270, %v3262
    %v4151 = vpack.c.b16 %v3271, %v3263
    %v4152 = vpack.c.b16 %v3272, %v3264
    %v4153 = vpack.c.b16 %v3273, %v3265
    %v4154 = vpack.c.b16 %v3282, %v3274
    %v4155 = vpack.c.b16 %v3283, %v3275
    %v4156 = vpack.c.b16 %v3284, %v3276
    %v4157 = vpack.c.b16 %v3285, %v3277
    %v4158 = vpack.c.b16 %v3286, %v3278
    %v4159 = vpack.c.b16 %v3287, %v3279
    %v4160 = vpack.c.b16 %v3288, %v3280
    %v4161 = vpack.c.b16 %v3289, %v3281
    %v4162 = vpack.c.b16 %v3298, %v3290
    %v4163 = vpack.c.b16 %v3299, %v3291
    %v4164 = vpack.c.b16 %v3300, %v3292
    %v4165 = vpack.c.b16 %v3301, %v3293
    %v4166 = vpack.c.b16 %v3302, %v3294
    %v4167 = vpack.c.b16 %v3303, %v3295
    %v4168 = vpack.c.b16 %v3304, %v3296
    %v4169 = vpack.c.b16 %v3305, %v3297
    %v4170 = vpack.c.b16 %v3314, %v3306
    %v4171 = vpack.c.b16 %v3315, %v3307
    %v4172 = vpack.c.b16 %v3316, %v3308
    %v4173 = vpack.c.b16 %v3317, %v3309
    %v4174 = vpack.c.b16 %v3318, %v3310
    %v4175 = vpack.c.b16 %v3319, %v3311
    %v4176 = vpack.c.b16 %v3320, %v3312
    %v4177 = vpack.c.b16 %v3321, %v3313
    %v4178 = vpack.c.b16 %v3330, %v3322
    %v4179 = vpack.c.b16 %v3331, %v3323
    %v4180 = vpack.c.b16 %v3332, %v3324
    %v4181 = vpack.c.b16 %v3333, %v3325
    %v4182 = vpack.c.b16 %v3334, %v3326
    %v4183 = vpack.c.b16 %v3335, %v3327
    %v4184 = vpack.c.b16 %v3336, %v3328
    %v4185 = vpack.c.b16 %v3337, %v3329
    %v4186 = vpack.c.b16 %v3346, %v3338
    %v4187 = vpack.c.b16 %v3347, %v3339
    %v4188 = vpack.c.b16 %v3348, %v3340
    %v4189 = vpack.c.b16 %v3349, %v3341
    %v4190 = vpack.c.b16 %v3350, %v3342
    %v4191 = vpack.c.b16 %v3351, %v3343
    %v4192 = vpack.c.b16 %v3352, %v3344
    %v4193 = vpack.c.b16 %v3353, %v3345
    %v4194 = vpack.c.b16 %v3362, %v3354
    %v4195 = vpack.c.b16 %v3363, %v3355
    %v4196 = vpack.c.b16 %v3364, %v3356
    %v4197 = vpack.c.b16 %v3365, %v3357
    %v4198 = vpack.c.b16 %v3366, %v3358
    %v4199 = vpack.c.b16 %v3367, %v3359
    %v4200 = vpack.c.b16 %v3368, %v3360
    %v4201 = vpack.c.b16 %v3369, %v3361
    %v4202 = vpack.c.b16 %v3378, %v3370
    %v4203 = vpack.c.b16 %v3379, %v3371
    %v4204 = vpack.c.b16 %v3380, %v3372
    %v4205 = vpack.c.b16 %v3381, %v3373
    %v4206 = vpack.c.b16 %v3382, %v3374
    %v4207 = vpack.c.b16 %v3383, %v3375
    %v4208 = vpack.c.b16 %v3384, %v3376
    %v4209 = vpack.c.b16 %v3385, %v3377
    %v4210 = vpack.c.b16 %v3394, %v3386
    %v4211 = vpack.c.b16 %v3395, %v3387
    %v4212 = vpack.c.b16 %v3396, %v3388
    %v4213 = vpack.c.b16 %v3397, %v3389
    %v4214 = vpack.c.b16 %v3398, %v3390
    %v4215 = vpack.c.b16 %v3399, %v3391
    %v4216 = vpack.c.b16 %v3400, %v3392
    %v4217 = vpack.c.b16 %v3401, %v3393
    %v4218 = vpack.c.b16 %v3410, %v3402
    %v4219 = vpack.c.b16 %v3411, %v3403
    %v4220 = vpack.c.b16 %v3412, %v3404
    %v4221 = vpack.c.b16 %v3413, %v3405
    %v4222 = vpack.c.b16 %v3414, %v3406
    %v4223 = vpack.c.b16 %v3415, %v3407
    %v4224 = vpack.c.b16 %v3416, %v3408
    %v4225 = vpack.c.b16 %v3417, %v3409
    %v4226 = vpack.c.b16 %v3426, %v3418
    %v4227 = vpack.c.b16 %v3427, %v3419
    %v4228 = vpack.c.b16 %v3428, %v3420
    %v4229 = vpack.c.b16 %v3429, %v3421
    %v4230 = vpack.c.b16 %v3430, %v3422
    %v4231 = vpack.c.b16 %v3431, %v3423
    %v4232 = vpack.c.b16 %v3432, %v3424
    %v4233 = vpack.c.b16 %v3433, %v3425
    %v4234 = vpack.c.b16 %v3442, %v3434
    %v4235 = vpack.c.b16 %v3443, %v3435
    %v4236 = vpack.c.b16 %v3444, %v3436
    %v4237 = vpack.c.b16 %v3445, %v3437
    %v4238 = vpack.c.b16 %v3446, %v3438
    %v4239 = vpack.c.b16 %v3447, %v3439
    %v4240 = vpack.c.b16 %v3448, %v3440
    %v4241 = vpack.c.b16 %v3449, %v3441
    %v4242 = vpack.c.b16 %v3458, %v3450
    %v4243 = vpack.c.b16 %v3459, %v3451
    %v4244 = vpack.c.b16 %v3460, %v3452
    %v4245 = vpack.c.b16 %v3461, %v3453
    %v4246 = vpack.c.b16 %v3462, %v3454
    %v4247 = vpack.c.b16 %v3463, %v3455
    %v4248 = vpack.c.b16 %v3464, %v3456
    %v4249 = vpack.c.b16 %v3465, %v3457
    %v4250 = vpack.c.b16 %v3474, %v3466
    %v4251 = vpack.c.b16 %v3475, %v3467
    %v4252 = vpack.c.b16 %v3476, %v3468
    %v4253 = vpack.c.b16 %v3477, %v3469
    %v4254 = vpack.c.b16 %v3478, %v3470
    %v4255 = vpack.c.b16 %v3479, %v3471
    %v4256 = vpack.c.b16 %v3480, %v3472
    %v4257 = vpack.c.b16 %v3481, %v3473
    %v4258 = vpack.c.b16 %v3490, %v3482
    %v4259 = vpack.c.b16 %v3491, %v3483
    %v4260 = vpack.c.b16 %v3492, %v3484
    %v4261 = vpack.c.b16 %v3493, %v3485
    %v4262 = vpack.c.b16 %v3494, %v3486
    %v4263 = vpack.c.b16 %v3495, %v3487
    %v4264 = vpack.c.b16 %v3496, %v3488
    %v4265 = vpack.c.b16 %v3497, %v3489
    %v4266 = vpack.c.b16 %v3506, %v3498
    %v4267 = vpack.c.b16 %v3507, %v3499
    %v4268 = vpack.c.b16 %v3508, %v3500
    %v4269 = vpack.c.b16 %v3509, %v3501
    %v4270 = vpack.c.b16 %v3510, %v3502
    %v4271 = vpack.c.b16 %v3511, %v3503
    %v4272 = vpack.c.b16 %v3512, %v3504
    %v4273 = vpack.c.b16 %v3513, %v3505
    %v4274 = vpack.c.b16 %v3522, %v3514
    %v4275 = vpack.c.b16 %v3523, %v3515
    %v4276 = vpack.c.b16 %v3524, %v3516
    %v4277 = vpack.c.b16 %v3525, %v3517
    %v4278 = vpack.c.b16 %v3526, %v3518
    %v4279 = vpack.c.b16 %v3527, %v3519
    %v4280 = vpack.c.b16 %v3528, %v3520
    %v4281 = vpack.c.b16 %v3529, %v3521
    %v4282 = vpack.c.b16 %v3538, %v3530
    %v4283 = vpack.c.b16 %v3539, %v3531
    %v4284 = vpack.c.b16 %v3540, %v3532
    %v4285 = vpack.c.b16 %v3541, %v3533
    %v4286 = vpack.c.b16 %v3542, %v3534
    %v4287 = vpack.c.b16 %v3543, %v3535
    %v4288 = vpack.c.b16 %v3544, %v3536
    %v4289 = vpack.c.b16 %v3545, %v3537
    %v4290 = vpack.c.b16 %v3554, %v3546
    %v4291 = vpack.c.b16 %v3555, %v3547
    %v4292 = vpack.c.b16 %v3556, %v3548
    %v4293 = vpack.c.b16 %v3557, %v3549
    %v4294 = vpack.c.b16 %v3558, %v3550
    %v4295 = vpack.c.b16 %v3559, %v3551
    %v4296 = vpack.c.b16 %v3560, %v3552
    %v4297 = vpack.c.b16 %v3561, %v3553
    %v4298 = vpack.c.b16 %v3570, %v3562
    %v4299 = vpack.c.b16 %v3571, %v3563
    %v4300 = vpack.c.b16 %v3572, %v3564
    %v4301 = vpack.c.b16 %v3573, %v3565
    %v4302 = vpack.c.b16 %v3574, %v3566
    %v4303 = vpack.c.b16 %v3575, %v3567
    %v4304 = vpack.c.b16 %v3576, %v3568
    %v4305 = vpack.c.b16 %v3577, %v3569
    %v4306 = vpack.c.b16 %v3586, %v3578
    %v4307 = vpack.c.b16 %v3587, %v3579
    %v4308 = vpack.c.b16 %v3588, %v3580
    %v4309 = vpack.c.b16 %v3589, %v3581
    %v4310 = vpack.c.b16 %v3590, %v3582
    %v4311 = vpack.c.b16 %v3591, %v3583
    %v4312 = vpack.c.b16 %v3592, %v3584
    %v4313 = vpack.c.b16 %v3593, %v3585
    %v4314 = vpack.c.b16 %v3602, %v3594
    %v4315 = vpack.c.b16 %v3603, %v3595
    %v4316 = vpack.c.b16 %v3604, %v3596
    %v4317 = vpack.c.b16 %v3605, %v3597
    %v4318 = vpack.c.b16 %v3606, %v3598
    %v4319 = vpack.c.b16 %v3607, %v3599
    %v4320 = vpack.c.b16 %v3608, %v3600
    %v4321 = vpack.c.b16 %v3609, %v3601
    %v4322 = vpack.c.b16 %v3618, %v3610
    %v4323 = vpack.c.b16 %v3619, %v3611
    %v4324 = vpack.c.b16 %v3620, %v3612
    %v4325 = vpack.c.b16 %v3621, %v3613
    %v4326 = vpack.c.b16 %v3622, %v3614
    %v4327 = vpack.c.b16 %v3623, %v3615
    %v4328 = vpack.c.b16 %v3624, %v3616
    %v4329 = vpack.c.b16 %v3625, %v3617
    %v4330 = vpack.c.b16 %v3634, %v3626
    %v4331 = vpack.c.b16 %v3635, %v3627
    %v4332 = vpack.c.b16 %v3636, %v3628
    %v4333 = vpack.c.b16 %v3637, %v3629
    %v4334 = vpack.c.b16 %v3638, %v3630
    %v4335 = vpack.c.b16 %v3639, %v3631
    %v4336 = vpack.c.b16 %v3640, %v3632
    %v4337 = vpack.c.b16 %v3641, %v3633
    %v4338 = vpack.c.b16 %v3650, %v3642
    %v4339 = vpack.c.b16 %v3651, %v3643
    %v4340 = vpack.c.b16 %v3652, %v3644
    %v4341 = vpack.c.b16 %v3653, %v3645
    %v4342 = vpack.c.b16 %v3654, %v3646
    %v4343 = vpack.c.b16 %v3655, %v3647
    %v4344 = vpack.c.b16 %v3656, %v3648
    %v4345 = vpack.c.b16 %v3657, %v3649
    %v4346 = vpack.c.b16 %v3666, %v3658
    %v4347 = vpack.c.b16 %v3667, %v3659
    %v4348 = vpack.c.b16 %v3668, %v3660
    %v4349 = vpack.c.b16 %v3669, %v3661
    %v4350 = vpack.c.b16 %v3670, %v3662
    %v4351 = vpack.c.b16 %v3671, %v3663
    %v4352 = vpack.c.b16 %v3672, %v3664
    %v4353 = vpack.c.b16 %v3673, %v3665
    %v4354 = vpack.c.b16 %v3682, %v3674
    %v4355 = vpack.c.b16 %v3683, %v3675
    %v4356 = vpack.c.b16 %v3684, %v3676
    %v4357 = vpack.c.b16 %v3685, %v3677
    %v4358 = vpack.c.b16 %v3686, %v3678
    %v4359 = vpack.c.b16 %v3687, %v3679
    %v4360 = vpack.c.b16 %v3688, %v3680
    %v4361 = vpack.c.b16 %v3689, %v3681
    %v4362 = vpack.c.b16 %v3698, %v3690
    %v4363 = vpack.c.b16 %v3699, %v3691
    %v4364 = vpack.c.b16 %v3700, %v3692
    %v4365 = vpack.c.b16 %v3701, %v3693
    %v4366 = vpack.c.b16 %v3702, %v3694
    %v4367 = vpack.c.b16 %v3703, %v3695
    %v4368 = vpack.c.b16 %v3704, %v3696
    %v4369 = vpack.c.b16 %v3705, %v3697
    %v4370 = vpack.c.b16 %v3714, %v3706
    %v4371 = vpack.c.b16 %v3715, %v3707
    %v4372 = vpack.c.b16 %v3716, %v3708
    %v4373 = vpack.c.b16 %v3717, %v3709
    %v4374 = vpack.c.b16 %v3718, %v3710
    %v4375 = vpack.c.b16 %v3719, %v3711
    %v4376 = vpack.c.b16 %v3720, %v3712
    %v4377 = vpack.c.b16 %v3721, %v3713
    %v4378 = vpack.c.b16 %v3730, %v3722
    %v4379 = vpack.c.b16 %v3731, %v3723
    %v4380 = vpack.c.b16 %v3732, %v3724
    %v4381 = vpack.c.b16 %v3733, %v3725
    %v4382 = vpack.c.b16 %v3734, %v3726
    %v4383 = vpack.c.b16 %v3735, %v3727
    %v4384 = vpack.c.b16 %v3736, %v3728
    %v4385 = vpack.c.b16 %v3737, %v3729
    %v4386 = vpack.c.b16 %v3746, %v3738
    %v4387 = vpack.c.b16 %v3747, %v3739
    %v4388 = vpack.c.b16 %v3748, %v3740
    %v4389 = vpack.c.b16 %v3749, %v3741
    %v4390 = vpack.c.b16 %v3750, %v3742
    %v4391 = vpack.c.b16 %v3751, %v3743
    %v4392 = vpack.c.b16 %v3752, %v3744
    %v4393 = vpack.c.b16 %v3753, %v3745
    %v4394 = vpack.c.b16 %v3762, %v3754
    %v4395 = vpack.c.b16 %v3763, %v3755
    %v4396 = vpack.c.b16 %v3764, %v3756
    %v4397 = vpack.c.b16 %v3765, %v3757
    %v4398 = vpack.c.b16 %v3766, %v3758
    %v4399 = vpack.c.b16 %v3767, %v3759
    %v4400 = vpack.c.b16 %v3768, %v3760
    %v4401 = vpack.c.b16 %v3769, %v3761
    %v4402 = vpack.c.b16 %v3778, %v3770
    %v4403 = vpack.c.b16 %v3779, %v3771
    %v4404 = vpack.c.b16 %v3780, %v3772
    %v4405 = vpack.c.b16 %v3781, %v3773
    %v4406 = vpack.c.b16 %v3782, %v3774
    %v4407 = vpack.c.b16 %v3783, %v3775
    %v4408 = vpack.c.b16 %v3784, %v3776
    %v4409 = vpack.c.b16 %v3785, %v3777
    %v4410 = vpack.c.b16 %v3794, %v3786
    %v4411 = vpack.c.b16 %v3795, %v3787
    %v4412 = vpack.c.b16 %v3796, %v3788
    %v4413 = vpack.c.b16 %v3797, %v3789
    %v4414 = vpack.c.b16 %v3798, %v3790
    %v4415 = vpack.c.b16 %v3799, %v3791
    %v4416 = vpack.c.b16 %v3800, %v3792
    %v4417 = vpack.c.b16 %v3801, %v3793
    %v4418 = vpack.c.b16 %v3810, %v3802
    %v4419 = vpack.c.b16 %v3811, %v3803
    %v4420 = vpack.c.b16 %v3812, %v3804
    %v4421 = vpack.c.b16 %v3813, %v3805
    %v4422 = vpack.c.b16 %v3814, %v3806
    %v4423 = vpack.c.b16 %v3815, %v3807
    %v4424 = vpack.c.b16 %v3816, %v3808
    %v4425 = vpack.c.b16 %v3817, %v3809
    %v4426 = vpack.c.b16 %v3826, %v3818
    %v4427 = vpack.c.b16 %v3827, %v3819
    %v4428 = vpack.c.b16 %v3828, %v3820
    %v4429 = vpack.c.b16 %v3829, %v3821
    %v4430 = vpack.c.b16 %v3830, %v3822
    %v4431 = vpack.c.b16 %v3831, %v3823
    %v4432 = vpack.c.b16 %v3832, %v3824
    %v4433 = vpack.c.b16 %v3833, %v3825
    %v4434 = vpack.c.b16 %v3842, %v3834
    %v4435 = vpack.c.b16 %v3843, %v3835
    %v4436 = vpack.c.b16 %v3844, %v3836
    %v4437 = vpack.c.b16 %v3845, %v3837
    %v4438 = vpack.c.b16 %v3846, %v3838
    %v4439 = vpack.c.b16 %v3847, %v3839
    %v4440 = vpack.c.b16 %v3848, %v3840
    %v4441 = vpack.c.b16 %v3849, %v3841
    %v4442 = vpack.c.b16 %v3858, %v3850
    %v4443 = vpack.c.b16 %v3859, %v3851
    %v4444 = vpack.c.b16 %v3860, %v3852
    %v4445 = vpack.c.b16 %v3861, %v3853
    %v4446 = vpack.c.b16 %v3862, %v3854
    %v4447 = vpack.c.b16 %v3863, %v3855
    %v4448 = vpack.c.b16 %v3864, %v3856
    %v4449 = vpack.c.b16 %v3865, %v3857
    %v4450 = vpack.c.b16 %v3874, %v3866
    %v4451 = vpack.c.b16 %v3875, %v3867
    %v4452 = vpack.c.b16 %v3876, %v3868
    %v4453 = vpack.c.b16 %v3877, %v3869
    %v4454 = vpack.c.b16 %v3878, %v3870
    %v4455 = vpack.c.b16 %v3879, %v3871
    %v4456 = vpack.c.b16 %v3880, %v3872
    %v4457 = vpack.c.b16 %v3881, %v3873
    %v4458 = vpack.c.b16 %v3890, %v3882
    %v4459 = vpack.c.b16 %v3891, %v3883
    %v4460 = vpack.c.b16 %v3892, %v3884
    %v4461 = vpack.c.b16 %v3893, %v3885
    %v4462 = vpack.c.b16 %v3894, %v3886
    %v4463 = vpack.c.b16 %v3895, %v3887
    %v4464 = vpack.c.b16 %v3896, %v3888
    %v4465 = vpack.c.b16 %v3897, %v3889
    %v4466 = vpack.c.b16 %v3906, %v3898
    %v4467 = vpack.c.b16 %v3907, %v3899
    %v4468 = vpack.c.b16 %v3908, %v3900
    %v4469 = vpack.c.b16 %v3909, %v3901
    %v4470 = vpack.c.b16 %v3910, %v3902
    %v4471 = vpack.c.b16 %v3911, %v3903
    %v4472 = vpack.c.b16 %v3912, %v3904
    %v4473 = vpack.c.b16 %v3913, %v3905
    %v4474 = vpack.c.b16 %v3922, %v3914
    %v4475 = vpack.c.b16 %v3923, %v3915
    %v4476 = vpack.c.b16 %v3924, %v3916
    %v4477 = vpack.c.b16 %v3925, %v3917
    %v4478 = vpack.c.b16 %v3926, %v3918
    %v4479 = vpack.c.b16 %v3927, %v3919
    %v4480 = vpack.c.b16 %v3928, %v3920
    %v4481 = vpack.c.b16 %v3929, %v3921
    %v4482 = vpack.c.b16 %v3938, %v3930
    %v4483 = vpack.c.b16 %v3939, %v3931
    %v4484 = vpack.c.b16 %v3940, %v3932
    %v4485 = vpack.c.b16 %v3941, %v3933
    %v4486 = vpack.c.b16 %v3942, %v3934
    %v4487 = vpack.c.b16 %v3943, %v3935
    %v4488 = vpack.c.b16 %v3944, %v3936
    %v4489 = vpack.c.b16 %v3945, %v3937
    %v4490 = vpack.c.b16 %v3954, %v3946
    %v4491 = vpack.c.b16 %v3955, %v3947
    %v4492 = vpack.c.b16 %v3956, %v3948
    %v4493 = vpack.c.b16 %v3957, %v3949
    %v4494 = vpack.c.b16 %v3958, %v3950
    %v4495 = vpack.c.b16 %v3959, %v3951
    %v4496 = vpack.c.b16 %v3960, %v3952
    %v4497 = vpack.c.b16 %v3961, %v3953
    %v4498 = vpack.c.b16 %v3970, %v3962
    %v4499 = vpack.c.b16 %v3971, %v3963
    %v4500 = vpack.c.b16 %v3972, %v3964
    %v4501 = vpack.c.b16 %v3973, %v3965
    %v4502 = vpack.c.b16 %v3974, %v3966
    %v4503 = vpack.c.b16 %v3975, %v3967
    %v4504 = vpack.c.b16 %v3976, %v3968
    %v4505 = vpack.c.b16 %v3977, %v3969
    %v4506 = vpack.c.b16 %v3986, %v3978
    %v4507 = vpack.c.b16 %v3987, %v3979
    %v4508 = vpack.c.b16 %v3988, %v3980
    %v4509 = vpack.c.b16 %v3989, %v3981
    %v4510 = vpack.c.b16 %v3990, %v3982
    %v4511 = vpack.c.b16 %v3991, %v3983
    %v4512 = vpack.c.b16 %v3992, %v3984
    %v4513 = vpack.c.b16 %v3993, %v3985
    %v4514 = vpack.c.b16 %v4002, %v3994
    %v4515 = vpack.c.b16 %v4003, %v3995
    %v4516 = vpack.c.b16 %v4004, %v3996
    %v4517 = vpack.c.b16 %v4005, %v3997
    %v4518 = vpack.c.b16 %v4006, %v3998
    %v4519 = vpack.c.b16 %v4007, %v3999
    %v4520 = vpack.c.b16 %v4008, %v4000
    %v4521 = vpack.c.b16 %v4009, %v4001
    %5034 = vmatprep.subr.bf16.mxu0 %v4011
    %5035 = vmatpush1.bf16.msra.mxu0 %v4010
    %5036 = vmatprep.subr.bf16.mxu0 %v4019
    %5037 = vmatpush1.bf16.msra.mxu0 %v4018
    %5038 = vmatprep.subr.bf16.mxu0 %v4027
    %5039 = vmatpush1.bf16.msra.mxu0 %v4026
    %5040 = vmatprep.subr.bf16.mxu0 %v4035
    %5041 = vmatpush1.bf16.msra.mxu0 %v4034
    %5042 = vmatprep.subr.bf16.mxu0 %v4043
    %5043 = vmatpush1.bf16.msra.mxu0 %v4042
    %5044 = vmatprep.subr.bf16.mxu0 %v4051
    %5045 = vmatpush1.bf16.msra.mxu0 %v4050
    %5046 = vmatprep.subr.bf16.mxu0 %v4059
    %5047 = vmatpush1.bf16.msra.mxu0 %v4058
    %5048 = vmatprep.subr.bf16.mxu0 %v4067
    %5049 = vmatpush1.bf16.msra.mxu0 %v4066
    %5050 = vmatprep.subr.bf16.mxu0 %v4075
    %5051 = vmatpush1.bf16.msra.mxu0 %v4074
    %5052 = vmatprep.subr.bf16.mxu0 %v4083
    %5053 = vmatpush1.bf16.msra.mxu0 %v4082
    %5054 = vmatprep.subr.bf16.mxu0 %v4091
    %5055 = vmatpush1.bf16.msra.mxu0 %v4090
    %5056 = vmatprep.subr.bf16.mxu0 %v4099
    %5057 = vmatpush1.bf16.msra.mxu0 %v4098
    %5058 = vmatprep.subr.bf16.mxu0 %v4107
    %5059 = vmatpush1.bf16.msra.mxu0 %v4106
    %5060 = vmatprep.subr.bf16.mxu0 %v4115
    %5061 = vmatpush1.bf16.msra.mxu0 %v4114
    %5062 = vmatprep.subr.bf16.mxu0 %v4123
    %5063 = vmatpush1.bf16.msra.mxu0 %v4122
    %5064 = vmatprep.subr.bf16.mxu0 %v4131
    %5065 = vmatpush1.bf16.msra.mxu0 %v4130
    %5066 = vmatprep.mubr.bf16.mxu0 %v1913
    %5067 = vmatmul.mubr.bf16.gmra.mrb[0].mxu0 %v1912
    %v5068 = vpop.f32.mrb[0].mxu0
    %v5069 = vadd.f32 %v2437, %v5068
    %v5070 = vpop.f32.mrb[0].mxu0
    %v5071 = vadd.f32 %v2441, %v5070
    %v5072 = vpop.f32.mrb[0].mxu0
    %v5073 = vpop.f32.mrb[0].mxu0
    %5074 = vdwg.mxu0
    %5075 = vmatprep.subr.bf16.mxu0 %v4139
    %5076 = vmatpush1.bf16.msra.mxu0 %v4138
    %5077 = vmatprep.subr.bf16.mxu0 %v4147
    %5078 = vmatpush1.bf16.msra.mxu0 %v4146
    %5079 = vmatprep.subr.bf16.mxu0 %v4155
    %5080 = vmatpush1.bf16.msra.mxu0 %v4154
    %5081 = vmatprep.subr.bf16.mxu0 %v4163
    %5082 = vmatpush1.bf16.msra.mxu0 %v4162
    %5083 = vmatprep.subr.bf16.mxu0 %v4171
    %5084 = vmatpush1.bf16.msra.mxu0 %v4170
    %5085 = vmatprep.subr.bf16.mxu0 %v4179
    %5086 = vmatpush1.bf16.msra.mxu0 %v4178
    %5087 = vmatprep.subr.bf16.mxu0 %v4187
    %5088 = vmatpush1.bf16.msra.mxu0 %v4186
    %5089 = vmatprep.subr.bf16.mxu0 %v4195
    %5090 = vmatpush1.bf16.msra.mxu0 %v4194
    %5091 = vmatprep.subr.bf16.mxu0 %v4203
    %5092 = vmatpush1.bf16.msra.mxu0 %v4202
    %5093 = vmatprep.subr.bf16.mxu0 %v4211
    %5094 = vmatpush1.bf16.msra.mxu0 %v4210
    %5095 = vmatprep.subr.bf16.mxu0 %v4219
    %5096 = vmatpush1.bf16.msra.mxu0 %v4218
    %5097 = vmatprep.subr.bf16.mxu0 %v4227
    %5098 = vmatpush1.bf16.msra.mxu0 %v4226
    %5099 = vmatprep.subr.bf16.mxu0 %v4235
    %5100 = vmatpush1.bf16.msra.mxu0 %v4234
    %5101 = vmatprep.subr.bf16.mxu0 %v4243
    %5102 = vmatpush1.bf16.msra.mxu0 %v4242
    %5103 = vmatprep.subr.bf16.mxu0 %v4251
    %5104 = vmatpush1.bf16.msra.mxu0 %v4250
    %5105 = vmatprep.subr.bf16.mxu0 %v4259
    %5106 = vmatpush1.bf16.msra.mxu0 %v4258
    %5107 = vmatprep.mubr.bf16.mxu0 %v1915
    %5108 = vmatmul.mubr.bf16.gmra.mrb[0].mxu0 %v1914
    %v5109 = vpop.f32.mrb[0].mxu0
    %v5110 = vadd.f32 %v5069, %v5109
    %v5111 = vpop.f32.mrb[0].mxu0
    %v5112 = vadd.f32 %v5071, %v5111
    %v5113 = vpop.f32.mrb[0].mxu0
    %v5114 = vpop.f32.mrb[0].mxu0
    %5115 = vdwg.mxu0
    %5116 = vmatprep.subr.bf16.mxu0 %v4267
    %5117 = vmatpush1.bf16.msra.mxu0 %v4266
    %5118 = vmatprep.subr.bf16.mxu0 %v4275
    %5119 = vmatpush1.bf16.msra.mxu0 %v4274
    %5120 = vmatprep.subr.bf16.mxu0 %v4283
    %5121 = vmatpush1.bf16.msra.mxu0 %v4282
    %5122 = vmatprep.subr.bf16.mxu0 %v4291
    %5123 = vmatpush1.bf16.msra.mxu0 %v4290
    %5124 = vmatprep.subr.bf16.mxu0 %v4299
    %5125 = vmatpush1.bf16.msra.mxu0 %v4298
    %5126 = vmatprep.subr.bf16.mxu0 %v4307
    %5127 = vmatpush1.bf16.msra.mxu0 %v4306
    %5128 = vmatprep.subr.bf16.mxu0 %v4315
    %5129 = vmatpush1.bf16.msra.mxu0 %v4314
    %5130 = vmatprep.subr.bf16.mxu0 %v4323
    %5131 = vmatpush1.bf16.msra.mxu0 %v4322
    %5132 = vmatprep.subr.bf16.mxu0 %v4331
    %5133 = vmatpush1.bf16.msra.mxu0 %v4330
    %5134 = vmatprep.subr.bf16.mxu0 %v4339
    %5135 = vmatpush1.bf16.msra.mxu0 %v4338
    %5136 = vmatprep.subr.bf16.mxu0 %v4347
    %5137 = vmatpush1.bf16.msra.mxu0 %v4346
    %5138 = vmatprep.subr.bf16.mxu0 %v4355
    %5139 = vmatpush1.bf16.msra.mxu0 %v4354
    %5140 = vmatprep.subr.bf16.mxu0 %v4363
    %5141 = vmatpush1.bf16.msra.mxu0 %v4362
    %5142 = vmatprep.subr.bf16.mxu0 %v4371
    %5143 = vmatpush1.bf16.msra.mxu0 %v4370
    %5144 = vmatprep.subr.bf16.mxu0 %v4379
    %5145 = vmatpush1.bf16.msra.mxu0 %v4378
    %5146 = vmatprep.subr.bf16.mxu0 %v4387
    %5147 = vmatpush1.bf16.msra.mxu0 %v4386
    %5148 = vmatprep.mubr.bf16.mxu0 %v1917
    %5149 = vmatmul.mubr.bf16.gmra.mrb[0].mxu0 %v1916
    %v5150 = vpop.f32.mrb[0].mxu0
    %v5151 = vadd.f32 %v5110, %v5150
    %v5152 = vpop.f32.mrb[0].mxu0
    %v5153 = vadd.f32 %v5112, %v5152
    %v5154 = vpop.f32.mrb[0].mxu0
    %v5155 = vpop.f32.mrb[0].mxu0
    %5156 = vdwg.mxu0
    %5157 = vmatprep.subr.bf16.mxu0 %v4395
    %5158 = vmatpush1.bf16.msra.mxu0 %v4394
    %5159 = vmatprep.subr.bf16.mxu0 %v4403
    %5160 = vmatpush1.bf16.msra.mxu0 %v4402
    %5161 = vmatprep.subr.bf16.mxu0 %v4411
    %5162 = vmatpush1.bf16.msra.mxu0 %v4410
    %5163 = vmatprep.subr.bf16.mxu0 %v4419
    %5164 = vmatpush1.bf16.msra.mxu0 %v4418
    %5165 = vmatprep.subr.bf16.mxu0 %v4427
    %5166 = vmatpush1.bf16.msra.mxu0 %v4426
    %5167 = vmatprep.subr.bf16.mxu0 %v4435
    %5168 = vmatpush1.bf16.msra.mxu0 %v4434
    %5169 = vmatprep.subr.bf16.mxu0 %v4443
    %5170 = vmatpush1.bf16.msra.mxu0 %v4442
    %5171 = vmatprep.subr.bf16.mxu0 %v4451
    %5172 = vmatpush1.bf16.msra.mxu0 %v4450
    %5173 = vmatprep.subr.bf16.mxu0 %v4459
    %5174 = vmatpush1.bf16.msra.mxu0 %v4458
    %5175 = vmatprep.subr.bf16.mxu0 %v4467
    %5176 = vmatpush1.bf16.msra.mxu0 %v4466
    %5177 = vmatprep.subr.bf16.mxu0 %v4475
    %5178 = vmatpush1.bf16.msra.mxu0 %v4474
    %5179 = vmatprep.subr.bf16.mxu0 %v4483
    %5180 = vmatpush1.bf16.msra.mxu0 %v4482
    %5181 = vmatprep.subr.bf16.mxu0 %v4491
    %5182 = vmatpush1.bf16.msra.mxu0 %v4490
    %5183 = vmatprep.subr.bf16.mxu0 %v4499
    %5184 = vmatpush1.bf16.msra.mxu0 %v4498
    %5185 = vmatprep.subr.bf16.mxu0 %v4507
    %5186 = vmatpush1.bf16.msra.mxu0 %v4506
    %5187 = vmatprep.subr.bf16.mxu0 %v4515
    %5188 = vmatpush1.bf16.msra.mxu0 %v4514
    %5189 = vmatprep.mubr.bf16.mxu0 %v1919
    %5190 = vmatmul.mubr.bf16.gmra.mrb[0].mxu0 %v1918
    %v5191 = vpop.f32.mrb[0].mxu0
    %v5192 = vadd.f32 %v5151, %v5191
    %v5193 = vpop.f32.mrb[0].mxu0
    %v5194 = vadd.f32 %v5153, %v5193
    %v5195 = vpop.f32.mrb[0].mxu0
    %v5196 = vpop.f32.mrb[0].mxu0
    %5197 = vdwg.mxu0
    %5198 = vmatprep.subr.bf16.mxu0 %v4013
    %5199 = vmatpush1.bf16.msra.mxu0 %v4012
    %5200 = vmatprep.subr.bf16.mxu0 %v4021
    %5201 = vmatpush1.bf16.msra.mxu0 %v4020
    %5202 = vmatprep.subr.bf16.mxu0 %v4029
    %5203 = vmatpush1.bf16.msra.mxu0 %v4028
    %5204 = vmatprep.subr.bf16.mxu0 %v4037
    %5205 = vmatpush1.bf16.msra.mxu0 %v4036
    %5206 = vmatprep.subr.bf16.mxu0 %v4045
    %5207 = vmatpush1.bf16.msra.mxu0 %v4044
    %5208 = vmatprep.subr.bf16.mxu0 %v4053
    %5209 = vmatpush1.bf16.msra.mxu0 %v4052
    %5210 = vmatprep.subr.bf16.mxu0 %v4061
    %5211 = vmatpush1.bf16.msra.mxu0 %v4060
    %5212 = vmatprep.subr.bf16.mxu0 %v4069
    %5213 = vmatpush1.bf16.msra.mxu0 %v4068
    %5214 = vmatprep.subr.bf16.mxu0 %v4077
    %5215 = vmatpush1.bf16.msra.mxu0 %v4076
    %5216 = vmatprep.subr.bf16.mxu0 %v4085
    %5217 = vmatpush1.bf16.msra.mxu0 %v4084
    %5218 = vmatprep.subr.bf16.mxu0 %v4093
    %5219 = vmatpush1.bf16.msra.mxu0 %v4092
    %5220 = vmatprep.subr.bf16.mxu0 %v4101
    %5221 = vmatpush1.bf16.msra.mxu0 %v4100
    %5222 = vmatprep.subr.bf16.mxu0 %v4109
    %5223 = vmatpush1.bf16.msra.mxu0 %v4108
    %5224 = vmatprep.subr.bf16.mxu0 %v4117
    %5225 = vmatpush1.bf16.msra.mxu0 %v4116
    %5226 = vmatprep.subr.bf16.mxu0 %v4125
    %5227 = vmatpush1.bf16.msra.mxu0 %v4124
    %5228 = vmatprep.subr.bf16.mxu0 %v4133
    %5229 = vmatpush1.bf16.msra.mxu0 %v4132
    %5230 = vmatprep.mubr.bf16.mxu0 %v1913
    %5231 = vmatmul.mubr.bf16.gmra.mrb[0].mxu0 %v1912
    %v5232 = vpop.f32.mrb[0].mxu0
    %v5233 = vadd.f32 %v2445, %v5232
    %v5234 = vpop.f32.mrb[0].mxu0
    %v5235 = vadd.f32 %v2449, %v5234
    %v5236 = vpop.f32.mrb[0].mxu0
    %v5237 = vpop.f32.mrb[0].mxu0
    %5238 = vdwg.mxu0
    %5239 = vmatprep.subr.bf16.mxu0 %v4141
    %5240 = vmatpush1.bf16.msra.mxu0 %v4140
    %5241 = vmatprep.subr.bf16.mxu0 %v4149
    %5242 = vmatpush1.bf16.msra.mxu0 %v4148
    %5243 = vmatprep.subr.bf16.mxu0 %v4157
    %5244 = vmatpush1.bf16.msra.mxu0 %v4156
    %5245 = vmatprep.subr.bf16.mxu0 %v4165
    %5246 = vmatpush1.bf16.msra.mxu0 %v4164
    %5247 = vmatprep.subr.bf16.mxu0 %v4173
    %5248 = vmatpush1.bf16.msra.mxu0 %v4172
    %5249 = vmatprep.subr.bf16.mxu0 %v4181
    %5250 = vmatpush1.bf16.msra.mxu0 %v4180
    %5251 = vmatprep.subr.bf16.mxu0 %v4189
    %5252 = vmatpush1.bf16.msra.mxu0 %v4188
    %5253 = vmatprep.subr.bf16.mxu0 %v4197
    %5254 = vmatpush1.bf16.msra.mxu0 %v4196
    %5255 = vmatprep.subr.bf16.mxu0 %v4205
    %5256 = vmatpush1.bf16.msra.mxu0 %v4204
    %5257 = vmatprep.subr.bf16.mxu0 %v4213
    %5258 = vmatpush1.bf16.msra.mxu0 %v4212
    %5259 = vmatprep.subr.bf16.mxu0 %v4221
    %5260 = vmatpush1.bf16.msra.mxu0 %v4220
    %5261 = vmatprep.subr.bf16.mxu0 %v4229
    %5262 = vmatpush1.bf16.msra.mxu0 %v4228
    %5263 = vmatprep.subr.bf16.mxu0 %v4237
    %5264 = vmatpush1.bf16.msra.mxu0 %v4236
    %5265 = vmatprep.subr.bf16.mxu0 %v4245
    %5266 = vmatpush1.bf16.msra.mxu0 %v4244
    %5267 = vmatprep.subr.bf16.mxu0 %v4253
    %5268 = vmatpush1.bf16.msra.mxu0 %v4252
    %5269 = vmatprep.subr.bf16.mxu0 %v4261
    %5270 = vmatpush1.bf16.msra.mxu0 %v4260
    %5271 = vmatprep.mubr.bf16.mxu0 %v1915
    %5272 = vmatmul.mubr.bf16.gmra.mrb[0].mxu0 %v1914
    %v5273 = vpop.f32.mrb[0].mxu0
    %v5274 = vadd.f32 %v5233, %v5273
    %v5275 = vpop.f32.mrb[0].mxu0
    %v5276 = vadd.f32 %v5235, %v5275
    %v5277 = vpop.f32.mrb[0].mxu0
    %v5278 = vpop.f32.mrb[0].mxu0
    %5279 = vdwg.mxu0
    %5280 = vmatprep.subr.bf16.mxu0 %v4269
    %5281 = vmatpush1.bf16.msra.mxu0 %v4268
    %5282 = vmatprep.subr.bf16.mxu0 %v4277
    %5283 = vmatpush1.bf16.msra.mxu0 %v4276
    %5284 = vmatprep.subr.bf16.mxu0 %v4285
    %5285 = vmatpush1.bf16.msra.mxu0 %v4284
    %5286 = vmatprep.subr.bf16.mxu0 %v4293
    %5287 = vmatpush1.bf16.msra.mxu0 %v4292
    %5288 = vmatprep.subr.bf16.mxu0 %v4301
    %5289 = vmatpush1.bf16.msra.mxu0 %v4300
    %5290 = vmatprep.subr.bf16.mxu0 %v4309
    %5291 = vmatpush1.bf16.msra.mxu0 %v4308
    %5292 = vmatprep.subr.bf16.mxu0 %v4317
    %5293 = vmatpush1.bf16.msra.mxu0 %v4316
    %5294 = vmatprep.subr.bf16.mxu0 %v4325
    %5295 = vmatpush1.bf16.msra.mxu0 %v4324
    %5296 = vmatprep.subr.bf16.mxu0 %v4333
    %5297 = vmatpush1.bf16.msra.mxu0 %v4332
    %5298 = vmatprep.subr.bf16.mxu0 %v4341
    %5299 = vmatpush1.bf16.msra.mxu0 %v4340
    %5300 = vmatprep.subr.bf16.mxu0 %v4349
    %5301 = vmatpush1.bf16.msra.mxu0 %v4348
    %5302 = vmatprep.subr.bf16.mxu0 %v4357
    %5303 = vmatpush1.bf16.msra.mxu0 %v4356
    %5304 = vmatprep.subr.bf16.mxu0 %v4365
    %5305 = vmatpush1.bf16.msra.mxu0 %v4364
    %5306 = vmatprep.subr.bf16.mxu0 %v4373
    %5307 = vmatpush1.bf16.msra.mxu0 %v4372
    %5308 = vmatprep.subr.bf16.mxu0 %v4381
    %5309 = vmatpush1.bf16.msra.mxu0 %v4380
    %5310 = vmatprep.subr.bf16.mxu0 %v4389
    %5311 = vmatpush1.bf16.msra.mxu0 %v4388
    %5312 = vmatprep.mubr.bf16.mxu0 %v1917
    %5313 = vmatmul.mubr.bf16.gmra.mrb[0].mxu0 %v1916
    %v5314 = vpop.f32.mrb[0].mxu0
    %v5315 = vadd.f32 %v5274, %v5314
    %v5316 = vpop.f32.mrb[0].mxu0
    %v5317 = vadd.f32 %v5276, %v5316
    %v5318 = vpop.f32.mrb[0].mxu0
    %v5319 = vpop.f32.mrb[0].mxu0
    %5320 = vdwg.mxu0
    %5321 = vmatprep.subr.bf16.mxu0 %v4397
    %5322 = vmatpush1.bf16.msra.mxu0 %v4396
    %5323 = vmatprep.subr.bf16.mxu0 %v4405
    %5324 = vmatpush1.bf16.msra.mxu0 %v4404
    %5325 = vmatprep.subr.bf16.mxu0 %v4413
    %5326 = vmatpush1.bf16.msra.mxu0 %v4412
    %5327 = vmatprep.subr.bf16.mxu0 %v4421
    %5328 = vmatpush1.bf16.msra.mxu0 %v4420
    %5329 = vmatprep.subr.bf16.mxu0 %v4429
    %5330 = vmatpush1.bf16.msra.mxu0 %v4428
    %5331 = vmatprep.subr.bf16.mxu0 %v4437
    %5332 = vmatpush1.bf16.msra.mxu0 %v4436
    %5333 = vmatprep.subr.bf16.mxu0 %v4445
    %5334 = vmatpush1.bf16.msra.mxu0 %v4444
    %5335 = vmatprep.subr.bf16.mxu0 %v4453
    %5336 = vmatpush1.bf16.msra.mxu0 %v4452
    %5337 = vmatprep.subr.bf16.mxu0 %v4461
    %5338 = vmatpush1.bf16.msra.mxu0 %v4460
    %5339 = vmatprep.subr.bf16.mxu0 %v4469
    %5340 = vmatpush1.bf16.msra.mxu0 %v4468
    %5341 = vmatprep.subr.bf16.mxu0 %v4477
    %5342 = vmatpush1.bf16.msra.mxu0 %v4476
    %5343 = vmatprep.subr.bf16.mxu0 %v4485
    %5344 = vmatpush1.bf16.msra.mxu0 %v4484
    %5345 = vmatprep.subr.bf16.mxu0 %v4493
    %5346 = vmatpush1.bf16.msra.mxu0 %v4492
    %5347 = vmatprep.subr.bf16.mxu0 %v4501
    %5348 = vmatpush1.bf16.msra.mxu0 %v4500
    %5349 = vmatprep.subr.bf16.mxu0 %v4509
    %5350 = vmatpush1.bf16.msra.mxu0 %v4508
    %5351 = vmatprep.subr.bf16.mxu0 %v4517
    %5352 = vmatpush1.bf16.msra.mxu0 %v4516
    %5353 = vmatprep.mubr.bf16.mxu0 %v1919
    %5354 = vmatmul.mubr.bf16.gmra.mrb[0].mxu0 %v1918
    %v5355 = vpop.f32.mrb[0].mxu0
    %v5356 = vadd.f32 %v5315, %v5355
    %v5357 = vpop.f32.mrb[0].mxu0
    %v5358 = vadd.f32 %v5317, %v5357
    %v5359 = vpop.f32.mrb[0].mxu0
    %v5360 = vpop.f32.mrb[0].mxu0
    %5361 = vdwg.mxu0
    %5362 = vmatprep.subr.bf16.mxu0 %v4015
    %5363 = vmatpush1.bf16.msra.mxu0 %v4014
    %5364 = vmatprep.subr.bf16.mxu0 %v4023
    %5365 = vmatpush1.bf16.msra.mxu0 %v4022
    %5366 = vmatprep.subr.bf16.mxu0 %v4031
    %5367 = vmatpush1.bf16.msra.mxu0 %v4030
    %5368 = vmatprep.subr.bf16.mxu0 %v4039
    %5369 = vmatpush1.bf16.msra.mxu0 %v4038
    %5370 = vmatprep.subr.bf16.mxu0 %v4047
    %5371 = vmatpush1.bf16.msra.mxu0 %v4046
    %5372 = vmatprep.subr.bf16.mxu0 %v4055
    %5373 = vmatpush1.bf16.msra.mxu0 %v4054
    %5374 = vmatprep.subr.bf16.mxu0 %v4063
    %5375 = vmatpush1.bf16.msra.mxu0 %v4062
    %5376 = vmatprep.subr.bf16.mxu0 %v4071
    %5377 = vmatpush1.bf16.msra.mxu0 %v4070
    %5378 = vmatprep.subr.bf16.mxu0 %v4079
    %5379 = vmatpush1.bf16.msra.mxu0 %v4078
    %5380 = vmatprep.subr.bf16.mxu0 %v4087
    %5381 = vmatpush1.bf16.msra.mxu0 %v4086
    %5382 = vmatprep.subr.bf16.mxu0 %v4095
    %5383 = vmatpush1.bf16.msra.mxu0 %v4094
    %5384 = vmatprep.subr.bf16.mxu0 %v4103
    %5385 = vmatpush1.bf16.msra.mxu0 %v4102
    %5386 = vmatprep.subr.bf16.mxu0 %v4111
    %5387 = vmatpush1.bf16.msra.mxu0 %v4110
    %5388 = vmatprep.subr.bf16.mxu0 %v4119
    %5389 = vmatpush1.bf16.msra.mxu0 %v4118
    %5390 = vmatprep.subr.bf16.mxu0 %v4127
    %5391 = vmatpush1.bf16.msra.mxu0 %v4126
    %5392 = vmatprep.subr.bf16.mxu0 %v4135
    %5393 = vmatpush1.bf16.msra.mxu0 %v4134
    %5394 = vmatprep.mubr.bf16.mxu0 %v1913
    %5395 = vmatmul.mubr.bf16.gmra.mrb[0].mxu0 %v1912
    %v5396 = vpop.f32.mrb[0].mxu0
    %v5397 = vadd.f32 %v2453, %v5396
    %v5398 = vpop.f32.mrb[0].mxu0
    %v5399 = vadd.f32 %v2457, %v5398
    %v5400 = vpop.f32.mrb[0].mxu0
    %v5401 = vpop.f32.mrb[0].mxu0
    %5402 = vdwg.mxu0
    %5403 = vmatprep.subr.bf16.mxu0 %v4143
    %5404 = vmatpush1.bf16.msra.mxu0 %v4142
    %5405 = vmatprep.subr.bf16.mxu0 %v4151
    %5406 = vmatpush1.bf16.msra.mxu0 %v4150
    %5407 = vmatprep.subr.bf16.mxu0 %v4159
    %5408 = vmatpush1.bf16.msra.mxu0 %v4158
    %5409 = vmatprep.subr.bf16.mxu0 %v4167
    %5410 = vmatpush1.bf16.msra.mxu0 %v4166
    %5411 = vmatprep.subr.bf16.mxu0 %v4175
    %5412 = vmatpush1.bf16.msra.mxu0 %v4174
    %5413 = vmatprep.subr.bf16.mxu0 %v4183
    %5414 = vmatpush1.bf16.msra.mxu0 %v4182
    %5415 = vmatprep.subr.bf16.mxu0 %v4191
    %5416 = vmatpush1.bf16.msra.mxu0 %v4190
    %5417 = vmatprep.subr.bf16.mxu0 %v4199
    %5418 = vmatpush1.bf16.msra.mxu0 %v4198
    %5419 = vmatprep.subr.bf16.mxu0 %v4207
    %5420 = vmatpush1.bf16.msra.mxu0 %v4206
    %5421 = vmatprep.subr.bf16.mxu0 %v4215
    %5422 = vmatpush1.bf16.msra.mxu0 %v4214
    %5423 = vmatprep.subr.bf16.mxu0 %v4223
    %5424 = vmatpush1.bf16.msra.mxu0 %v4222
    %5425 = vmatprep.subr.bf16.mxu0 %v4231
    %5426 = vmatpush1.bf16.msra.mxu0 %v4230
    %5427 = vmatprep.subr.bf16.mxu0 %v4239
    %5428 = vmatpush1.bf16.msra.mxu0 %v4238
    %5429 = vmatprep.subr.bf16.mxu0 %v4247
    %5430 = vmatpush1.bf16.msra.mxu0 %v4246
    %5431 = vmatprep.subr.bf16.mxu0 %v4255
    %5432 = vmatpush1.bf16.msra.mxu0 %v4254
    %5433 = vmatprep.subr.bf16.mxu0 %v4263
    %5434 = vmatpush1.bf16.msra.mxu0 %v4262
    %5435 = vmatprep.mubr.bf16.mxu0 %v1915
    %5436 = vmatmul.mubr.bf16.gmra.mrb[0].mxu0 %v1914
    %v5437 = vpop.f32.mrb[0].mxu0
    %v5438 = vadd.f32 %v5397, %v5437
    %v5439 = vpop.f32.mrb[0].mxu0
    %v5440 = vadd.f32 %v5399, %v5439
    %v5441 = vpop.f32.mrb[0].mxu0
    %v5442 = vpop.f32.mrb[0].mxu0
    %5443 = vdwg.mxu0
    %5444 = vmatprep.subr.bf16.mxu0 %v4271
    %5445 = vmatpush1.bf16.msra.mxu0 %v4270
    %5446 = vmatprep.subr.bf16.mxu0 %v4279
    %5447 = vmatpush1.bf16.msra.mxu0 %v4278
    %5448 = vmatprep.subr.bf16.mxu0 %v4287
    %5449 = vmatpush1.bf16.msra.mxu0 %v4286
    %5450 = vmatprep.subr.bf16.mxu0 %v4295
    %5451 = vmatpush1.bf16.msra.mxu0 %v4294
    %5452 = vmatprep.subr.bf16.mxu0 %v4303
    %5453 = vmatpush1.bf16.msra.mxu0 %v4302
    %5454 = vmatprep.subr.bf16.mxu0 %v4311
    %5455 = vmatpush1.bf16.msra.mxu0 %v4310
    %5456 = vmatprep.subr.bf16.mxu0 %v4319
    %5457 = vmatpush1.bf16.msra.mxu0 %v4318
    %5458 = vmatprep.subr.bf16.mxu0 %v4327
    %5459 = vmatpush1.bf16.msra.mxu0 %v4326
    %5460 = vmatprep.subr.bf16.mxu0 %v4335
    %5461 = vmatpush1.bf16.msra.mxu0 %v4334
    %5462 = vmatprep.subr.bf16.mxu0 %v4343
    %5463 = vmatpush1.bf16.msra.mxu0 %v4342
    %5464 = vmatprep.subr.bf16.mxu0 %v4351
    %5465 = vmatpush1.bf16.msra.mxu0 %v4350
    %5466 = vmatprep.subr.bf16.mxu0 %v4359
    %5467 = vmatpush1.bf16.msra.mxu0 %v4358
    %5468 = vmatprep.subr.bf16.mxu0 %v4367
    %5469 = vmatpush1.bf16.msra.mxu0 %v4366
    %5470 = vmatprep.subr.bf16.mxu0 %v4375
    %5471 = vmatpush1.bf16.msra.mxu0 %v4374
    %5472 = vmatprep.subr.bf16.mxu0 %v4383
    %5473 = vmatpush1.bf16.msra.mxu0 %v4382
    %5474 = vmatprep.subr.bf16.mxu0 %v4391
    %5475 = vmatpush1.bf16.msra.mxu0 %v4390
    %5476 = vmatprep.mubr.bf16.mxu0 %v1917
    %5477 = vmatmul.mubr.bf16.gmra.mrb[0].mxu0 %v1916
    %v5478 = vpop.f32.mrb[0].mxu0
    %v5479 = vadd.f32 %v5438, %v5478
    %v5480 = vpop.f32.mrb[0].mxu0
    %v5481 = vadd.f32 %v5440, %v5480
    %v5482 = vpop.f32.mrb[0].mxu0
    %v5483 = vpop.f32.mrb[0].mxu0
    %5484 = vdwg.mxu0
    %5485 = vmatprep.subr.bf16.mxu0 %v4399
    %5486 = vmatpush1.bf16.msra.mxu0 %v4398
    %5487 = vmatprep.subr.bf16.mxu0 %v4407
    %5488 = vmatpush1.bf16.msra.mxu0 %v4406
    %5489 = vmatprep.subr.bf16.mxu0 %v4415
    %5490 = vmatpush1.bf16.msra.mxu0 %v4414
    %5491 = vmatprep.subr.bf16.mxu0 %v4423
    %5492 = vmatpush1.bf16.msra.mxu0 %v4422
    %5493 = vmatprep.subr.bf16.mxu0 %v4431
    %5494 = vmatpush1.bf16.msra.mxu0 %v4430
    %5495 = vmatprep.subr.bf16.mxu0 %v4439
    %5496 = vmatpush1.bf16.msra.mxu0 %v4438
    %5497 = vmatprep.subr.bf16.mxu0 %v4447
    %5498 = vmatpush1.bf16.msra.mxu0 %v4446
    %5499 = vmatprep.subr.bf16.mxu0 %v4455
    %5500 = vmatpush1.bf16.msra.mxu0 %v4454
    %5501 = vmatprep.subr.bf16.mxu0 %v4463
    %5502 = vmatpush1.bf16.msra.mxu0 %v4462
    %5503 = vmatprep.subr.bf16.mxu0 %v4471
    %5504 = vmatpush1.bf16.msra.mxu0 %v4470
    %5505 = vmatprep.subr.bf16.mxu0 %v4479
    %5506 = vmatpush1.bf16.msra.mxu0 %v4478
    %5507 = vmatprep.subr.bf16.mxu0 %v4487
    %5508 = vmatpush1.bf16.msra.mxu0 %v4486
    %5509 = vmatprep.subr.bf16.mxu0 %v4495
    %5510 = vmatpush1.bf16.msra.mxu0 %v4494
    %5511 = vmatprep.subr.bf16.mxu0 %v4503
    %5512 = vmatpush1.bf16.msra.mxu0 %v4502
    %5513 = vmatprep.subr.bf16.mxu0 %v4511
    %5514 = vmatpush1.bf16.msra.mxu0 %v4510
    %5515 = vmatprep.subr.bf16.mxu0 %v4519
    %5516 = vmatpush1.bf16.msra.mxu0 %v4518
    %5517 = vmatprep.mubr.bf16.mxu0 %v1919
    %5518 = vmatmul.mubr.bf16.gmra.mrb[0].mxu0 %v1918
    %v5519 = vpop.f32.mrb[0].mxu0
    %v5520 = vadd.f32 %v5479, %v5519
    %v5521 = vpop.f32.mrb[0].mxu0
    %v5522 = vadd.f32 %v5481, %v5521
    %v5523 = vpop.f32.mrb[0].mxu0
    %v5524 = vpop.f32.mrb[0].mxu0
    %5525 = vdwg.mxu0
    %5526 = vmatprep.subr.bf16.mxu0 %v4017
    %5527 = vmatpush1.bf16.msra.mxu0 %v4016
    %5528 = vmatprep.subr.bf16.mxu0 %v4025
    %5529 = vmatpush1.bf16.msra.mxu0 %v4024
    %5530 = vmatprep.subr.bf16.mxu0 %v4033
    %5531 = vmatpush1.bf16.msra.mxu0 %v4032
    %5532 = vmatprep.subr.bf16.mxu0 %v4041
    %5533 = vmatpush1.bf16.msra.mxu0 %v4040
    %5534 = vmatprep.subr.bf16.mxu0 %v4049
    %5535 = vmatpush1.bf16.msra.mxu0 %v4048
    %5536 = vmatprep.subr.bf16.mxu0 %v4057
    %5537 = vmatpush1.bf16.msra.mxu0 %v4056
    %5538 = vmatprep.subr.bf16.mxu0 %v4065
    %5539 = vmatpush1.bf16.msra.mxu0 %v4064
    %5540 = vmatprep.subr.bf16.mxu0 %v4073
    %5541 = vmatpush1.bf16.msra.mxu0 %v4072
    %5542 = vmatprep.subr.bf16.mxu0 %v4081
    %5543 = vmatpush1.bf16.msra.mxu0 %v4080
    %5544 = vmatprep.subr.bf16.mxu0 %v4089
    %5545 = vmatpush1.bf16.msra.mxu0 %v4088
    %5546 = vmatprep.subr.bf16.mxu0 %v4097
    %5547 = vmatpush1.bf16.msra.mxu0 %v4096
    %5548 = vmatprep.subr.bf16.mxu0 %v4105
    %5549 = vmatpush1.bf16.msra.mxu0 %v4104
    %5550 = vmatprep.subr.bf16.mxu0 %v4113
    %5551 = vmatpush1.bf16.msra.mxu0 %v4112
    %5552 = vmatprep.subr.bf16.mxu0 %v4121
    %5553 = vmatpush1.bf16.msra.mxu0 %v4120
    %5554 = vmatprep.subr.bf16.mxu0 %v4129
    %5555 = vmatpush1.bf16.msra.mxu0 %v4128
    %5556 = vmatprep.subr.bf16.mxu0 %v4137
    %5557 = vmatpush1.bf16.msra.mxu0 %v4136
    %5558 = vmatprep.mubr.bf16.mxu0 %v1913
    %5559 = vmatmul.mubr.bf16.gmra.mrb[0].mxu0 %v1912
    %v5560 = vpop.f32.mrb[0].mxu0
    %v5561 = vadd.f32 %v2461, %v5560
    %v5562 = vpop.f32.mrb[0].mxu0
    %v5563 = vadd.f32 %v2465, %v5562
    %v5564 = vpop.f32.mrb[0].mxu0
    %v5565 = vpop.f32.mrb[0].mxu0
    %5566 = vdwg.mxu0
    %5567 = vmatprep.subr.bf16.mxu0 %v4145
    %5568 = vmatpush1.bf16.msra.mxu0 %v4144
    %5569 = vmatprep.subr.bf16.mxu0 %v4153
    %5570 = vmatpush1.bf16.msra.mxu0 %v4152
    %5571 = vmatprep.subr.bf16.mxu0 %v4161
    %5572 = vmatpush1.bf16.msra.mxu0 %v4160
    %5573 = vmatprep.subr.bf16.mxu0 %v4169
    %5574 = vmatpush1.bf16.msra.mxu0 %v4168
    %5575 = vmatprep.subr.bf16.mxu0 %v4177
    %5576 = vmatpush1.bf16.msra.mxu0 %v4176
    %5577 = vmatprep.subr.bf16.mxu0 %v4185
    %5578 = vmatpush1.bf16.msra.mxu0 %v4184
    %5579 = vmatprep.subr.bf16.mxu0 %v4193
    %5580 = vmatpush1.bf16.msra.mxu0 %v4192
    %5581 = vmatprep.subr.bf16.mxu0 %v4201
    %5582 = vmatpush1.bf16.msra.mxu0 %v4200
    %5583 = vmatprep.subr.bf16.mxu0 %v4209
    %5584 = vmatpush1.bf16.msra.mxu0 %v4208
    %5585 = vmatprep.subr.bf16.mxu0 %v4217
    %5586 = vmatpush1.bf16.msra.mxu0 %v4216
    %5587 = vmatprep.subr.bf16.mxu0 %v4225
    %5588 = vmatpush1.bf16.msra.mxu0 %v4224
    %5589 = vmatprep.subr.bf16.mxu0 %v4233
    %5590 = vmatpush1.bf16.msra.mxu0 %v4232
    %5591 = vmatprep.subr.bf16.mxu0 %v4241
    %5592 = vmatpush1.bf16.msra.mxu0 %v4240
    %5593 = vmatprep.subr.bf16.mxu0 %v4249
    %5594 = vmatpush1.bf16.msra.mxu0 %v4248
    %5595 = vmatprep.subr.bf16.mxu0 %v4257
    %5596 = vmatpush1.bf16.msra.mxu0 %v4256
    %5597 = vmatprep.subr.bf16.mxu0 %v4265
    %5598 = vmatpush1.bf16.msra.mxu0 %v4264
    %5599 = vmatprep.mubr.bf16.mxu0 %v1915
    %5600 = vmatmul.mubr.bf16.gmra.mrb[0].mxu0 %v1914
    %v5601 = vpop.f32.mrb[0].mxu0
    %v5602 = vadd.f32 %v5561, %v5601
    %v5603 = vpop.f32.mrb[0].mxu0
    %v5604 = vadd.f32 %v5563, %v5603
    %v5605 = vpop.f32.mrb[0].mxu0
    %v5606 = vpop.f32.mrb[0].mxu0
    %5607 = vdwg.mxu0
    %5608 = vmatprep.subr.bf16.mxu0 %v4273
    %5609 = vmatpush1.bf16.msra.mxu0 %v4272
    %5610 = vmatprep.subr.bf16.mxu0 %v4281
    %5611 = vmatpush1.bf16.msra.mxu0 %v4280
    %5612 = vmatprep.subr.bf16.mxu0 %v4289
    %5613 = vmatpush1.bf16.msra.mxu0 %v4288
    %5614 = vmatprep.subr.bf16.mxu0 %v4297
    %5615 = vmatpush1.bf16.msra.mxu0 %v4296
    %5616 = vmatprep.subr.bf16.mxu0 %v4305
    %5617 = vmatpush1.bf16.msra.mxu0 %v4304
    %5618 = vmatprep.subr.bf16.mxu0 %v4313
    %5619 = vmatpush1.bf16.msra.mxu0 %v4312
    %5620 = vmatprep.subr.bf16.mxu0 %v4321
    %5621 = vmatpush1.bf16.msra.mxu0 %v4320
    %5622 = vmatprep.subr.bf16.mxu0 %v4329
    %5623 = vmatpush1.bf16.msra.mxu0 %v4328
    %5624 = vmatprep.subr.bf16.mxu0 %v4337
    %5625 = vmatpush1.bf16.msra.mxu0 %v4336
    %5626 = vmatprep.subr.bf16.mxu0 %v4345
    %5627 = vmatpush1.bf16.msra.mxu0 %v4344
    %5628 = vmatprep.subr.bf16.mxu0 %v4353
    %5629 = vmatpush1.bf16.msra.mxu0 %v4352
    %5630 = vmatprep.subr.bf16.mxu0 %v4361
    %5631 = vmatpush1.bf16.msra.mxu0 %v4360
    %5632 = vmatprep.subr.bf16.mxu0 %v4369
    %5633 = vmatpush1.bf16.msra.mxu0 %v4368
    %5634 = vmatprep.subr.bf16.mxu0 %v4377
    %5635 = vmatpush1.bf16.msra.mxu0 %v4376
    %5636 = vmatprep.subr.bf16.mxu0 %v4385
    %5637 = vmatpush1.bf16.msra.mxu0 %v4384
    %5638 = vmatprep.subr.bf16.mxu0 %v4393
    %5639 = vmatpush1.bf16.msra.mxu0 %v4392
    %5640 = vmatprep.mubr.bf16.mxu0 %v1917
    %5641 = vmatmul.mubr.bf16.gmra.mrb[0].mxu0 %v1916
    %v5642 = vpop.f32.mrb[0].mxu0
    %v5643 = vadd.f32 %v5602, %v5642
    %v5644 = vpop.f32.mrb[0].mxu0
    %v5645 = vadd.f32 %v5604, %v5644
    %v5646 = vpop.f32.mrb[0].mxu0
    %v5647 = vpop.f32.mrb[0].mxu0
    %5648 = vdwg.mxu0
    %5649 = vmatprep.subr.bf16.mxu0 %v4401
    %5650 = vmatpush1.bf16.msra.mxu0 %v4400
    %5651 = vmatprep.subr.bf16.mxu0 %v4409
    %5652 = vmatpush1.bf16.msra.mxu0 %v4408
    %5653 = vmatprep.subr.bf16.mxu0 %v4417
    %5654 = vmatpush1.bf16.msra.mxu0 %v4416
    %5655 = vmatprep.subr.bf16.mxu0 %v4425
    %5656 = vmatpush1.bf16.msra.mxu0 %v4424
    %5657 = vmatprep.subr.bf16.mxu0 %v4433
    %5658 = vmatpush1.bf16.msra.mxu0 %v4432
    %5659 = vmatprep.subr.bf16.mxu0 %v4441
    %5660 = vmatpush1.bf16.msra.mxu0 %v4440
    %5661 = vmatprep.subr.bf16.mxu0 %v4449
    %5662 = vmatpush1.bf16.msra.mxu0 %v4448
    %5663 = vmatprep.subr.bf16.mxu0 %v4457
    %5664 = vmatpush1.bf16.msra.mxu0 %v4456
    %5665 = vmatprep.subr.bf16.mxu0 %v4465
    %5666 = vmatpush1.bf16.msra.mxu0 %v4464
    %5667 = vmatprep.subr.bf16.mxu0 %v4473
    %5668 = vmatpush1.bf16.msra.mxu0 %v4472
    %5669 = vmatprep.subr.bf16.mxu0 %v4481
    %5670 = vmatpush1.bf16.msra.mxu0 %v4480
    %5671 = vmatprep.subr.bf16.mxu0 %v4489
    %5672 = vmatpush1.bf16.msra.mxu0 %v4488
    %5673 = vmatprep.subr.bf16.mxu0 %v4497
    %5674 = vmatpush1.bf16.msra.mxu0 %v4496
    %5675 = vmatprep.subr.bf16.mxu0 %v4505
    %5676 = vmatpush1.bf16.msra.mxu0 %v4504
    %5677 = vmatprep.subr.bf16.mxu0 %v4513
    %5678 = vmatpush1.bf16.msra.mxu0 %v4512
    %5679 = vmatprep.subr.bf16.mxu0 %v4521
    %5680 = vmatpush1.bf16.msra.mxu0 %v4520
    %5681 = vmatprep.mubr.bf16.mxu0 %v1919
    %5682 = vmatmul.mubr.bf16.gmra.mrb[0].mxu0 %v1918
    %v5683 = vpop.f32.mrb[0].mxu0
    %v5684 = vadd.f32 %v5643, %v5683
    %v5685 = vpop.f32.mrb[0].mxu0
    %v5686 = vadd.f32 %v5645, %v5685
    %v5687 = vpop.f32.mrb[0].mxu0
    %v5688 = vpop.f32.mrb[0].mxu0
    %5689 = vdwg.mxu0
    %v5690 = vmax.f32 %v5192, 0.0
    %v5691 = vmax.f32 %v5194, 0.0
    %v5692 = vmax.f32 %v5356, 0.0
    %v5693 = vmax.f32 %v5358, 0.0
    %v5694 = vmax.f32 %v5520, 0.0
    %v5695 = vmax.f32 %v5522, 0.0
    %v5696 = vmax.f32 %v5684, 0.0
    %v5697 = vmax.f32 %v5686, 0.0
    %v5698 = vpack.c.bf16 %v5690, %v5690
    %v5699 = vpack.c.bf16 %v5691, %v5691
    %v5700 = vpack.c.bf16 %v5692, %v5692
    %v5701 = vpack.c.bf16 %v5693, %v5693
    %v5702 = vpack.c.bf16 %v5694, %v5694
    %v5703 = vpack.c.bf16 %v5695, %v5695
    %v5704 = vpack.c.bf16 %v5696, %v5696
    %v5705 = vpack.c.bf16 %v5697, %v5697
    %v5706 = vld [vmem:[#allocation17] sm:$0xf]
    %v5707 = vld [vmem:[#allocation17 + $0x4] sm:$0xf]
    %v5708 = vld [vmem:[#allocation17 + $0x8] sm:$0xf]
    %v5709 = vld [vmem:[#allocation17 + $0xc] sm:$0xf]
    %v5710 = vld [vmem:[#allocation17 + $0x10] sm:$0xf]
    %v5711 = vld [vmem:[#allocation17 + $0x14] sm:$0xf]
    %v5712 = vld [vmem:[#allocation17 + $0x18] sm:$0xf]
    %v5713 = vld [vmem:[#allocation17 + $0x1c] sm:$0xf]
    %v5714 = vld [vmem:[#allocation17 + $0x20] sm:$0xf]
    %v5715 = vld [vmem:[#allocation17 + $0x24] sm:$0xf]
    %v5716 = vld [vmem:[#allocation17 + $0x28] sm:$0xf]
    %v5717 = vld [vmem:[#allocation17 + $0x2c] sm:$0xf]
    %v5718 = vld [vmem:[#allocation17 + $0x30] sm:$0xf]
    %v5719 = vld [vmem:[#allocation17 + $0x34] sm:$0xf]
    %v5720 = vld [vmem:[#allocation17 + $0x38] sm:$0xf]
    %v5721 = vld [vmem:[#allocation17 + $0x3c] sm:$0xf]
    %v5722 = vld [vmem:[#allocation17 + $0x40] sm:$0xf]
    %v5723 = vld [vmem:[#allocation17 + $0x44] sm:$0xf]
    %v5724 = vld [vmem:[#allocation17 + $0x48] sm:$0xf]
    %v5725 = vld [vmem:[#allocation17 + $0x4c] sm:$0xf]
    %v5726 = vld [vmem:[#allocation17 + $0x50] sm:$0xf]
    %v5727 = vld [vmem:[#allocation17 + $0x54] sm:$0xf]
    %v5728 = vld [vmem:[#allocation17 + $0x58] sm:$0xf]
    %v5729 = vld [vmem:[#allocation17 + $0x5c] sm:$0xf]
    %v5730 = vld [vmem:[#allocation17 + $0x60] sm:$0xf]
    %v5731 = vld [vmem:[#allocation17 + $0x64] sm:$0xf]
    %v5732 = vld [vmem:[#allocation17 + $0x68] sm:$0xf]
    %v5733 = vld [vmem:[#allocation17 + $0x6c] sm:$0xf]
    %v5734 = vld [vmem:[#allocation17 + $0x70] sm:$0xf]
    %v5735 = vld [vmem:[#allocation17 + $0x74] sm:$0xf]
    %v5736 = vld [vmem:[#allocation17 + $0x78] sm:$0xf]
    %v5737 = vld [vmem:[#allocation17 + $0x7c] sm:$0xf]
    %v5738 = vld [vmem:[#allocation17 + $0x80] sm:$0xf]
    %v5739 = vld [vmem:[#allocation17 + $0x84] sm:$0xf]
    %v5740 = vld [vmem:[#allocation17 + $0x88] sm:$0xf]
    %v5741 = vld [vmem:[#allocation17 + $0x8c] sm:$0xf]
    %v5742 = vld [vmem:[#allocation17 + $0x90] sm:$0xf]
    %v5743 = vld [vmem:[#allocation17 + $0x94] sm:$0xf]
    %v5744 = vld [vmem:[#allocation17 + $0x98] sm:$0xf]
    %v5745 = vld [vmem:[#allocation17 + $0x9c] sm:$0xf]
    %v5746 = vld [vmem:[#allocation17 + $0xa0] sm:$0xf]
    %v5747 = vld [vmem:[#allocation17 + $0xa4] sm:$0xf]
    %v5748 = vld [vmem:[#allocation17 + $0xa8] sm:$0xf]
    %v5749 = vld [vmem:[#allocation17 + $0xac] sm:$0xf]
    %v5750 = vld [vmem:[#allocation17 + $0xb0] sm:$0xf]
    %v5751 = vld [vmem:[#allocation17 + $0xb4] sm:$0xf]
    %v5752 = vld [vmem:[#allocation17 + $0xb8] sm:$0xf]
    %v5753 = vld [vmem:[#allocation17 + $0xbc] sm:$0xf]
    %v5754 = vld [vmem:[#allocation17 + $0xc0] sm:$0xf]
    %v5755 = vld [vmem:[#allocation17 + $0xc4] sm:$0xf]
    %v5756 = vld [vmem:[#allocation17 + $0xc8] sm:$0xf]
    %v5757 = vld [vmem:[#allocation17 + $0xcc] sm:$0xf]
    %v5758 = vld [vmem:[#allocation17 + $0xd0] sm:$0xf]
    %v5759 = vld [vmem:[#allocation17 + $0xd4] sm:$0xf]
    %v5760 = vld [vmem:[#allocation17 + $0xd8] sm:$0xf]
    %v5761 = vld [vmem:[#allocation17 + $0xdc] sm:$0xf]
    %v5762 = vld [vmem:[#allocation17 + $0xe0] sm:$0xf]
    %v5763 = vld [vmem:[#allocation17 + $0xe4] sm:$0xf]
    %v5764 = vld [vmem:[#allocation17 + $0xe8] sm:$0xf]
    %v5765 = vld [vmem:[#allocation17 + $0xec] sm:$0xf]
    %v5766 = vld [vmem:[#allocation17 + $0xf0] sm:$0xf]
    %v5767 = vld [vmem:[#allocation17 + $0xf4] sm:$0xf]
    %v5768 = vld [vmem:[#allocation17 + $0xf8] sm:$0xf]
    %v5769 = vld [vmem:[#allocation17 + $0xfc] sm:$0xf]
    %v5770 = vld [vmem:[#allocation17 + $0x100] sm:$0xf]
    %v5771 = vld [vmem:[#allocation17 + $0x104] sm:$0xf]
    %v5772 = vld [vmem:[#allocation17 + $0x108] sm:$0xf]
    %v5773 = vld [vmem:[#allocation17 + $0x10c] sm:$0xf]
    %v5774 = vld [vmem:[#allocation17 + $0x110] sm:$0xf]
    %v5775 = vld [vmem:[#allocation17 + $0x114] sm:$0xf]
    %v5776 = vld [vmem:[#allocation17 + $0x118] sm:$0xf]
    %v5777 = vld [vmem:[#allocation17 + $0x11c] sm:$0xf]
    %v5778 = vld [vmem:[#allocation17 + $0x120] sm:$0xf]
    %v5779 = vld [vmem:[#allocation17 + $0x124] sm:$0xf]
    %v5780 = vld [vmem:[#allocation17 + $0x128] sm:$0xf]
    %v5781 = vld [vmem:[#allocation17 + $0x12c] sm:$0xf]
    %v5782 = vld [vmem:[#allocation17 + $0x130] sm:$0xf]
    %v5783 = vld [vmem:[#allocation17 + $0x134] sm:$0xf]
    %v5784 = vld [vmem:[#allocation17 + $0x138] sm:$0xf]
    %v5785 = vld [vmem:[#allocation17 + $0x13c] sm:$0xf]
    %v5786 = vld [vmem:[#allocation17 + $0x140] sm:$0xf]
    %v5787 = vld [vmem:[#allocation17 + $0x144] sm:$0xf]
    %v5788 = vld [vmem:[#allocation17 + $0x148] sm:$0xf]
    %v5789 = vld [vmem:[#allocation17 + $0x14c] sm:$0xf]
    %v5790 = vld [vmem:[#allocation17 + $0x150] sm:$0xf]
    %v5791 = vld [vmem:[#allocation17 + $0x154] sm:$0xf]
    %v5792 = vld [vmem:[#allocation17 + $0x158] sm:$0xf]
    %v5793 = vld [vmem:[#allocation17 + $0x15c] sm:$0xf]
    %v5794 = vld [vmem:[#allocation17 + $0x160] sm:$0xf]
    %v5795 = vld [vmem:[#allocation17 + $0x164] sm:$0xf]
    %v5796 = vld [vmem:[#allocation17 + $0x168] sm:$0xf]
    %v5797 = vld [vmem:[#allocation17 + $0x16c] sm:$0xf]
    %v5798 = vld [vmem:[#allocation17 + $0x170] sm:$0xf]
    %v5799 = vld [vmem:[#allocation17 + $0x174] sm:$0xf]
    %v5800 = vld [vmem:[#allocation17 + $0x178] sm:$0xf]
    %v5801 = vld [vmem:[#allocation17 + $0x17c] sm:$0xf]
    %v5802 = vld [vmem:[#allocation17 + $0x180] sm:$0xf]
    %v5803 = vld [vmem:[#allocation17 + $0x184] sm:$0xf]
    %v5804 = vld [vmem:[#allocation17 + $0x188] sm:$0xf]
    %v5805 = vld [vmem:[#allocation17 + $0x18c] sm:$0xf]
    %v5806 = vld [vmem:[#allocation17 + $0x190] sm:$0xf]
    %v5807 = vld [vmem:[#allocation17 + $0x194] sm:$0xf]
    %v5808 = vld [vmem:[#allocation17 + $0x198] sm:$0xf]
    %v5809 = vld [vmem:[#allocation17 + $0x19c] sm:$0xf]
    %v5810 = vld [vmem:[#allocation17 + $0x1a0] sm:$0xf]
    %v5811 = vld [vmem:[#allocation17 + $0x1a4] sm:$0xf]
    %v5812 = vld [vmem:[#allocation17 + $0x1a8] sm:$0xf]
    %v5813 = vld [vmem:[#allocation17 + $0x1ac] sm:$0xf]
    %v5814 = vld [vmem:[#allocation17 + $0x1b0] sm:$0xf]
    %v5815 = vld [vmem:[#allocation17 + $0x1b4] sm:$0xf]
    %v5816 = vld [vmem:[#allocation17 + $0x1b8] sm:$0xf]
    %v5817 = vld [vmem:[#allocation17 + $0x1bc] sm:$0xf]
    %v5818 = vld [vmem:[#allocation17 + $0x1c0] sm:$0xf]
    %v5819 = vld [vmem:[#allocation17 + $0x1c4] sm:$0xf]
    %v5820 = vld [vmem:[#allocation17 + $0x1c8] sm:$0xf]
    %v5821 = vld [vmem:[#allocation17 + $0x1cc] sm:$0xf]
    %v5822 = vld [vmem:[#allocation17 + $0x1d0] sm:$0xf]
    %v5823 = vld [vmem:[#allocation17 + $0x1d4] sm:$0xf]
    %v5824 = vld [vmem:[#allocation17 + $0x1d8] sm:$0xf]
    %v5825 = vld [vmem:[#allocation17 + $0x1dc] sm:$0xf]
    %v5826 = vld [vmem:[#allocation17 + $0x1e0] sm:$0xf]
    %v5827 = vld [vmem:[#allocation17 + $0x1e4] sm:$0xf]
    %v5828 = vld [vmem:[#allocation17 + $0x1e8] sm:$0xf]
    %v5829 = vld [vmem:[#allocation17 + $0x1ec] sm:$0xf]
    %v5830 = vld [vmem:[#allocation17 + $0x1f0] sm:$0xf]
    %v5831 = vld [vmem:[#allocation17 + $0x1f4] sm:$0xf]
    %v5832 = vld [vmem:[#allocation17 + $0x1f8] sm:$0xf]
    %v5833 = vld [vmem:[#allocation17 + $0x1fc] sm:$0xf]
    %v5834 = vld [vmem:[#allocation19] sm:$0x1]
    %v5836 = vlaneseq
    %v5837 = vshrl.u32 %v5836, 7
    %v5838 = vsub.s32 0, %v5837
    %v5839 = vrot.slane %v5834, %v5838
    %v5969 = vunpack.c.l.b16 %v5706
    %v5970 = vunpack.c.l.b16 %v5707
    %v5971 = vunpack.c.l.b16 %v5708
    %v5972 = vunpack.c.l.b16 %v5709
    %v5973 = vunpack.c.l.b16 %v5710
    %v5974 = vunpack.c.l.b16 %v5711
    %v5975 = vunpack.c.l.b16 %v5712
    %v5976 = vunpack.c.l.b16 %v5713
    %v5977 = vunpack.c.l.b16 %v5714
    %v5978 = vunpack.c.l.b16 %v5715
    %v5979 = vunpack.c.l.b16 %v5716
    %v5980 = vunpack.c.l.b16 %v5717
    %v5981 = vunpack.c.l.b16 %v5718
    %v5982 = vunpack.c.l.b16 %v5719
    %v5983 = vunpack.c.l.b16 %v5720
    %v5984 = vunpack.c.l.b16 %v5721
    %v5985 = vunpack.c.l.b16 %v5722
    %v5986 = vunpack.c.l.b16 %v5723
    %v5987 = vunpack.c.l.b16 %v5724
    %v5988 = vunpack.c.l.b16 %v5725
    %v5989 = vunpack.c.l.b16 %v5726
    %v5990 = vunpack.c.l.b16 %v5727
    %v5991 = vunpack.c.l.b16 %v5728
    %v5992 = vunpack.c.l.b16 %v5729
    %v5993 = vunpack.c.l.b16 %v5730
    %v5994 = vunpack.c.l.b16 %v5731
    %v5995 = vunpack.c.l.b16 %v5732
    %v5996 = vunpack.c.l.b16 %v5733
    %v5997 = vunpack.c.l.b16 %v5734
    %v5998 = vunpack.c.l.b16 %v5735
    %v5999 = vunpack.c.l.b16 %v5736
    %v6000 = vunpack.c.l.b16 %v5737
    %v6001 = vunpack.c.l.b16 %v5738
    %v6002 = vunpack.c.l.b16 %v5739
    %v6003 = vunpack.c.l.b16 %v5740
    %v6004 = vunpack.c.l.b16 %v5741
    %v6005 = vunpack.c.l.b16 %v5742
    %v6006 = vunpack.c.l.b16 %v5743
    %v6007 = vunpack.c.l.b16 %v5744
    %v6008 = vunpack.c.l.b16 %v5745
    %v6009 = vunpack.c.l.b16 %v5746
    %v6010 = vunpack.c.l.b16 %v5747
    %v6011 = vunpack.c.l.b16 %v5748
    %v6012 = vunpack.c.l.b16 %v5749
    %v6013 = vunpack.c.l.b16 %v5750
    %v6014 = vunpack.c.l.b16 %v5751
    %v6015 = vunpack.c.l.b16 %v5752
    %v6016 = vunpack.c.l.b16 %v5753
    %v6017 = vunpack.c.l.b16 %v5754
    %v6018 = vunpack.c.l.b16 %v5755
    %v6019 = vunpack.c.l.b16 %v5756
    %v6020 = vunpack.c.l.b16 %v5757
    %v6021 = vunpack.c.l.b16 %v5758
    %v6022 = vunpack.c.l.b16 %v5759
    %v6023 = vunpack.c.l.b16 %v5760
    %v6024 = vunpack.c.l.b16 %v5761
    %v6025 = vunpack.c.l.b16 %v5762
    %v6026 = vunpack.c.l.b16 %v5763
    %v6027 = vunpack.c.l.b16 %v5764
    %v6028 = vunpack.c.l.b16 %v5765
    %v6029 = vunpack.c.l.b16 %v5766
    %v6030 = vunpack.c.l.b16 %v5767
    %v6031 = vunpack.c.l.b16 %v5768
    %v6032 = vunpack.c.l.b16 %v5769
    %v6033 = vunpack.c.l.b16 %v5770
    %v6034 = vunpack.c.l.b16 %v5771
    %v6035 = vunpack.c.l.b16 %v5772
    %v6036 = vunpack.c.l.b16 %v5773
    %v6037 = vunpack.c.l.b16 %v5774
    %v6038 = vunpack.c.l.b16 %v5775
    %v6039 = vunpack.c.l.b16 %v5776
    %v6040 = vunpack.c.l.b16 %v5777
    %v6041 = vunpack.c.l.b16 %v5778
    %v6042 = vunpack.c.l.b16 %v5779
    %v6043 = vunpack.c.l.b16 %v5780
    %v6044 = vunpack.c.l.b16 %v5781
    %v6045 = vunpack.c.l.b16 %v5782
    %v6046 = vunpack.c.l.b16 %v5783
    %v6047 = vunpack.c.l.b16 %v5784
    %v6048 = vunpack.c.l.b16 %v5785
    %v6049 = vunpack.c.l.b16 %v5786
    %v6050 = vunpack.c.l.b16 %v5787
    %v6051 = vunpack.c.l.b16 %v5788
    %v6052 = vunpack.c.l.b16 %v5789
    %v6053 = vunpack.c.l.b16 %v5790
    %v6054 = vunpack.c.l.b16 %v5791
    %v6055 = vunpack.c.l.b16 %v5792
    %v6056 = vunpack.c.l.b16 %v5793
    %v6057 = vunpack.c.l.b16 %v5794
    %v6058 = vunpack.c.l.b16 %v5795
    %v6059 = vunpack.c.l.b16 %v5796
    %v6060 = vunpack.c.l.b16 %v5797
    %v6061 = vunpack.c.l.b16 %v5798
    %v6062 = vunpack.c.l.b16 %v5799
    %v6063 = vunpack.c.l.b16 %v5800
    %v6064 = vunpack.c.l.b16 %v5801
    %v6065 = vunpack.c.l.b16 %v5802
    %v6066 = vunpack.c.l.b16 %v5803
    %v6067 = vunpack.c.l.b16 %v5804
    %v6068 = vunpack.c.l.b16 %v5805
    %v6069 = vunpack.c.l.b16 %v5806
    %v6070 = vunpack.c.l.b16 %v5807
    %v6071 = vunpack.c.l.b16 %v5808
    %v6072 = vunpack.c.l.b16 %v5809
    %v6073 = vunpack.c.l.b16 %v5810
    %v6074 = vunpack.c.l.b16 %v5811
    %v6075 = vunpack.c.l.b16 %v5812
    %v6076 = vunpack.c.l.b16 %v5813
    %v6077 = vunpack.c.l.b16 %v5814
    %v6078 = vunpack.c.l.b16 %v5815
    %v6079 = vunpack.c.l.b16 %v5816
    %v6080 = vunpack.c.l.b16 %v5817
    %v6081 = vunpack.c.l.b16 %v5818
    %v6082 = vunpack.c.l.b16 %v5819
    %v6083 = vunpack.c.l.b16 %v5820
    %v6084 = vunpack.c.l.b16 %v5821
    %v6085 = vunpack.c.l.b16 %v5822
    %v6086 = vunpack.c.l.b16 %v5823
    %v6087 = vunpack.c.l.b16 %v5824
    %v6088 = vunpack.c.l.b16 %v5825
    %v6089 = vunpack.c.l.b16 %v5826
    %v6090 = vunpack.c.l.b16 %v5827
    %v6091 = vunpack.c.l.b16 %v5828
    %v6092 = vunpack.c.l.b16 %v5829
    %v6093 = vunpack.c.l.b16 %v5830
    %v6094 = vunpack.c.l.b16 %v5831
    %v6095 = vunpack.c.l.b16 %v5832
    %v6096 = vunpack.c.l.b16 %v5833
    %v6097 = vpack.c.b16 %v5970, %v5969
    %v6098 = vpack.c.b16 %v5972, %v5971
    %v6099 = vpack.c.b16 %v5974, %v5973
    %v6100 = vpack.c.b16 %v5976, %v5975
    %v6101 = vpack.c.b16 %v5978, %v5977
    %v6102 = vpack.c.b16 %v5980, %v5979
    %v6103 = vpack.c.b16 %v5982, %v5981
    %v6104 = vpack.c.b16 %v5984, %v5983
    %v6105 = vpack.c.b16 %v5986, %v5985
    %v6106 = vpack.c.b16 %v5988, %v5987
    %v6107 = vpack.c.b16 %v5990, %v5989
    %v6108 = vpack.c.b16 %v5992, %v5991
    %v6109 = vpack.c.b16 %v5994, %v5993
    %v6110 = vpack.c.b16 %v5996, %v5995
    %v6111 = vpack.c.b16 %v5998, %v5997
    %v6112 = vpack.c.b16 %v6000, %v5999
    %v6113 = vpack.c.b16 %v6002, %v6001
    %v6114 = vpack.c.b16 %v6004, %v6003
    %v6115 = vpack.c.b16 %v6006, %v6005
    %v6116 = vpack.c.b16 %v6008, %v6007
    %v6117 = vpack.c.b16 %v6010, %v6009
    %v6118 = vpack.c.b16 %v6012, %v6011
    %v6119 = vpack.c.b16 %v6014, %v6013
    %v6120 = vpack.c.b16 %v6016, %v6015
    %v6121 = vpack.c.b16 %v6018, %v6017
    %v6122 = vpack.c.b16 %v6020, %v6019
    %v6123 = vpack.c.b16 %v6022, %v6021
    %v6124 = vpack.c.b16 %v6024, %v6023
    %v6125 = vpack.c.b16 %v6026, %v6025
    %v6126 = vpack.c.b16 %v6028, %v6027
    %v6127 = vpack.c.b16 %v6030, %v6029
    %v6128 = vpack.c.b16 %v6032, %v6031
    %v6129 = vpack.c.b16 %v6034, %v6033
    %v6130 = vpack.c.b16 %v6036, %v6035
    %v6131 = vpack.c.b16 %v6038, %v6037
    %v6132 = vpack.c.b16 %v6040, %v6039
    %v6133 = vpack.c.b16 %v6042, %v6041
    %v6134 = vpack.c.b16 %v6044, %v6043
    %v6135 = vpack.c.b16 %v6046, %v6045
    %v6136 = vpack.c.b16 %v6048, %v6047
    %v6137 = vpack.c.b16 %v6050, %v6049
    %v6138 = vpack.c.b16 %v6052, %v6051
    %v6139 = vpack.c.b16 %v6054, %v6053
    %v6140 = vpack.c.b16 %v6056, %v6055
    %v6141 = vpack.c.b16 %v6058, %v6057
    %v6142 = vpack.c.b16 %v6060, %v6059
    %v6143 = vpack.c.b16 %v6062, %v6061
    %v6144 = vpack.c.b16 %v6064, %v6063
    %v6145 = vpack.c.b16 %v6066, %v6065
    %v6146 = vpack.c.b16 %v6068, %v6067
    %v6147 = vpack.c.b16 %v6070, %v6069
    %v6148 = vpack.c.b16 %v6072, %v6071
    %v6149 = vpack.c.b16 %v6074, %v6073
    %v6150 = vpack.c.b16 %v6076, %v6075
    %v6151 = vpack.c.b16 %v6078, %v6077
    %v6152 = vpack.c.b16 %v6080, %v6079
    %v6153 = vpack.c.b16 %v6082, %v6081
    %v6154 = vpack.c.b16 %v6084, %v6083
    %v6155 = vpack.c.b16 %v6086, %v6085
    %v6156 = vpack.c.b16 %v6088, %v6087
    %v6157 = vpack.c.b16 %v6090, %v6089
    %v6158 = vpack.c.b16 %v6092, %v6091
    %v6159 = vpack.c.b16 %v6094, %v6093
    %v6160 = vpack.c.b16 %v6096, %v6095
    %6225 = vmatprep.subr.bf16.mxu0 0
    %6226 = vmatpush1.bf16.msra.mxu0 %v6097
    %6227 = vmatprep.subr.bf16.mxu0 0
    %6228 = vmatpush1.bf16.msra.mxu0 %v6098
    %6229 = vmatprep.subr.bf16.mxu0 0
    %6230 = vmatpush1.bf16.msra.mxu0 %v6099
    %6231 = vmatprep.subr.bf16.mxu0 0
    %6232 = vmatpush1.bf16.msra.mxu0 %v6100
    %6233 = vmatprep.subr.bf16.mxu0 0
    %6234 = vmatpush1.bf16.msra.mxu0 %v6101
    %6235 = vmatprep.subr.bf16.mxu0 0
    %6236 = vmatpush1.bf16.msra.mxu0 %v6102
    %6237 = vmatprep.subr.bf16.mxu0 0
    %6238 = vmatpush1.bf16.msra.mxu0 %v6103
    %6239 = vmatprep.subr.bf16.mxu0 0
    %6240 = vmatpush1.bf16.msra.mxu0 %v6104
    %6241 = vmatprep.subr.bf16.mxu0 0
    %6242 = vmatpush1.bf16.msra.mxu0 %v6105
    %6243 = vmatprep.subr.bf16.mxu0 0
    %6244 = vmatpush1.bf16.msra.mxu0 %v6106
    %6245 = vmatprep.subr.bf16.mxu0 0
    %6246 = vmatpush1.bf16.msra.mxu0 %v6107
    %6247 = vmatprep.subr.bf16.mxu0 0
    %6248 = vmatpush1.bf16.msra.mxu0 %v6108
    %6249 = vmatprep.subr.bf16.mxu0 0
    %6250 = vmatpush1.bf16.msra.mxu0 %v6109
    %6251 = vmatprep.subr.bf16.mxu0 0
    %6252 = vmatpush1.bf16.msra.mxu0 %v6110
    %6253 = vmatprep.subr.bf16.mxu0 0
    %6254 = vmatpush1.bf16.msra.mxu0 %v6111
    %6255 = vmatprep.subr.bf16.mxu0 0
    %6256 = vmatpush1.bf16.msra.mxu0 %v6112
    %6257 = vmatprep.mubr.bf16.mxu0 %v5699
    %6258 = vmatmul.mubr.bf16.gmra.mrb[0].mxu0 %v5698
    %v6259 = vpop.f32.mrb[0].mxu0
    %v6260 = vadd.f32 %v5839, %v6259
    %v6261 = vpop.f32.mrb[0].mxu0
    %v6262 = vpop.f32.mrb[0].mxu0
    %v6263 = vpop.f32.mrb[0].mxu0
    %6264 = vdwg.mxu0
    %6265 = vmatprep.subr.bf16.mxu0 0
    %6266 = vmatpush1.bf16.msra.mxu0 %v6113
    %6267 = vmatprep.subr.bf16.mxu0 0
    %6268 = vmatpush1.bf16.msra.mxu0 %v6114
    %6269 = vmatprep.subr.bf16.mxu0 0
    %6270 = vmatpush1.bf16.msra.mxu0 %v6115
    %6271 = vmatprep.subr.bf16.mxu0 0
    %6272 = vmatpush1.bf16.msra.mxu0 %v6116
    %6273 = vmatprep.subr.bf16.mxu0 0
    %6274 = vmatpush1.bf16.msra.mxu0 %v6117
    %6275 = vmatprep.subr.bf16.mxu0 0
    %6276 = vmatpush1.bf16.msra.mxu0 %v6118
    %6277 = vmatprep.subr.bf16.mxu0 0
    %6278 = vmatpush1.bf16.msra.mxu0 %v6119
    %6279 = vmatprep.subr.bf16.mxu0 0
    %6280 = vmatpush1.bf16.msra.mxu0 %v6120
    %6281 = vmatprep.subr.bf16.mxu0 0
    %6282 = vmatpush1.bf16.msra.mxu0 %v6121
    %6283 = vmatprep.subr.bf16.mxu0 0
    %6284 = vmatpush1.bf16.msra.mxu0 %v6122
    %6285 = vmatprep.subr.bf16.mxu0 0
    %6286 = vmatpush1.bf16.msra.mxu0 %v6123
    %6287 = vmatprep.subr.bf16.mxu0 0
    %6288 = vmatpush1.bf16.msra.mxu0 %v6124
    %6289 = vmatprep.subr.bf16.mxu0 0
    %6290 = vmatpush1.bf16.msra.mxu0 %v6125
    %6291 = vmatprep.subr.bf16.mxu0 0
    %6292 = vmatpush1.bf16.msra.mxu0 %v6126
    %6293 = vmatprep.subr.bf16.mxu0 0
    %6294 = vmatpush1.bf16.msra.mxu0 %v6127
    %6295 = vmatprep.subr.bf16.mxu0 0
    %6296 = vmatpush1.bf16.msra.mxu0 %v6128
    %6297 = vmatprep.mubr.bf16.mxu0 %v5701
    %6298 = vmatmul.mubr.bf16.gmra.mrb[0].mxu0 %v5700
    %v6299 = vpop.f32.mrb[0].mxu0
    %v6300 = vadd.f32 %v6260, %v6299
    %v6301 = vpop.f32.mrb[0].mxu0
    %v6302 = vpop.f32.mrb[0].mxu0
    %v6303 = vpop.f32.mrb[0].mxu0
    %6304 = vdwg.mxu0
    %6305 = vmatprep.subr.bf16.mxu0 0
    %6306 = vmatpush1.bf16.msra.mxu0 %v6129
    %6307 = vmatprep.subr.bf16.mxu0 0
    %6308 = vmatpush1.bf16.msra.mxu0 %v6130
    %6309 = vmatprep.subr.bf16.mxu0 0
    %6310 = vmatpush1.bf16.msra.mxu0 %v6131
    %6311 = vmatprep.subr.bf16.mxu0 0
    %6312 = vmatpush1.bf16.msra.mxu0 %v6132
    %6313 = vmatprep.subr.bf16.mxu0 0
    %6314 = vmatpush1.bf16.msra.mxu0 %v6133
    %6315 = vmatprep.subr.bf16.mxu0 0
    %6316 = vmatpush1.bf16.msra.mxu0 %v6134
    %6317 = vmatprep.subr.bf16.mxu0 0
    %6318 = vmatpush1.bf16.msra.mxu0 %v6135
    %6319 = vmatprep.subr.bf16.mxu0 0
    %6320 = vmatpush1.bf16.msra.mxu0 %v6136
    %6321 = vmatprep.subr.bf16.mxu0 0
    %6322 = vmatpush1.bf16.msra.mxu0 %v6137
    %6323 = vmatprep.subr.bf16.mxu0 0
    %6324 = vmatpush1.bf16.msra.mxu0 %v6138
    %6325 = vmatprep.subr.bf16.mxu0 0
    %6326 = vmatpush1.bf16.msra.mxu0 %v6139
    %6327 = vmatprep.subr.bf16.mxu0 0
    %6328 = vmatpush1.bf16.msra.mxu0 %v6140
    %6329 = vmatprep.subr.bf16.mxu0 0
    %6330 = vmatpush1.bf16.msra.mxu0 %v6141
    %6331 = vmatprep.subr.bf16.mxu0 0
    %6332 = vmatpush1.bf16.msra.mxu0 %v6142
    %6333 = vmatprep.subr.bf16.mxu0 0
    %6334 = vmatpush1.bf16.msra.mxu0 %v6143
    %6335 = vmatprep.subr.bf16.mxu0 0
    %6336 = vmatpush1.bf16.msra.mxu0 %v6144
    %6337 = vmatprep.mubr.bf16.mxu0 %v5703
    %6338 = vmatmul.mubr.bf16.gmra.mrb[0].mxu0 %v5702
    %v6339 = vpop.f32.mrb[0].mxu0
    %v6340 = vadd.f32 %v6300, %v6339
    %v6341 = vpop.f32.mrb[0].mxu0
    %v6342 = vpop.f32.mrb[0].mxu0
    %v6343 = vpop.f32.mrb[0].mxu0
    %6344 = vdwg.mxu0
    %6345 = vmatprep.subr.bf16.mxu0 0
    %6346 = vmatpush1.bf16.msra.mxu0 %v6145
    %6347 = vmatprep.subr.bf16.mxu0 0
    %6348 = vmatpush1.bf16.msra.mxu0 %v6146
    %6349 = vmatprep.subr.bf16.mxu0 0
    %6350 = vmatpush1.bf16.msra.mxu0 %v6147
    %6351 = vmatprep.subr.bf16.mxu0 0
    %6352 = vmatpush1.bf16.msra.mxu0 %v6148
    %6353 = vmatprep.subr.bf16.mxu0 0
    %6354 = vmatpush1.bf16.msra.mxu0 %v6149
    %6355 = vmatprep.subr.bf16.mxu0 0
    %6356 = vmatpush1.bf16.msra.mxu0 %v6150
    %6357 = vmatprep.subr.bf16.mxu0 0
    %6358 = vmatpush1.bf16.msra.mxu0 %v6151
    %6359 = vmatprep.subr.bf16.mxu0 0
    %6360 = vmatpush1.bf16.msra.mxu0 %v6152
    %6361 = vmatprep.subr.bf16.mxu0 0
    %6362 = vmatpush1.bf16.msra.mxu0 %v6153
    %6363 = vmatprep.subr.bf16.mxu0 0
    %6364 = vmatpush1.bf16.msra.mxu0 %v6154
    %6365 = vmatprep.subr.bf16.mxu0 0
    %6366 = vmatpush1.bf16.msra.mxu0 %v6155
    %6367 = vmatprep.subr.bf16.mxu0 0
    %6368 = vmatpush1.bf16.msra.mxu0 %v6156
    %6369 = vmatprep.subr.bf16.mxu0 0
    %6370 = vmatpush1.bf16.msra.mxu0 %v6157
    %6371 = vmatprep.subr.bf16.mxu0 0
    %6372 = vmatpush1.bf16.msra.mxu0 %v6158
    %6373 = vmatprep.subr.bf16.mxu0 0
    %6374 = vmatpush1.bf16.msra.mxu0 %v6159
    %6375 = vmatprep.subr.bf16.mxu0 0
    %6376 = vmatpush1.bf16.msra.mxu0 %v6160
    %6377 = vmatprep.mubr.bf16.mxu0 %v5705
    %6378 = vmatmul.mubr.bf16.gmra.mrb[0].mxu0 %v5704
    %v6379 = vpop.f32.mrb[0].mxu0
    %v6380 = vadd.f32 %v6340, %v6379
    %v6381 = vpop.f32.mrb[0].mxu0
    %v6382 = vpop.f32.mrb[0].mxu0
    %v6383 = vpop.f32.mrb[0].mxu0
    %6384 = vdwg.mxu0
    %6385 = vst [vmem:[#allocation20] sm:$0xff] %v6380
    // Predicated region
    $region90: #{tpu_custom_call.1} parent=1 // pred_check
      _
    $region91: #{tpu_custom_call.1} parent=1 // pred_check_branch
      %6387 = sbr.rel (0) target = $region93
    $region92: #{tpu_custom_call.1} parent=1 // pred_region
      %s6389 = ssub.s32 128, 128
      %6390 = vsyncadd [#allocation4], %s6389
      %s6392 = sshll.u32 [#allocation20], 4
      %s6393 = int_to_ptr.vmem [resolvable:$true] %s6392
      %6395 = dma.vmem_to_hbm [thread:$0]  %s6393, 128, %s11, [#allocation4]
    $region93: #{tpu_custom_call.1} parent=1 // pred_fallthru
      _
    // Predicated region
    $region94: #{tpu_custom_call.1} parent=1 // pred_check
      _
    $region95: #{tpu_custom_call.1} parent=1 // pred_check_branch
      %6397 = sbr.rel (0) target = $region97
    $region96: #{tpu_custom_call.1} parent=1 // pred_region
      %6398 = dma.done [#allocation4], 128
    $region97: #{tpu_custom_call.1} parent=1 // pred_fallthru
      _
    %6399 = vsyncpa [#allocation3], 1
    %6400 = vsyncpa [#allocation6], 1
    %6401 = vsyncpa [#allocation9], 1
    %6402 = vsyncpa [#allocation12], 1
    %6403 = vsyncpa [#allocation15], 1
    %6404 = vsyncpa [#allocation18], 1
    %6405 = vsyncpa [#allocation4], 1

</llo_original>
